<compile_context>
chip_gen: v6e
topology: v6e:2x2x1
jax: 0.10.0
libtpu: 0.0.40
codegen_flags: <defaults>
</compile_context>

<pallas_src>
import math
from functools import partial

import numpy as np

import jax
import jax.numpy as jnp
from jax.experimental import pallas as pl
from jax.experimental.pallas import tpu as pltpu

TWO_PI = 2.0 * math.pi
SQRT_2_OVER_PI = math.sqrt(2.0 / math.pi)
GELU_C = 0.044715


# ----------------------------- in-kernel math ------------------------------ #
def _gelu(x):
    # tanh-approx GELU (EUP tanh); |err| vs exact erf-GELU ~1e-3, within tol.
    return 0.5 * x * (1.0 + jnp.tanh(SQRT_2_OVER_PI * (x + GELU_C * x * x * x)))


def _sigmoid(x):
    # exp + approx reciprocal both ride the EUP slot.
    return pl.reciprocal(1.0 + jnp.exp(-x), approx=True)


def _dot(a, w_ref):
    # bf16 operands at the MXU, f32 accumulation.
    return jnp.dot(a.astype(jnp.bfloat16), w_ref[...],
                   preferred_element_type=jnp.float32)


# --------------------------------- kernel ---------------------------------- #
def nerf_decoder_kernel(
    x_ref, c_ref,
    bt_ref, phase_ref,
    wx1_ref, bx1_ref, wx2_ref, bx2_ref, wx3_ref, bx3_ref,
    w45_ref, wj2_ref, bj2_ref, wj3_ref, bj3_ref,
    out_ref,
):
    # --- positional encoding via broadcasted VPU FMAs (f32), phase trick ---
    # bt rows are already scaled by 2*pi; cos(v + [0|-pi/2]) == [cos(v)|sin(v)]
    x = x_ref[...]                                      # (T, in_dim) f32
    in_dim = x_ref.shape[1]
    ang = x[:, 0:1] * bt_ref[0:1, :]                    # (T, 2m)
    for d in range(1, in_dim):
        ang = ang + x[:, d:d + 1] * bt_ref[d:d + 1, :]
    pe = jnp.cos(ang + phase_ref[...])                  # (T, 2m) == [cos | sin]

    # --- mlp_x branch (bf16 matmuls, f32 accumulation / activations) ---
    h = _gelu(_dot(pe, wx1_ref) + bx1_ref[...])
    h = _gelu(_dot(h, wx2_ref) + bx2_ref[...])
    h = _gelu(_dot(h, wx3_ref) + bx3_ref[...])

    # --- joint MLP.  Wx4 o Wj1[:128] folded into one (256,256) matmul; the z
    #     contribution zf@Wj1[128:] + bj1 + bx4@Wj1[:128] arrives as c (1,256).
    j = _gelu(_dot(h, w45_ref) + c_ref[...])
    j = _gelu(_dot(j, wj2_ref) + bj2_ref[...])
    j = _dot(j, wj3_ref) + bj3_ref[...]                  # (T, 128) zero-padded
    out_ref[...] = _sigmoid(j).astype(out_ref.dtype)     # bf16 lane-dense store


# ------------------------------ parameter init ----------------------------- #
def init_params(key, latent_dim=64, input_dim=2, output_dim=1, pe_var=10.0):
    """Deterministic synthetic parameters with the module's shapes.
    Linear weights stored as (in, out) so y = x @ W + b."""
    ks = iter(jax.random.split(key, 32))

    def lin(fan_in, fan_out):
        w = jax.random.normal(next(ks), (fan_in, fan_out), jnp.float32) / np.sqrt(fan_in)
        b = jax.random.normal(next(ks), (1, fan_out), jnp.float32) * 0.01
        return w, b

    m = latent_dim // 2
    B = pe_var * jax.random.normal(next(ks), (m, input_dim), jnp.float32)  # Normal(0, pe_var)

    p = {"B": B}
    p["wx1"], p["bx1"] = lin(latent_dim, 256)
    p["wx2"], p["bx2"] = lin(256, 256)
    p["wx3"], p["bx3"] = lin(256, 256)
    p["wx4"], p["bx4"] = lin(256, 128)
    p["wz1"], p["bz1"] = lin(latent_dim, 4 * latent_dim)
    p["wz2"], p["bz2"] = lin(4 * latent_dim, 4 * latent_dim)
    p["wz3"], p["bz3"] = lin(4 * latent_dim, 4 * latent_dim)
    p["wz4"], p["bz4"] = lin(4 * latent_dim, 128)
    p["wj1"], p["bj1"] = lin(256, 256)
    p["wj2"], p["bj2"] = lin(256, 256)
    p["wj3"], p["bj3"] = lin(256, output_dim)
    return p


# ------------------------ one-time weight repacking ------------------------- #
def prepare_params(params, pe_interleave=True):
    """Repack weights for the kernel ONCE (outside the per-call jit):
    bf16 casts, wx1 row permute for the [cos|sin] layout, Wx4 o Wj1[:128]
    fold (composed in f32, single bf16 cast), lane-dense wj3 padding."""
    f32, bf16 = jnp.float32, jnp.bfloat16
    hp = jax.lax.Precision.HIGHEST
    m, _ = params["B"].shape
    out_dim = params["wj3"].shape[-1]

    # PE rows pre-scaled by 2*pi; phase [0 | -pi/2] realizes [cos | sin].
    bt = (TWO_PI * params["B"].T).astype(f32)                       # (in_dim, m)
    bt2 = jnp.concatenate([bt, bt], axis=1)                         # (in_dim, 2m)
    phase = jnp.concatenate(
        [jnp.zeros((1, m), f32), jnp.full((1, m), -0.5 * math.pi, f32)], axis=1)

    wx1 = params["wx1"]
    wx1m = jnp.concatenate([wx1[0::2, :], wx1[1::2, :]], axis=0) if pe_interleave else wx1

    # Fold Wx4 o Wj1[:128] (no nonlinearity between them); compose in f32.
    w45 = jnp.dot(params["wx4"], params["wj1"][:128, :], precision=hp)       # (256,256)
    b45 = jnp.dot(params["bx4"], params["wj1"][:128, :], precision=hp) + params["bj1"]

    # Lane-dense output: zero-pad final layer to 128 output columns.
    out_pad = max(128, -(-out_dim // 128) * 128)
    wj3p = jnp.pad(params["wj3"], ((0, 0), (0, out_pad - out_dim)))
    bj3p = jnp.pad(params["bj3"], ((0, 0), (0, out_pad - out_dim)))

    consts = (
        bt2, phase,
        wx1m.astype(bf16), params["bx1"].astype(f32),
        params["wx2"].astype(bf16), params["bx2"].astype(f32),
        params["wx3"].astype(bf16), params["bx3"].astype(f32),
        w45.astype(bf16),
        params["wj2"].astype(bf16), params["bj2"].astype(f32),
        wj3p.astype(bf16), bj3p.astype(f32),
    )
    zparams = (params["wz1"], params["bz1"], params["wz2"], params["bz2"],
               params["wz3"], params["bz3"], params["wz4"], params["bz4"],
               params["wj1"][128:, :], b45.astype(f32))
    return consts, zparams, out_dim


def _pick_tile(hw, batch):
    # Biggest tile up to 1024 (amortizes ~0.35us/step overhead); multiple of
    # 256 rows.  For batch==1 keep >=2 parallel grid steps (v7x megacore).
    tile = min(1024, max(256, -(-hw // 256) * 256))
    if batch == 1 and -(-hw // tile) < 2 and tile >= 512:
        tile //= 2
    return tile


# --------------------------------- wrapper ---------------------------------- #
@partial(jax.jit, static_argnames=("out_dim",))
def nerf_decoder_forward(x, z, consts, zparams, out_dim):
    f32 = jnp.float32
    hp = jax.lax.Precision.HIGHEST
    gelu = lambda t: jax.nn.gelu(t, approximate=False)
    lin = lambda a, w, b: jnp.dot(a, w, precision=hp) + b

    (wz1, bz1, wz2, bz2, wz3, bz3, wz4, bz4, wj1z, b45) = zparams

    batch = x.shape[0]
    spatial = x.shape[1:-1]
    in_dim = x.shape[-1]
    hw = int(np.prod(spatial, dtype=np.int64)) if spatial else 1

    # --- hoisted mlp_z branch: per batch element, tiny, exact f32 ---
    g = gelu(lin(z.astype(f32), wz1, bz1))
    g = gelu(lin(g, wz2, bz2))
    g = gelu(lin(g, wz3, bz3))
    zf = lin(g, wz4, bz4)                                           # (batch, 128)
    # folded z half of joint layer 1 (+ bx4@Wj1[:128] + bj1 already in b45)
    c = (jnp.dot(zf, wj1z, precision=hp) + b45).astype(f32)         # (batch, 256)
    c3 = c.reshape(batch, 1, 256)

    # --- points-major x, padded along rows only ---
    tile = _pick_tile(hw, batch)
    hw_pad = -(-hw // tile) * tile
    x3 = x.reshape(batch, hw, in_dim).astype(f32)
    if hw_pad != hw:
        x3 = jnp.pad(x3, ((0, 0), (0, hw_pad - hw), (0, 0)))

    out_pad = consts[-1].shape[-1]                                   # 128

    grid = (batch, hw_pad // tile)
    x_spec = pl.BlockSpec((None, tile, in_dim), lambda b, i: (b, i, 0))
    c_spec = pl.BlockSpec((None, 1, 256), lambda b, i: (b, 0, 0))
    const_specs = [pl.BlockSpec(a.shape, lambda b, i: (0, 0)) for a in consts]
    out_spec = pl.BlockSpec((None, tile, out_pad), lambda b, i: (b, i, 0))

    macs_per_point = 64 * 256 + 4 * 256 * 256 + 256 * out_pad
    weight_bytes = sum(int(a.size) * a.dtype.itemsize for a in consts)
    cost = pl.CostEstimate(
        flops=2 * batch * hw_pad * macs_per_point,
        transcendentals=batch * hw_pad * (5 * 256 + 64 + out_pad),
        bytes_accessed=int(x3.size) * 4 + batch * hw_pad * out_pad * 2 + weight_bytes,
    )

    out = pl.pallas_call(
        nerf_decoder_kernel,
        out_shape=jax.ShapeDtypeStruct((batch, hw_pad, out_pad), jnp.bfloat16),
        grid=grid,
        in_specs=[x_spec, c_spec] + const_specs,
        out_specs=out_spec,
        cost_estimate=cost,
        compiler_params=pltpu.CompilerParams(
            dimension_semantics=("parallel", "parallel")),
    )(x3, c3, *consts)

    out = out[:, :hw, :out_dim].astype(f32)
    return out.reshape((batch,) + spatial + (out_dim,))


# ------------------------- pure-JAX reference (check) ----------------------- #
def reference_forward(x, z, params, pe_interleave=True):
    hp = jax.lax.Precision.HIGHEST
    v = jnp.einsum("ij,...j->...i", params["B"], x, precision=hp)
    cos_v = jnp.cos(TWO_PI * v)
    sin_v = jnp.sin(TWO_PI * v)
    if pe_interleave:
        v = jnp.stack([cos_v, sin_v], axis=-1).reshape(v.shape[:-1] + (-1,))
    else:
        v = jnp.concatenate([cos_v, sin_v], axis=-1)

    def lin(h, w, b):
        return jnp.matmul(h, w, precision=hp) + b[0]

    gelu = lambda t: jax.nn.gelu(t, approximate=False)
    h = gelu(lin(v, params["wx1"], params["bx1"]))
    h = gelu(lin(h, params["wx2"], params["bx2"]))
    h = gelu(lin(h, params["wx3"], params["bx3"]))
    vf = lin(h, params["wx4"], params["bx4"])

    g = gelu(lin(z, params["wz1"], params["bz1"]))
    g = gelu(lin(g, params["wz2"], params["bz2"]))
    g = gelu(lin(g, params["wz3"], params["bz3"]))
    zf = lin(g, params["wz4"], params["bz4"])

    zf = jnp.broadcast_to(
        zf.reshape((zf.shape[0],) + (1,) * (vf.ndim - 2) + (zf.shape[-1],)),
        vf.shape[:-1] + (zf.shape[-1],),
    )
    j = jnp.concatenate([vf, zf], axis=-1)
    j = gelu(lin(j, params["wj1"], params["bj1"]))
    j = gelu(lin(j, params["wj2"], params["bj2"]))
    j = lin(j, params["wj3"], params["bj3"])
    return jax.nn.sigmoid(j)


# ----------------------------------- main ----------------------------------- #
if __name__ == "__main__":
    key = jax.random.PRNGKey(0)
    kp, kx, kz = jax.random.split(key, 3)

    latent_dim, input_dim, output_dim = 64, 2, 1
    params = init_params(kp, latent_dim, input_dim, output_dim, pe_var=10.0)

    batch, H, W = 2, 16, 16
    x = jax.random.uniform(kx, (batch, H, W, input_dim), jnp.float32)
    z = jax.random.normal(kz, (batch, latent_dim), jnp.float32)

    # one-time weight repack (cached outside the jitted forward)
    consts, zparams, out_dim = prepare_params(params)
    consts = jax.tree_util.tree_map(jax.block_until_ready, consts)

    out = jax.block_until_ready(nerf_decoder_forward(x, z, consts, zparams, out_dim))
    assert out.shape == (batch, H, W, output_dim), out.shape

    ref = jax.block_until_ready(reference_forward(x, z, params))
    max_err = float(jnp.max(jnp.abs(out - ref)))
    if not (max_err < 2.5e-2):
        raise AssertionError(f"kernel/reference mismatch: max abs err = {max_err}")

    print("KERNEL_OK")
</pallas_src>

<mosaic_0001>
module attributes {stable_mosaic.version = 11 : i64} {
  func.func @nerf_decoder_kernel(%arg0: i32, %arg1: i32, %arg2: memref<1x256x2xf32, #tpu.memory_space<vmem>>, %arg3: memref<1x1x256xf32, #tpu.memory_space<vmem>>, %arg4: memref<2x64xf32, #tpu.memory_space<vmem>>, %arg5: memref<1x64xf32, #tpu.memory_space<vmem>>, %arg6: memref<64x256xbf16, #tpu.memory_space<vmem>>, %arg7: memref<1x256xf32, #tpu.memory_space<vmem>>, %arg8: memref<256x256xbf16, #tpu.memory_space<vmem>>, %arg9: memref<1x256xf32, #tpu.memory_space<vmem>>, %arg10: memref<256x256xbf16, #tpu.memory_space<vmem>>, %arg11: memref<1x256xf32, #tpu.memory_space<vmem>>, %arg12: memref<256x256xbf16, #tpu.memory_space<vmem>>, %arg13: memref<256x256xbf16, #tpu.memory_space<vmem>>, %arg14: memref<1x256xf32, #tpu.memory_space<vmem>>, %arg15: memref<256x128xbf16, #tpu.memory_space<vmem>>, %arg16: memref<1x128xf32, #tpu.memory_space<vmem>>, %arg17: memref<1x256x128xbf16, #tpu.memory_space<vmem>>) attributes {dimension_semantics = [#tpu.dimension_semantics<parallel>, #tpu.dimension_semantics<parallel>], iteration_bounds = array<i64: 2, 1>, scalar_prefetch = 0 : i64, scratch_operands = 0 : i64, tpu.core_type = #tpu.core_type<tc>, window_params = [{transform_indices = @transform_0, window_bounds = array<i64: 1, 256, 2>}, {transform_indices = @transform_1, window_bounds = array<i64: 1, 1, 256>}, {pipeline_mode = #tpu.pipeline_mode<synchronous>, transform_indices = @transform_2, window_bounds = array<i64: 2, 64>}, {pipeline_mode = #tpu.pipeline_mode<synchronous>, transform_indices = @transform_3, window_bounds = array<i64: 1, 64>}, {pipeline_mode = #tpu.pipeline_mode<synchronous>, transform_indices = @transform_4, window_bounds = array<i64: 64, 256>}, {pipeline_mode = #tpu.pipeline_mode<synchronous>, transform_indices = @transform_5, window_bounds = array<i64: 1, 256>}, {pipeline_mode = #tpu.pipeline_mode<synchronous>, transform_indices = @transform_6, window_bounds = array<i64: 256, 256>}, {pipeline_mode = #tpu.pipeline_mode<synchronous>, transform_indices = @transform_7, window_bounds = array<i64: 1, 256>}, {pipeline_mode = #tpu.pipeline_mode<synchronous>, transform_indices = @transform_8, window_bounds = array<i64: 256, 256>}, {pipeline_mode = #tpu.pipeline_mode<synchronous>, transform_indices = @transform_9, window_bounds = array<i64: 1, 256>}, {pipeline_mode = #tpu.pipeline_mode<synchronous>, transform_indices = @transform_10, window_bounds = array<i64: 256, 256>}, {pipeline_mode = #tpu.pipeline_mode<synchronous>, transform_indices = @transform_11, window_bounds = array<i64: 256, 256>}, {pipeline_mode = #tpu.pipeline_mode<synchronous>, transform_indices = @transform_12, window_bounds = array<i64: 1, 256>}, {pipeline_mode = #tpu.pipeline_mode<synchronous>, transform_indices = @transform_13, window_bounds = array<i64: 256, 128>}, {pipeline_mode = #tpu.pipeline_mode<synchronous>, transform_indices = @transform_14, window_bounds = array<i64: 1, 128>}, {transform_indices = @transform_15, window_bounds = array<i64: 1, 256, 128>}]} {
    %c0 = arith.constant 0 : index
    %c0_0 = arith.constant 0 : index
    %c0_1 = arith.constant 0 : index
    %0 = vector.load %arg2[%c0, %c0_0, %c0_1] : memref<1x256x2xf32, #tpu.memory_space<vmem>>, vector<1x256x2xf32>
    %1 = vector.shape_cast %0 : vector<1x256x2xf32> to vector<256x2xf32>
    %2 = vector.extract_strided_slice %1 {offsets = [0, 0], sizes = [256, 1], strides = [1, 1]} : vector<256x2xf32> to vector<256x1xf32>
    %c0_2 = arith.constant 0 : index
    %c0_3 = arith.constant 0 : index
    %3 = vector.load %arg4[%c0_2, %c0_3] : memref<2x64xf32, #tpu.memory_space<vmem>>, vector<1x64xf32>
    %4 = vector.broadcast %2 : vector<256x1xf32> to vector<256x64xf32>
    %5 = vector.broadcast %3 : vector<1x64xf32> to vector<256x64xf32>
    %6 = arith.mulf %4, %5 : vector<256x64xf32>
    %7 = vector.extract_strided_slice %1 {offsets = [0, 1], sizes = [256, 1], strides = [1, 1]} : vector<256x2xf32> to vector<256x1xf32>
    %c1 = arith.constant 1 : index
    %c0_4 = arith.constant 0 : index
    %8 = vector.load %arg4[%c1, %c0_4] : memref<2x64xf32, #tpu.memory_space<vmem>>, vector<1x64xf32>
    %9 = vector.broadcast %7 : vector<256x1xf32> to vector<256x64xf32>
    %10 = vector.broadcast %8 : vector<1x64xf32> to vector<256x64xf32>
    %11 = arith.mulf %9, %10 : vector<256x64xf32>
    %12 = arith.addf %6, %11 : vector<256x64xf32>
    %c0_5 = arith.constant 0 : index
    %c0_6 = arith.constant 0 : index
    %13 = vector.load %arg5[%c0_5, %c0_6] : memref<1x64xf32, #tpu.memory_space<vmem>>, vector<1x64xf32>
    %14 = vector.broadcast %13 : vector<1x64xf32> to vector<256x64xf32>
    %15 = arith.addf %12, %14 : vector<256x64xf32>
    %16 = math.cos %15 : vector<256x64xf32>
    %17 = arith.truncf %16 : vector<256x64xf32> to vector<256x64xbf16>
    %c0_7 = arith.constant 0 : index
    %c0_8 = arith.constant 0 : index
    %18 = vector.load %arg6[%c0_7, %c0_8] : memref<64x256xbf16, #tpu.memory_space<vmem>>, vector<64x256xbf16>
    %cst = arith.constant dense<0.000000e+00> : vector<256x256xf32>
    %19 = tpu.matmul %17, %18, %cst {dimension_numbers = #tpu.dot_dimension_numbers<[1], [0], [0], [1], [0, 0, 1, 1], [], []>} : vector<256x64xbf16>, vector<64x256xbf16>, vector<256x256xf32> -> vector<256x256xf32>
    %c0_9 = arith.constant 0 : index
    %c0_10 = arith.constant 0 : index
    %20 = vector.load %arg7[%c0_9, %c0_10] : memref<1x256xf32, #tpu.memory_space<vmem>>, vector<1x256xf32>
    %21 = vector.broadcast %20 : vector<1x256xf32> to vector<256x256xf32>
    %22 = arith.addf %19, %21 : vector<256x256xf32>
    %cst_11 = arith.constant 5.000000e-01 : f32
    %23 = vector.broadcast %cst_11 : f32 to vector<256x256xf32>
    %24 = arith.mulf %23, %22 : vector<256x256xf32>
    %cst_12 = arith.constant 4.471500e-02 : f32
    %25 = vector.broadcast %cst_12 : f32 to vector<256x256xf32>
    %26 = arith.mulf %25, %22 : vector<256x256xf32>
    %27 = arith.mulf %26, %22 : vector<256x256xf32>
    %28 = arith.mulf %27, %22 : vector<256x256xf32>
    %29 = arith.addf %22, %28 : vector<256x256xf32>
    %cst_13 = arith.constant 0.797884583 : f32
    %30 = vector.broadcast %cst_13 : f32 to vector<256x256xf32>
    %31 = arith.mulf %30, %29 : vector<256x256xf32>
    %32 = math.tanh %31 : vector<256x256xf32>
    %cst_14 = arith.constant 1.000000e+00 : f32
    %33 = vector.broadcast %cst_14 : f32 to vector<256x256xf32>
    %34 = arith.addf %33, %32 : vector<256x256xf32>
    %35 = arith.mulf %24, %34 : vector<256x256xf32>
    %36 = arith.truncf %35 : vector<256x256xf32> to vector<256x256xbf16>
    %c0_15 = arith.constant 0 : index
    %c0_16 = arith.constant 0 : index
    %37 = vector.load %arg8[%c0_15, %c0_16] : memref<256x256xbf16, #tpu.memory_space<vmem>>, vector<256x256xbf16>
    %cst_17 = arith.constant dense<0.000000e+00> : vector<256x256xf32>
    %38 = tpu.matmul %36, %37, %cst_17 {dimension_numbers = #tpu.dot_dimension_numbers<[1], [0], [0], [1], [0, 0, 1, 1], [], []>} : vector<256x256xbf16>, vector<256x256xbf16>, vector<256x256xf32> -> vector<256x256xf32>
    %c0_18 = arith.constant 0 : index
    %c0_19 = arith.constant 0 : index
    %39 = vector.load %arg9[%c0_18, %c0_19] : memref<1x256xf32, #tpu.memory_space<vmem>>, vector<1x256xf32>
    %40 = vector.broadcast %39 : vector<1x256xf32> to vector<256x256xf32>
    %41 = arith.addf %38, %40 : vector<256x256xf32>
    %cst_20 = arith.constant 5.000000e-01 : f32
    %42 = vector.broadcast %cst_20 : f32 to vector<256x256xf32>
    %43 = arith.mulf %42, %41 : vector<256x256xf32>
    %cst_21 = arith.constant 4.471500e-02 : f32
    %44 = vector.broadcast %cst_21 : f32 to vector<256x256xf32>
    %45 = arith.mulf %44, %41 : vector<256x256xf32>
    %46 = arith.mulf %45, %41 : vector<256x256xf32>
    %47 = arith.mulf %46, %41 : vector<256x256xf32>
    %48 = arith.addf %41, %47 : vector<256x256xf32>
    %cst_22 = arith.constant 0.797884583 : f32
    %49 = vector.broadcast %cst_22 : f32 to vector<256x256xf32>
    %50 = arith.mulf %49, %48 : vector<256x256xf32>
    %51 = math.tanh %50 : vector<256x256xf32>
    %cst_23 = arith.constant 1.000000e+00 : f32
    %52 = vector.broadcast %cst_23 : f32 to vector<256x256xf32>
    %53 = arith.addf %52, %51 : vector<256x256xf32>
    %54 = arith.mulf %43, %53 : vector<256x256xf32>
    %55 = arith.truncf %54 : vector<256x256xf32> to vector<256x256xbf16>
    %c0_24 = arith.constant 0 : index
    %c0_25 = arith.constant 0 : index
    %56 = vector.load %arg10[%c0_24, %c0_25] : memref<256x256xbf16, #tpu.memory_space<vmem>>, vector<256x256xbf16>
    %cst_26 = arith.constant dense<0.000000e+00> : vector<256x256xf32>
    %57 = tpu.matmul %55, %56, %cst_26 {dimension_numbers = #tpu.dot_dimension_numbers<[1], [0], [0], [1], [0, 0, 1, 1], [], []>} : vector<256x256xbf16>, vector<256x256xbf16>, vector<256x256xf32> -> vector<256x256xf32>
    %c0_27 = arith.constant 0 : index
    %c0_28 = arith.constant 0 : index
    %58 = vector.load %arg11[%c0_27, %c0_28] : memref<1x256xf32, #tpu.memory_space<vmem>>, vector<1x256xf32>
    %59 = vector.broadcast %58 : vector<1x256xf32> to vector<256x256xf32>
    %60 = arith.addf %57, %59 : vector<256x256xf32>
    %cst_29 = arith.constant 5.000000e-01 : f32
    %61 = vector.broadcast %cst_29 : f32 to vector<256x256xf32>
    %62 = arith.mulf %61, %60 : vector<256x256xf32>
    %cst_30 = arith.constant 4.471500e-02 : f32
    %63 = vector.broadcast %cst_30 : f32 to vector<256x256xf32>
    %64 = arith.mulf %63, %60 : vector<256x256xf32>
    %65 = arith.mulf %64, %60 : vector<256x256xf32>
    %66 = arith.mulf %65, %60 : vector<256x256xf32>
    %67 = arith.addf %60, %66 : vector<256x256xf32>
    %cst_31 = arith.constant 0.797884583 : f32
    %68 = vector.broadcast %cst_31 : f32 to vector<256x256xf32>
    %69 = arith.mulf %68, %67 : vector<256x256xf32>
    %70 = math.tanh %69 : vector<256x256xf32>
    %cst_32 = arith.constant 1.000000e+00 : f32
    %71 = vector.broadcast %cst_32 : f32 to vector<256x256xf32>
    %72 = arith.addf %71, %70 : vector<256x256xf32>
    %73 = arith.mulf %62, %72 : vector<256x256xf32>
    %74 = arith.truncf %73 : vector<256x256xf32> to vector<256x256xbf16>
    %c0_33 = arith.constant 0 : index
    %c0_34 = arith.constant 0 : index
    %75 = vector.load %arg12[%c0_33, %c0_34] : memref<256x256xbf16, #tpu.memory_space<vmem>>, vector<256x256xbf16>
    %cst_35 = arith.constant dense<0.000000e+00> : vector<256x256xf32>
    %76 = tpu.matmul %74, %75, %cst_35 {dimension_numbers = #tpu.dot_dimension_numbers<[1], [0], [0], [1], [0, 0, 1, 1], [], []>} : vector<256x256xbf16>, vector<256x256xbf16>, vector<256x256xf32> -> vector<256x256xf32>
    %c0_36 = arith.constant 0 : index
    %c0_37 = arith.constant 0 : index
    %c0_38 = arith.constant 0 : index
    %77 = vector.load %arg3[%c0_36, %c0_37, %c0_38] : memref<1x1x256xf32, #tpu.memory_space<vmem>>, vector<1x1x256xf32>
    %78 = vector.shape_cast %77 : vector<1x1x256xf32> to vector<1x256xf32>
    %79 = vector.broadcast %78 : vector<1x256xf32> to vector<256x256xf32>
    %80 = arith.addf %76, %79 : vector<256x256xf32>
    %cst_39 = arith.constant 5.000000e-01 : f32
    %81 = vector.broadcast %cst_39 : f32 to vector<256x256xf32>
    %82 = arith.mulf %81, %80 : vector<256x256xf32>
    %cst_40 = arith.constant 4.471500e-02 : f32
    %83 = vector.broadcast %cst_40 : f32 to vector<256x256xf32>
    %84 = arith.mulf %83, %80 : vector<256x256xf32>
    %85 = arith.mulf %84, %80 : vector<256x256xf32>
    %86 = arith.mulf %85, %80 : vector<256x256xf32>
    %87 = arith.addf %80, %86 : vector<256x256xf32>
    %cst_41 = arith.constant 0.797884583 : f32
    %88 = vector.broadcast %cst_41 : f32 to vector<256x256xf32>
    %89 = arith.mulf %88, %87 : vector<256x256xf32>
    %90 = math.tanh %89 : vector<256x256xf32>
    %cst_42 = arith.constant 1.000000e+00 : f32
    %91 = vector.broadcast %cst_42 : f32 to vector<256x256xf32>
    %92 = arith.addf %91, %90 : vector<256x256xf32>
    %93 = arith.mulf %82, %92 : vector<256x256xf32>
    %94 = arith.truncf %93 : vector<256x256xf32> to vector<256x256xbf16>
    %c0_43 = arith.constant 0 : index
    %c0_44 = arith.constant 0 : index
    %95 = vector.load %arg13[%c0_43, %c0_44] : memref<256x256xbf16, #tpu.memory_space<vmem>>, vector<256x256xbf16>
    %cst_45 = arith.constant dense<0.000000e+00> : vector<256x256xf32>
    %96 = tpu.matmul %94, %95, %cst_45 {dimension_numbers = #tpu.dot_dimension_numbers<[1], [0], [0], [1], [0, 0, 1, 1], [], []>} : vector<256x256xbf16>, vector<256x256xbf16>, vector<256x256xf32> -> vector<256x256xf32>
    %c0_46 = arith.constant 0 : index
    %c0_47 = arith.constant 0 : index
    %97 = vector.load %arg14[%c0_46, %c0_47] : memref<1x256xf32, #tpu.memory_space<vmem>>, vector<1x256xf32>
    %98 = vector.broadcast %97 : vector<1x256xf32> to vector<256x256xf32>
    %99 = arith.addf %96, %98 : vector<256x256xf32>
    %cst_48 = arith.constant 5.000000e-01 : f32
    %100 = vector.broadcast %cst_48 : f32 to vector<256x256xf32>
    %101 = arith.mulf %100, %99 : vector<256x256xf32>
    %cst_49 = arith.constant 4.471500e-02 : f32
    %102 = vector.broadcast %cst_49 : f32 to vector<256x256xf32>
    %103 = arith.mulf %102, %99 : vector<256x256xf32>
    %104 = arith.mulf %103, %99 : vector<256x256xf32>
    %105 = arith.mulf %104, %99 : vector<256x256xf32>
    %106 = arith.addf %99, %105 : vector<256x256xf32>
    %cst_50 = arith.constant 0.797884583 : f32
    %107 = vector.broadcast %cst_50 : f32 to vector<256x256xf32>
    %108 = arith.mulf %107, %106 : vector<256x256xf32>
    %109 = math.tanh %108 : vector<256x256xf32>
    %cst_51 = arith.constant 1.000000e+00 : f32
    %110 = vector.broadcast %cst_51 : f32 to vector<256x256xf32>
    %111 = arith.addf %110, %109 : vector<256x256xf32>
    %112 = arith.mulf %101, %111 : vector<256x256xf32>
    %113 = arith.truncf %112 : vector<256x256xf32> to vector<256x256xbf16>
    %c0_52 = arith.constant 0 : index
    %c0_53 = arith.constant 0 : index
    %114 = vector.load %arg15[%c0_52, %c0_53] : memref<256x128xbf16, #tpu.memory_space<vmem>>, vector<256x128xbf16>
    %cst_54 = arith.constant dense<0.000000e+00> : vector<256x128xf32>
    %115 = tpu.matmul %113, %114, %cst_54 {dimension_numbers = #tpu.dot_dimension_numbers<[1], [0], [0], [1], [0, 0, 1, 1], [], []>} : vector<256x256xbf16>, vector<256x128xbf16>, vector<256x128xf32> -> vector<256x128xf32>
    %c0_55 = arith.constant 0 : index
    %c0_56 = arith.constant 0 : index
    %116 = vector.load %arg16[%c0_55, %c0_56] : memref<1x128xf32, #tpu.memory_space<vmem>>, vector<1x128xf32>
    %117 = vector.broadcast %116 : vector<1x128xf32> to vector<256x128xf32>
    %118 = arith.addf %115, %117 : vector<256x128xf32>
    %cst_57 = arith.constant 0.000000e+00 : f32
    %119 = vector.broadcast %cst_57 : f32 to vector<256x128xf32>
    %120 = arith.subf %119, %118 : vector<256x128xf32>
    %121 = math.exp %120 : vector<256x128xf32>
    %cst_58 = arith.constant 1.000000e+00 : f32
    %122 = vector.broadcast %cst_58 : f32 to vector<256x128xf32>
    %123 = arith.addf %122, %121 : vector<256x128xf32>
    %124 = tpu.reciprocal %123 {approx = true} : vector<256x128xf32> -> vector<256x128xf32>
    %125 = arith.truncf %124 : vector<256x128xf32> to vector<256x128xbf16>
    %c0_59 = arith.constant 0 : index
    %c0_60 = arith.constant 0 : index
    %c0_61 = arith.constant 0 : index
    %126 = vector.load %arg17[%c0_59, %c0_60, %c0_61] : memref<1x256x128xbf16, #tpu.memory_space<vmem>>, vector<1x256x128xbf16>
    %127 = vector.shape_cast %126 : vector<1x256x128xbf16> to vector<256x128xbf16>
    %128 = vector.shape_cast %125 : vector<256x128xbf16> to vector<1x256x128xbf16>
    tpu.vector_store %arg17[%c0_59, %c0_60, %c0_61], %128 {strides = array<i32>} : memref<1x256x128xbf16, #tpu.memory_space<vmem>>, vector<1x256x128xbf16>,
    return
  }
  func.func @transform_0(%arg0: i32, %arg1: i32) -> (i32, i32, i32) {
    %c0_i32 = arith.constant 0 : i32
    %c0_i32_0 = arith.constant 0 : i32
    return %arg0, %arg1, %c0_i32 : i32, i32, i32
  }
  func.func @transform_1(%arg0: i32, %arg1: i32) -> (i32, i32, i32) {
    %c0_i32 = arith.constant 0 : i32
    %c0_i32_0 = arith.constant 0 : i32
    %c0_i32_1 = arith.constant 0 : i32
    return %arg0, %c0_i32, %c0_i32_0 : i32, i32, i32
  }
  func.func @transform_2(%arg0: i32, %arg1: i32) -> (i32, i32) {
    %c0_i32 = arith.constant 0 : i32
    %c0_i32_0 = arith.constant 0 : i32
    %c0_i32_1 = arith.constant 0 : i32
    return %c0_i32, %c0_i32_0 : i32, i32
  }
  func.func @transform_3(%arg0: i32, %arg1: i32) -> (i32, i32) {
    %c0_i32 = arith.constant 0 : i32
    %c0_i32_0 = arith.constant 0 : i32
    %c0_i32_1 = arith.constant 0 : i32
    return %c0_i32, %c0_i32_0 : i32, i32
  }
  func.func @transform_4(%arg0: i32, %arg1: i32) -> (i32, i32) {
    %c0_i32 = arith.constant 0 : i32
    %c0_i32_0 = arith.constant 0 : i32
    %c0_i32_1 = arith.constant 0 : i32
    return %c0_i32, %c0_i32_0 : i32, i32
  }
  func.func @transform_5(%arg0: i32, %arg1: i32) -> (i32, i32) {
    %c0_i32 = arith.constant 0 : i32
    %c0_i32_0 = arith.constant 0 : i32
    %c0_i32_1 = arith.constant 0 : i32
    return %c0_i32, %c0_i32_0 : i32, i32
  }
  func.func @transform_6(%arg0: i32, %arg1: i32) -> (i32, i32) {
    %c0_i32 = arith.constant 0 : i32
    %c0_i32_0 = arith.constant 0 : i32
    %c0_i32_1 = arith.constant 0 : i32
    return %c0_i32, %c0_i32_0 : i32, i32
  }
  func.func @transform_7(%arg0: i32, %arg1: i32) -> (i32, i32) {
    %c0_i32 = arith.constant 0 : i32
    %c0_i32_0 = arith.constant 0 : i32
    %c0_i32_1 = arith.constant 0 : i32
    return %c0_i32, %c0_i32_0 : i32, i32
  }
  func.func @transform_8(%arg0: i32, %arg1: i32) -> (i32, i32) {
    %c0_i32 = arith.constant 0 : i32
    %c0_i32_0 = arith.constant 0 : i32
    %c0_i32_1 = arith.constant 0 : i32
    return %c0_i32, %c0_i32_0 : i32, i32
  }
  func.func @transform_9(%arg0: i32, %arg1: i32) -> (i32, i32) {
    %c0_i32 = arith.constant 0 : i32
    %c0_i32_0 = arith.constant 0 : i32
    %c0_i32_1 = arith.constant 0 : i32
    return %c0_i32, %c0_i32_0 : i32, i32
  }
  func.func @transform_10(%arg0: i32, %arg1: i32) -> (i32, i32) {
    %c0_i32 = arith.constant 0 : i32
    %c0_i32_0 = arith.constant 0 : i32
    %c0_i32_1 = arith.constant 0 : i32
    return %c0_i32, %c0_i32_0 : i32, i32
  }
  func.func @transform_11(%arg0: i32, %arg1: i32) -> (i32, i32) {
    %c0_i32 = arith.constant 0 : i32
    %c0_i32_0 = arith.constant 0 : i32
    %c0_i32_1 = arith.constant 0 : i32
    return %c0_i32, %c0_i32_0 : i32, i32
  }
  func.func @transform_12(%arg0: i32, %arg1: i32) -> (i32, i32) {
    %c0_i32 = arith.constant 0 : i32
    %c0_i32_0 = arith.constant 0 : i32
    %c0_i32_1 = arith.constant 0 : i32
    return %c0_i32, %c0_i32_0 : i32, i32
  }
  func.func @transform_13(%arg0: i32, %arg1: i32) -> (i32, i32) {
    %c0_i32 = arith.constant 0 : i32
    %c0_i32_0 = arith.constant 0 : i32
    %c0_i32_1 = arith.constant 0 : i32
    return %c0_i32, %c0_i32_0 : i32, i32
  }
  func.func @transform_14(%arg0: i32, %arg1: i32) -> (i32, i32) {
    %c0_i32 = arith.constant 0 : i32
    %c0_i32_0 = arith.constant 0 : i32
    %c0_i32_1 = arith.constant 0 : i32
    return %c0_i32, %c0_i32_0 : i32, i32
  }
  func.func @transform_15(%arg0: i32, %arg1: i32) -> (i32, i32, i32) {
    %c0_i32 = arith.constant 0 : i32
    %c0_i32_0 = arith.constant 0 : i32
    return %arg0, %arg1, %c0_i32 : i32, i32, i32
  }
}

</mosaic_0001>

<llo_original>
// kernel: nerf_decoder_forward.1
$region0: #{nerf_decoder_forward.1}
  #allocation0 [shape = 'u32[]', space=smem, size = 0x4, offset = 0x4, fixed_abs, tag = 'smem constant byte address 0x4 - core index']
  #allocation1 [shape = 'u32[144,128]{1,0:T(1,128)}', space=vmem, size = 0x12000, scoped, tag = 'internal scratch']
  %s0 = inlined_call_operand.vmem [shape: f32[2,256,2], index: 0, kind: input, shape index: {}]
  %s1 = inlined_call_operand.vmem [shape: f32[2,1,256], index: 1, kind: input, shape index: {}]
  %s2 = inlined_call_operand.vmem [shape: f32[2,64], index: 2, kind: input, shape index: {}]
  %s3 = inlined_call_operand.vmem [shape: f32[1,64], index: 3, kind: input, shape index: {}]
  %s4 = inlined_call_operand.vmem [shape: bf16[64,256], index: 4, kind: input, shape index: {}]
  %s5 = inlined_call_operand.vmem [shape: f32[1,256], index: 5, kind: input, shape index: {}]
  %s6 = inlined_call_operand.vmem [shape: bf16[256,256], index: 6, kind: input, shape index: {}]
  %s7 = inlined_call_operand.vmem [shape: f32[1,256], index: 7, kind: input, shape index: {}]
  %s8 = inlined_call_operand.vmem [shape: bf16[256,256], index: 8, kind: input, shape index: {}]
  %s9 = inlined_call_operand.vmem [shape: f32[1,256], index: 9, kind: input, shape index: {}]
  %s10 = inlined_call_operand.vmem [shape: bf16[256,256], index: 10, kind: input, shape index: {}]
  %s11 = inlined_call_operand.vmem [shape: bf16[256,256], index: 11, kind: input, shape index: {}]
  %s12 = inlined_call_operand.vmem [shape: f32[1,256], index: 12, kind: input, shape index: {}]
  %s13 = inlined_call_operand.vmem [shape: bf16[256,128], index: 13, kind: input, shape index: {}]
  %s14 = inlined_call_operand.vmem [shape: f32[1,128], index: 14, kind: input, shape index: {}]
  %s15 = inlined_call_operand.vmem [shape: bf16[2,256,128], index: 15, kind: output, shape index: {}]
  %s16 = sld [smem:[#allocation0]]
  $region93: #{nerf_decoder_forward.1} parent=0
    _
  %s18 = ssub.s32 1, %s16
  %s19 = scalar_select 0, %s18, %s16
  loop: start=0, step=1, limit=4
  $region2: #{nerf_decoder_forward.1} parent=0 // loop_pre_header
    _
  $region3: #{nerf_decoder_forward.1} parent=0 // loop_header
    %s21 = sphi 0, %s25
    %p22 = scmp.ge.s32.totalorder %s21, 4
    %s28 = sphi 0, %s40
    %s29 = sphi 0, %s36
    %s30 = sphi 0, %s28
    %s31 = sphi 0, %s29
    %s32 = sphi 0, %s30
    %s33 = sphi 0, %s31
    %s45 = sphi 0, %s47
    %s48 = sphi 0, %s45
    %s49 = sphi 0, %s48
    %s65 = sphi 0, %s49
    %s71 = sphi 0, %s73
    %s74 = sphi 0, %s71
    %s75 = sphi 0, %s74
    %s91 = sphi 0, %s75
    %s95 = sphi 0, %s95
    %s97 = sphi 0, %s95
    %s98 = sphi 0, %s97
    %s112 = sphi 0, %s98
    %s116 = sphi 0, %s116
    %s118 = sphi 0, %s116
    %s119 = sphi 0, %s118
    %s133 = sphi 0, %s119
    %s137 = sphi 0, %s137
    %s139 = sphi 0, %s137
    %s140 = sphi 0, %s139
    %s154 = sphi 0, %s140
    %s158 = sphi 0, %s158
    %s160 = sphi 0, %s158
    %s161 = sphi 0, %s160
    %s175 = sphi 0, %s161
    %s179 = sphi 0, %s179
    %s181 = sphi 0, %s179
    %s182 = sphi 0, %s181
    %s196 = sphi 0, %s182
    %s200 = sphi 0, %s200
    %s202 = sphi 0, %s200
    %s203 = sphi 0, %s202
    %s217 = sphi 0, %s203
    %s221 = sphi 0, %s221
    %s223 = sphi 0, %s221
    %s224 = sphi 0, %s223
    %s238 = sphi 0, %s224
    %s242 = sphi 0, %s242
    %s244 = sphi 0, %s242
    %s245 = sphi 0, %s244
    %s259 = sphi 0, %s245
    %s263 = sphi 0, %s263
    %s265 = sphi 0, %s263
    %s266 = sphi 0, %s265
    %s280 = sphi 0, %s266
    %s284 = sphi 0, %s284
    %s286 = sphi 0, %s284
    %s287 = sphi 0, %s286
    %s301 = sphi 0, %s287
    %s305 = sphi 0, %s305
    %s307 = sphi 0, %s305
    %s308 = sphi 0, %s307
    %s322 = sphi 0, %s308
    %s326 = sphi 0, %s326
    %s328 = sphi 0, %s326
    %s329 = sphi 0, %s328
    %s343 = sphi 0, %s329
    %s347 = sphi 0, %s347
    %s349 = sphi 0, %s347
    %s350 = sphi 0, %s349
    %s364 = sphi 0, %s350
    %s372 = sphi 0, %s374
    %s375 = sphi 0, %s372
    %s376 = sphi 0, %s375
    %s392 = sphi 0, %s376
  $region4: #{nerf_decoder_forward.1} parent=0 // loop_header_branch
    %24 = sbr.rel (%p22) target = $region8
  $region5: #{nerf_decoder_forward.1} parent=0 // loop_body
    %s26 = ssub.s32 %s21, 1
    %s27 = ssub.s32 %s21, 2
    %s34 = sadd.s32 1, %s29
    %p35 = scmp.ge.s32.totalorder %s34, 1
    %s36 = scalar_select %p35, 0, %s34
    %s37 = sadd.s32 1, %s28
    %s38 = scalar_select %p35, %s37, %s28
    %p39 = scmp.ge.s32.totalorder %s38, 2
    %s40 = scalar_select %p39, 0, %s38
    %s41 = ssub.s32 %s28, %s40
    %s42 = ssub.s32 %s29, %s36
    %s43 = sor.u32 %s41, %s42
    %p44 = scmp.eq.s32.totalorder %s43, 0
    %s46 = sadd.s32 %s45, 1
    %s47 = scalar_select %p44, %s45, %s46
    %p50 = pneg %p44
    %p51 = scmp.eq.s32.totalorder %s21, 1
    %p52 = por %p50, %p51
    %p53 = scmp.ne.s32.totalorder %s45, %s48
    %p54 = scmp.eq.s32.totalorder %s21, 0
    %p55 = por %p53, %p54
    %p56 = scmp.ne.s32.totalorder %s45, %s48
    %p57 = scmp.eq.s32.totalorder %s26, 1
    %p58 = por %p56, %p57
    %p59 = scmp.ne.s32.totalorder %s48, %s49
    %p60 = scmp.eq.s32.totalorder %s26, 0
    %p61 = por %p59, %p60
    %p62 = scmp.ne.s32.totalorder %s48, %s49
    %p63 = scmp.eq.s32.totalorder %s27, 1
    %p64 = por %p62, %p63
    %p66 = scmp.ne.s32.totalorder %s49, %s65
    %p67 = scmp.eq.s32.totalorder %s27, 0
    %p68 = por %p66, %p67
    %s69 = ssub.s32 %s28, %s40
    %p70 = scmp.eq.s32.totalorder %s69, 0
    %s72 = sadd.s32 %s71, 1
    %s73 = scalar_select %p70, %s71, %s72
    %p76 = pneg %p70
    %p77 = scmp.eq.s32.totalorder %s21, 1
    %p78 = por %p76, %p77
    %p79 = scmp.ne.s32.totalorder %s71, %s74
    %p80 = scmp.eq.s32.totalorder %s21, 0
    %p81 = por %p79, %p80
    %p82 = scmp.ne.s32.totalorder %s71, %s74
    %p83 = scmp.eq.s32.totalorder %s26, 1
    %p84 = por %p82, %p83
    %p85 = scmp.ne.s32.totalorder %s74, %s75
    %p86 = scmp.eq.s32.totalorder %s26, 0
    %p87 = por %p85, %p86
    %p88 = scmp.ne.s32.totalorder %s74, %s75
    %p89 = scmp.eq.s32.totalorder %s27, 1
    %p90 = por %p88, %p89
    %p92 = scmp.ne.s32.totalorder %s75, %s91
    %p93 = scmp.eq.s32.totalorder %s27, 0
    %p94 = por %p92, %p93
    %s96 = sadd.s32 %s95, 1
    %p99 = scmp.eq.s32.totalorder %s21, 1
    %p100 = scmp.ne.s32.totalorder %s95, %s97
    %p101 = scmp.eq.s32.totalorder %s21, 0
    %p102 = por %p100, %p101
    %p103 = scmp.ne.s32.totalorder %s95, %s97
    %p104 = scmp.eq.s32.totalorder %s26, 1
    %p105 = por %p103, %p104
    %p106 = scmp.ne.s32.totalorder %s97, %s98
    %p107 = scmp.eq.s32.totalorder %s26, 0
    %p108 = por %p106, %p107
    %p109 = scmp.ne.s32.totalorder %s97, %s98
    %p110 = scmp.eq.s32.totalorder %s27, 1
    %p111 = por %p109, %p110
    %p113 = scmp.ne.s32.totalorder %s98, %s112
    %p114 = scmp.eq.s32.totalorder %s27, 0
    %p115 = por %p113, %p114
    %s117 = sadd.s32 %s116, 1
    %p120 = scmp.eq.s32.totalorder %s21, 1
    %p121 = scmp.ne.s32.totalorder %s116, %s118
    %p122 = scmp.eq.s32.totalorder %s21, 0
    %p123 = por %p121, %p122
    %p124 = scmp.ne.s32.totalorder %s116, %s118
    %p125 = scmp.eq.s32.totalorder %s26, 1
    %p126 = por %p124, %p125
    %p127 = scmp.ne.s32.totalorder %s118, %s119
    %p128 = scmp.eq.s32.totalorder %s26, 0
    %p129 = por %p127, %p128
    %p130 = scmp.ne.s32.totalorder %s118, %s119
    %p131 = scmp.eq.s32.totalorder %s27, 1
    %p132 = por %p130, %p131
    %p134 = scmp.ne.s32.totalorder %s119, %s133
    %p135 = scmp.eq.s32.totalorder %s27, 0
    %p136 = por %p134, %p135
    %s138 = sadd.s32 %s137, 1
    %p141 = scmp.eq.s32.totalorder %s21, 1
    %p142 = scmp.ne.s32.totalorder %s137, %s139
    %p143 = scmp.eq.s32.totalorder %s21, 0
    %p144 = por %p142, %p143
    %p145 = scmp.ne.s32.totalorder %s137, %s139
    %p146 = scmp.eq.s32.totalorder %s26, 1
    %p147 = por %p145, %p146
    %p148 = scmp.ne.s32.totalorder %s139, %s140
    %p149 = scmp.eq.s32.totalorder %s26, 0
    %p150 = por %p148, %p149
    %p151 = scmp.ne.s32.totalorder %s139, %s140
    %p152 = scmp.eq.s32.totalorder %s27, 1
    %p153 = por %p151, %p152
    %p155 = scmp.ne.s32.totalorder %s140, %s154
    %p156 = scmp.eq.s32.totalorder %s27, 0
    %p157 = por %p155, %p156
    %s159 = sadd.s32 %s158, 1
    %p162 = scmp.eq.s32.totalorder %s21, 1
    %p163 = scmp.ne.s32.totalorder %s158, %s160
    %p164 = scmp.eq.s32.totalorder %s21, 0
    %p165 = por %p163, %p164
    %p166 = scmp.ne.s32.totalorder %s158, %s160
    %p167 = scmp.eq.s32.totalorder %s26, 1
    %p168 = por %p166, %p167
    %p169 = scmp.ne.s32.totalorder %s160, %s161
    %p170 = scmp.eq.s32.totalorder %s26, 0
    %p171 = por %p169, %p170
    %p172 = scmp.ne.s32.totalorder %s160, %s161
    %p173 = scmp.eq.s32.totalorder %s27, 1
    %p174 = por %p172, %p173
    %p176 = scmp.ne.s32.totalorder %s161, %s175
    %p177 = scmp.eq.s32.totalorder %s27, 0
    %p178 = por %p176, %p177
    %s180 = sadd.s32 %s179, 1
    %p183 = scmp.eq.s32.totalorder %s21, 1
    %p184 = scmp.ne.s32.totalorder %s179, %s181
    %p185 = scmp.eq.s32.totalorder %s21, 0
    %p186 = por %p184, %p185
    %p187 = scmp.ne.s32.totalorder %s179, %s181
    %p188 = scmp.eq.s32.totalorder %s26, 1
    %p189 = por %p187, %p188
    %p190 = scmp.ne.s32.totalorder %s181, %s182
    %p191 = scmp.eq.s32.totalorder %s26, 0
    %p192 = por %p190, %p191
    %p193 = scmp.ne.s32.totalorder %s181, %s182
    %p194 = scmp.eq.s32.totalorder %s27, 1
    %p195 = por %p193, %p194
    %p197 = scmp.ne.s32.totalorder %s182, %s196
    %p198 = scmp.eq.s32.totalorder %s27, 0
    %p199 = por %p197, %p198
    %s201 = sadd.s32 %s200, 1
    %p204 = scmp.eq.s32.totalorder %s21, 1
    %p205 = scmp.ne.s32.totalorder %s200, %s202
    %p206 = scmp.eq.s32.totalorder %s21, 0
    %p207 = por %p205, %p206
    %p208 = scmp.ne.s32.totalorder %s200, %s202
    %p209 = scmp.eq.s32.totalorder %s26, 1
    %p210 = por %p208, %p209
    %p211 = scmp.ne.s32.totalorder %s202, %s203
    %p212 = scmp.eq.s32.totalorder %s26, 0
    %p213 = por %p211, %p212
    %p214 = scmp.ne.s32.totalorder %s202, %s203
    %p215 = scmp.eq.s32.totalorder %s27, 1
    %p216 = por %p214, %p215
    %p218 = scmp.ne.s32.totalorder %s203, %s217
    %p219 = scmp.eq.s32.totalorder %s27, 0
    %p220 = por %p218, %p219
    %s222 = sadd.s32 %s221, 1
    %p225 = scmp.eq.s32.totalorder %s21, 1
    %p226 = scmp.ne.s32.totalorder %s221, %s223
    %p227 = scmp.eq.s32.totalorder %s21, 0
    %p228 = por %p226, %p227
    %p229 = scmp.ne.s32.totalorder %s221, %s223
    %p230 = scmp.eq.s32.totalorder %s26, 1
    %p231 = por %p229, %p230
    %p232 = scmp.ne.s32.totalorder %s223, %s224
    %p233 = scmp.eq.s32.totalorder %s26, 0
    %p234 = por %p232, %p233
    %p235 = scmp.ne.s32.totalorder %s223, %s224
    %p236 = scmp.eq.s32.totalorder %s27, 1
    %p237 = por %p235, %p236
    %p239 = scmp.ne.s32.totalorder %s224, %s238
    %p240 = scmp.eq.s32.totalorder %s27, 0
    %p241 = por %p239, %p240
    %s243 = sadd.s32 %s242, 1
    %p246 = scmp.eq.s32.totalorder %s21, 1
    %p247 = scmp.ne.s32.totalorder %s242, %s244
    %p248 = scmp.eq.s32.totalorder %s21, 0
    %p249 = por %p247, %p248
    %p250 = scmp.ne.s32.totalorder %s242, %s244
    %p251 = scmp.eq.s32.totalorder %s26, 1
    %p252 = por %p250, %p251
    %p253 = scmp.ne.s32.totalorder %s244, %s245
    %p254 = scmp.eq.s32.totalorder %s26, 0
    %p255 = por %p253, %p254
    %p256 = scmp.ne.s32.totalorder %s244, %s245
    %p257 = scmp.eq.s32.totalorder %s27, 1
    %p258 = por %p256, %p257
    %p260 = scmp.ne.s32.totalorder %s245, %s259
    %p261 = scmp.eq.s32.totalorder %s27, 0
    %p262 = por %p260, %p261
    %s264 = sadd.s32 %s263, 1
    %p267 = scmp.eq.s32.totalorder %s21, 1
    %p268 = scmp.ne.s32.totalorder %s263, %s265
    %p269 = scmp.eq.s32.totalorder %s21, 0
    %p270 = por %p268, %p269
    %p271 = scmp.ne.s32.totalorder %s263, %s265
    %p272 = scmp.eq.s32.totalorder %s26, 1
    %p273 = por %p271, %p272
    %p274 = scmp.ne.s32.totalorder %s265, %s266
    %p275 = scmp.eq.s32.totalorder %s26, 0
    %p276 = por %p274, %p275
    %p277 = scmp.ne.s32.totalorder %s265, %s266
    %p278 = scmp.eq.s32.totalorder %s27, 1
    %p279 = por %p277, %p278
    %p281 = scmp.ne.s32.totalorder %s266, %s280
    %p282 = scmp.eq.s32.totalorder %s27, 0
    %p283 = por %p281, %p282
    %s285 = sadd.s32 %s284, 1
    %p288 = scmp.eq.s32.totalorder %s21, 1
    %p289 = scmp.ne.s32.totalorder %s284, %s286
    %p290 = scmp.eq.s32.totalorder %s21, 0
    %p291 = por %p289, %p290
    %p292 = scmp.ne.s32.totalorder %s284, %s286
    %p293 = scmp.eq.s32.totalorder %s26, 1
    %p294 = por %p292, %p293
    %p295 = scmp.ne.s32.totalorder %s286, %s287
    %p296 = scmp.eq.s32.totalorder %s26, 0
    %p297 = por %p295, %p296
    %p298 = scmp.ne.s32.totalorder %s286, %s287
    %p299 = scmp.eq.s32.totalorder %s27, 1
    %p300 = por %p298, %p299
    %p302 = scmp.ne.s32.totalorder %s287, %s301
    %p303 = scmp.eq.s32.totalorder %s27, 0
    %p304 = por %p302, %p303
    %s306 = sadd.s32 %s305, 1
    %p309 = scmp.eq.s32.totalorder %s21, 1
    %p310 = scmp.ne.s32.totalorder %s305, %s307
    %p311 = scmp.eq.s32.totalorder %s21, 0
    %p312 = por %p310, %p311
    %p313 = scmp.ne.s32.totalorder %s305, %s307
    %p314 = scmp.eq.s32.totalorder %s26, 1
    %p315 = por %p313, %p314
    %p316 = scmp.ne.s32.totalorder %s307, %s308
    %p317 = scmp.eq.s32.totalorder %s26, 0
    %p318 = por %p316, %p317
    %p319 = scmp.ne.s32.totalorder %s307, %s308
    %p320 = scmp.eq.s32.totalorder %s27, 1
    %p321 = por %p319, %p320
    %p323 = scmp.ne.s32.totalorder %s308, %s322
    %p324 = scmp.eq.s32.totalorder %s27, 0
    %p325 = por %p323, %p324
    %s327 = sadd.s32 %s326, 1
    %p330 = scmp.eq.s32.totalorder %s21, 1
    %p331 = scmp.ne.s32.totalorder %s326, %s328
    %p332 = scmp.eq.s32.totalorder %s21, 0
    %p333 = por %p331, %p332
    %p334 = scmp.ne.s32.totalorder %s326, %s328
    %p335 = scmp.eq.s32.totalorder %s26, 1
    %p336 = por %p334, %p335
    %p337 = scmp.ne.s32.totalorder %s328, %s329
    %p338 = scmp.eq.s32.totalorder %s26, 0
    %p339 = por %p337, %p338
    %p340 = scmp.ne.s32.totalorder %s328, %s329
    %p341 = scmp.eq.s32.totalorder %s27, 1
    %p342 = por %p340, %p341
    %p344 = scmp.ne.s32.totalorder %s329, %s343
    %p345 = scmp.eq.s32.totalorder %s27, 0
    %p346 = por %p344, %p345
    %s348 = sadd.s32 %s347, 1
    %p351 = scmp.eq.s32.totalorder %s21, 1
    %p352 = scmp.ne.s32.totalorder %s347, %s349
    %p353 = scmp.eq.s32.totalorder %s21, 0
    %p354 = por %p352, %p353
    %p355 = scmp.ne.s32.totalorder %s347, %s349
    %p356 = scmp.eq.s32.totalorder %s26, 1
    %p357 = por %p355, %p356
    %p358 = scmp.ne.s32.totalorder %s349, %s350
    %p359 = scmp.eq.s32.totalorder %s26, 0
    %p360 = por %p358, %p359
    %p361 = scmp.ne.s32.totalorder %s349, %s350
    %p362 = scmp.eq.s32.totalorder %s27, 1
    %p363 = por %p361, %p362
    %p365 = scmp.ne.s32.totalorder %s350, %s364
    %p366 = scmp.eq.s32.totalorder %s27, 0
    %p367 = por %p365, %p366
    %s368 = ssub.s32 %s28, %s40
    %s369 = ssub.s32 %s29, %s36
    %s370 = sor.u32 %s368, %s369
    %p371 = scmp.eq.s32.totalorder %s370, 0
    %s373 = sadd.s32 %s372, 1
    %s374 = scalar_select %p371, %s372, %s373
    %p377 = pneg %p371
    %p378 = scmp.eq.s32.totalorder %s21, 1
    %p379 = por %p377, %p378
    %p380 = scmp.ne.s32.totalorder %s372, %s375
    %p381 = scmp.eq.s32.totalorder %s21, 0
    %p382 = por %p380, %p381
    %p383 = scmp.ne.s32.totalorder %s372, %s375
    %p384 = scmp.eq.s32.totalorder %s26, 1
    %p385 = por %p383, %p384
    %p386 = scmp.ne.s32.totalorder %s375, %s376
    %p387 = scmp.eq.s32.totalorder %s26, 0
    %p388 = por %p386, %p387
    %p389 = scmp.ne.s32.totalorder %s375, %s376
    %p390 = scmp.eq.s32.totalorder %s27, 1
    %p391 = por %p389, %p390
    %p393 = scmp.ne.s32.totalorder %s376, %s392
    %p394 = scmp.eq.s32.totalorder %s27, 0
    %p395 = por %p393, %p394
    %p396 = scmp.le.s32.totalorder 1, %s21
    %p397 = scmp.lt.s32.totalorder %s21, 3
    %p398 = pnand %p396, %p397
    %p399 = pneg %p398
    // Predicated region
    $region9: #{nerf_decoder_forward.1} parent=5 // pred_check
      _
    $region10: #{nerf_decoder_forward.1} parent=5 // pred_check_branch
      %401 = sbr.rel (%p398) target = $region12
    $region11: #{nerf_decoder_forward.1} parent=5 // pred_region
      %s402 = ssub.s32 %s21, 1
      // Predicated region
      $region13: #{nerf_decoder_forward.1} parent=11 // pred_check
        %p403 = pneg %p108
      $region14: #{nerf_decoder_forward.1} parent=11 // pred_check_branch
        %405 = sbr.rel (%p403) target = $region16
      $region15: #{nerf_decoder_forward.1} parent=11 // pred_region
        _
      $region16: #{nerf_decoder_forward.1} parent=11 // pred_fallthru
        _
      // Predicated region
      $region17: #{nerf_decoder_forward.1} parent=11 // pred_check
        %p406 = pneg %p129
      $region18: #{nerf_decoder_forward.1} parent=11 // pred_check_branch
        %408 = sbr.rel (%p406) target = $region20
      $region19: #{nerf_decoder_forward.1} parent=11 // pred_region
        _
      $region20: #{nerf_decoder_forward.1} parent=11 // pred_fallthru
        _
      // Predicated region
      $region21: #{nerf_decoder_forward.1} parent=11 // pred_check
        %p409 = pneg %p150
      $region22: #{nerf_decoder_forward.1} parent=11 // pred_check_branch
        %411 = sbr.rel (%p409) target = $region24
      $region23: #{nerf_decoder_forward.1} parent=11 // pred_region
        _
      $region24: #{nerf_decoder_forward.1} parent=11 // pred_fallthru
        _
      // Predicated region
      $region25: #{nerf_decoder_forward.1} parent=11 // pred_check
        %p412 = pneg %p171
      $region26: #{nerf_decoder_forward.1} parent=11 // pred_check_branch
        %414 = sbr.rel (%p412) target = $region28
      $region27: #{nerf_decoder_forward.1} parent=11 // pred_region
        _
      $region28: #{nerf_decoder_forward.1} parent=11 // pred_fallthru
        _
      // Predicated region
      $region29: #{nerf_decoder_forward.1} parent=11 // pred_check
        %p415 = pneg %p192
      $region30: #{nerf_decoder_forward.1} parent=11 // pred_check_branch
        %417 = sbr.rel (%p415) target = $region32
      $region31: #{nerf_decoder_forward.1} parent=11 // pred_region
        _
      $region32: #{nerf_decoder_forward.1} parent=11 // pred_fallthru
        _
      // Predicated region
      $region33: #{nerf_decoder_forward.1} parent=11 // pred_check
        %p418 = pneg %p213
      $region34: #{nerf_decoder_forward.1} parent=11 // pred_check_branch
        %420 = sbr.rel (%p418) target = $region36
      $region35: #{nerf_decoder_forward.1} parent=11 // pred_region
        _
      $region36: #{nerf_decoder_forward.1} parent=11 // pred_fallthru
        _
      // Predicated region
      $region37: #{nerf_decoder_forward.1} parent=11 // pred_check
        %p421 = pneg %p234
      $region38: #{nerf_decoder_forward.1} parent=11 // pred_check_branch
        %423 = sbr.rel (%p421) target = $region40
      $region39: #{nerf_decoder_forward.1} parent=11 // pred_region
        _
      $region40: #{nerf_decoder_forward.1} parent=11 // pred_fallthru
        _
      // Predicated region
      $region41: #{nerf_decoder_forward.1} parent=11 // pred_check
        %p424 = pneg %p255
      $region42: #{nerf_decoder_forward.1} parent=11 // pred_check_branch
        %426 = sbr.rel (%p424) target = $region44
      $region43: #{nerf_decoder_forward.1} parent=11 // pred_region
        _
      $region44: #{nerf_decoder_forward.1} parent=11 // pred_fallthru
        _
      // Predicated region
      $region45: #{nerf_decoder_forward.1} parent=11 // pred_check
        %p427 = pneg %p276
      $region46: #{nerf_decoder_forward.1} parent=11 // pred_check_branch
        %429 = sbr.rel (%p427) target = $region48
      $region47: #{nerf_decoder_forward.1} parent=11 // pred_region
        _
      $region48: #{nerf_decoder_forward.1} parent=11 // pred_fallthru
        _
      // Predicated region
      $region49: #{nerf_decoder_forward.1} parent=11 // pred_check
        %p430 = pneg %p297
      $region50: #{nerf_decoder_forward.1} parent=11 // pred_check_branch
        %432 = sbr.rel (%p430) target = $region52
      $region51: #{nerf_decoder_forward.1} parent=11 // pred_region
        _
      $region52: #{nerf_decoder_forward.1} parent=11 // pred_fallthru
        _
      // Predicated region
      $region53: #{nerf_decoder_forward.1} parent=11 // pred_check
        %p433 = pneg %p318
      $region54: #{nerf_decoder_forward.1} parent=11 // pred_check_branch
        %435 = sbr.rel (%p433) target = $region56
      $region55: #{nerf_decoder_forward.1} parent=11 // pred_region
        _
      $region56: #{nerf_decoder_forward.1} parent=11 // pred_fallthru
        _
      // Predicated region
      $region57: #{nerf_decoder_forward.1} parent=11 // pred_check
        %p436 = pneg %p339
      $region58: #{nerf_decoder_forward.1} parent=11 // pred_check_branch
        %438 = sbr.rel (%p436) target = $region60
      $region59: #{nerf_decoder_forward.1} parent=11 // pred_region
        _
      $region60: #{nerf_decoder_forward.1} parent=11 // pred_fallthru
        _
      // Predicated region
      $region61: #{nerf_decoder_forward.1} parent=11 // pred_check
        %p439 = pneg %p360
      $region62: #{nerf_decoder_forward.1} parent=11 // pred_check_branch
        %441 = sbr.rel (%p439) target = $region64
      $region63: #{nerf_decoder_forward.1} parent=11 // pred_region
        _
      $region64: #{nerf_decoder_forward.1} parent=11 // pred_fallthru
        _
    $region12: #{nerf_decoder_forward.1} parent=5 // pred_fallthru
      _
    %p442 = scmp.lt.s32.totalorder %s21, 2
    // Predicated region
    $region65: #{nerf_decoder_forward.1} parent=5 // pred_check
      %p443 = pneg %p442
    $region66: #{nerf_decoder_forward.1} parent=5 // pred_check_branch
      %445 = sbr.rel (%p443) target = $region68
    $region67: #{nerf_decoder_forward.1} parent=5 // pred_region
      // Predicated region
      $region69: #{nerf_decoder_forward.1} parent=67 // pred_check
        %p446 = pneg %p55
      $region70: #{nerf_decoder_forward.1} parent=67 // pred_check_branch
        %448 = sbr.rel (%p446) target = $region72
      $region71: #{nerf_decoder_forward.1} parent=67 // pred_region
        %s449 = smul.u32 32, %s29
        %p450 = scmp.lt.s32.totalorder %s28, 1
        %s451 = scalar_select %p450, %s28, 1
        %p452 = scmp.lt.s32.totalorder %s449, 31
        %s453 = scalar_select %p452, %s449, 31
        %s454 = smul.addr %s451, 32
        %s455 = sadd.s32 %s453, %s454
        %s456 = smul.addr %s455, 8
        %s457 = scalar_lea.vmem %s0, %s456
        %s458 = smul.u32 32, %s29
      $region72: #{nerf_decoder_forward.1} parent=67 // pred_fallthru
        _
      // Predicated region
      $region73: #{nerf_decoder_forward.1} parent=67 // pred_check
        %p459 = pneg %p81
      $region74: #{nerf_decoder_forward.1} parent=67 // pred_check_branch
        %461 = sbr.rel (%p459) target = $region76
      $region75: #{nerf_decoder_forward.1} parent=67 // pred_region
        %p462 = scmp.lt.s32.totalorder %s28, 1
        %s463 = scalar_select %p462, %s28, 1
        %s464 = smul.addr %s463, 2
        %s465 = scalar_lea.vmem %s1, %s464
      $region76: #{nerf_decoder_forward.1} parent=67 // pred_fallthru
        _
    $region68: #{nerf_decoder_forward.1} parent=5 // pred_fallthru
      _
    %p466 = scmp.le.s32.totalorder 1, %s21
    %p467 = scmp.lt.s32.totalorder %s21, 3
    %p468 = pnand %p466, %p467
    %p469 = pneg %p468
    // Predicated region
    $region77: #{nerf_decoder_forward.1} parent=5 // pred_check
      _
    $region78: #{nerf_decoder_forward.1} parent=5 // pred_check_branch
      %471 = sbr.rel (%p468) target = $region80
    $region79: #{nerf_decoder_forward.1} parent=5 // pred_region
      %s472 = ssub.s32 %s21, 1
      %s473 = smul.u32 32, %s31
      %p474 = scmp.lt.s32.totalorder %s30, 1
      %s475 = scalar_select %p474, %s30, 1
      %p476 = scmp.lt.s32.totalorder %s473, 31
      %s477 = scalar_select %p476, %s473, 31
      %s478 = smul.addr %s475, 32
      %s479 = sadd.s32 %s477, %s478
      %s480 = smul.addr %s479, 8
      %s481 = scalar_lea.vmem %s0, %s480
      %p482 = pneg %p61
      %p483 = pneg %p58
      %p484 = scmp.lt.s32.totalorder %s30, 1
      %s485 = scalar_select %p484, %s30, 1
      %s486 = smul.addr %s485, 2
      %s487 = scalar_lea.vmem %s1, %s486
      %p488 = pneg %p87
      %p489 = pneg %p84
      %p490 = pneg %p108
      %p491 = pneg %p105
      %p492 = pneg %p129
      %p493 = pneg %p126
      %p494 = pneg %p150
      %p495 = pneg %p147
      %p496 = pneg %p171
      %p497 = pneg %p168
      %p498 = pneg %p192
      %p499 = pneg %p189
      %p500 = pneg %p213
      %p501 = pneg %p210
      %p502 = pneg %p234
      %p503 = pneg %p231
      %p504 = pneg %p255
      %p505 = pneg %p252
      %p506 = pneg %p276
      %p507 = pneg %p273
      %p508 = pneg %p297
      %p509 = pneg %p294
      %p510 = pneg %p318
      %p511 = pneg %p315
      %p512 = pneg %p339
      %p513 = pneg %p336
      %p514 = pneg %p360
      %p515 = pneg %p357
      %p516 = pneg %p388
      %p517 = pneg %p385
      %s518 = smul.u32 32, %s31
      %p519 = scmp.lt.s32.totalorder %s30, 1
      %s520 = scalar_select %p519, %s30, 1
      %p521 = scmp.lt.s32.totalorder %s518, 31
      %s522 = scalar_select %p521, %s518, 31
      %s523 = smul.addr %s520, 32
      %s524 = sadd.s32 %s522, %s523
      %s525 = smul.addr %s524, 4
      %s526 = scalar_lea.vmem %s15, %s525
      %s527 = smul.u32 32, %s31
      %p528 = scmp.lt.s32.totalorder %s30, 1
      %s529 = scalar_select %p528, %s30, 1
      %p530 = scmp.lt.s32.totalorder %s527, 31
      %s531 = scalar_select %p530, %s527, 31
      %s532 = smul.addr %s529, 32
      %s533 = sadd.s32 %s531, %s532
      %s534 = smul.addr %s533, 8
      %s535 = scalar_lea.vmem %s0, %s534
      %s536 = smul.u32 32, %s31
      %p537 = scmp.lt.s32.totalorder %s30, 1
      %s538 = scalar_select %p537, %s30, 1
      %s539 = smul.addr %s538, 2
      %s540 = scalar_lea.vmem %s1, %s539
      %s541 = smul.u32 32, %s31
      %p542 = scmp.lt.s32.totalorder %s30, 1
      %s543 = scalar_select %p542, %s30, 1
      %p544 = scmp.lt.s32.totalorder %s541, 31
      %s545 = scalar_select %p544, %s541, 31
      %s546 = smul.addr %s543, 32
      %s547 = sadd.s32 %s545, %s546
      %s548 = smul.addr %s547, 4
      %s549 = scalar_lea.vmem %s15, %s548
      %s550 = smul.u32 32, %s31
      %v552 = vld [vmem:[%s535] sm:$0xff]
      %v553 = vld [vmem:[%s535 + $0x8] sm:$0xff]
      %v554 = vld [vmem:[%s535 + $0x10] sm:$0xff]
      %v555 = vld [vmem:[%s535 + $0x18] sm:$0xff]
      %v556 = vld [vmem:[%s535 + $0x20] sm:$0xff]
      %v557 = vld [vmem:[%s535 + $0x28] sm:$0xff]
      %v558 = vld [vmem:[%s535 + $0x30] sm:$0xff]
      %v559 = vld [vmem:[%s535 + $0x38] sm:$0xff]
      %v560 = vld [vmem:[%s535 + $0x40] sm:$0xff]
      %v561 = vld [vmem:[%s535 + $0x48] sm:$0xff]
      %v562 = vld [vmem:[%s535 + $0x50] sm:$0xff]
      %v563 = vld [vmem:[%s535 + $0x58] sm:$0xff]
      %v564 = vld [vmem:[%s535 + $0x60] sm:$0xff]
      %v565 = vld [vmem:[%s535 + $0x68] sm:$0xff]
      %v566 = vld [vmem:[%s535 + $0x70] sm:$0xff]
      %v567 = vld [vmem:[%s535 + $0x78] sm:$0xff]
      %v568 = vld [vmem:[%s535 + $0x80] sm:$0xff]
      %v569 = vld [vmem:[%s535 + $0x88] sm:$0xff]
      %v570 = vld [vmem:[%s535 + $0x90] sm:$0xff]
      %v571 = vld [vmem:[%s535 + $0x98] sm:$0xff]
      %v572 = vld [vmem:[%s535 + $0xa0] sm:$0xff]
      %v573 = vld [vmem:[%s535 + $0xa8] sm:$0xff]
      %v574 = vld [vmem:[%s535 + $0xb0] sm:$0xff]
      %v575 = vld [vmem:[%s535 + $0xb8] sm:$0xff]
      %v576 = vld [vmem:[%s535 + $0xc0] sm:$0xff]
      %v577 = vld [vmem:[%s535 + $0xc8] sm:$0xff]
      %v578 = vld [vmem:[%s535 + $0xd0] sm:$0xff]
      %v579 = vld [vmem:[%s535 + $0xd8] sm:$0xff]
      %v580 = vld [vmem:[%s535 + $0xe0] sm:$0xff]
      %v581 = vld [vmem:[%s535 + $0xe8] sm:$0xff]
      %v582 = vld [vmem:[%s535 + $0xf0] sm:$0xff]
      %v583 = vld [vmem:[%s535 + $0xf8] sm:$0xff]
      %v584 = vld [vmem:[%s2] sm:$0x1]
      %586 = vset.pattern.permute.xlu0 0
      %587 = vperm.xlu0 %586, %v552
      %v588 = vpop.permute.xlu0 %587
      %591 = vset.pattern.permute.xlu0 0
      %592 = vperm.xlu0 %591, %v553
      %v593 = vpop.permute.xlu0 %592
      %596 = vset.pattern.permute.xlu0 0
      %597 = vperm.xlu0 %596, %v554
      %v598 = vpop.permute.xlu0 %597
      %601 = vset.pattern.permute.xlu0 0
      %602 = vperm.xlu0 %601, %v555
      %v603 = vpop.permute.xlu0 %602
      %606 = vset.pattern.permute.xlu0 0
      %607 = vperm.xlu0 %606, %v556
      %v608 = vpop.permute.xlu0 %607
      %611 = vset.pattern.permute.xlu0 0
      %612 = vperm.xlu0 %611, %v557
      %v613 = vpop.permute.xlu0 %612
      %616 = vset.pattern.permute.xlu0 0
      %617 = vperm.xlu0 %616, %v558
      %v618 = vpop.permute.xlu0 %617
      %621 = vset.pattern.permute.xlu0 0
      %622 = vperm.xlu0 %621, %v559
      %v623 = vpop.permute.xlu0 %622
      %626 = vset.pattern.permute.xlu0 0
      %627 = vperm.xlu0 %626, %v560
      %v628 = vpop.permute.xlu0 %627
      %631 = vset.pattern.permute.xlu0 0
      %632 = vperm.xlu0 %631, %v561
      %v633 = vpop.permute.xlu0 %632
      %636 = vset.pattern.permute.xlu0 0
      %637 = vperm.xlu0 %636, %v562
      %v638 = vpop.permute.xlu0 %637
      %641 = vset.pattern.permute.xlu0 0
      %642 = vperm.xlu0 %641, %v563
      %v643 = vpop.permute.xlu0 %642
      %646 = vset.pattern.permute.xlu0 0
      %647 = vperm.xlu0 %646, %v564
      %v648 = vpop.permute.xlu0 %647
      %651 = vset.pattern.permute.xlu0 0
      %652 = vperm.xlu0 %651, %v565
      %v653 = vpop.permute.xlu0 %652
      %656 = vset.pattern.permute.xlu0 0
      %657 = vperm.xlu0 %656, %v566
      %v658 = vpop.permute.xlu0 %657
      %661 = vset.pattern.permute.xlu0 0
      %662 = vperm.xlu0 %661, %v567
      %v663 = vpop.permute.xlu0 %662
      %666 = vset.pattern.permute.xlu0 0
      %667 = vperm.xlu0 %666, %v568
      %v668 = vpop.permute.xlu0 %667
      %671 = vset.pattern.permute.xlu0 0
      %672 = vperm.xlu0 %671, %v569
      %v673 = vpop.permute.xlu0 %672
      %676 = vset.pattern.permute.xlu0 0
      %677 = vperm.xlu0 %676, %v570
      %v678 = vpop.permute.xlu0 %677
      %681 = vset.pattern.permute.xlu0 0
      %682 = vperm.xlu0 %681, %v571
      %v683 = vpop.permute.xlu0 %682
      %686 = vset.pattern.permute.xlu0 0
      %687 = vperm.xlu0 %686, %v572
      %v688 = vpop.permute.xlu0 %687
      %691 = vset.pattern.permute.xlu0 0
      %692 = vperm.xlu0 %691, %v573
      %v693 = vpop.permute.xlu0 %692
      %696 = vset.pattern.permute.xlu0 0
      %697 = vperm.xlu0 %696, %v574
      %v698 = vpop.permute.xlu0 %697
      %701 = vset.pattern.permute.xlu0 0
      %702 = vperm.xlu0 %701, %v575
      %v703 = vpop.permute.xlu0 %702
      %706 = vset.pattern.permute.xlu0 0
      %707 = vperm.xlu0 %706, %v576
      %v708 = vpop.permute.xlu0 %707
      %711 = vset.pattern.permute.xlu0 0
      %712 = vperm.xlu0 %711, %v577
      %v713 = vpop.permute.xlu0 %712
      %716 = vset.pattern.permute.xlu0 0
      %717 = vperm.xlu0 %716, %v578
      %v718 = vpop.permute.xlu0 %717
      %721 = vset.pattern.permute.xlu0 0
      %722 = vperm.xlu0 %721, %v579
      %v723 = vpop.permute.xlu0 %722
      %726 = vset.pattern.permute.xlu0 0
      %727 = vperm.xlu0 %726, %v580
      %v728 = vpop.permute.xlu0 %727
      %731 = vset.pattern.permute.xlu0 0
      %732 = vperm.xlu0 %731, %v581
      %v733 = vpop.permute.xlu0 %732
      %736 = vset.pattern.permute.xlu0 0
      %737 = vperm.xlu0 %736, %v582
      %v738 = vpop.permute.xlu0 %737
      %741 = vset.pattern.permute.xlu0 0
      %742 = vperm.xlu0 %741, %v583
      %v743 = vpop.permute.xlu0 %742
      %v745 = vlaneseq
      %v746 = vshrl.u32 %v745, 7
      %v747 = vsub.s32 0, %v746
      %v748 = vrot.slane %v584, %v747
      %v749 = vmul.f32 %v588, %v748
      %v750 = vmul.f32 %v593, %v748
      %v751 = vmul.f32 %v598, %v748
      %v752 = vmul.f32 %v603, %v748
      %v753 = vmul.f32 %v608, %v748
      %v754 = vmul.f32 %v613, %v748
      %v755 = vmul.f32 %v618, %v748
      %v756 = vmul.f32 %v623, %v748
      %v757 = vmul.f32 %v628, %v748
      %v758 = vmul.f32 %v633, %v748
      %v759 = vmul.f32 %v638, %v748
      %v760 = vmul.f32 %v643, %v748
      %v761 = vmul.f32 %v648, %v748
      %v762 = vmul.f32 %v653, %v748
      %v763 = vmul.f32 %v658, %v748
      %v764 = vmul.f32 %v663, %v748
      %v765 = vmul.f32 %v668, %v748
      %v766 = vmul.f32 %v673, %v748
      %v767 = vmul.f32 %v678, %v748
      %v768 = vmul.f32 %v683, %v748
      %v769 = vmul.f32 %v688, %v748
      %v770 = vmul.f32 %v693, %v748
      %v771 = vmul.f32 %v698, %v748
      %v772 = vmul.f32 %v703, %v748
      %v773 = vmul.f32 %v708, %v748
      %v774 = vmul.f32 %v713, %v748
      %v775 = vmul.f32 %v718, %v748
      %v776 = vmul.f32 %v723, %v748
      %v777 = vmul.f32 %v728, %v748
      %v778 = vmul.f32 %v733, %v748
      %v779 = vmul.f32 %v738, %v748
      %v780 = vmul.f32 %v743, %v748
      %v781 = vld [vmem:[%s2 + $0x1] sm:$0x1]
      %782 = vset.pattern.permute.xlu0 1
      %783 = vperm.xlu0 %782, %v552
      %v784 = vpop.permute.xlu0 %783
      %786 = vset.pattern.permute.xlu0 1
      %787 = vperm.xlu0 %786, %v553
      %v788 = vpop.permute.xlu0 %787
      %790 = vset.pattern.permute.xlu0 1
      %791 = vperm.xlu0 %790, %v554
      %v792 = vpop.permute.xlu0 %791
      %794 = vset.pattern.permute.xlu0 1
      %795 = vperm.xlu0 %794, %v555
      %v796 = vpop.permute.xlu0 %795
      %798 = vset.pattern.permute.xlu0 1
      %799 = vperm.xlu0 %798, %v556
      %v800 = vpop.permute.xlu0 %799
      %802 = vset.pattern.permute.xlu0 1
      %803 = vperm.xlu0 %802, %v557
      %v804 = vpop.permute.xlu0 %803
      %806 = vset.pattern.permute.xlu0 1
      %807 = vperm.xlu0 %806, %v558
      %v808 = vpop.permute.xlu0 %807
      %810 = vset.pattern.permute.xlu0 1
      %811 = vperm.xlu0 %810, %v559
      %v812 = vpop.permute.xlu0 %811
      %814 = vset.pattern.permute.xlu0 1
      %815 = vperm.xlu0 %814, %v560
      %v816 = vpop.permute.xlu0 %815
      %818 = vset.pattern.permute.xlu0 1
      %819 = vperm.xlu0 %818, %v561
      %v820 = vpop.permute.xlu0 %819
      %822 = vset.pattern.permute.xlu0 1
      %823 = vperm.xlu0 %822, %v562
      %v824 = vpop.permute.xlu0 %823
      %826 = vset.pattern.permute.xlu0 1
      %827 = vperm.xlu0 %826, %v563
      %v828 = vpop.permute.xlu0 %827
      %830 = vset.pattern.permute.xlu0 1
      %831 = vperm.xlu0 %830, %v564
      %v832 = vpop.permute.xlu0 %831
      %834 = vset.pattern.permute.xlu0 1
      %835 = vperm.xlu0 %834, %v565
      %v836 = vpop.permute.xlu0 %835
      %838 = vset.pattern.permute.xlu0 1
      %839 = vperm.xlu0 %838, %v566
      %v840 = vpop.permute.xlu0 %839
      %842 = vset.pattern.permute.xlu0 1
      %843 = vperm.xlu0 %842, %v567
      %v844 = vpop.permute.xlu0 %843
      %846 = vset.pattern.permute.xlu0 1
      %847 = vperm.xlu0 %846, %v568
      %v848 = vpop.permute.xlu0 %847
      %850 = vset.pattern.permute.xlu0 1
      %851 = vperm.xlu0 %850, %v569
      %v852 = vpop.permute.xlu0 %851
      %854 = vset.pattern.permute.xlu0 1
      %855 = vperm.xlu0 %854, %v570
      %v856 = vpop.permute.xlu0 %855
      %858 = vset.pattern.permute.xlu0 1
      %859 = vperm.xlu0 %858, %v571
      %v860 = vpop.permute.xlu0 %859
      %862 = vset.pattern.permute.xlu0 1
      %863 = vperm.xlu0 %862, %v572
      %v864 = vpop.permute.xlu0 %863
      %866 = vset.pattern.permute.xlu0 1
      %867 = vperm.xlu0 %866, %v573
      %v868 = vpop.permute.xlu0 %867
      %870 = vset.pattern.permute.xlu0 1
      %871 = vperm.xlu0 %870, %v574
      %v872 = vpop.permute.xlu0 %871
      %874 = vset.pattern.permute.xlu0 1
      %875 = vperm.xlu0 %874, %v575
      %v876 = vpop.permute.xlu0 %875
      %878 = vset.pattern.permute.xlu0 1
      %879 = vperm.xlu0 %878, %v576
      %v880 = vpop.permute.xlu0 %879
      %882 = vset.pattern.permute.xlu0 1
      %883 = vperm.xlu0 %882, %v577
      %v884 = vpop.permute.xlu0 %883
      %886 = vset.pattern.permute.xlu0 1
      %887 = vperm.xlu0 %886, %v578
      %v888 = vpop.permute.xlu0 %887
      %890 = vset.pattern.permute.xlu0 1
      %891 = vperm.xlu0 %890, %v579
      %v892 = vpop.permute.xlu0 %891
      %894 = vset.pattern.permute.xlu0 1
      %895 = vperm.xlu0 %894, %v580
      %v896 = vpop.permute.xlu0 %895
      %898 = vset.pattern.permute.xlu0 1
      %899 = vperm.xlu0 %898, %v581
      %v900 = vpop.permute.xlu0 %899
      %902 = vset.pattern.permute.xlu0 1
      %903 = vperm.xlu0 %902, %v582
      %v904 = vpop.permute.xlu0 %903
      %906 = vset.pattern.permute.xlu0 1
      %907 = vperm.xlu0 %906, %v583
      %v908 = vpop.permute.xlu0 %907
      %v910 = vlaneseq
      %v911 = vshrl.u32 %v910, 7
      %v912 = vsub.s32 0, %v911
      %v913 = vrot.slane %v781, %v912
      %v914 = vmul.f32 %v784, %v913
      %v915 = vmul.f32 %v788, %v913
      %v916 = vmul.f32 %v792, %v913
      %v917 = vmul.f32 %v796, %v913
      %v918 = vmul.f32 %v800, %v913
      %v919 = vmul.f32 %v804, %v913
      %v920 = vmul.f32 %v808, %v913
      %v921 = vmul.f32 %v812, %v913
      %v922 = vmul.f32 %v816, %v913
      %v923 = vmul.f32 %v820, %v913
      %v924 = vmul.f32 %v824, %v913
      %v925 = vmul.f32 %v828, %v913
      %v926 = vmul.f32 %v832, %v913
      %v927 = vmul.f32 %v836, %v913
      %v928 = vmul.f32 %v840, %v913
      %v929 = vmul.f32 %v844, %v913
      %v930 = vmul.f32 %v848, %v913
      %v931 = vmul.f32 %v852, %v913
      %v932 = vmul.f32 %v856, %v913
      %v933 = vmul.f32 %v860, %v913
      %v934 = vmul.f32 %v864, %v913
      %v935 = vmul.f32 %v868, %v913
      %v936 = vmul.f32 %v872, %v913
      %v937 = vmul.f32 %v876, %v913
      %v938 = vmul.f32 %v880, %v913
      %v939 = vmul.f32 %v884, %v913
      %v940 = vmul.f32 %v888, %v913
      %v941 = vmul.f32 %v892, %v913
      %v942 = vmul.f32 %v896, %v913
      %v943 = vmul.f32 %v900, %v913
      %v944 = vmul.f32 %v904, %v913
      %v945 = vmul.f32 %v908, %v913
      %v946 = vadd.f32 %v749, %v914
      %v947 = vadd.f32 %v750, %v915
      %v948 = vadd.f32 %v751, %v916
      %v949 = vadd.f32 %v752, %v917
      %v950 = vadd.f32 %v753, %v918
      %v951 = vadd.f32 %v754, %v919
      %v952 = vadd.f32 %v755, %v920
      %v953 = vadd.f32 %v756, %v921
      %v954 = vadd.f32 %v757, %v922
      %v955 = vadd.f32 %v758, %v923
      %v956 = vadd.f32 %v759, %v924
      %v957 = vadd.f32 %v760, %v925
      %v958 = vadd.f32 %v761, %v926
      %v959 = vadd.f32 %v762, %v927
      %v960 = vadd.f32 %v763, %v928
      %v961 = vadd.f32 %v764, %v929
      %v962 = vadd.f32 %v765, %v930
      %v963 = vadd.f32 %v766, %v931
      %v964 = vadd.f32 %v767, %v932
      %v965 = vadd.f32 %v768, %v933
      %v966 = vadd.f32 %v769, %v934
      %v967 = vadd.f32 %v770, %v935
      %v968 = vadd.f32 %v771, %v936
      %v969 = vadd.f32 %v772, %v937
      %v970 = vadd.f32 %v773, %v938
      %v971 = vadd.f32 %v774, %v939
      %v972 = vadd.f32 %v775, %v940
      %v973 = vadd.f32 %v776, %v941
      %v974 = vadd.f32 %v777, %v942
      %v975 = vadd.f32 %v778, %v943
      %v976 = vadd.f32 %v779, %v944
      %v977 = vadd.f32 %v780, %v945
      %v978 = vld [vmem:[%s3] sm:$0x1]
      %v980 = vlaneseq
      %v981 = vshrl.u32 %v980, 7
      %v982 = vsub.s32 0, %v981
      %v983 = vrot.slane %v978, %v982
      %v985 = vadd.f32 %v946, %v983
      %v986 = vadd.f32 %v947, %v983
      %v987 = vadd.f32 %v948, %v983
      %v988 = vadd.f32 %v949, %v983
      %v989 = vadd.f32 %v950, %v983
      %v990 = vadd.f32 %v951, %v983
      %v991 = vadd.f32 %v952, %v983
      %v992 = vadd.f32 %v953, %v983
      %v993 = vadd.f32 %v954, %v983
      %v994 = vadd.f32 %v955, %v983
      %v995 = vadd.f32 %v956, %v983
      %v996 = vadd.f32 %v957, %v983
      %v997 = vadd.f32 %v958, %v983
      %v998 = vadd.f32 %v959, %v983
      %v999 = vadd.f32 %v960, %v983
      %v1000 = vadd.f32 %v961, %v983
      %v1001 = vadd.f32 %v962, %v983
      %v1002 = vadd.f32 %v963, %v983
      %v1003 = vadd.f32 %v964, %v983
      %v1004 = vadd.f32 %v965, %v983
      %v1005 = vadd.f32 %v966, %v983
      %v1006 = vadd.f32 %v967, %v983
      %v1007 = vadd.f32 %v968, %v983
      %v1008 = vadd.f32 %v969, %v983
      %v1009 = vadd.f32 %v970, %v983
      %v1010 = vadd.f32 %v971, %v983
      %v1011 = vadd.f32 %v972, %v983
      %v1012 = vadd.f32 %v973, %v983
      %v1013 = vadd.f32 %v974, %v983
      %v1014 = vadd.f32 %v975, %v983
      %v1015 = vadd.f32 %v976, %v983
      %v1016 = vadd.f32 %v977, %v983
      %v1017 = vand.u32 2147483647, %v985
      %vm1018 = vcmp.le.f32.partialorder %v1017, 0.7853982
      %vm1019 = vcmp.lt.s32.totalorder %v985, 0
      %v1020 = vand.u32 %v985, 2139095040
      %v1021 = vshrl.u32 %v1020, 23
      %v1022 = vsub.s32 %v1021, 127
      %v1023 = vand.u32 2147483647, %v985
      %v1024 = vand.u32 %v1023, 8388607
      %v1025 = vor.u32 %v1024, 8388608
      %v1026 = vsub.s32 0, %v1025
      %v1027 = vadd.s32 %v1022, 1
      %vm1028 = vcmp.gt.s32.totalorder %v1027, 0
      %v1029 = vsel %vm1028, %v1027, 0
      %v1030 = vshrl.u32 %v1029, 5
      %v1031 = vand.u32 %v1029, 31
      %v1032 = vsub.s32 32, %v1031
      %v1033 = vshrl.u32 683565275, %v1032
      %v1034 = vshll.u32 683565275, %v1031
      %v1035 = vshrl.u32 2475754826, %v1032
      %v1036 = vor.u32 %v1034, %v1035
      %v1037 = vshll.u32 2475754826, %v1031
      %v1038 = vshrl.u32 2131351028, %v1032
      %v1039 = vor.u32 %v1037, %v1038
      %v1040 = vshll.u32 2131351028, %v1031
      %v1041 = vshrl.u32 2102212464, %v1032
      %v1042 = vor.u32 %v1040, %v1041
      %v1043 = vshll.u32 2102212464, %v1031
      %v1044 = vshrl.u32 920167782, %v1032
      %v1045 = vor.u32 %v1043, %v1044
      %v1046 = vshll.u32 920167782, %v1031
      %v1047 = vshrl.u32 1326507024, %v1032
      %v1048 = vor.u32 %v1046, %v1047
      %vm1049 = vcmp.lt.s32.totalorder %v1030, 1
      %vm1050 = vcmp.lt.s32.totalorder %v1030, 2
      %vm1051 = vcmp.lt.s32.totalorder %v1030, 3
      %vm1052 = vcmp.lt.s32.totalorder %v1030, 4
      %v1053 = vsel %vm1049, %v1033, %v1036
      %v1054 = vsel %vm1052, %v1042, 2102212464
      %v1055 = vsel %vm1051, %v1039, %v1054
      %v1056 = vsel %vm1050, %v1053, %v1055
      %v1057 = vsel %vm1049, %v1036, %v1039
      %v1058 = vsel %vm1052, %v1045, 920167782
      %v1059 = vsel %vm1051, %v1042, %v1058
      %v1060 = vsel %vm1050, %v1057, %v1059
      %v1061 = vsel %vm1049, %v1039, %v1042
      %v1062 = vsel %vm1052, %v1048, 1326507024
      %v1063 = vsel %vm1051, %v1045, %v1062
      %v1064 = vsel %vm1050, %v1061, %v1063
      %v1065 = vshll.u32 %v1025, 8
      %v1066 = vmul.u32.u64.compose %v1065, %v1064
      %v1067 = vextract.low.u32 %v1066
      %v1068 = vextract.high.u32 %v1066
      %v1069 = vmul.u32.u64.compose %v1065, %v1060
      %v1070 = vextract.low.u32 %v1069
      %v1071 = vextract.high.u32 %v1069
      %v1072 = vmul.u32 %v1065, %v1056
      %v1073 = vadd.s32 %v1068, %v1070
      %vm1074 = vc.u32 %v1068, %v1070
      %v1075 = vadd.s32 %v1071, 1
      %v1076 = vsel %vm1074, %v1075, %v1071
      %v1077 = vadd.s32 %v1072, %v1076
      %v1078 = vadd.s32 %v1077, 536870912
      %v1079 = vshrl.u32 %v1078, 30
      %v1080 = vshll.u32 %v1079, 30
      %v1081 = vsub.s32 %v1077, %v1080
      %vm1082 = vcmp.lt.s32.totalorder %v1081, 0
      %v1083 = vsub.s32 0, %v1081
      %v1084 = vsel %vm1082, %v1083, %v1081
      %v1085 = vclz %v1084
      %v1086 = vsub.s32 %v1085, 2
      %vm1087 = vcmp.gt.s32.totalorder 0, %v1086
      %v1088 = vsel %vm1087, 0, %v1086
      %v1089 = vsub.s32 32, %v1088
      %v1090 = vshll.u32 %v1081, %v1088
      %v1091 = vshrl.u32 %v1073, %v1089
      %v1092 = vor.u32 %v1090, %v1091
      %v1093 = vsub.s32 4294967266, %v1088
      %v1094 = vadd.s32 %v1093, 127
      %v1095 = vshll.u32 %v1094, 23
      %v1096 = vor.u32 4788187, %v1095
      %v1097 = vand.u32 2147483647, %v1096
      %v1099 = vcvt.s32.f32 %v1092
      %v1100 = vmul.f32 %v1099, %v1097
      %v1101 = vxor.u32 %v1100, 2147483648
      %v1102 = vsel %vm1019, %v1101, %v1100
      %v1103 = vsub.s32 4, %v1079
      %v1104 = vsel %vm1019, %v1103, %v1079
      %v1105 = vsel %vm1018, %v985, %v1102
      %v1106 = vsel %vm1018, 0, %v1104
      %v1107 = vcosq.f32.pop %v1105
      %v1108 = vsinq.f32.pop %v1105
      %vm1109 = vweird.f32 %v985
      %v1110 = vand.u32 %v1106, 3
      %vm1111 = vcmp.lt.s32.totalorder %v1110, 2
      %vm1112 = vcmp.eq.s32.totalorder %v1110, 0
      %v1113 = vxor.u32 %v1108, 2147483648
      %v1114 = vsel %vm1112, %v1107, %v1113
      %vm1115 = vcmp.eq.s32.totalorder %v1110, 2
      %v1116 = vxor.u32 %v1107, 2147483648
      %v1117 = vsel %vm1115, %v1116, %v1108
      %v1118 = vsel %vm1111, %v1114, %v1117
      %v1119 = vsel %vm1109, nan, %v1118
      %v1120 = vand.u32 2147483647, %v986
      %vm1121 = vcmp.le.f32.partialorder %v1120, 0.7853982
      %vm1122 = vcmp.lt.s32.totalorder %v986, 0
      %v1123 = vand.u32 %v986, 2139095040
      %v1124 = vshrl.u32 %v1123, 23
      %v1125 = vsub.s32 %v1124, 127
      %v1126 = vand.u32 2147483647, %v986
      %v1127 = vand.u32 %v1126, 8388607
      %v1128 = vor.u32 %v1127, 8388608
      %v1129 = vsub.s32 0, %v1128
      %v1130 = vadd.s32 %v1125, 1
      %vm1131 = vcmp.gt.s32.totalorder %v1130, 0
      %v1132 = vsel %vm1131, %v1130, 0
      %v1133 = vshrl.u32 %v1132, 5
      %v1134 = vand.u32 %v1132, 31
      %v1135 = vsub.s32 32, %v1134
      %v1136 = vshrl.u32 683565275, %v1135
      %v1137 = vshll.u32 683565275, %v1134
      %v1138 = vshrl.u32 2475754826, %v1135
      %v1139 = vor.u32 %v1137, %v1138
      %v1140 = vshll.u32 2475754826, %v1134
      %v1141 = vshrl.u32 2131351028, %v1135
      %v1142 = vor.u32 %v1140, %v1141
      %v1143 = vshll.u32 2131351028, %v1134
      %v1144 = vshrl.u32 2102212464, %v1135
      %v1145 = vor.u32 %v1143, %v1144
      %v1146 = vshll.u32 2102212464, %v1134
      %v1147 = vshrl.u32 920167782, %v1135
      %v1148 = vor.u32 %v1146, %v1147
      %v1149 = vshll.u32 920167782, %v1134
      %v1150 = vshrl.u32 1326507024, %v1135
      %v1151 = vor.u32 %v1149, %v1150
      %vm1152 = vcmp.lt.s32.totalorder %v1133, 1
      %vm1153 = vcmp.lt.s32.totalorder %v1133, 2
      %vm1154 = vcmp.lt.s32.totalorder %v1133, 3
      %vm1155 = vcmp.lt.s32.totalorder %v1133, 4
      %v1156 = vsel %vm1152, %v1136, %v1139
      %v1157 = vsel %vm1155, %v1145, 2102212464
      %v1158 = vsel %vm1154, %v1142, %v1157
      %v1159 = vsel %vm1153, %v1156, %v1158
      %v1160 = vsel %vm1152, %v1139, %v1142
      %v1161 = vsel %vm1155, %v1148, 920167782
      %v1162 = vsel %vm1154, %v1145, %v1161
      %v1163 = vsel %vm1153, %v1160, %v1162
      %v1164 = vsel %vm1152, %v1142, %v1145
      %v1165 = vsel %vm1155, %v1151, 1326507024
      %v1166 = vsel %vm1154, %v1148, %v1165
      %v1167 = vsel %vm1153, %v1164, %v1166
      %v1168 = vshll.u32 %v1128, 8
      %v1169 = vmul.u32.u64.compose %v1168, %v1167
      %v1170 = vextract.low.u32 %v1169
      %v1171 = vextract.high.u32 %v1169
      %v1172 = vmul.u32.u64.compose %v1168, %v1163
      %v1173 = vextract.low.u32 %v1172
      %v1174 = vextract.high.u32 %v1172
      %v1175 = vmul.u32 %v1168, %v1159
      %v1176 = vadd.s32 %v1171, %v1173
      %vm1177 = vc.u32 %v1171, %v1173
      %v1178 = vadd.s32 %v1174, 1
      %v1179 = vsel %vm1177, %v1178, %v1174
      %v1180 = vadd.s32 %v1175, %v1179
      %v1181 = vadd.s32 %v1180, 536870912
      %v1182 = vshrl.u32 %v1181, 30
      %v1183 = vshll.u32 %v1182, 30
      %v1184 = vsub.s32 %v1180, %v1183
      %vm1185 = vcmp.lt.s32.totalorder %v1184, 0
      %v1186 = vsub.s32 0, %v1184
      %v1187 = vsel %vm1185, %v1186, %v1184
      %v1188 = vclz %v1187
      %v1189 = vsub.s32 %v1188, 2
      %vm1190 = vcmp.gt.s32.totalorder 0, %v1189
      %v1191 = vsel %vm1190, 0, %v1189
      %v1192 = vsub.s32 32, %v1191
      %v1193 = vshll.u32 %v1184, %v1191
      %v1194 = vshrl.u32 %v1176, %v1192
      %v1195 = vor.u32 %v1193, %v1194
      %v1196 = vsub.s32 4294967266, %v1191
      %v1197 = vadd.s32 %v1196, 127
      %v1198 = vshll.u32 %v1197, 23
      %v1199 = vor.u32 4788187, %v1198
      %v1200 = vand.u32 2147483647, %v1199
      %v1202 = vcvt.s32.f32 %v1195
      %v1203 = vmul.f32 %v1202, %v1200
      %v1204 = vxor.u32 %v1203, 2147483648
      %v1205 = vsel %vm1122, %v1204, %v1203
      %v1206 = vsub.s32 4, %v1182
      %v1207 = vsel %vm1122, %v1206, %v1182
      %v1208 = vsel %vm1121, %v986, %v1205
      %v1209 = vsel %vm1121, 0, %v1207
      %v1210 = vcosq.f32.pop %v1208
      %v1211 = vsinq.f32.pop %v1208
      %vm1212 = vweird.f32 %v986
      %v1213 = vand.u32 %v1209, 3
      %vm1214 = vcmp.lt.s32.totalorder %v1213, 2
      %vm1215 = vcmp.eq.s32.totalorder %v1213, 0
      %v1216 = vxor.u32 %v1211, 2147483648
      %v1217 = vsel %vm1215, %v1210, %v1216
      %vm1218 = vcmp.eq.s32.totalorder %v1213, 2
      %v1219 = vxor.u32 %v1210, 2147483648
      %v1220 = vsel %vm1218, %v1219, %v1211
      %v1221 = vsel %vm1214, %v1217, %v1220
      %v1222 = vsel %vm1212, nan, %v1221
      %v1223 = vand.u32 2147483647, %v987
      %vm1224 = vcmp.le.f32.partialorder %v1223, 0.7853982
      %vm1225 = vcmp.lt.s32.totalorder %v987, 0
      %v1226 = vand.u32 %v987, 2139095040
      %v1227 = vshrl.u32 %v1226, 23
      %v1228 = vsub.s32 %v1227, 127
      %v1229 = vand.u32 2147483647, %v987
      %v1230 = vand.u32 %v1229, 8388607
      %v1231 = vor.u32 %v1230, 8388608
      %v1232 = vsub.s32 0, %v1231
      %v1233 = vadd.s32 %v1228, 1
      %vm1234 = vcmp.gt.s32.totalorder %v1233, 0
      %v1235 = vsel %vm1234, %v1233, 0
      %v1236 = vshrl.u32 %v1235, 5
      %v1237 = vand.u32 %v1235, 31
      %v1238 = vsub.s32 32, %v1237
      %v1239 = vshrl.u32 683565275, %v1238
      %v1240 = vshll.u32 683565275, %v1237
      %v1241 = vshrl.u32 2475754826, %v1238
      %v1242 = vor.u32 %v1240, %v1241
      %v1243 = vshll.u32 2475754826, %v1237
      %v1244 = vshrl.u32 2131351028, %v1238
      %v1245 = vor.u32 %v1243, %v1244
      %v1246 = vshll.u32 2131351028, %v1237
      %v1247 = vshrl.u32 2102212464, %v1238
      %v1248 = vor.u32 %v1246, %v1247
      %v1249 = vshll.u32 2102212464, %v1237
      %v1250 = vshrl.u32 920167782, %v1238
      %v1251 = vor.u32 %v1249, %v1250
      %v1252 = vshll.u32 920167782, %v1237
      %v1253 = vshrl.u32 1326507024, %v1238
      %v1254 = vor.u32 %v1252, %v1253
      %vm1255 = vcmp.lt.s32.totalorder %v1236, 1
      %vm1256 = vcmp.lt.s32.totalorder %v1236, 2
      %vm1257 = vcmp.lt.s32.totalorder %v1236, 3
      %vm1258 = vcmp.lt.s32.totalorder %v1236, 4
      %v1259 = vsel %vm1255, %v1239, %v1242
      %v1260 = vsel %vm1258, %v1248, 2102212464
      %v1261 = vsel %vm1257, %v1245, %v1260
      %v1262 = vsel %vm1256, %v1259, %v1261
      %v1263 = vsel %vm1255, %v1242, %v1245
      %v1264 = vsel %vm1258, %v1251, 920167782
      %v1265 = vsel %vm1257, %v1248, %v1264
      %v1266 = vsel %vm1256, %v1263, %v1265
      %v1267 = vsel %vm1255, %v1245, %v1248
      %v1268 = vsel %vm1258, %v1254, 1326507024
      %v1269 = vsel %vm1257, %v1251, %v1268
      %v1270 = vsel %vm1256, %v1267, %v1269
      %v1271 = vshll.u32 %v1231, 8
      %v1272 = vmul.u32.u64.compose %v1271, %v1270
      %v1273 = vextract.low.u32 %v1272
      %v1274 = vextract.high.u32 %v1272
      %v1275 = vmul.u32.u64.compose %v1271, %v1266
      %v1276 = vextract.low.u32 %v1275
      %v1277 = vextract.high.u32 %v1275
      %v1278 = vmul.u32 %v1271, %v1262
      %v1279 = vadd.s32 %v1274, %v1276
      %vm1280 = vc.u32 %v1274, %v1276
      %v1281 = vadd.s32 %v1277, 1
      %v1282 = vsel %vm1280, %v1281, %v1277
      %v1283 = vadd.s32 %v1278, %v1282
      %v1284 = vadd.s32 %v1283, 536870912
      %v1285 = vshrl.u32 %v1284, 30
      %v1286 = vshll.u32 %v1285, 30
      %v1287 = vsub.s32 %v1283, %v1286
      %vm1288 = vcmp.lt.s32.totalorder %v1287, 0
      %v1289 = vsub.s32 0, %v1287
      %v1290 = vsel %vm1288, %v1289, %v1287
      %v1291 = vclz %v1290
      %v1292 = vsub.s32 %v1291, 2
      %vm1293 = vcmp.gt.s32.totalorder 0, %v1292
      %v1294 = vsel %vm1293, 0, %v1292
      %v1295 = vsub.s32 32, %v1294
      %v1296 = vshll.u32 %v1287, %v1294
      %v1297 = vshrl.u32 %v1279, %v1295
      %v1298 = vor.u32 %v1296, %v1297
      %v1299 = vsub.s32 4294967266, %v1294
      %v1300 = vadd.s32 %v1299, 127
      %v1301 = vshll.u32 %v1300, 23
      %v1302 = vor.u32 4788187, %v1301
      %v1303 = vand.u32 2147483647, %v1302
      %v1305 = vcvt.s32.f32 %v1298
      %v1306 = vmul.f32 %v1305, %v1303
      %v1307 = vxor.u32 %v1306, 2147483648
      %v1308 = vsel %vm1225, %v1307, %v1306
      %v1309 = vsub.s32 4, %v1285
      %v1310 = vsel %vm1225, %v1309, %v1285
      %v1311 = vsel %vm1224, %v987, %v1308
      %v1312 = vsel %vm1224, 0, %v1310
      %v1313 = vcosq.f32.pop %v1311
      %v1314 = vsinq.f32.pop %v1311
      %vm1315 = vweird.f32 %v987
      %v1316 = vand.u32 %v1312, 3
      %vm1317 = vcmp.lt.s32.totalorder %v1316, 2
      %vm1318 = vcmp.eq.s32.totalorder %v1316, 0
      %v1319 = vxor.u32 %v1314, 2147483648
      %v1320 = vsel %vm1318, %v1313, %v1319
      %vm1321 = vcmp.eq.s32.totalorder %v1316, 2
      %v1322 = vxor.u32 %v1313, 2147483648
      %v1323 = vsel %vm1321, %v1322, %v1314
      %v1324 = vsel %vm1317, %v1320, %v1323
      %v1325 = vsel %vm1315, nan, %v1324
      %v1326 = vand.u32 2147483647, %v988
      %vm1327 = vcmp.le.f32.partialorder %v1326, 0.7853982
      %vm1328 = vcmp.lt.s32.totalorder %v988, 0
      %v1329 = vand.u32 %v988, 2139095040
      %v1330 = vshrl.u32 %v1329, 23
      %v1331 = vsub.s32 %v1330, 127
      %v1332 = vand.u32 2147483647, %v988
      %v1333 = vand.u32 %v1332, 8388607
      %v1334 = vor.u32 %v1333, 8388608
      %v1335 = vsub.s32 0, %v1334
      %v1336 = vadd.s32 %v1331, 1
      %vm1337 = vcmp.gt.s32.totalorder %v1336, 0
      %v1338 = vsel %vm1337, %v1336, 0
      %v1339 = vshrl.u32 %v1338, 5
      %v1340 = vand.u32 %v1338, 31
      %v1341 = vsub.s32 32, %v1340
      %v1342 = vshrl.u32 683565275, %v1341
      %v1343 = vshll.u32 683565275, %v1340
      %v1344 = vshrl.u32 2475754826, %v1341
      %v1345 = vor.u32 %v1343, %v1344
      %v1346 = vshll.u32 2475754826, %v1340
      %v1347 = vshrl.u32 2131351028, %v1341
      %v1348 = vor.u32 %v1346, %v1347
      %v1349 = vshll.u32 2131351028, %v1340
      %v1350 = vshrl.u32 2102212464, %v1341
      %v1351 = vor.u32 %v1349, %v1350
      %v1352 = vshll.u32 2102212464, %v1340
      %v1353 = vshrl.u32 920167782, %v1341
      %v1354 = vor.u32 %v1352, %v1353
      %v1355 = vshll.u32 920167782, %v1340
      %v1356 = vshrl.u32 1326507024, %v1341
      %v1357 = vor.u32 %v1355, %v1356
      %vm1358 = vcmp.lt.s32.totalorder %v1339, 1
      %vm1359 = vcmp.lt.s32.totalorder %v1339, 2
      %vm1360 = vcmp.lt.s32.totalorder %v1339, 3
      %vm1361 = vcmp.lt.s32.totalorder %v1339, 4
      %v1362 = vsel %vm1358, %v1342, %v1345
      %v1363 = vsel %vm1361, %v1351, 2102212464
      %v1364 = vsel %vm1360, %v1348, %v1363
      %v1365 = vsel %vm1359, %v1362, %v1364
      %v1366 = vsel %vm1358, %v1345, %v1348
      %v1367 = vsel %vm1361, %v1354, 920167782
      %v1368 = vsel %vm1360, %v1351, %v1367
      %v1369 = vsel %vm1359, %v1366, %v1368
      %v1370 = vsel %vm1358, %v1348, %v1351
      %v1371 = vsel %vm1361, %v1357, 1326507024
      %v1372 = vsel %vm1360, %v1354, %v1371
      %v1373 = vsel %vm1359, %v1370, %v1372
      %v1374 = vshll.u32 %v1334, 8
      %v1375 = vmul.u32.u64.compose %v1374, %v1373
      %v1376 = vextract.low.u32 %v1375
      %v1377 = vextract.high.u32 %v1375
      %v1378 = vmul.u32.u64.compose %v1374, %v1369
      %v1379 = vextract.low.u32 %v1378
      %v1380 = vextract.high.u32 %v1378
      %v1381 = vmul.u32 %v1374, %v1365
      %v1382 = vadd.s32 %v1377, %v1379
      %vm1383 = vc.u32 %v1377, %v1379
      %v1384 = vadd.s32 %v1380, 1
      %v1385 = vsel %vm1383, %v1384, %v1380
      %v1386 = vadd.s32 %v1381, %v1385
      %v1387 = vadd.s32 %v1386, 536870912
      %v1388 = vshrl.u32 %v1387, 30
      %v1389 = vshll.u32 %v1388, 30
      %v1390 = vsub.s32 %v1386, %v1389
      %vm1391 = vcmp.lt.s32.totalorder %v1390, 0
      %v1392 = vsub.s32 0, %v1390
      %v1393 = vsel %vm1391, %v1392, %v1390
      %v1394 = vclz %v1393
      %v1395 = vsub.s32 %v1394, 2
      %vm1396 = vcmp.gt.s32.totalorder 0, %v1395
      %v1397 = vsel %vm1396, 0, %v1395
      %v1398 = vsub.s32 32, %v1397
      %v1399 = vshll.u32 %v1390, %v1397
      %v1400 = vshrl.u32 %v1382, %v1398
      %v1401 = vor.u32 %v1399, %v1400
      %v1402 = vsub.s32 4294967266, %v1397
      %v1403 = vadd.s32 %v1402, 127
      %v1404 = vshll.u32 %v1403, 23
      %v1405 = vor.u32 4788187, %v1404
      %v1406 = vand.u32 2147483647, %v1405
      %v1408 = vcvt.s32.f32 %v1401
      %v1409 = vmul.f32 %v1408, %v1406
      %v1410 = vxor.u32 %v1409, 2147483648
      %v1411 = vsel %vm1328, %v1410, %v1409
      %v1412 = vsub.s32 4, %v1388
      %v1413 = vsel %vm1328, %v1412, %v1388
      %v1414 = vsel %vm1327, %v988, %v1411
      %v1415 = vsel %vm1327, 0, %v1413
      %v1416 = vcosq.f32.pop %v1414
      %v1417 = vsinq.f32.pop %v1414
      %vm1418 = vweird.f32 %v988
      %v1419 = vand.u32 %v1415, 3
      %vm1420 = vcmp.lt.s32.totalorder %v1419, 2
      %vm1421 = vcmp.eq.s32.totalorder %v1419, 0
      %v1422 = vxor.u32 %v1417, 2147483648
      %v1423 = vsel %vm1421, %v1416, %v1422
      %vm1424 = vcmp.eq.s32.totalorder %v1419, 2
      %v1425 = vxor.u32 %v1416, 2147483648
      %v1426 = vsel %vm1424, %v1425, %v1417
      %v1427 = vsel %vm1420, %v1423, %v1426
      %v1428 = vsel %vm1418, nan, %v1427
      %v1429 = vand.u32 2147483647, %v989
      %vm1430 = vcmp.le.f32.partialorder %v1429, 0.7853982
      %vm1431 = vcmp.lt.s32.totalorder %v989, 0
      %v1432 = vand.u32 %v989, 2139095040
      %v1433 = vshrl.u32 %v1432, 23
      %v1434 = vsub.s32 %v1433, 127
      %v1435 = vand.u32 2147483647, %v989
      %v1436 = vand.u32 %v1435, 8388607
      %v1437 = vor.u32 %v1436, 8388608
      %v1438 = vsub.s32 0, %v1437
      %v1439 = vadd.s32 %v1434, 1
      %vm1440 = vcmp.gt.s32.totalorder %v1439, 0
      %v1441 = vsel %vm1440, %v1439, 0
      %v1442 = vshrl.u32 %v1441, 5
      %v1443 = vand.u32 %v1441, 31
      %v1444 = vsub.s32 32, %v1443
      %v1445 = vshrl.u32 683565275, %v1444
      %v1446 = vshll.u32 683565275, %v1443
      %v1447 = vshrl.u32 2475754826, %v1444
      %v1448 = vor.u32 %v1446, %v1447
      %v1449 = vshll.u32 2475754826, %v1443
      %v1450 = vshrl.u32 2131351028, %v1444
      %v1451 = vor.u32 %v1449, %v1450
      %v1452 = vshll.u32 2131351028, %v1443
      %v1453 = vshrl.u32 2102212464, %v1444
      %v1454 = vor.u32 %v1452, %v1453
      %v1455 = vshll.u32 2102212464, %v1443
      %v1456 = vshrl.u32 920167782, %v1444
      %v1457 = vor.u32 %v1455, %v1456
      %v1458 = vshll.u32 920167782, %v1443
      %v1459 = vshrl.u32 1326507024, %v1444
      %v1460 = vor.u32 %v1458, %v1459
      %vm1461 = vcmp.lt.s32.totalorder %v1442, 1
      %vm1462 = vcmp.lt.s32.totalorder %v1442, 2
      %vm1463 = vcmp.lt.s32.totalorder %v1442, 3
      %vm1464 = vcmp.lt.s32.totalorder %v1442, 4
      %v1465 = vsel %vm1461, %v1445, %v1448
      %v1466 = vsel %vm1464, %v1454, 2102212464
      %v1467 = vsel %vm1463, %v1451, %v1466
      %v1468 = vsel %vm1462, %v1465, %v1467
      %v1469 = vsel %vm1461, %v1448, %v1451
      %v1470 = vsel %vm1464, %v1457, 920167782
      %v1471 = vsel %vm1463, %v1454, %v1470
      %v1472 = vsel %vm1462, %v1469, %v1471
      %v1473 = vsel %vm1461, %v1451, %v1454
      %v1474 = vsel %vm1464, %v1460, 1326507024
      %v1475 = vsel %vm1463, %v1457, %v1474
      %v1476 = vsel %vm1462, %v1473, %v1475
      %v1477 = vshll.u32 %v1437, 8
      %v1478 = vmul.u32.u64.compose %v1477, %v1476
      %v1479 = vextract.low.u32 %v1478
      %v1480 = vextract.high.u32 %v1478
      %v1481 = vmul.u32.u64.compose %v1477, %v1472
      %v1482 = vextract.low.u32 %v1481
      %v1483 = vextract.high.u32 %v1481
      %v1484 = vmul.u32 %v1477, %v1468
      %v1485 = vadd.s32 %v1480, %v1482
      %vm1486 = vc.u32 %v1480, %v1482
      %v1487 = vadd.s32 %v1483, 1
      %v1488 = vsel %vm1486, %v1487, %v1483
      %v1489 = vadd.s32 %v1484, %v1488
      %v1490 = vadd.s32 %v1489, 536870912
      %v1491 = vshrl.u32 %v1490, 30
      %v1492 = vshll.u32 %v1491, 30
      %v1493 = vsub.s32 %v1489, %v1492
      %vm1494 = vcmp.lt.s32.totalorder %v1493, 0
      %v1495 = vsub.s32 0, %v1493
      %v1496 = vsel %vm1494, %v1495, %v1493
      %v1497 = vclz %v1496
      %v1498 = vsub.s32 %v1497, 2
      %vm1499 = vcmp.gt.s32.totalorder 0, %v1498
      %v1500 = vsel %vm1499, 0, %v1498
      %v1501 = vsub.s32 32, %v1500
      %v1502 = vshll.u32 %v1493, %v1500
      %v1503 = vshrl.u32 %v1485, %v1501
      %v1504 = vor.u32 %v1502, %v1503
      %v1505 = vsub.s32 4294967266, %v1500
      %v1506 = vadd.s32 %v1505, 127
      %v1507 = vshll.u32 %v1506, 23
      %v1508 = vor.u32 4788187, %v1507
      %v1509 = vand.u32 2147483647, %v1508
      %v1511 = vcvt.s32.f32 %v1504
      %v1512 = vmul.f32 %v1511, %v1509
      %v1513 = vxor.u32 %v1512, 2147483648
      %v1514 = vsel %vm1431, %v1513, %v1512
      %v1515 = vsub.s32 4, %v1491
      %v1516 = vsel %vm1431, %v1515, %v1491
      %v1517 = vsel %vm1430, %v989, %v1514
      %v1518 = vsel %vm1430, 0, %v1516
      %v1519 = vcosq.f32.pop %v1517
      %v1520 = vsinq.f32.pop %v1517
      %vm1521 = vweird.f32 %v989
      %v1522 = vand.u32 %v1518, 3
      %vm1523 = vcmp.lt.s32.totalorder %v1522, 2
      %vm1524 = vcmp.eq.s32.totalorder %v1522, 0
      %v1525 = vxor.u32 %v1520, 2147483648
      %v1526 = vsel %vm1524, %v1519, %v1525
      %vm1527 = vcmp.eq.s32.totalorder %v1522, 2
      %v1528 = vxor.u32 %v1519, 2147483648
      %v1529 = vsel %vm1527, %v1528, %v1520
      %v1530 = vsel %vm1523, %v1526, %v1529
      %v1531 = vsel %vm1521, nan, %v1530
      %v1532 = vand.u32 2147483647, %v990
      %vm1533 = vcmp.le.f32.partialorder %v1532, 0.7853982
      %vm1534 = vcmp.lt.s32.totalorder %v990, 0
      %v1535 = vand.u32 %v990, 2139095040
      %v1536 = vshrl.u32 %v1535, 23
      %v1537 = vsub.s32 %v1536, 127
      %v1538 = vand.u32 2147483647, %v990
      %v1539 = vand.u32 %v1538, 8388607
      %v1540 = vor.u32 %v1539, 8388608
      %v1541 = vsub.s32 0, %v1540
      %v1542 = vadd.s32 %v1537, 1
      %vm1543 = vcmp.gt.s32.totalorder %v1542, 0
      %v1544 = vsel %vm1543, %v1542, 0
      %v1545 = vshrl.u32 %v1544, 5
      %v1546 = vand.u32 %v1544, 31
      %v1547 = vsub.s32 32, %v1546
      %v1548 = vshrl.u32 683565275, %v1547
      %v1549 = vshll.u32 683565275, %v1546
      %v1550 = vshrl.u32 2475754826, %v1547
      %v1551 = vor.u32 %v1549, %v1550
      %v1552 = vshll.u32 2475754826, %v1546
      %v1553 = vshrl.u32 2131351028, %v1547
      %v1554 = vor.u32 %v1552, %v1553
      %v1555 = vshll.u32 2131351028, %v1546
      %v1556 = vshrl.u32 2102212464, %v1547
      %v1557 = vor.u32 %v1555, %v1556
      %v1558 = vshll.u32 2102212464, %v1546
      %v1559 = vshrl.u32 920167782, %v1547
      %v1560 = vor.u32 %v1558, %v1559
      %v1561 = vshll.u32 920167782, %v1546
      %v1562 = vshrl.u32 1326507024, %v1547
      %v1563 = vor.u32 %v1561, %v1562
      %vm1564 = vcmp.lt.s32.totalorder %v1545, 1
      %vm1565 = vcmp.lt.s32.totalorder %v1545, 2
      %vm1566 = vcmp.lt.s32.totalorder %v1545, 3
      %vm1567 = vcmp.lt.s32.totalorder %v1545, 4
      %v1568 = vsel %vm1564, %v1548, %v1551
      %v1569 = vsel %vm1567, %v1557, 2102212464
      %v1570 = vsel %vm1566, %v1554, %v1569
      %v1571 = vsel %vm1565, %v1568, %v1570
      %v1572 = vsel %vm1564, %v1551, %v1554
      %v1573 = vsel %vm1567, %v1560, 920167782
      %v1574 = vsel %vm1566, %v1557, %v1573
      %v1575 = vsel %vm1565, %v1572, %v1574
      %v1576 = vsel %vm1564, %v1554, %v1557
      %v1577 = vsel %vm1567, %v1563, 1326507024
      %v1578 = vsel %vm1566, %v1560, %v1577
      %v1579 = vsel %vm1565, %v1576, %v1578
      %v1580 = vshll.u32 %v1540, 8
      %v1581 = vmul.u32.u64.compose %v1580, %v1579
      %v1582 = vextract.low.u32 %v1581
      %v1583 = vextract.high.u32 %v1581
      %v1584 = vmul.u32.u64.compose %v1580, %v1575
      %v1585 = vextract.low.u32 %v1584
      %v1586 = vextract.high.u32 %v1584
      %v1587 = vmul.u32 %v1580, %v1571
      %v1588 = vadd.s32 %v1583, %v1585
      %vm1589 = vc.u32 %v1583, %v1585
      %v1590 = vadd.s32 %v1586, 1
      %v1591 = vsel %vm1589, %v1590, %v1586
      %v1592 = vadd.s32 %v1587, %v1591
      %v1593 = vadd.s32 %v1592, 536870912
      %v1594 = vshrl.u32 %v1593, 30
      %v1595 = vshll.u32 %v1594, 30
      %v1596 = vsub.s32 %v1592, %v1595
      %vm1597 = vcmp.lt.s32.totalorder %v1596, 0
      %v1598 = vsub.s32 0, %v1596
      %v1599 = vsel %vm1597, %v1598, %v1596
      %v1600 = vclz %v1599
      %v1601 = vsub.s32 %v1600, 2
      %vm1602 = vcmp.gt.s32.totalorder 0, %v1601
      %v1603 = vsel %vm1602, 0, %v1601
      %v1604 = vsub.s32 32, %v1603
      %v1605 = vshll.u32 %v1596, %v1603
      %v1606 = vshrl.u32 %v1588, %v1604
      %v1607 = vor.u32 %v1605, %v1606
      %v1608 = vsub.s32 4294967266, %v1603
      %v1609 = vadd.s32 %v1608, 127
      %v1610 = vshll.u32 %v1609, 23
      %v1611 = vor.u32 4788187, %v1610
      %v1612 = vand.u32 2147483647, %v1611
      %v1614 = vcvt.s32.f32 %v1607
      %v1615 = vmul.f32 %v1614, %v1612
      %v1616 = vxor.u32 %v1615, 2147483648
      %v1617 = vsel %vm1534, %v1616, %v1615
      %v1618 = vsub.s32 4, %v1594
      %v1619 = vsel %vm1534, %v1618, %v1594
      %v1620 = vsel %vm1533, %v990, %v1617
      %v1621 = vsel %vm1533, 0, %v1619
      %v1622 = vcosq.f32.pop %v1620
      %v1623 = vsinq.f32.pop %v1620
      %vm1624 = vweird.f32 %v990
      %v1625 = vand.u32 %v1621, 3
      %vm1626 = vcmp.lt.s32.totalorder %v1625, 2
      %vm1627 = vcmp.eq.s32.totalorder %v1625, 0
      %v1628 = vxor.u32 %v1623, 2147483648
      %v1629 = vsel %vm1627, %v1622, %v1628
      %vm1630 = vcmp.eq.s32.totalorder %v1625, 2
      %v1631 = vxor.u32 %v1622, 2147483648
      %v1632 = vsel %vm1630, %v1631, %v1623
      %v1633 = vsel %vm1626, %v1629, %v1632
      %v1634 = vsel %vm1624, nan, %v1633
      %v1635 = vand.u32 2147483647, %v991
      %vm1636 = vcmp.le.f32.partialorder %v1635, 0.7853982
      %vm1637 = vcmp.lt.s32.totalorder %v991, 0
      %v1638 = vand.u32 %v991, 2139095040
      %v1639 = vshrl.u32 %v1638, 23
      %v1640 = vsub.s32 %v1639, 127
      %v1641 = vand.u32 2147483647, %v991
      %v1642 = vand.u32 %v1641, 8388607
      %v1643 = vor.u32 %v1642, 8388608
      %v1644 = vsub.s32 0, %v1643
      %v1645 = vadd.s32 %v1640, 1
      %vm1646 = vcmp.gt.s32.totalorder %v1645, 0
      %v1647 = vsel %vm1646, %v1645, 0
      %v1648 = vshrl.u32 %v1647, 5
      %v1649 = vand.u32 %v1647, 31
      %v1650 = vsub.s32 32, %v1649
      %v1651 = vshrl.u32 683565275, %v1650
      %v1652 = vshll.u32 683565275, %v1649
      %v1653 = vshrl.u32 2475754826, %v1650
      %v1654 = vor.u32 %v1652, %v1653
      %v1655 = vshll.u32 2475754826, %v1649
      %v1656 = vshrl.u32 2131351028, %v1650
      %v1657 = vor.u32 %v1655, %v1656
      %v1658 = vshll.u32 2131351028, %v1649
      %v1659 = vshrl.u32 2102212464, %v1650
      %v1660 = vor.u32 %v1658, %v1659
      %v1661 = vshll.u32 2102212464, %v1649
      %v1662 = vshrl.u32 920167782, %v1650
      %v1663 = vor.u32 %v1661, %v1662
      %v1664 = vshll.u32 920167782, %v1649
      %v1665 = vshrl.u32 1326507024, %v1650
      %v1666 = vor.u32 %v1664, %v1665
      %vm1667 = vcmp.lt.s32.totalorder %v1648, 1
      %vm1668 = vcmp.lt.s32.totalorder %v1648, 2
      %vm1669 = vcmp.lt.s32.totalorder %v1648, 3
      %vm1670 = vcmp.lt.s32.totalorder %v1648, 4
      %v1671 = vsel %vm1667, %v1651, %v1654
      %v1672 = vsel %vm1670, %v1660, 2102212464
      %v1673 = vsel %vm1669, %v1657, %v1672
      %v1674 = vsel %vm1668, %v1671, %v1673
      %v1675 = vsel %vm1667, %v1654, %v1657
      %v1676 = vsel %vm1670, %v1663, 920167782
      %v1677 = vsel %vm1669, %v1660, %v1676
      %v1678 = vsel %vm1668, %v1675, %v1677
      %v1679 = vsel %vm1667, %v1657, %v1660
      %v1680 = vsel %vm1670, %v1666, 1326507024
      %v1681 = vsel %vm1669, %v1663, %v1680
      %v1682 = vsel %vm1668, %v1679, %v1681
      %v1683 = vshll.u32 %v1643, 8
      %v1684 = vmul.u32.u64.compose %v1683, %v1682
      %v1685 = vextract.low.u32 %v1684
      %v1686 = vextract.high.u32 %v1684
      %v1687 = vmul.u32.u64.compose %v1683, %v1678
      %v1688 = vextract.low.u32 %v1687
      %v1689 = vextract.high.u32 %v1687
      %v1690 = vmul.u32 %v1683, %v1674
      %v1691 = vadd.s32 %v1686, %v1688
      %vm1692 = vc.u32 %v1686, %v1688
      %v1693 = vadd.s32 %v1689, 1
      %v1694 = vsel %vm1692, %v1693, %v1689
      %v1695 = vadd.s32 %v1690, %v1694
      %v1696 = vadd.s32 %v1695, 536870912
      %v1697 = vshrl.u32 %v1696, 30
      %v1698 = vshll.u32 %v1697, 30
      %v1699 = vsub.s32 %v1695, %v1698
      %vm1700 = vcmp.lt.s32.totalorder %v1699, 0
      %v1701 = vsub.s32 0, %v1699
      %v1702 = vsel %vm1700, %v1701, %v1699
      %v1703 = vclz %v1702
      %v1704 = vsub.s32 %v1703, 2
      %vm1705 = vcmp.gt.s32.totalorder 0, %v1704
      %v1706 = vsel %vm1705, 0, %v1704
      %v1707 = vsub.s32 32, %v1706
      %v1708 = vshll.u32 %v1699, %v1706
      %v1709 = vshrl.u32 %v1691, %v1707
      %v1710 = vor.u32 %v1708, %v1709
      %v1711 = vsub.s32 4294967266, %v1706
      %v1712 = vadd.s32 %v1711, 127
      %v1713 = vshll.u32 %v1712, 23
      %v1714 = vor.u32 4788187, %v1713
      %v1715 = vand.u32 2147483647, %v1714
      %v1717 = vcvt.s32.f32 %v1710
      %v1718 = vmul.f32 %v1717, %v1715
      %v1719 = vxor.u32 %v1718, 2147483648
      %v1720 = vsel %vm1637, %v1719, %v1718
      %v1721 = vsub.s32 4, %v1697
      %v1722 = vsel %vm1637, %v1721, %v1697
      %v1723 = vsel %vm1636, %v991, %v1720
      %v1724 = vsel %vm1636, 0, %v1722
      %v1725 = vcosq.f32.pop %v1723
      %v1726 = vsinq.f32.pop %v1723
      %vm1727 = vweird.f32 %v991
      %v1728 = vand.u32 %v1724, 3
      %vm1729 = vcmp.lt.s32.totalorder %v1728, 2
      %vm1730 = vcmp.eq.s32.totalorder %v1728, 0
      %v1731 = vxor.u32 %v1726, 2147483648
      %v1732 = vsel %vm1730, %v1725, %v1731
      %vm1733 = vcmp.eq.s32.totalorder %v1728, 2
      %v1734 = vxor.u32 %v1725, 2147483648
      %v1735 = vsel %vm1733, %v1734, %v1726
      %v1736 = vsel %vm1729, %v1732, %v1735
      %v1737 = vsel %vm1727, nan, %v1736
      %v1738 = vand.u32 2147483647, %v992
      %vm1739 = vcmp.le.f32.partialorder %v1738, 0.7853982
      %vm1740 = vcmp.lt.s32.totalorder %v992, 0
      %v1741 = vand.u32 %v992, 2139095040
      %v1742 = vshrl.u32 %v1741, 23
      %v1743 = vsub.s32 %v1742, 127
      %v1744 = vand.u32 2147483647, %v992
      %v1745 = vand.u32 %v1744, 8388607
      %v1746 = vor.u32 %v1745, 8388608
      %v1747 = vsub.s32 0, %v1746
      %v1748 = vadd.s32 %v1743, 1
      %vm1749 = vcmp.gt.s32.totalorder %v1748, 0
      %v1750 = vsel %vm1749, %v1748, 0
      %v1751 = vshrl.u32 %v1750, 5
      %v1752 = vand.u32 %v1750, 31
      %v1753 = vsub.s32 32, %v1752
      %v1754 = vshrl.u32 683565275, %v1753
      %v1755 = vshll.u32 683565275, %v1752
      %v1756 = vshrl.u32 2475754826, %v1753
      %v1757 = vor.u32 %v1755, %v1756
      %v1758 = vshll.u32 2475754826, %v1752
      %v1759 = vshrl.u32 2131351028, %v1753
      %v1760 = vor.u32 %v1758, %v1759
      %v1761 = vshll.u32 2131351028, %v1752
      %v1762 = vshrl.u32 2102212464, %v1753
      %v1763 = vor.u32 %v1761, %v1762
      %v1764 = vshll.u32 2102212464, %v1752
      %v1765 = vshrl.u32 920167782, %v1753
      %v1766 = vor.u32 %v1764, %v1765
      %v1767 = vshll.u32 920167782, %v1752
      %v1768 = vshrl.u32 1326507024, %v1753
      %v1769 = vor.u32 %v1767, %v1768
      %vm1770 = vcmp.lt.s32.totalorder %v1751, 1
      %vm1771 = vcmp.lt.s32.totalorder %v1751, 2
      %vm1772 = vcmp.lt.s32.totalorder %v1751, 3
      %vm1773 = vcmp.lt.s32.totalorder %v1751, 4
      %v1774 = vsel %vm1770, %v1754, %v1757
      %v1775 = vsel %vm1773, %v1763, 2102212464
      %v1776 = vsel %vm1772, %v1760, %v1775
      %v1777 = vsel %vm1771, %v1774, %v1776
      %v1778 = vsel %vm1770, %v1757, %v1760
      %v1779 = vsel %vm1773, %v1766, 920167782
      %v1780 = vsel %vm1772, %v1763, %v1779
      %v1781 = vsel %vm1771, %v1778, %v1780
      %v1782 = vsel %vm1770, %v1760, %v1763
      %v1783 = vsel %vm1773, %v1769, 1326507024
      %v1784 = vsel %vm1772, %v1766, %v1783
      %v1785 = vsel %vm1771, %v1782, %v1784
      %v1786 = vshll.u32 %v1746, 8
      %v1787 = vmul.u32.u64.compose %v1786, %v1785
      %v1788 = vextract.low.u32 %v1787
      %v1789 = vextract.high.u32 %v1787
      %v1790 = vmul.u32.u64.compose %v1786, %v1781
      %v1791 = vextract.low.u32 %v1790
      %v1792 = vextract.high.u32 %v1790
      %v1793 = vmul.u32 %v1786, %v1777
      %v1794 = vadd.s32 %v1789, %v1791
      %vm1795 = vc.u32 %v1789, %v1791
      %v1796 = vadd.s32 %v1792, 1
      %v1797 = vsel %vm1795, %v1796, %v1792
      %v1798 = vadd.s32 %v1793, %v1797
      %v1799 = vadd.s32 %v1798, 536870912
      %v1800 = vshrl.u32 %v1799, 30
      %v1801 = vshll.u32 %v1800, 30
      %v1802 = vsub.s32 %v1798, %v1801
      %vm1803 = vcmp.lt.s32.totalorder %v1802, 0
      %v1804 = vsub.s32 0, %v1802
      %v1805 = vsel %vm1803, %v1804, %v1802
      %v1806 = vclz %v1805
      %v1807 = vsub.s32 %v1806, 2
      %vm1808 = vcmp.gt.s32.totalorder 0, %v1807
      %v1809 = vsel %vm1808, 0, %v1807
      %v1810 = vsub.s32 32, %v1809
      %v1811 = vshll.u32 %v1802, %v1809
      %v1812 = vshrl.u32 %v1794, %v1810
      %v1813 = vor.u32 %v1811, %v1812
      %v1814 = vsub.s32 4294967266, %v1809
      %v1815 = vadd.s32 %v1814, 127
      %v1816 = vshll.u32 %v1815, 23
      %v1817 = vor.u32 4788187, %v1816
      %v1818 = vand.u32 2147483647, %v1817
      %v1820 = vcvt.s32.f32 %v1813
      %v1821 = vmul.f32 %v1820, %v1818
      %v1822 = vxor.u32 %v1821, 2147483648
      %v1823 = vsel %vm1740, %v1822, %v1821
      %v1824 = vsub.s32 4, %v1800
      %v1825 = vsel %vm1740, %v1824, %v1800
      %v1826 = vsel %vm1739, %v992, %v1823
      %v1827 = vsel %vm1739, 0, %v1825
      %v1828 = vcosq.f32.pop %v1826
      %v1829 = vsinq.f32.pop %v1826
      %vm1830 = vweird.f32 %v992
      %v1831 = vand.u32 %v1827, 3
      %vm1832 = vcmp.lt.s32.totalorder %v1831, 2
      %vm1833 = vcmp.eq.s32.totalorder %v1831, 0
      %v1834 = vxor.u32 %v1829, 2147483648
      %v1835 = vsel %vm1833, %v1828, %v1834
      %vm1836 = vcmp.eq.s32.totalorder %v1831, 2
      %v1837 = vxor.u32 %v1828, 2147483648
      %v1838 = vsel %vm1836, %v1837, %v1829
      %v1839 = vsel %vm1832, %v1835, %v1838
      %v1840 = vsel %vm1830, nan, %v1839
      %v1841 = vand.u32 2147483647, %v993
      %vm1842 = vcmp.le.f32.partialorder %v1841, 0.7853982
      %vm1843 = vcmp.lt.s32.totalorder %v993, 0
      %v1844 = vand.u32 %v993, 2139095040
      %v1845 = vshrl.u32 %v1844, 23
      %v1846 = vsub.s32 %v1845, 127
      %v1847 = vand.u32 2147483647, %v993
      %v1848 = vand.u32 %v1847, 8388607
      %v1849 = vor.u32 %v1848, 8388608
      %v1850 = vsub.s32 0, %v1849
      %v1851 = vadd.s32 %v1846, 1
      %vm1852 = vcmp.gt.s32.totalorder %v1851, 0
      %v1853 = vsel %vm1852, %v1851, 0
      %v1854 = vshrl.u32 %v1853, 5
      %v1855 = vand.u32 %v1853, 31
      %v1856 = vsub.s32 32, %v1855
      %v1857 = vshrl.u32 683565275, %v1856
      %v1858 = vshll.u32 683565275, %v1855
      %v1859 = vshrl.u32 2475754826, %v1856
      %v1860 = vor.u32 %v1858, %v1859
      %v1861 = vshll.u32 2475754826, %v1855
      %v1862 = vshrl.u32 2131351028, %v1856
      %v1863 = vor.u32 %v1861, %v1862
      %v1864 = vshll.u32 2131351028, %v1855
      %v1865 = vshrl.u32 2102212464, %v1856
      %v1866 = vor.u32 %v1864, %v1865
      %v1867 = vshll.u32 2102212464, %v1855
      %v1868 = vshrl.u32 920167782, %v1856
      %v1869 = vor.u32 %v1867, %v1868
      %v1870 = vshll.u32 920167782, %v1855
      %v1871 = vshrl.u32 1326507024, %v1856
      %v1872 = vor.u32 %v1870, %v1871
      %vm1873 = vcmp.lt.s32.totalorder %v1854, 1
      %vm1874 = vcmp.lt.s32.totalorder %v1854, 2
      %vm1875 = vcmp.lt.s32.totalorder %v1854, 3
      %vm1876 = vcmp.lt.s32.totalorder %v1854, 4
      %v1877 = vsel %vm1873, %v1857, %v1860
      %v1878 = vsel %vm1876, %v1866, 2102212464
      %v1879 = vsel %vm1875, %v1863, %v1878
      %v1880 = vsel %vm1874, %v1877, %v1879
      %v1881 = vsel %vm1873, %v1860, %v1863
      %v1882 = vsel %vm1876, %v1869, 920167782
      %v1883 = vsel %vm1875, %v1866, %v1882
      %v1884 = vsel %vm1874, %v1881, %v1883
      %v1885 = vsel %vm1873, %v1863, %v1866
      %v1886 = vsel %vm1876, %v1872, 1326507024
      %v1887 = vsel %vm1875, %v1869, %v1886
      %v1888 = vsel %vm1874, %v1885, %v1887
      %v1889 = vshll.u32 %v1849, 8
      %v1890 = vmul.u32.u64.compose %v1889, %v1888
      %v1891 = vextract.low.u32 %v1890
      %v1892 = vextract.high.u32 %v1890
      %v1893 = vmul.u32.u64.compose %v1889, %v1884
      %v1894 = vextract.low.u32 %v1893
      %v1895 = vextract.high.u32 %v1893
      %v1896 = vmul.u32 %v1889, %v1880
      %v1897 = vadd.s32 %v1892, %v1894
      %vm1898 = vc.u32 %v1892, %v1894
      %v1899 = vadd.s32 %v1895, 1
      %v1900 = vsel %vm1898, %v1899, %v1895
      %v1901 = vadd.s32 %v1896, %v1900
      %v1902 = vadd.s32 %v1901, 536870912
      %v1903 = vshrl.u32 %v1902, 30
      %v1904 = vshll.u32 %v1903, 30
      %v1905 = vsub.s32 %v1901, %v1904
      %vm1906 = vcmp.lt.s32.totalorder %v1905, 0
      %v1907 = vsub.s32 0, %v1905
      %v1908 = vsel %vm1906, %v1907, %v1905
      %v1909 = vclz %v1908
      %v1910 = vsub.s32 %v1909, 2
      %vm1911 = vcmp.gt.s32.totalorder 0, %v1910
      %v1912 = vsel %vm1911, 0, %v1910
      %v1913 = vsub.s32 32, %v1912
      %v1914 = vshll.u32 %v1905, %v1912
      %v1915 = vshrl.u32 %v1897, %v1913
      %v1916 = vor.u32 %v1914, %v1915
      %v1917 = vsub.s32 4294967266, %v1912
      %v1918 = vadd.s32 %v1917, 127
      %v1919 = vshll.u32 %v1918, 23
      %v1920 = vor.u32 4788187, %v1919
      %v1921 = vand.u32 2147483647, %v1920
      %v1923 = vcvt.s32.f32 %v1916
      %v1924 = vmul.f32 %v1923, %v1921
      %v1925 = vxor.u32 %v1924, 2147483648
      %v1926 = vsel %vm1843, %v1925, %v1924
      %v1927 = vsub.s32 4, %v1903
      %v1928 = vsel %vm1843, %v1927, %v1903
      %v1929 = vsel %vm1842, %v993, %v1926
      %v1930 = vsel %vm1842, 0, %v1928
      %v1931 = vcosq.f32.pop %v1929
      %v1932 = vsinq.f32.pop %v1929
      %vm1933 = vweird.f32 %v993
      %v1934 = vand.u32 %v1930, 3
      %vm1935 = vcmp.lt.s32.totalorder %v1934, 2
      %vm1936 = vcmp.eq.s32.totalorder %v1934, 0
      %v1937 = vxor.u32 %v1932, 2147483648
      %v1938 = vsel %vm1936, %v1931, %v1937
      %vm1939 = vcmp.eq.s32.totalorder %v1934, 2
      %v1940 = vxor.u32 %v1931, 2147483648
      %v1941 = vsel %vm1939, %v1940, %v1932
      %v1942 = vsel %vm1935, %v1938, %v1941
      %v1943 = vsel %vm1933, nan, %v1942
      %v1944 = vand.u32 2147483647, %v994
      %vm1945 = vcmp.le.f32.partialorder %v1944, 0.7853982
      %vm1946 = vcmp.lt.s32.totalorder %v994, 0
      %v1947 = vand.u32 %v994, 2139095040
      %v1948 = vshrl.u32 %v1947, 23
      %v1949 = vsub.s32 %v1948, 127
      %v1950 = vand.u32 2147483647, %v994
      %v1951 = vand.u32 %v1950, 8388607
      %v1952 = vor.u32 %v1951, 8388608
      %v1953 = vsub.s32 0, %v1952
      %v1954 = vadd.s32 %v1949, 1
      %vm1955 = vcmp.gt.s32.totalorder %v1954, 0
      %v1956 = vsel %vm1955, %v1954, 0
      %v1957 = vshrl.u32 %v1956, 5
      %v1958 = vand.u32 %v1956, 31
      %v1959 = vsub.s32 32, %v1958
      %v1960 = vshrl.u32 683565275, %v1959
      %v1961 = vshll.u32 683565275, %v1958
      %v1962 = vshrl.u32 2475754826, %v1959
      %v1963 = vor.u32 %v1961, %v1962
      %v1964 = vshll.u32 2475754826, %v1958
      %v1965 = vshrl.u32 2131351028, %v1959
      %v1966 = vor.u32 %v1964, %v1965
      %v1967 = vshll.u32 2131351028, %v1958
      %v1968 = vshrl.u32 2102212464, %v1959
      %v1969 = vor.u32 %v1967, %v1968
      %v1970 = vshll.u32 2102212464, %v1958
      %v1971 = vshrl.u32 920167782, %v1959
      %v1972 = vor.u32 %v1970, %v1971
      %v1973 = vshll.u32 920167782, %v1958
      %v1974 = vshrl.u32 1326507024, %v1959
      %v1975 = vor.u32 %v1973, %v1974
      %vm1976 = vcmp.lt.s32.totalorder %v1957, 1
      %vm1977 = vcmp.lt.s32.totalorder %v1957, 2
      %vm1978 = vcmp.lt.s32.totalorder %v1957, 3
      %vm1979 = vcmp.lt.s32.totalorder %v1957, 4
      %v1980 = vsel %vm1976, %v1960, %v1963
      %v1981 = vsel %vm1979, %v1969, 2102212464
      %v1982 = vsel %vm1978, %v1966, %v1981
      %v1983 = vsel %vm1977, %v1980, %v1982
      %v1984 = vsel %vm1976, %v1963, %v1966
      %v1985 = vsel %vm1979, %v1972, 920167782
      %v1986 = vsel %vm1978, %v1969, %v1985
      %v1987 = vsel %vm1977, %v1984, %v1986
      %v1988 = vsel %vm1976, %v1966, %v1969
      %v1989 = vsel %vm1979, %v1975, 1326507024
      %v1990 = vsel %vm1978, %v1972, %v1989
      %v1991 = vsel %vm1977, %v1988, %v1990
      %v1992 = vshll.u32 %v1952, 8
      %v1993 = vmul.u32.u64.compose %v1992, %v1991
      %v1994 = vextract.low.u32 %v1993
      %v1995 = vextract.high.u32 %v1993
      %v1996 = vmul.u32.u64.compose %v1992, %v1987
      %v1997 = vextract.low.u32 %v1996
      %v1998 = vextract.high.u32 %v1996
      %v1999 = vmul.u32 %v1992, %v1983
      %v2000 = vadd.s32 %v1995, %v1997
      %vm2001 = vc.u32 %v1995, %v1997
      %v2002 = vadd.s32 %v1998, 1
      %v2003 = vsel %vm2001, %v2002, %v1998
      %v2004 = vadd.s32 %v1999, %v2003
      %v2005 = vadd.s32 %v2004, 536870912
      %v2006 = vshrl.u32 %v2005, 30
      %v2007 = vshll.u32 %v2006, 30
      %v2008 = vsub.s32 %v2004, %v2007
      %vm2009 = vcmp.lt.s32.totalorder %v2008, 0
      %v2010 = vsub.s32 0, %v2008
      %v2011 = vsel %vm2009, %v2010, %v2008
      %v2012 = vclz %v2011
      %v2013 = vsub.s32 %v2012, 2
      %vm2014 = vcmp.gt.s32.totalorder 0, %v2013
      %v2015 = vsel %vm2014, 0, %v2013
      %v2016 = vsub.s32 32, %v2015
      %v2017 = vshll.u32 %v2008, %v2015
      %v2018 = vshrl.u32 %v2000, %v2016
      %v2019 = vor.u32 %v2017, %v2018
      %v2020 = vsub.s32 4294967266, %v2015
      %v2021 = vadd.s32 %v2020, 127
      %v2022 = vshll.u32 %v2021, 23
      %v2023 = vor.u32 4788187, %v2022
      %v2024 = vand.u32 2147483647, %v2023
      %v2026 = vcvt.s32.f32 %v2019
      %v2027 = vmul.f32 %v2026, %v2024
      %v2028 = vxor.u32 %v2027, 2147483648
      %v2029 = vsel %vm1946, %v2028, %v2027
      %v2030 = vsub.s32 4, %v2006
      %v2031 = vsel %vm1946, %v2030, %v2006
      %v2032 = vsel %vm1945, %v994, %v2029
      %v2033 = vsel %vm1945, 0, %v2031
      %v2034 = vcosq.f32.pop %v2032
      %v2035 = vsinq.f32.pop %v2032
      %vm2036 = vweird.f32 %v994
      %v2037 = vand.u32 %v2033, 3
      %vm2038 = vcmp.lt.s32.totalorder %v2037, 2
      %vm2039 = vcmp.eq.s32.totalorder %v2037, 0
      %v2040 = vxor.u32 %v2035, 2147483648
      %v2041 = vsel %vm2039, %v2034, %v2040
      %vm2042 = vcmp.eq.s32.totalorder %v2037, 2
      %v2043 = vxor.u32 %v2034, 2147483648
      %v2044 = vsel %vm2042, %v2043, %v2035
      %v2045 = vsel %vm2038, %v2041, %v2044
      %v2046 = vsel %vm2036, nan, %v2045
      %v2047 = vand.u32 2147483647, %v995
      %vm2048 = vcmp.le.f32.partialorder %v2047, 0.7853982
      %vm2049 = vcmp.lt.s32.totalorder %v995, 0
      %v2050 = vand.u32 %v995, 2139095040
      %v2051 = vshrl.u32 %v2050, 23
      %v2052 = vsub.s32 %v2051, 127
      %v2053 = vand.u32 2147483647, %v995
      %v2054 = vand.u32 %v2053, 8388607
      %v2055 = vor.u32 %v2054, 8388608
      %v2056 = vsub.s32 0, %v2055
      %v2057 = vadd.s32 %v2052, 1
      %vm2058 = vcmp.gt.s32.totalorder %v2057, 0
      %v2059 = vsel %vm2058, %v2057, 0
      %v2060 = vshrl.u32 %v2059, 5
      %v2061 = vand.u32 %v2059, 31
      %v2062 = vsub.s32 32, %v2061
      %v2063 = vshrl.u32 683565275, %v2062
      %v2064 = vshll.u32 683565275, %v2061
      %v2065 = vshrl.u32 2475754826, %v2062
      %v2066 = vor.u32 %v2064, %v2065
      %v2067 = vshll.u32 2475754826, %v2061
      %v2068 = vshrl.u32 2131351028, %v2062
      %v2069 = vor.u32 %v2067, %v2068
      %v2070 = vshll.u32 2131351028, %v2061
      %v2071 = vshrl.u32 2102212464, %v2062
      %v2072 = vor.u32 %v2070, %v2071
      %v2073 = vshll.u32 2102212464, %v2061
      %v2074 = vshrl.u32 920167782, %v2062
      %v2075 = vor.u32 %v2073, %v2074
      %v2076 = vshll.u32 920167782, %v2061
      %v2077 = vshrl.u32 1326507024, %v2062
      %v2078 = vor.u32 %v2076, %v2077
      %vm2079 = vcmp.lt.s32.totalorder %v2060, 1
      %vm2080 = vcmp.lt.s32.totalorder %v2060, 2
      %vm2081 = vcmp.lt.s32.totalorder %v2060, 3
      %vm2082 = vcmp.lt.s32.totalorder %v2060, 4
      %v2083 = vsel %vm2079, %v2063, %v2066
      %v2084 = vsel %vm2082, %v2072, 2102212464
      %v2085 = vsel %vm2081, %v2069, %v2084
      %v2086 = vsel %vm2080, %v2083, %v2085
      %v2087 = vsel %vm2079, %v2066, %v2069
      %v2088 = vsel %vm2082, %v2075, 920167782
      %v2089 = vsel %vm2081, %v2072, %v2088
      %v2090 = vsel %vm2080, %v2087, %v2089
      %v2091 = vsel %vm2079, %v2069, %v2072
      %v2092 = vsel %vm2082, %v2078, 1326507024
      %v2093 = vsel %vm2081, %v2075, %v2092
      %v2094 = vsel %vm2080, %v2091, %v2093
      %v2095 = vshll.u32 %v2055, 8
      %v2096 = vmul.u32.u64.compose %v2095, %v2094
      %v2097 = vextract.low.u32 %v2096
      %v2098 = vextract.high.u32 %v2096
      %v2099 = vmul.u32.u64.compose %v2095, %v2090
      %v2100 = vextract.low.u32 %v2099
      %v2101 = vextract.high.u32 %v2099
      %v2102 = vmul.u32 %v2095, %v2086
      %v2103 = vadd.s32 %v2098, %v2100
      %vm2104 = vc.u32 %v2098, %v2100
      %v2105 = vadd.s32 %v2101, 1
      %v2106 = vsel %vm2104, %v2105, %v2101
      %v2107 = vadd.s32 %v2102, %v2106
      %v2108 = vadd.s32 %v2107, 536870912
      %v2109 = vshrl.u32 %v2108, 30
      %v2110 = vshll.u32 %v2109, 30
      %v2111 = vsub.s32 %v2107, %v2110
      %vm2112 = vcmp.lt.s32.totalorder %v2111, 0
      %v2113 = vsub.s32 0, %v2111
      %v2114 = vsel %vm2112, %v2113, %v2111
      %v2115 = vclz %v2114
      %v2116 = vsub.s32 %v2115, 2
      %vm2117 = vcmp.gt.s32.totalorder 0, %v2116
      %v2118 = vsel %vm2117, 0, %v2116
      %v2119 = vsub.s32 32, %v2118
      %v2120 = vshll.u32 %v2111, %v2118
      %v2121 = vshrl.u32 %v2103, %v2119
      %v2122 = vor.u32 %v2120, %v2121
      %v2123 = vsub.s32 4294967266, %v2118
      %v2124 = vadd.s32 %v2123, 127
      %v2125 = vshll.u32 %v2124, 23
      %v2126 = vor.u32 4788187, %v2125
      %v2127 = vand.u32 2147483647, %v2126
      %v2129 = vcvt.s32.f32 %v2122
      %v2130 = vmul.f32 %v2129, %v2127
      %v2131 = vxor.u32 %v2130, 2147483648
      %v2132 = vsel %vm2049, %v2131, %v2130
      %v2133 = vsub.s32 4, %v2109
      %v2134 = vsel %vm2049, %v2133, %v2109
      %v2135 = vsel %vm2048, %v995, %v2132
      %v2136 = vsel %vm2048, 0, %v2134
      %v2137 = vcosq.f32.pop %v2135
      %v2138 = vsinq.f32.pop %v2135
      %vm2139 = vweird.f32 %v995
      %v2140 = vand.u32 %v2136, 3
      %vm2141 = vcmp.lt.s32.totalorder %v2140, 2
      %vm2142 = vcmp.eq.s32.totalorder %v2140, 0
      %v2143 = vxor.u32 %v2138, 2147483648
      %v2144 = vsel %vm2142, %v2137, %v2143
      %vm2145 = vcmp.eq.s32.totalorder %v2140, 2
      %v2146 = vxor.u32 %v2137, 2147483648
      %v2147 = vsel %vm2145, %v2146, %v2138
      %v2148 = vsel %vm2141, %v2144, %v2147
      %v2149 = vsel %vm2139, nan, %v2148
      %v2150 = vand.u32 2147483647, %v996
      %vm2151 = vcmp.le.f32.partialorder %v2150, 0.7853982
      %vm2152 = vcmp.lt.s32.totalorder %v996, 0
      %v2153 = vand.u32 %v996, 2139095040
      %v2154 = vshrl.u32 %v2153, 23
      %v2155 = vsub.s32 %v2154, 127
      %v2156 = vand.u32 2147483647, %v996
      %v2157 = vand.u32 %v2156, 8388607
      %v2158 = vor.u32 %v2157, 8388608
      %v2159 = vsub.s32 0, %v2158
      %v2160 = vadd.s32 %v2155, 1
      %vm2161 = vcmp.gt.s32.totalorder %v2160, 0
      %v2162 = vsel %vm2161, %v2160, 0
      %v2163 = vshrl.u32 %v2162, 5
      %v2164 = vand.u32 %v2162, 31
      %v2165 = vsub.s32 32, %v2164
      %v2166 = vshrl.u32 683565275, %v2165
      %v2167 = vshll.u32 683565275, %v2164
      %v2168 = vshrl.u32 2475754826, %v2165
      %v2169 = vor.u32 %v2167, %v2168
      %v2170 = vshll.u32 2475754826, %v2164
      %v2171 = vshrl.u32 2131351028, %v2165
      %v2172 = vor.u32 %v2170, %v2171
      %v2173 = vshll.u32 2131351028, %v2164
      %v2174 = vshrl.u32 2102212464, %v2165
      %v2175 = vor.u32 %v2173, %v2174
      %v2176 = vshll.u32 2102212464, %v2164
      %v2177 = vshrl.u32 920167782, %v2165
      %v2178 = vor.u32 %v2176, %v2177
      %v2179 = vshll.u32 920167782, %v2164
      %v2180 = vshrl.u32 1326507024, %v2165
      %v2181 = vor.u32 %v2179, %v2180
      %vm2182 = vcmp.lt.s32.totalorder %v2163, 1
      %vm2183 = vcmp.lt.s32.totalorder %v2163, 2
      %vm2184 = vcmp.lt.s32.totalorder %v2163, 3
      %vm2185 = vcmp.lt.s32.totalorder %v2163, 4
      %v2186 = vsel %vm2182, %v2166, %v2169
      %v2187 = vsel %vm2185, %v2175, 2102212464
      %v2188 = vsel %vm2184, %v2172, %v2187
      %v2189 = vsel %vm2183, %v2186, %v2188
      %v2190 = vsel %vm2182, %v2169, %v2172
      %v2191 = vsel %vm2185, %v2178, 920167782
      %v2192 = vsel %vm2184, %v2175, %v2191
      %v2193 = vsel %vm2183, %v2190, %v2192
      %v2194 = vsel %vm2182, %v2172, %v2175
      %v2195 = vsel %vm2185, %v2181, 1326507024
      %v2196 = vsel %vm2184, %v2178, %v2195
      %v2197 = vsel %vm2183, %v2194, %v2196
      %v2198 = vshll.u32 %v2158, 8
      %v2199 = vmul.u32.u64.compose %v2198, %v2197
      %v2200 = vextract.low.u32 %v2199
      %v2201 = vextract.high.u32 %v2199
      %v2202 = vmul.u32.u64.compose %v2198, %v2193
      %v2203 = vextract.low.u32 %v2202
      %v2204 = vextract.high.u32 %v2202
      %v2205 = vmul.u32 %v2198, %v2189
      %v2206 = vadd.s32 %v2201, %v2203
      %vm2207 = vc.u32 %v2201, %v2203
      %v2208 = vadd.s32 %v2204, 1
      %v2209 = vsel %vm2207, %v2208, %v2204
      %v2210 = vadd.s32 %v2205, %v2209
      %v2211 = vadd.s32 %v2210, 536870912
      %v2212 = vshrl.u32 %v2211, 30
      %v2213 = vshll.u32 %v2212, 30
      %v2214 = vsub.s32 %v2210, %v2213
      %vm2215 = vcmp.lt.s32.totalorder %v2214, 0
      %v2216 = vsub.s32 0, %v2214
      %v2217 = vsel %vm2215, %v2216, %v2214
      %v2218 = vclz %v2217
      %v2219 = vsub.s32 %v2218, 2
      %vm2220 = vcmp.gt.s32.totalorder 0, %v2219
      %v2221 = vsel %vm2220, 0, %v2219
      %v2222 = vsub.s32 32, %v2221
      %v2223 = vshll.u32 %v2214, %v2221
      %v2224 = vshrl.u32 %v2206, %v2222
      %v2225 = vor.u32 %v2223, %v2224
      %v2226 = vsub.s32 4294967266, %v2221
      %v2227 = vadd.s32 %v2226, 127
      %v2228 = vshll.u32 %v2227, 23
      %v2229 = vor.u32 4788187, %v2228
      %v2230 = vand.u32 2147483647, %v2229
      %v2232 = vcvt.s32.f32 %v2225
      %v2233 = vmul.f32 %v2232, %v2230
      %v2234 = vxor.u32 %v2233, 2147483648
      %v2235 = vsel %vm2152, %v2234, %v2233
      %v2236 = vsub.s32 4, %v2212
      %v2237 = vsel %vm2152, %v2236, %v2212
      %v2238 = vsel %vm2151, %v996, %v2235
      %v2239 = vsel %vm2151, 0, %v2237
      %v2240 = vcosq.f32.pop %v2238
      %v2241 = vsinq.f32.pop %v2238
      %vm2242 = vweird.f32 %v996
      %v2243 = vand.u32 %v2239, 3
      %vm2244 = vcmp.lt.s32.totalorder %v2243, 2
      %vm2245 = vcmp.eq.s32.totalorder %v2243, 0
      %v2246 = vxor.u32 %v2241, 2147483648
      %v2247 = vsel %vm2245, %v2240, %v2246
      %vm2248 = vcmp.eq.s32.totalorder %v2243, 2
      %v2249 = vxor.u32 %v2240, 2147483648
      %v2250 = vsel %vm2248, %v2249, %v2241
      %v2251 = vsel %vm2244, %v2247, %v2250
      %v2252 = vsel %vm2242, nan, %v2251
      %v2253 = vand.u32 2147483647, %v997
      %vm2254 = vcmp.le.f32.partialorder %v2253, 0.7853982
      %vm2255 = vcmp.lt.s32.totalorder %v997, 0
      %v2256 = vand.u32 %v997, 2139095040
      %v2257 = vshrl.u32 %v2256, 23
      %v2258 = vsub.s32 %v2257, 127
      %v2259 = vand.u32 2147483647, %v997
      %v2260 = vand.u32 %v2259, 8388607
      %v2261 = vor.u32 %v2260, 8388608
      %v2262 = vsub.s32 0, %v2261
      %v2263 = vadd.s32 %v2258, 1
      %vm2264 = vcmp.gt.s32.totalorder %v2263, 0
      %v2265 = vsel %vm2264, %v2263, 0
      %v2266 = vshrl.u32 %v2265, 5
      %v2267 = vand.u32 %v2265, 31
      %v2268 = vsub.s32 32, %v2267
      %v2269 = vshrl.u32 683565275, %v2268
      %v2270 = vshll.u32 683565275, %v2267
      %v2271 = vshrl.u32 2475754826, %v2268
      %v2272 = vor.u32 %v2270, %v2271
      %v2273 = vshll.u32 2475754826, %v2267
      %v2274 = vshrl.u32 2131351028, %v2268
      %v2275 = vor.u32 %v2273, %v2274
      %v2276 = vshll.u32 2131351028, %v2267
      %v2277 = vshrl.u32 2102212464, %v2268
      %v2278 = vor.u32 %v2276, %v2277
      %v2279 = vshll.u32 2102212464, %v2267
      %v2280 = vshrl.u32 920167782, %v2268
      %v2281 = vor.u32 %v2279, %v2280
      %v2282 = vshll.u32 920167782, %v2267
      %v2283 = vshrl.u32 1326507024, %v2268
      %v2284 = vor.u32 %v2282, %v2283
      %vm2285 = vcmp.lt.s32.totalorder %v2266, 1
      %vm2286 = vcmp.lt.s32.totalorder %v2266, 2
      %vm2287 = vcmp.lt.s32.totalorder %v2266, 3
      %vm2288 = vcmp.lt.s32.totalorder %v2266, 4
      %v2289 = vsel %vm2285, %v2269, %v2272
      %v2290 = vsel %vm2288, %v2278, 2102212464
      %v2291 = vsel %vm2287, %v2275, %v2290
      %v2292 = vsel %vm2286, %v2289, %v2291
      %v2293 = vsel %vm2285, %v2272, %v2275
      %v2294 = vsel %vm2288, %v2281, 920167782
      %v2295 = vsel %vm2287, %v2278, %v2294
      %v2296 = vsel %vm2286, %v2293, %v2295
      %v2297 = vsel %vm2285, %v2275, %v2278
      %v2298 = vsel %vm2288, %v2284, 1326507024
      %v2299 = vsel %vm2287, %v2281, %v2298
      %v2300 = vsel %vm2286, %v2297, %v2299
      %v2301 = vshll.u32 %v2261, 8
      %v2302 = vmul.u32.u64.compose %v2301, %v2300
      %v2303 = vextract.low.u32 %v2302
      %v2304 = vextract.high.u32 %v2302
      %v2305 = vmul.u32.u64.compose %v2301, %v2296
      %v2306 = vextract.low.u32 %v2305
      %v2307 = vextract.high.u32 %v2305
      %v2308 = vmul.u32 %v2301, %v2292
      %v2309 = vadd.s32 %v2304, %v2306
      %vm2310 = vc.u32 %v2304, %v2306
      %v2311 = vadd.s32 %v2307, 1
      %v2312 = vsel %vm2310, %v2311, %v2307
      %v2313 = vadd.s32 %v2308, %v2312
      %v2314 = vadd.s32 %v2313, 536870912
      %v2315 = vshrl.u32 %v2314, 30
      %v2316 = vshll.u32 %v2315, 30
      %v2317 = vsub.s32 %v2313, %v2316
      %vm2318 = vcmp.lt.s32.totalorder %v2317, 0
      %v2319 = vsub.s32 0, %v2317
      %v2320 = vsel %vm2318, %v2319, %v2317
      %v2321 = vclz %v2320
      %v2322 = vsub.s32 %v2321, 2
      %vm2323 = vcmp.gt.s32.totalorder 0, %v2322
      %v2324 = vsel %vm2323, 0, %v2322
      %v2325 = vsub.s32 32, %v2324
      %v2326 = vshll.u32 %v2317, %v2324
      %v2327 = vshrl.u32 %v2309, %v2325
      %v2328 = vor.u32 %v2326, %v2327
      %v2329 = vsub.s32 4294967266, %v2324
      %v2330 = vadd.s32 %v2329, 127
      %v2331 = vshll.u32 %v2330, 23
      %v2332 = vor.u32 4788187, %v2331
      %v2333 = vand.u32 2147483647, %v2332
      %v2335 = vcvt.s32.f32 %v2328
      %v2336 = vmul.f32 %v2335, %v2333
      %v2337 = vxor.u32 %v2336, 2147483648
      %v2338 = vsel %vm2255, %v2337, %v2336
      %v2339 = vsub.s32 4, %v2315
      %v2340 = vsel %vm2255, %v2339, %v2315
      %v2341 = vsel %vm2254, %v997, %v2338
      %v2342 = vsel %vm2254, 0, %v2340
      %v2343 = vcosq.f32.pop %v2341
      %v2344 = vsinq.f32.pop %v2341
      %vm2345 = vweird.f32 %v997
      %v2346 = vand.u32 %v2342, 3
      %vm2347 = vcmp.lt.s32.totalorder %v2346, 2
      %vm2348 = vcmp.eq.s32.totalorder %v2346, 0
      %v2349 = vxor.u32 %v2344, 2147483648
      %v2350 = vsel %vm2348, %v2343, %v2349
      %vm2351 = vcmp.eq.s32.totalorder %v2346, 2
      %v2352 = vxor.u32 %v2343, 2147483648
      %v2353 = vsel %vm2351, %v2352, %v2344
      %v2354 = vsel %vm2347, %v2350, %v2353
      %v2355 = vsel %vm2345, nan, %v2354
      %v2356 = vand.u32 2147483647, %v998
      %vm2357 = vcmp.le.f32.partialorder %v2356, 0.7853982
      %vm2358 = vcmp.lt.s32.totalorder %v998, 0
      %v2359 = vand.u32 %v998, 2139095040
      %v2360 = vshrl.u32 %v2359, 23
      %v2361 = vsub.s32 %v2360, 127
      %v2362 = vand.u32 2147483647, %v998
      %v2363 = vand.u32 %v2362, 8388607
      %v2364 = vor.u32 %v2363, 8388608
      %v2365 = vsub.s32 0, %v2364
      %v2366 = vadd.s32 %v2361, 1
      %vm2367 = vcmp.gt.s32.totalorder %v2366, 0
      %v2368 = vsel %vm2367, %v2366, 0
      %v2369 = vshrl.u32 %v2368, 5
      %v2370 = vand.u32 %v2368, 31
      %v2371 = vsub.s32 32, %v2370
      %v2372 = vshrl.u32 683565275, %v2371
      %v2373 = vshll.u32 683565275, %v2370
      %v2374 = vshrl.u32 2475754826, %v2371
      %v2375 = vor.u32 %v2373, %v2374
      %v2376 = vshll.u32 2475754826, %v2370
      %v2377 = vshrl.u32 2131351028, %v2371
      %v2378 = vor.u32 %v2376, %v2377
      %v2379 = vshll.u32 2131351028, %v2370
      %v2380 = vshrl.u32 2102212464, %v2371
      %v2381 = vor.u32 %v2379, %v2380
      %v2382 = vshll.u32 2102212464, %v2370
      %v2383 = vshrl.u32 920167782, %v2371
      %v2384 = vor.u32 %v2382, %v2383
      %v2385 = vshll.u32 920167782, %v2370
      %v2386 = vshrl.u32 1326507024, %v2371
      %v2387 = vor.u32 %v2385, %v2386
      %vm2388 = vcmp.lt.s32.totalorder %v2369, 1
      %vm2389 = vcmp.lt.s32.totalorder %v2369, 2
      %vm2390 = vcmp.lt.s32.totalorder %v2369, 3
      %vm2391 = vcmp.lt.s32.totalorder %v2369, 4
      %v2392 = vsel %vm2388, %v2372, %v2375
      %v2393 = vsel %vm2391, %v2381, 2102212464
      %v2394 = vsel %vm2390, %v2378, %v2393
      %v2395 = vsel %vm2389, %v2392, %v2394
      %v2396 = vsel %vm2388, %v2375, %v2378
      %v2397 = vsel %vm2391, %v2384, 920167782
      %v2398 = vsel %vm2390, %v2381, %v2397
      %v2399 = vsel %vm2389, %v2396, %v2398
      %v2400 = vsel %vm2388, %v2378, %v2381
      %v2401 = vsel %vm2391, %v2387, 1326507024
      %v2402 = vsel %vm2390, %v2384, %v2401
      %v2403 = vsel %vm2389, %v2400, %v2402
      %v2404 = vshll.u32 %v2364, 8
      %v2405 = vmul.u32.u64.compose %v2404, %v2403
      %v2406 = vextract.low.u32 %v2405
      %v2407 = vextract.high.u32 %v2405
      %v2408 = vmul.u32.u64.compose %v2404, %v2399
      %v2409 = vextract.low.u32 %v2408
      %v2410 = vextract.high.u32 %v2408
      %v2411 = vmul.u32 %v2404, %v2395
      %v2412 = vadd.s32 %v2407, %v2409
      %vm2413 = vc.u32 %v2407, %v2409
      %v2414 = vadd.s32 %v2410, 1
      %v2415 = vsel %vm2413, %v2414, %v2410
      %v2416 = vadd.s32 %v2411, %v2415
      %v2417 = vadd.s32 %v2416, 536870912
      %v2418 = vshrl.u32 %v2417, 30
      %v2419 = vshll.u32 %v2418, 30
      %v2420 = vsub.s32 %v2416, %v2419
      %vm2421 = vcmp.lt.s32.totalorder %v2420, 0
      %v2422 = vsub.s32 0, %v2420
      %v2423 = vsel %vm2421, %v2422, %v2420
      %v2424 = vclz %v2423
      %v2425 = vsub.s32 %v2424, 2
      %vm2426 = vcmp.gt.s32.totalorder 0, %v2425
      %v2427 = vsel %vm2426, 0, %v2425
      %v2428 = vsub.s32 32, %v2427
      %v2429 = vshll.u32 %v2420, %v2427
      %v2430 = vshrl.u32 %v2412, %v2428
      %v2431 = vor.u32 %v2429, %v2430
      %v2432 = vsub.s32 4294967266, %v2427
      %v2433 = vadd.s32 %v2432, 127
      %v2434 = vshll.u32 %v2433, 23
      %v2435 = vor.u32 4788187, %v2434
      %v2436 = vand.u32 2147483647, %v2435
      %v2438 = vcvt.s32.f32 %v2431
      %v2439 = vmul.f32 %v2438, %v2436
      %v2440 = vxor.u32 %v2439, 2147483648
      %v2441 = vsel %vm2358, %v2440, %v2439
      %v2442 = vsub.s32 4, %v2418
      %v2443 = vsel %vm2358, %v2442, %v2418
      %v2444 = vsel %vm2357, %v998, %v2441
      %v2445 = vsel %vm2357, 0, %v2443
      %v2446 = vcosq.f32.pop %v2444
      %v2447 = vsinq.f32.pop %v2444
      %vm2448 = vweird.f32 %v998
      %v2449 = vand.u32 %v2445, 3
      %vm2450 = vcmp.lt.s32.totalorder %v2449, 2
      %vm2451 = vcmp.eq.s32.totalorder %v2449, 0
      %v2452 = vxor.u32 %v2447, 2147483648
      %v2453 = vsel %vm2451, %v2446, %v2452
      %vm2454 = vcmp.eq.s32.totalorder %v2449, 2
      %v2455 = vxor.u32 %v2446, 2147483648
      %v2456 = vsel %vm2454, %v2455, %v2447
      %v2457 = vsel %vm2450, %v2453, %v2456
      %v2458 = vsel %vm2448, nan, %v2457
      %v2459 = vand.u32 2147483647, %v999
      %vm2460 = vcmp.le.f32.partialorder %v2459, 0.7853982
      %vm2461 = vcmp.lt.s32.totalorder %v999, 0
      %v2462 = vand.u32 %v999, 2139095040
      %v2463 = vshrl.u32 %v2462, 23
      %v2464 = vsub.s32 %v2463, 127
      %v2465 = vand.u32 2147483647, %v999
      %v2466 = vand.u32 %v2465, 8388607
      %v2467 = vor.u32 %v2466, 8388608
      %v2468 = vsub.s32 0, %v2467
      %v2469 = vadd.s32 %v2464, 1
      %vm2470 = vcmp.gt.s32.totalorder %v2469, 0
      %v2471 = vsel %vm2470, %v2469, 0
      %v2472 = vshrl.u32 %v2471, 5
      %v2473 = vand.u32 %v2471, 31
      %v2474 = vsub.s32 32, %v2473
      %v2475 = vshrl.u32 683565275, %v2474
      %v2476 = vshll.u32 683565275, %v2473
      %v2477 = vshrl.u32 2475754826, %v2474
      %v2478 = vor.u32 %v2476, %v2477
      %v2479 = vshll.u32 2475754826, %v2473
      %v2480 = vshrl.u32 2131351028, %v2474
      %v2481 = vor.u32 %v2479, %v2480
      %v2482 = vshll.u32 2131351028, %v2473
      %v2483 = vshrl.u32 2102212464, %v2474
      %v2484 = vor.u32 %v2482, %v2483
      %v2485 = vshll.u32 2102212464, %v2473
      %v2486 = vshrl.u32 920167782, %v2474
      %v2487 = vor.u32 %v2485, %v2486
      %v2488 = vshll.u32 920167782, %v2473
      %v2489 = vshrl.u32 1326507024, %v2474
      %v2490 = vor.u32 %v2488, %v2489
      %vm2491 = vcmp.lt.s32.totalorder %v2472, 1
      %vm2492 = vcmp.lt.s32.totalorder %v2472, 2
      %vm2493 = vcmp.lt.s32.totalorder %v2472, 3
      %vm2494 = vcmp.lt.s32.totalorder %v2472, 4
      %v2495 = vsel %vm2491, %v2475, %v2478
      %v2496 = vsel %vm2494, %v2484, 2102212464
      %v2497 = vsel %vm2493, %v2481, %v2496
      %v2498 = vsel %vm2492, %v2495, %v2497
      %v2499 = vsel %vm2491, %v2478, %v2481
      %v2500 = vsel %vm2494, %v2487, 920167782
      %v2501 = vsel %vm2493, %v2484, %v2500
      %v2502 = vsel %vm2492, %v2499, %v2501
      %v2503 = vsel %vm2491, %v2481, %v2484
      %v2504 = vsel %vm2494, %v2490, 1326507024
      %v2505 = vsel %vm2493, %v2487, %v2504
      %v2506 = vsel %vm2492, %v2503, %v2505
      %v2507 = vshll.u32 %v2467, 8
      %v2508 = vmul.u32.u64.compose %v2507, %v2506
      %v2509 = vextract.low.u32 %v2508
      %v2510 = vextract.high.u32 %v2508
      %v2511 = vmul.u32.u64.compose %v2507, %v2502
      %v2512 = vextract.low.u32 %v2511
      %v2513 = vextract.high.u32 %v2511
      %v2514 = vmul.u32 %v2507, %v2498
      %v2515 = vadd.s32 %v2510, %v2512
      %vm2516 = vc.u32 %v2510, %v2512
      %v2517 = vadd.s32 %v2513, 1
      %v2518 = vsel %vm2516, %v2517, %v2513
      %v2519 = vadd.s32 %v2514, %v2518
      %v2520 = vadd.s32 %v2519, 536870912
      %v2521 = vshrl.u32 %v2520, 30
      %v2522 = vshll.u32 %v2521, 30
      %v2523 = vsub.s32 %v2519, %v2522
      %vm2524 = vcmp.lt.s32.totalorder %v2523, 0
      %v2525 = vsub.s32 0, %v2523
      %v2526 = vsel %vm2524, %v2525, %v2523
      %v2527 = vclz %v2526
      %v2528 = vsub.s32 %v2527, 2
      %vm2529 = vcmp.gt.s32.totalorder 0, %v2528
      %v2530 = vsel %vm2529, 0, %v2528
      %v2531 = vsub.s32 32, %v2530
      %v2532 = vshll.u32 %v2523, %v2530
      %v2533 = vshrl.u32 %v2515, %v2531
      %v2534 = vor.u32 %v2532, %v2533
      %v2535 = vsub.s32 4294967266, %v2530
      %v2536 = vadd.s32 %v2535, 127
      %v2537 = vshll.u32 %v2536, 23
      %v2538 = vor.u32 4788187, %v2537
      %v2539 = vand.u32 2147483647, %v2538
      %v2541 = vcvt.s32.f32 %v2534
      %v2542 = vmul.f32 %v2541, %v2539
      %v2543 = vxor.u32 %v2542, 2147483648
      %v2544 = vsel %vm2461, %v2543, %v2542
      %v2545 = vsub.s32 4, %v2521
      %v2546 = vsel %vm2461, %v2545, %v2521
      %v2547 = vsel %vm2460, %v999, %v2544
      %v2548 = vsel %vm2460, 0, %v2546
      %v2549 = vcosq.f32.pop %v2547
      %v2550 = vsinq.f32.pop %v2547
      %vm2551 = vweird.f32 %v999
      %v2552 = vand.u32 %v2548, 3
      %vm2553 = vcmp.lt.s32.totalorder %v2552, 2
      %vm2554 = vcmp.eq.s32.totalorder %v2552, 0
      %v2555 = vxor.u32 %v2550, 2147483648
      %v2556 = vsel %vm2554, %v2549, %v2555
      %vm2557 = vcmp.eq.s32.totalorder %v2552, 2
      %v2558 = vxor.u32 %v2549, 2147483648
      %v2559 = vsel %vm2557, %v2558, %v2550
      %v2560 = vsel %vm2553, %v2556, %v2559
      %v2561 = vsel %vm2551, nan, %v2560
      %v2562 = vand.u32 2147483647, %v1000
      %vm2563 = vcmp.le.f32.partialorder %v2562, 0.7853982
      %vm2564 = vcmp.lt.s32.totalorder %v1000, 0
      %v2565 = vand.u32 %v1000, 2139095040
      %v2566 = vshrl.u32 %v2565, 23
      %v2567 = vsub.s32 %v2566, 127
      %v2568 = vand.u32 2147483647, %v1000
      %v2569 = vand.u32 %v2568, 8388607
      %v2570 = vor.u32 %v2569, 8388608
      %v2571 = vsub.s32 0, %v2570
      %v2572 = vadd.s32 %v2567, 1
      %vm2573 = vcmp.gt.s32.totalorder %v2572, 0
      %v2574 = vsel %vm2573, %v2572, 0
      %v2575 = vshrl.u32 %v2574, 5
      %v2576 = vand.u32 %v2574, 31
      %v2577 = vsub.s32 32, %v2576
      %v2578 = vshrl.u32 683565275, %v2577
      %v2579 = vshll.u32 683565275, %v2576
      %v2580 = vshrl.u32 2475754826, %v2577
      %v2581 = vor.u32 %v2579, %v2580
      %v2582 = vshll.u32 2475754826, %v2576
      %v2583 = vshrl.u32 2131351028, %v2577
      %v2584 = vor.u32 %v2582, %v2583
      %v2585 = vshll.u32 2131351028, %v2576
      %v2586 = vshrl.u32 2102212464, %v2577
      %v2587 = vor.u32 %v2585, %v2586
      %v2588 = vshll.u32 2102212464, %v2576
      %v2589 = vshrl.u32 920167782, %v2577
      %v2590 = vor.u32 %v2588, %v2589
      %v2591 = vshll.u32 920167782, %v2576
      %v2592 = vshrl.u32 1326507024, %v2577
      %v2593 = vor.u32 %v2591, %v2592
      %vm2594 = vcmp.lt.s32.totalorder %v2575, 1
      %vm2595 = vcmp.lt.s32.totalorder %v2575, 2
      %vm2596 = vcmp.lt.s32.totalorder %v2575, 3
      %vm2597 = vcmp.lt.s32.totalorder %v2575, 4
      %v2598 = vsel %vm2594, %v2578, %v2581
      %v2599 = vsel %vm2597, %v2587, 2102212464
      %v2600 = vsel %vm2596, %v2584, %v2599
      %v2601 = vsel %vm2595, %v2598, %v2600
      %v2602 = vsel %vm2594, %v2581, %v2584
      %v2603 = vsel %vm2597, %v2590, 920167782
      %v2604 = vsel %vm2596, %v2587, %v2603
      %v2605 = vsel %vm2595, %v2602, %v2604
      %v2606 = vsel %vm2594, %v2584, %v2587
      %v2607 = vsel %vm2597, %v2593, 1326507024
      %v2608 = vsel %vm2596, %v2590, %v2607
      %v2609 = vsel %vm2595, %v2606, %v2608
      %v2610 = vshll.u32 %v2570, 8
      %v2611 = vmul.u32.u64.compose %v2610, %v2609
      %v2612 = vextract.low.u32 %v2611
      %v2613 = vextract.high.u32 %v2611
      %v2614 = vmul.u32.u64.compose %v2610, %v2605
      %v2615 = vextract.low.u32 %v2614
      %v2616 = vextract.high.u32 %v2614
      %v2617 = vmul.u32 %v2610, %v2601
      %v2618 = vadd.s32 %v2613, %v2615
      %vm2619 = vc.u32 %v2613, %v2615
      %v2620 = vadd.s32 %v2616, 1
      %v2621 = vsel %vm2619, %v2620, %v2616
      %v2622 = vadd.s32 %v2617, %v2621
      %v2623 = vadd.s32 %v2622, 536870912
      %v2624 = vshrl.u32 %v2623, 30
      %v2625 = vshll.u32 %v2624, 30
      %v2626 = vsub.s32 %v2622, %v2625
      %vm2627 = vcmp.lt.s32.totalorder %v2626, 0
      %v2628 = vsub.s32 0, %v2626
      %v2629 = vsel %vm2627, %v2628, %v2626
      %v2630 = vclz %v2629
      %v2631 = vsub.s32 %v2630, 2
      %vm2632 = vcmp.gt.s32.totalorder 0, %v2631
      %v2633 = vsel %vm2632, 0, %v2631
      %v2634 = vsub.s32 32, %v2633
      %v2635 = vshll.u32 %v2626, %v2633
      %v2636 = vshrl.u32 %v2618, %v2634
      %v2637 = vor.u32 %v2635, %v2636
      %v2638 = vsub.s32 4294967266, %v2633
      %v2639 = vadd.s32 %v2638, 127
      %v2640 = vshll.u32 %v2639, 23
      %v2641 = vor.u32 4788187, %v2640
      %v2642 = vand.u32 2147483647, %v2641
      %v2644 = vcvt.s32.f32 %v2637
      %v2645 = vmul.f32 %v2644, %v2642
      %v2646 = vxor.u32 %v2645, 2147483648
      %v2647 = vsel %vm2564, %v2646, %v2645
      %v2648 = vsub.s32 4, %v2624
      %v2649 = vsel %vm2564, %v2648, %v2624
      %v2650 = vsel %vm2563, %v1000, %v2647
      %v2651 = vsel %vm2563, 0, %v2649
      %v2652 = vcosq.f32.pop %v2650
      %v2653 = vsinq.f32.pop %v2650
      %vm2654 = vweird.f32 %v1000
      %v2655 = vand.u32 %v2651, 3
      %vm2656 = vcmp.lt.s32.totalorder %v2655, 2
      %vm2657 = vcmp.eq.s32.totalorder %v2655, 0
      %v2658 = vxor.u32 %v2653, 2147483648
      %v2659 = vsel %vm2657, %v2652, %v2658
      %vm2660 = vcmp.eq.s32.totalorder %v2655, 2
      %v2661 = vxor.u32 %v2652, 2147483648
      %v2662 = vsel %vm2660, %v2661, %v2653
      %v2663 = vsel %vm2656, %v2659, %v2662
      %v2664 = vsel %vm2654, nan, %v2663
      %v2665 = vand.u32 2147483647, %v1001
      %vm2666 = vcmp.le.f32.partialorder %v2665, 0.7853982
      %vm2667 = vcmp.lt.s32.totalorder %v1001, 0
      %v2668 = vand.u32 %v1001, 2139095040
      %v2669 = vshrl.u32 %v2668, 23
      %v2670 = vsub.s32 %v2669, 127
      %v2671 = vand.u32 2147483647, %v1001
      %v2672 = vand.u32 %v2671, 8388607
      %v2673 = vor.u32 %v2672, 8388608
      %v2674 = vsub.s32 0, %v2673
      %v2675 = vadd.s32 %v2670, 1
      %vm2676 = vcmp.gt.s32.totalorder %v2675, 0
      %v2677 = vsel %vm2676, %v2675, 0
      %v2678 = vshrl.u32 %v2677, 5
      %v2679 = vand.u32 %v2677, 31
      %v2680 = vsub.s32 32, %v2679
      %v2681 = vshrl.u32 683565275, %v2680
      %v2682 = vshll.u32 683565275, %v2679
      %v2683 = vshrl.u32 2475754826, %v2680
      %v2684 = vor.u32 %v2682, %v2683
      %v2685 = vshll.u32 2475754826, %v2679
      %v2686 = vshrl.u32 2131351028, %v2680
      %v2687 = vor.u32 %v2685, %v2686
      %v2688 = vshll.u32 2131351028, %v2679
      %v2689 = vshrl.u32 2102212464, %v2680
      %v2690 = vor.u32 %v2688, %v2689
      %v2691 = vshll.u32 2102212464, %v2679
      %v2692 = vshrl.u32 920167782, %v2680
      %v2693 = vor.u32 %v2691, %v2692
      %v2694 = vshll.u32 920167782, %v2679
      %v2695 = vshrl.u32 1326507024, %v2680
      %v2696 = vor.u32 %v2694, %v2695
      %vm2697 = vcmp.lt.s32.totalorder %v2678, 1
      %vm2698 = vcmp.lt.s32.totalorder %v2678, 2
      %vm2699 = vcmp.lt.s32.totalorder %v2678, 3
      %vm2700 = vcmp.lt.s32.totalorder %v2678, 4
      %v2701 = vsel %vm2697, %v2681, %v2684
      %v2702 = vsel %vm2700, %v2690, 2102212464
      %v2703 = vsel %vm2699, %v2687, %v2702
      %v2704 = vsel %vm2698, %v2701, %v2703
      %v2705 = vsel %vm2697, %v2684, %v2687
      %v2706 = vsel %vm2700, %v2693, 920167782
      %v2707 = vsel %vm2699, %v2690, %v2706
      %v2708 = vsel %vm2698, %v2705, %v2707
      %v2709 = vsel %vm2697, %v2687, %v2690
      %v2710 = vsel %vm2700, %v2696, 1326507024
      %v2711 = vsel %vm2699, %v2693, %v2710
      %v2712 = vsel %vm2698, %v2709, %v2711
      %v2713 = vshll.u32 %v2673, 8
      %v2714 = vmul.u32.u64.compose %v2713, %v2712
      %v2715 = vextract.low.u32 %v2714
      %v2716 = vextract.high.u32 %v2714
      %v2717 = vmul.u32.u64.compose %v2713, %v2708
      %v2718 = vextract.low.u32 %v2717
      %v2719 = vextract.high.u32 %v2717
      %v2720 = vmul.u32 %v2713, %v2704
      %v2721 = vadd.s32 %v2716, %v2718
      %vm2722 = vc.u32 %v2716, %v2718
      %v2723 = vadd.s32 %v2719, 1
      %v2724 = vsel %vm2722, %v2723, %v2719
      %v2725 = vadd.s32 %v2720, %v2724
      %v2726 = vadd.s32 %v2725, 536870912
      %v2727 = vshrl.u32 %v2726, 30
      %v2728 = vshll.u32 %v2727, 30
      %v2729 = vsub.s32 %v2725, %v2728
      %vm2730 = vcmp.lt.s32.totalorder %v2729, 0
      %v2731 = vsub.s32 0, %v2729
      %v2732 = vsel %vm2730, %v2731, %v2729
      %v2733 = vclz %v2732
      %v2734 = vsub.s32 %v2733, 2
      %vm2735 = vcmp.gt.s32.totalorder 0, %v2734
      %v2736 = vsel %vm2735, 0, %v2734
      %v2737 = vsub.s32 32, %v2736
      %v2738 = vshll.u32 %v2729, %v2736
      %v2739 = vshrl.u32 %v2721, %v2737
      %v2740 = vor.u32 %v2738, %v2739
      %v2741 = vsub.s32 4294967266, %v2736
      %v2742 = vadd.s32 %v2741, 127
      %v2743 = vshll.u32 %v2742, 23
      %v2744 = vor.u32 4788187, %v2743
      %v2745 = vand.u32 2147483647, %v2744
      %v2747 = vcvt.s32.f32 %v2740
      %v2748 = vmul.f32 %v2747, %v2745
      %v2749 = vxor.u32 %v2748, 2147483648
      %v2750 = vsel %vm2667, %v2749, %v2748
      %v2751 = vsub.s32 4, %v2727
      %v2752 = vsel %vm2667, %v2751, %v2727
      %v2753 = vsel %vm2666, %v1001, %v2750
      %v2754 = vsel %vm2666, 0, %v2752
      %v2755 = vcosq.f32.pop %v2753
      %v2756 = vsinq.f32.pop %v2753
      %vm2757 = vweird.f32 %v1001
      %v2758 = vand.u32 %v2754, 3
      %vm2759 = vcmp.lt.s32.totalorder %v2758, 2
      %vm2760 = vcmp.eq.s32.totalorder %v2758, 0
      %v2761 = vxor.u32 %v2756, 2147483648
      %v2762 = vsel %vm2760, %v2755, %v2761
      %vm2763 = vcmp.eq.s32.totalorder %v2758, 2
      %v2764 = vxor.u32 %v2755, 2147483648
      %v2765 = vsel %vm2763, %v2764, %v2756
      %v2766 = vsel %vm2759, %v2762, %v2765
      %v2767 = vsel %vm2757, nan, %v2766
      %v2768 = vand.u32 2147483647, %v1002
      %vm2769 = vcmp.le.f32.partialorder %v2768, 0.7853982
      %vm2770 = vcmp.lt.s32.totalorder %v1002, 0
      %v2771 = vand.u32 %v1002, 2139095040
      %v2772 = vshrl.u32 %v2771, 23
      %v2773 = vsub.s32 %v2772, 127
      %v2774 = vand.u32 2147483647, %v1002
      %v2775 = vand.u32 %v2774, 8388607
      %v2776 = vor.u32 %v2775, 8388608
      %v2777 = vsub.s32 0, %v2776
      %v2778 = vadd.s32 %v2773, 1
      %vm2779 = vcmp.gt.s32.totalorder %v2778, 0
      %v2780 = vsel %vm2779, %v2778, 0
      %v2781 = vshrl.u32 %v2780, 5
      %v2782 = vand.u32 %v2780, 31
      %v2783 = vsub.s32 32, %v2782
      %v2784 = vshrl.u32 683565275, %v2783
      %v2785 = vshll.u32 683565275, %v2782
      %v2786 = vshrl.u32 2475754826, %v2783
      %v2787 = vor.u32 %v2785, %v2786
      %v2788 = vshll.u32 2475754826, %v2782
      %v2789 = vshrl.u32 2131351028, %v2783
      %v2790 = vor.u32 %v2788, %v2789
      %v2791 = vshll.u32 2131351028, %v2782
      %v2792 = vshrl.u32 2102212464, %v2783
      %v2793 = vor.u32 %v2791, %v2792
      %v2794 = vshll.u32 2102212464, %v2782
      %v2795 = vshrl.u32 920167782, %v2783
      %v2796 = vor.u32 %v2794, %v2795
      %v2797 = vshll.u32 920167782, %v2782
      %v2798 = vshrl.u32 1326507024, %v2783
      %v2799 = vor.u32 %v2797, %v2798
      %vm2800 = vcmp.lt.s32.totalorder %v2781, 1
      %vm2801 = vcmp.lt.s32.totalorder %v2781, 2
      %vm2802 = vcmp.lt.s32.totalorder %v2781, 3
      %vm2803 = vcmp.lt.s32.totalorder %v2781, 4
      %v2804 = vsel %vm2800, %v2784, %v2787
      %v2805 = vsel %vm2803, %v2793, 2102212464
      %v2806 = vsel %vm2802, %v2790, %v2805
      %v2807 = vsel %vm2801, %v2804, %v2806
      %v2808 = vsel %vm2800, %v2787, %v2790
      %v2809 = vsel %vm2803, %v2796, 920167782
      %v2810 = vsel %vm2802, %v2793, %v2809
      %v2811 = vsel %vm2801, %v2808, %v2810
      %v2812 = vsel %vm2800, %v2790, %v2793
      %v2813 = vsel %vm2803, %v2799, 1326507024
      %v2814 = vsel %vm2802, %v2796, %v2813
      %v2815 = vsel %vm2801, %v2812, %v2814
      %v2816 = vshll.u32 %v2776, 8
      %v2817 = vmul.u32.u64.compose %v2816, %v2815
      %v2818 = vextract.low.u32 %v2817
      %v2819 = vextract.high.u32 %v2817
      %v2820 = vmul.u32.u64.compose %v2816, %v2811
      %v2821 = vextract.low.u32 %v2820
      %v2822 = vextract.high.u32 %v2820
      %v2823 = vmul.u32 %v2816, %v2807
      %v2824 = vadd.s32 %v2819, %v2821
      %vm2825 = vc.u32 %v2819, %v2821
      %v2826 = vadd.s32 %v2822, 1
      %v2827 = vsel %vm2825, %v2826, %v2822
      %v2828 = vadd.s32 %v2823, %v2827
      %v2829 = vadd.s32 %v2828, 536870912
      %v2830 = vshrl.u32 %v2829, 30
      %v2831 = vshll.u32 %v2830, 30
      %v2832 = vsub.s32 %v2828, %v2831
      %vm2833 = vcmp.lt.s32.totalorder %v2832, 0
      %v2834 = vsub.s32 0, %v2832
      %v2835 = vsel %vm2833, %v2834, %v2832
      %v2836 = vclz %v2835
      %v2837 = vsub.s32 %v2836, 2
      %vm2838 = vcmp.gt.s32.totalorder 0, %v2837
      %v2839 = vsel %vm2838, 0, %v2837
      %v2840 = vsub.s32 32, %v2839
      %v2841 = vshll.u32 %v2832, %v2839
      %v2842 = vshrl.u32 %v2824, %v2840
      %v2843 = vor.u32 %v2841, %v2842
      %v2844 = vsub.s32 4294967266, %v2839
      %v2845 = vadd.s32 %v2844, 127
      %v2846 = vshll.u32 %v2845, 23
      %v2847 = vor.u32 4788187, %v2846
      %v2848 = vand.u32 2147483647, %v2847
      %v2850 = vcvt.s32.f32 %v2843
      %v2851 = vmul.f32 %v2850, %v2848
      %v2852 = vxor.u32 %v2851, 2147483648
      %v2853 = vsel %vm2770, %v2852, %v2851
      %v2854 = vsub.s32 4, %v2830
      %v2855 = vsel %vm2770, %v2854, %v2830
      %v2856 = vsel %vm2769, %v1002, %v2853
      %v2857 = vsel %vm2769, 0, %v2855
      %v2858 = vcosq.f32.pop %v2856
      %v2859 = vsinq.f32.pop %v2856
      %vm2860 = vweird.f32 %v1002
      %v2861 = vand.u32 %v2857, 3
      %vm2862 = vcmp.lt.s32.totalorder %v2861, 2
      %vm2863 = vcmp.eq.s32.totalorder %v2861, 0
      %v2864 = vxor.u32 %v2859, 2147483648
      %v2865 = vsel %vm2863, %v2858, %v2864
      %vm2866 = vcmp.eq.s32.totalorder %v2861, 2
      %v2867 = vxor.u32 %v2858, 2147483648
      %v2868 = vsel %vm2866, %v2867, %v2859
      %v2869 = vsel %vm2862, %v2865, %v2868
      %v2870 = vsel %vm2860, nan, %v2869
      %v2871 = vand.u32 2147483647, %v1003
      %vm2872 = vcmp.le.f32.partialorder %v2871, 0.7853982
      %vm2873 = vcmp.lt.s32.totalorder %v1003, 0
      %v2874 = vand.u32 %v1003, 2139095040
      %v2875 = vshrl.u32 %v2874, 23
      %v2876 = vsub.s32 %v2875, 127
      %v2877 = vand.u32 2147483647, %v1003
      %v2878 = vand.u32 %v2877, 8388607
      %v2879 = vor.u32 %v2878, 8388608
      %v2880 = vsub.s32 0, %v2879
      %v2881 = vadd.s32 %v2876, 1
      %vm2882 = vcmp.gt.s32.totalorder %v2881, 0
      %v2883 = vsel %vm2882, %v2881, 0
      %v2884 = vshrl.u32 %v2883, 5
      %v2885 = vand.u32 %v2883, 31
      %v2886 = vsub.s32 32, %v2885
      %v2887 = vshrl.u32 683565275, %v2886
      %v2888 = vshll.u32 683565275, %v2885
      %v2889 = vshrl.u32 2475754826, %v2886
      %v2890 = vor.u32 %v2888, %v2889
      %v2891 = vshll.u32 2475754826, %v2885
      %v2892 = vshrl.u32 2131351028, %v2886
      %v2893 = vor.u32 %v2891, %v2892
      %v2894 = vshll.u32 2131351028, %v2885
      %v2895 = vshrl.u32 2102212464, %v2886
      %v2896 = vor.u32 %v2894, %v2895
      %v2897 = vshll.u32 2102212464, %v2885
      %v2898 = vshrl.u32 920167782, %v2886
      %v2899 = vor.u32 %v2897, %v2898
      %v2900 = vshll.u32 920167782, %v2885
      %v2901 = vshrl.u32 1326507024, %v2886
      %v2902 = vor.u32 %v2900, %v2901
      %vm2903 = vcmp.lt.s32.totalorder %v2884, 1
      %vm2904 = vcmp.lt.s32.totalorder %v2884, 2
      %vm2905 = vcmp.lt.s32.totalorder %v2884, 3
      %vm2906 = vcmp.lt.s32.totalorder %v2884, 4
      %v2907 = vsel %vm2903, %v2887, %v2890
      %v2908 = vsel %vm2906, %v2896, 2102212464
      %v2909 = vsel %vm2905, %v2893, %v2908
      %v2910 = vsel %vm2904, %v2907, %v2909
      %v2911 = vsel %vm2903, %v2890, %v2893
      %v2912 = vsel %vm2906, %v2899, 920167782
      %v2913 = vsel %vm2905, %v2896, %v2912
      %v2914 = vsel %vm2904, %v2911, %v2913
      %v2915 = vsel %vm2903, %v2893, %v2896
      %v2916 = vsel %vm2906, %v2902, 1326507024
      %v2917 = vsel %vm2905, %v2899, %v2916
      %v2918 = vsel %vm2904, %v2915, %v2917
      %v2919 = vshll.u32 %v2879, 8
      %v2920 = vmul.u32.u64.compose %v2919, %v2918
      %v2921 = vextract.low.u32 %v2920
      %v2922 = vextract.high.u32 %v2920
      %v2923 = vmul.u32.u64.compose %v2919, %v2914
      %v2924 = vextract.low.u32 %v2923
      %v2925 = vextract.high.u32 %v2923
      %v2926 = vmul.u32 %v2919, %v2910
      %v2927 = vadd.s32 %v2922, %v2924
      %vm2928 = vc.u32 %v2922, %v2924
      %v2929 = vadd.s32 %v2925, 1
      %v2930 = vsel %vm2928, %v2929, %v2925
      %v2931 = vadd.s32 %v2926, %v2930
      %v2932 = vadd.s32 %v2931, 536870912
      %v2933 = vshrl.u32 %v2932, 30
      %v2934 = vshll.u32 %v2933, 30
      %v2935 = vsub.s32 %v2931, %v2934
      %vm2936 = vcmp.lt.s32.totalorder %v2935, 0
      %v2937 = vsub.s32 0, %v2935
      %v2938 = vsel %vm2936, %v2937, %v2935
      %v2939 = vclz %v2938
      %v2940 = vsub.s32 %v2939, 2
      %vm2941 = vcmp.gt.s32.totalorder 0, %v2940
      %v2942 = vsel %vm2941, 0, %v2940
      %v2943 = vsub.s32 32, %v2942
      %v2944 = vshll.u32 %v2935, %v2942
      %v2945 = vshrl.u32 %v2927, %v2943
      %v2946 = vor.u32 %v2944, %v2945
      %v2947 = vsub.s32 4294967266, %v2942
      %v2948 = vadd.s32 %v2947, 127
      %v2949 = vshll.u32 %v2948, 23
      %v2950 = vor.u32 4788187, %v2949
      %v2951 = vand.u32 2147483647, %v2950
      %v2953 = vcvt.s32.f32 %v2946
      %v2954 = vmul.f32 %v2953, %v2951
      %v2955 = vxor.u32 %v2954, 2147483648
      %v2956 = vsel %vm2873, %v2955, %v2954
      %v2957 = vsub.s32 4, %v2933
      %v2958 = vsel %vm2873, %v2957, %v2933
      %v2959 = vsel %vm2872, %v1003, %v2956
      %v2960 = vsel %vm2872, 0, %v2958
      %v2961 = vcosq.f32.pop %v2959
      %v2962 = vsinq.f32.pop %v2959
      %vm2963 = vweird.f32 %v1003
      %v2964 = vand.u32 %v2960, 3
      %vm2965 = vcmp.lt.s32.totalorder %v2964, 2
      %vm2966 = vcmp.eq.s32.totalorder %v2964, 0
      %v2967 = vxor.u32 %v2962, 2147483648
      %v2968 = vsel %vm2966, %v2961, %v2967
      %vm2969 = vcmp.eq.s32.totalorder %v2964, 2
      %v2970 = vxor.u32 %v2961, 2147483648
      %v2971 = vsel %vm2969, %v2970, %v2962
      %v2972 = vsel %vm2965, %v2968, %v2971
      %v2973 = vsel %vm2963, nan, %v2972
      %v2974 = vand.u32 2147483647, %v1004
      %vm2975 = vcmp.le.f32.partialorder %v2974, 0.7853982
      %vm2976 = vcmp.lt.s32.totalorder %v1004, 0
      %v2977 = vand.u32 %v1004, 2139095040
      %v2978 = vshrl.u32 %v2977, 23
      %v2979 = vsub.s32 %v2978, 127
      %v2980 = vand.u32 2147483647, %v1004
      %v2981 = vand.u32 %v2980, 8388607
      %v2982 = vor.u32 %v2981, 8388608
      %v2983 = vsub.s32 0, %v2982
      %v2984 = vadd.s32 %v2979, 1
      %vm2985 = vcmp.gt.s32.totalorder %v2984, 0
      %v2986 = vsel %vm2985, %v2984, 0
      %v2987 = vshrl.u32 %v2986, 5
      %v2988 = vand.u32 %v2986, 31
      %v2989 = vsub.s32 32, %v2988
      %v2990 = vshrl.u32 683565275, %v2989
      %v2991 = vshll.u32 683565275, %v2988
      %v2992 = vshrl.u32 2475754826, %v2989
      %v2993 = vor.u32 %v2991, %v2992
      %v2994 = vshll.u32 2475754826, %v2988
      %v2995 = vshrl.u32 2131351028, %v2989
      %v2996 = vor.u32 %v2994, %v2995
      %v2997 = vshll.u32 2131351028, %v2988
      %v2998 = vshrl.u32 2102212464, %v2989
      %v2999 = vor.u32 %v2997, %v2998
      %v3000 = vshll.u32 2102212464, %v2988
      %v3001 = vshrl.u32 920167782, %v2989
      %v3002 = vor.u32 %v3000, %v3001
      %v3003 = vshll.u32 920167782, %v2988
      %v3004 = vshrl.u32 1326507024, %v2989
      %v3005 = vor.u32 %v3003, %v3004
      %vm3006 = vcmp.lt.s32.totalorder %v2987, 1
      %vm3007 = vcmp.lt.s32.totalorder %v2987, 2
      %vm3008 = vcmp.lt.s32.totalorder %v2987, 3
      %vm3009 = vcmp.lt.s32.totalorder %v2987, 4
      %v3010 = vsel %vm3006, %v2990, %v2993
      %v3011 = vsel %vm3009, %v2999, 2102212464
      %v3012 = vsel %vm3008, %v2996, %v3011
      %v3013 = vsel %vm3007, %v3010, %v3012
      %v3014 = vsel %vm3006, %v2993, %v2996
      %v3015 = vsel %vm3009, %v3002, 920167782
      %v3016 = vsel %vm3008, %v2999, %v3015
      %v3017 = vsel %vm3007, %v3014, %v3016
      %v3018 = vsel %vm3006, %v2996, %v2999
      %v3019 = vsel %vm3009, %v3005, 1326507024
      %v3020 = vsel %vm3008, %v3002, %v3019
      %v3021 = vsel %vm3007, %v3018, %v3020
      %v3022 = vshll.u32 %v2982, 8
      %v3023 = vmul.u32.u64.compose %v3022, %v3021
      %v3024 = vextract.low.u32 %v3023
      %v3025 = vextract.high.u32 %v3023
      %v3026 = vmul.u32.u64.compose %v3022, %v3017
      %v3027 = vextract.low.u32 %v3026
      %v3028 = vextract.high.u32 %v3026
      %v3029 = vmul.u32 %v3022, %v3013
      %v3030 = vadd.s32 %v3025, %v3027
      %vm3031 = vc.u32 %v3025, %v3027
      %v3032 = vadd.s32 %v3028, 1
      %v3033 = vsel %vm3031, %v3032, %v3028
      %v3034 = vadd.s32 %v3029, %v3033
      %v3035 = vadd.s32 %v3034, 536870912
      %v3036 = vshrl.u32 %v3035, 30
      %v3037 = vshll.u32 %v3036, 30
      %v3038 = vsub.s32 %v3034, %v3037
      %vm3039 = vcmp.lt.s32.totalorder %v3038, 0
      %v3040 = vsub.s32 0, %v3038
      %v3041 = vsel %vm3039, %v3040, %v3038
      %v3042 = vclz %v3041
      %v3043 = vsub.s32 %v3042, 2
      %vm3044 = vcmp.gt.s32.totalorder 0, %v3043
      %v3045 = vsel %vm3044, 0, %v3043
      %v3046 = vsub.s32 32, %v3045
      %v3047 = vshll.u32 %v3038, %v3045
      %v3048 = vshrl.u32 %v3030, %v3046
      %v3049 = vor.u32 %v3047, %v3048
      %v3050 = vsub.s32 4294967266, %v3045
      %v3051 = vadd.s32 %v3050, 127
      %v3052 = vshll.u32 %v3051, 23
      %v3053 = vor.u32 4788187, %v3052
      %v3054 = vand.u32 2147483647, %v3053
      %v3056 = vcvt.s32.f32 %v3049
      %v3057 = vmul.f32 %v3056, %v3054
      %v3058 = vxor.u32 %v3057, 2147483648
      %v3059 = vsel %vm2976, %v3058, %v3057
      %v3060 = vsub.s32 4, %v3036
      %v3061 = vsel %vm2976, %v3060, %v3036
      %v3062 = vsel %vm2975, %v1004, %v3059
      %v3063 = vsel %vm2975, 0, %v3061
      %v3064 = vcosq.f32.pop %v3062
      %v3065 = vsinq.f32.pop %v3062
      %vm3066 = vweird.f32 %v1004
      %v3067 = vand.u32 %v3063, 3
      %vm3068 = vcmp.lt.s32.totalorder %v3067, 2
      %vm3069 = vcmp.eq.s32.totalorder %v3067, 0
      %v3070 = vxor.u32 %v3065, 2147483648
      %v3071 = vsel %vm3069, %v3064, %v3070
      %vm3072 = vcmp.eq.s32.totalorder %v3067, 2
      %v3073 = vxor.u32 %v3064, 2147483648
      %v3074 = vsel %vm3072, %v3073, %v3065
      %v3075 = vsel %vm3068, %v3071, %v3074
      %v3076 = vsel %vm3066, nan, %v3075
      %v3077 = vand.u32 2147483647, %v1005
      %vm3078 = vcmp.le.f32.partialorder %v3077, 0.7853982
      %vm3079 = vcmp.lt.s32.totalorder %v1005, 0
      %v3080 = vand.u32 %v1005, 2139095040
      %v3081 = vshrl.u32 %v3080, 23
      %v3082 = vsub.s32 %v3081, 127
      %v3083 = vand.u32 2147483647, %v1005
      %v3084 = vand.u32 %v3083, 8388607
      %v3085 = vor.u32 %v3084, 8388608
      %v3086 = vsub.s32 0, %v3085
      %v3087 = vadd.s32 %v3082, 1
      %vm3088 = vcmp.gt.s32.totalorder %v3087, 0
      %v3089 = vsel %vm3088, %v3087, 0
      %v3090 = vshrl.u32 %v3089, 5
      %v3091 = vand.u32 %v3089, 31
      %v3092 = vsub.s32 32, %v3091
      %v3093 = vshrl.u32 683565275, %v3092
      %v3094 = vshll.u32 683565275, %v3091
      %v3095 = vshrl.u32 2475754826, %v3092
      %v3096 = vor.u32 %v3094, %v3095
      %v3097 = vshll.u32 2475754826, %v3091
      %v3098 = vshrl.u32 2131351028, %v3092
      %v3099 = vor.u32 %v3097, %v3098
      %v3100 = vshll.u32 2131351028, %v3091
      %v3101 = vshrl.u32 2102212464, %v3092
      %v3102 = vor.u32 %v3100, %v3101
      %v3103 = vshll.u32 2102212464, %v3091
      %v3104 = vshrl.u32 920167782, %v3092
      %v3105 = vor.u32 %v3103, %v3104
      %v3106 = vshll.u32 920167782, %v3091
      %v3107 = vshrl.u32 1326507024, %v3092
      %v3108 = vor.u32 %v3106, %v3107
      %vm3109 = vcmp.lt.s32.totalorder %v3090, 1
      %vm3110 = vcmp.lt.s32.totalorder %v3090, 2
      %vm3111 = vcmp.lt.s32.totalorder %v3090, 3
      %vm3112 = vcmp.lt.s32.totalorder %v3090, 4
      %v3113 = vsel %vm3109, %v3093, %v3096
      %v3114 = vsel %vm3112, %v3102, 2102212464
      %v3115 = vsel %vm3111, %v3099, %v3114
      %v3116 = vsel %vm3110, %v3113, %v3115
      %v3117 = vsel %vm3109, %v3096, %v3099
      %v3118 = vsel %vm3112, %v3105, 920167782
      %v3119 = vsel %vm3111, %v3102, %v3118
      %v3120 = vsel %vm3110, %v3117, %v3119
      %v3121 = vsel %vm3109, %v3099, %v3102
      %v3122 = vsel %vm3112, %v3108, 1326507024
      %v3123 = vsel %vm3111, %v3105, %v3122
      %v3124 = vsel %vm3110, %v3121, %v3123
      %v3125 = vshll.u32 %v3085, 8
      %v3126 = vmul.u32.u64.compose %v3125, %v3124
      %v3127 = vextract.low.u32 %v3126
      %v3128 = vextract.high.u32 %v3126
      %v3129 = vmul.u32.u64.compose %v3125, %v3120
      %v3130 = vextract.low.u32 %v3129
      %v3131 = vextract.high.u32 %v3129
      %v3132 = vmul.u32 %v3125, %v3116
      %v3133 = vadd.s32 %v3128, %v3130
      %vm3134 = vc.u32 %v3128, %v3130
      %v3135 = vadd.s32 %v3131, 1
      %v3136 = vsel %vm3134, %v3135, %v3131
      %v3137 = vadd.s32 %v3132, %v3136
      %v3138 = vadd.s32 %v3137, 536870912
      %v3139 = vshrl.u32 %v3138, 30
      %v3140 = vshll.u32 %v3139, 30
      %v3141 = vsub.s32 %v3137, %v3140
      %vm3142 = vcmp.lt.s32.totalorder %v3141, 0
      %v3143 = vsub.s32 0, %v3141
      %v3144 = vsel %vm3142, %v3143, %v3141
      %v3145 = vclz %v3144
      %v3146 = vsub.s32 %v3145, 2
      %vm3147 = vcmp.gt.s32.totalorder 0, %v3146
      %v3148 = vsel %vm3147, 0, %v3146
      %v3149 = vsub.s32 32, %v3148
      %v3150 = vshll.u32 %v3141, %v3148
      %v3151 = vshrl.u32 %v3133, %v3149
      %v3152 = vor.u32 %v3150, %v3151
      %v3153 = vsub.s32 4294967266, %v3148
      %v3154 = vadd.s32 %v3153, 127
      %v3155 = vshll.u32 %v3154, 23
      %v3156 = vor.u32 4788187, %v3155
      %v3157 = vand.u32 2147483647, %v3156
      %v3159 = vcvt.s32.f32 %v3152
      %v3160 = vmul.f32 %v3159, %v3157
      %v3161 = vxor.u32 %v3160, 2147483648
      %v3162 = vsel %vm3079, %v3161, %v3160
      %v3163 = vsub.s32 4, %v3139
      %v3164 = vsel %vm3079, %v3163, %v3139
      %v3165 = vsel %vm3078, %v1005, %v3162
      %v3166 = vsel %vm3078, 0, %v3164
      %v3167 = vcosq.f32.pop %v3165
      %v3168 = vsinq.f32.pop %v3165
      %vm3169 = vweird.f32 %v1005
      %v3170 = vand.u32 %v3166, 3
      %vm3171 = vcmp.lt.s32.totalorder %v3170, 2
      %vm3172 = vcmp.eq.s32.totalorder %v3170, 0
      %v3173 = vxor.u32 %v3168, 2147483648
      %v3174 = vsel %vm3172, %v3167, %v3173
      %vm3175 = vcmp.eq.s32.totalorder %v3170, 2
      %v3176 = vxor.u32 %v3167, 2147483648
      %v3177 = vsel %vm3175, %v3176, %v3168
      %v3178 = vsel %vm3171, %v3174, %v3177
      %v3179 = vsel %vm3169, nan, %v3178
      %v3180 = vand.u32 2147483647, %v1006
      %vm3181 = vcmp.le.f32.partialorder %v3180, 0.7853982
      %vm3182 = vcmp.lt.s32.totalorder %v1006, 0
      %v3183 = vand.u32 %v1006, 2139095040
      %v3184 = vshrl.u32 %v3183, 23
      %v3185 = vsub.s32 %v3184, 127
      %v3186 = vand.u32 2147483647, %v1006
      %v3187 = vand.u32 %v3186, 8388607
      %v3188 = vor.u32 %v3187, 8388608
      %v3189 = vsub.s32 0, %v3188
      %v3190 = vadd.s32 %v3185, 1
      %vm3191 = vcmp.gt.s32.totalorder %v3190, 0
      %v3192 = vsel %vm3191, %v3190, 0
      %v3193 = vshrl.u32 %v3192, 5
      %v3194 = vand.u32 %v3192, 31
      %v3195 = vsub.s32 32, %v3194
      %v3196 = vshrl.u32 683565275, %v3195
      %v3197 = vshll.u32 683565275, %v3194
      %v3198 = vshrl.u32 2475754826, %v3195
      %v3199 = vor.u32 %v3197, %v3198
      %v3200 = vshll.u32 2475754826, %v3194
      %v3201 = vshrl.u32 2131351028, %v3195
      %v3202 = vor.u32 %v3200, %v3201
      %v3203 = vshll.u32 2131351028, %v3194
      %v3204 = vshrl.u32 2102212464, %v3195
      %v3205 = vor.u32 %v3203, %v3204
      %v3206 = vshll.u32 2102212464, %v3194
      %v3207 = vshrl.u32 920167782, %v3195
      %v3208 = vor.u32 %v3206, %v3207
      %v3209 = vshll.u32 920167782, %v3194
      %v3210 = vshrl.u32 1326507024, %v3195
      %v3211 = vor.u32 %v3209, %v3210
      %vm3212 = vcmp.lt.s32.totalorder %v3193, 1
      %vm3213 = vcmp.lt.s32.totalorder %v3193, 2
      %vm3214 = vcmp.lt.s32.totalorder %v3193, 3
      %vm3215 = vcmp.lt.s32.totalorder %v3193, 4
      %v3216 = vsel %vm3212, %v3196, %v3199
      %v3217 = vsel %vm3215, %v3205, 2102212464
      %v3218 = vsel %vm3214, %v3202, %v3217
      %v3219 = vsel %vm3213, %v3216, %v3218
      %v3220 = vsel %vm3212, %v3199, %v3202
      %v3221 = vsel %vm3215, %v3208, 920167782
      %v3222 = vsel %vm3214, %v3205, %v3221
      %v3223 = vsel %vm3213, %v3220, %v3222
      %v3224 = vsel %vm3212, %v3202, %v3205
      %v3225 = vsel %vm3215, %v3211, 1326507024
      %v3226 = vsel %vm3214, %v3208, %v3225
      %v3227 = vsel %vm3213, %v3224, %v3226
      %v3228 = vshll.u32 %v3188, 8
      %v3229 = vmul.u32.u64.compose %v3228, %v3227
      %v3230 = vextract.low.u32 %v3229
      %v3231 = vextract.high.u32 %v3229
      %v3232 = vmul.u32.u64.compose %v3228, %v3223
      %v3233 = vextract.low.u32 %v3232
      %v3234 = vextract.high.u32 %v3232
      %v3235 = vmul.u32 %v3228, %v3219
      %v3236 = vadd.s32 %v3231, %v3233
      %vm3237 = vc.u32 %v3231, %v3233
      %v3238 = vadd.s32 %v3234, 1
      %v3239 = vsel %vm3237, %v3238, %v3234
      %v3240 = vadd.s32 %v3235, %v3239
      %v3241 = vadd.s32 %v3240, 536870912
      %v3242 = vshrl.u32 %v3241, 30
      %v3243 = vshll.u32 %v3242, 30
      %v3244 = vsub.s32 %v3240, %v3243
      %vm3245 = vcmp.lt.s32.totalorder %v3244, 0
      %v3246 = vsub.s32 0, %v3244
      %v3247 = vsel %vm3245, %v3246, %v3244
      %v3248 = vclz %v3247
      %v3249 = vsub.s32 %v3248, 2
      %vm3250 = vcmp.gt.s32.totalorder 0, %v3249
      %v3251 = vsel %vm3250, 0, %v3249
      %v3252 = vsub.s32 32, %v3251
      %v3253 = vshll.u32 %v3244, %v3251
      %v3254 = vshrl.u32 %v3236, %v3252
      %v3255 = vor.u32 %v3253, %v3254
      %v3256 = vsub.s32 4294967266, %v3251
      %v3257 = vadd.s32 %v3256, 127
      %v3258 = vshll.u32 %v3257, 23
      %v3259 = vor.u32 4788187, %v3258
      %v3260 = vand.u32 2147483647, %v3259
      %v3262 = vcvt.s32.f32 %v3255
      %v3263 = vmul.f32 %v3262, %v3260
      %v3264 = vxor.u32 %v3263, 2147483648
      %v3265 = vsel %vm3182, %v3264, %v3263
      %v3266 = vsub.s32 4, %v3242
      %v3267 = vsel %vm3182, %v3266, %v3242
      %v3268 = vsel %vm3181, %v1006, %v3265
      %v3269 = vsel %vm3181, 0, %v3267
      %v3270 = vcosq.f32.pop %v3268
      %v3271 = vsinq.f32.pop %v3268
      %vm3272 = vweird.f32 %v1006
      %v3273 = vand.u32 %v3269, 3
      %vm3274 = vcmp.lt.s32.totalorder %v3273, 2
      %vm3275 = vcmp.eq.s32.totalorder %v3273, 0
      %v3276 = vxor.u32 %v3271, 2147483648
      %v3277 = vsel %vm3275, %v3270, %v3276
      %vm3278 = vcmp.eq.s32.totalorder %v3273, 2
      %v3279 = vxor.u32 %v3270, 2147483648
      %v3280 = vsel %vm3278, %v3279, %v3271
      %v3281 = vsel %vm3274, %v3277, %v3280
      %v3282 = vsel %vm3272, nan, %v3281
      %v3283 = vand.u32 2147483647, %v1007
      %vm3284 = vcmp.le.f32.partialorder %v3283, 0.7853982
      %vm3285 = vcmp.lt.s32.totalorder %v1007, 0
      %v3286 = vand.u32 %v1007, 2139095040
      %v3287 = vshrl.u32 %v3286, 23
      %v3288 = vsub.s32 %v3287, 127
      %v3289 = vand.u32 2147483647, %v1007
      %v3290 = vand.u32 %v3289, 8388607
      %v3291 = vor.u32 %v3290, 8388608
      %v3292 = vsub.s32 0, %v3291
      %v3293 = vadd.s32 %v3288, 1
      %vm3294 = vcmp.gt.s32.totalorder %v3293, 0
      %v3295 = vsel %vm3294, %v3293, 0
      %v3296 = vshrl.u32 %v3295, 5
      %v3297 = vand.u32 %v3295, 31
      %v3298 = vsub.s32 32, %v3297
      %v3299 = vshrl.u32 683565275, %v3298
      %v3300 = vshll.u32 683565275, %v3297
      %v3301 = vshrl.u32 2475754826, %v3298
      %v3302 = vor.u32 %v3300, %v3301
      %v3303 = vshll.u32 2475754826, %v3297
      %v3304 = vshrl.u32 2131351028, %v3298
      %v3305 = vor.u32 %v3303, %v3304
      %v3306 = vshll.u32 2131351028, %v3297
      %v3307 = vshrl.u32 2102212464, %v3298
      %v3308 = vor.u32 %v3306, %v3307
      %v3309 = vshll.u32 2102212464, %v3297
      %v3310 = vshrl.u32 920167782, %v3298
      %v3311 = vor.u32 %v3309, %v3310
      %v3312 = vshll.u32 920167782, %v3297
      %v3313 = vshrl.u32 1326507024, %v3298
      %v3314 = vor.u32 %v3312, %v3313
      %vm3315 = vcmp.lt.s32.totalorder %v3296, 1
      %vm3316 = vcmp.lt.s32.totalorder %v3296, 2
      %vm3317 = vcmp.lt.s32.totalorder %v3296, 3
      %vm3318 = vcmp.lt.s32.totalorder %v3296, 4
      %v3319 = vsel %vm3315, %v3299, %v3302
      %v3320 = vsel %vm3318, %v3308, 2102212464
      %v3321 = vsel %vm3317, %v3305, %v3320
      %v3322 = vsel %vm3316, %v3319, %v3321
      %v3323 = vsel %vm3315, %v3302, %v3305
      %v3324 = vsel %vm3318, %v3311, 920167782
      %v3325 = vsel %vm3317, %v3308, %v3324
      %v3326 = vsel %vm3316, %v3323, %v3325
      %v3327 = vsel %vm3315, %v3305, %v3308
      %v3328 = vsel %vm3318, %v3314, 1326507024
      %v3329 = vsel %vm3317, %v3311, %v3328
      %v3330 = vsel %vm3316, %v3327, %v3329
      %v3331 = vshll.u32 %v3291, 8
      %v3332 = vmul.u32.u64.compose %v3331, %v3330
      %v3333 = vextract.low.u32 %v3332
      %v3334 = vextract.high.u32 %v3332
      %v3335 = vmul.u32.u64.compose %v3331, %v3326
      %v3336 = vextract.low.u32 %v3335
      %v3337 = vextract.high.u32 %v3335
      %v3338 = vmul.u32 %v3331, %v3322
      %v3339 = vadd.s32 %v3334, %v3336
      %vm3340 = vc.u32 %v3334, %v3336
      %v3341 = vadd.s32 %v3337, 1
      %v3342 = vsel %vm3340, %v3341, %v3337
      %v3343 = vadd.s32 %v3338, %v3342
      %v3344 = vadd.s32 %v3343, 536870912
      %v3345 = vshrl.u32 %v3344, 30
      %v3346 = vshll.u32 %v3345, 30
      %v3347 = vsub.s32 %v3343, %v3346
      %vm3348 = vcmp.lt.s32.totalorder %v3347, 0
      %v3349 = vsub.s32 0, %v3347
      %v3350 = vsel %vm3348, %v3349, %v3347
      %v3351 = vclz %v3350
      %v3352 = vsub.s32 %v3351, 2
      %vm3353 = vcmp.gt.s32.totalorder 0, %v3352
      %v3354 = vsel %vm3353, 0, %v3352
      %v3355 = vsub.s32 32, %v3354
      %v3356 = vshll.u32 %v3347, %v3354
      %v3357 = vshrl.u32 %v3339, %v3355
      %v3358 = vor.u32 %v3356, %v3357
      %v3359 = vsub.s32 4294967266, %v3354
      %v3360 = vadd.s32 %v3359, 127
      %v3361 = vshll.u32 %v3360, 23
      %v3362 = vor.u32 4788187, %v3361
      %v3363 = vand.u32 2147483647, %v3362
      %v3365 = vcvt.s32.f32 %v3358
      %v3366 = vmul.f32 %v3365, %v3363
      %v3367 = vxor.u32 %v3366, 2147483648
      %v3368 = vsel %vm3285, %v3367, %v3366
      %v3369 = vsub.s32 4, %v3345
      %v3370 = vsel %vm3285, %v3369, %v3345
      %v3371 = vsel %vm3284, %v1007, %v3368
      %v3372 = vsel %vm3284, 0, %v3370
      %v3373 = vcosq.f32.pop %v3371
      %v3374 = vsinq.f32.pop %v3371
      %vm3375 = vweird.f32 %v1007
      %v3376 = vand.u32 %v3372, 3
      %vm3377 = vcmp.lt.s32.totalorder %v3376, 2
      %vm3378 = vcmp.eq.s32.totalorder %v3376, 0
      %v3379 = vxor.u32 %v3374, 2147483648
      %v3380 = vsel %vm3378, %v3373, %v3379
      %vm3381 = vcmp.eq.s32.totalorder %v3376, 2
      %v3382 = vxor.u32 %v3373, 2147483648
      %v3383 = vsel %vm3381, %v3382, %v3374
      %v3384 = vsel %vm3377, %v3380, %v3383
      %v3385 = vsel %vm3375, nan, %v3384
      %v3386 = vand.u32 2147483647, %v1008
      %vm3387 = vcmp.le.f32.partialorder %v3386, 0.7853982
      %vm3388 = vcmp.lt.s32.totalorder %v1008, 0
      %v3389 = vand.u32 %v1008, 2139095040
      %v3390 = vshrl.u32 %v3389, 23
      %v3391 = vsub.s32 %v3390, 127
      %v3392 = vand.u32 2147483647, %v1008
      %v3393 = vand.u32 %v3392, 8388607
      %v3394 = vor.u32 %v3393, 8388608
      %v3395 = vsub.s32 0, %v3394
      %v3396 = vadd.s32 %v3391, 1
      %vm3397 = vcmp.gt.s32.totalorder %v3396, 0
      %v3398 = vsel %vm3397, %v3396, 0
      %v3399 = vshrl.u32 %v3398, 5
      %v3400 = vand.u32 %v3398, 31
      %v3401 = vsub.s32 32, %v3400
      %v3402 = vshrl.u32 683565275, %v3401
      %v3403 = vshll.u32 683565275, %v3400
      %v3404 = vshrl.u32 2475754826, %v3401
      %v3405 = vor.u32 %v3403, %v3404
      %v3406 = vshll.u32 2475754826, %v3400
      %v3407 = vshrl.u32 2131351028, %v3401
      %v3408 = vor.u32 %v3406, %v3407
      %v3409 = vshll.u32 2131351028, %v3400
      %v3410 = vshrl.u32 2102212464, %v3401
      %v3411 = vor.u32 %v3409, %v3410
      %v3412 = vshll.u32 2102212464, %v3400
      %v3413 = vshrl.u32 920167782, %v3401
      %v3414 = vor.u32 %v3412, %v3413
      %v3415 = vshll.u32 920167782, %v3400
      %v3416 = vshrl.u32 1326507024, %v3401
      %v3417 = vor.u32 %v3415, %v3416
      %vm3418 = vcmp.lt.s32.totalorder %v3399, 1
      %vm3419 = vcmp.lt.s32.totalorder %v3399, 2
      %vm3420 = vcmp.lt.s32.totalorder %v3399, 3
      %vm3421 = vcmp.lt.s32.totalorder %v3399, 4
      %v3422 = vsel %vm3418, %v3402, %v3405
      %v3423 = vsel %vm3421, %v3411, 2102212464
      %v3424 = vsel %vm3420, %v3408, %v3423
      %v3425 = vsel %vm3419, %v3422, %v3424
      %v3426 = vsel %vm3418, %v3405, %v3408
      %v3427 = vsel %vm3421, %v3414, 920167782
      %v3428 = vsel %vm3420, %v3411, %v3427
      %v3429 = vsel %vm3419, %v3426, %v3428
      %v3430 = vsel %vm3418, %v3408, %v3411
      %v3431 = vsel %vm3421, %v3417, 1326507024
      %v3432 = vsel %vm3420, %v3414, %v3431
      %v3433 = vsel %vm3419, %v3430, %v3432
      %v3434 = vshll.u32 %v3394, 8
      %v3435 = vmul.u32.u64.compose %v3434, %v3433
      %v3436 = vextract.low.u32 %v3435
      %v3437 = vextract.high.u32 %v3435
      %v3438 = vmul.u32.u64.compose %v3434, %v3429
      %v3439 = vextract.low.u32 %v3438
      %v3440 = vextract.high.u32 %v3438
      %v3441 = vmul.u32 %v3434, %v3425
      %v3442 = vadd.s32 %v3437, %v3439
      %vm3443 = vc.u32 %v3437, %v3439
      %v3444 = vadd.s32 %v3440, 1
      %v3445 = vsel %vm3443, %v3444, %v3440
      %v3446 = vadd.s32 %v3441, %v3445
      %v3447 = vadd.s32 %v3446, 536870912
      %v3448 = vshrl.u32 %v3447, 30
      %v3449 = vshll.u32 %v3448, 30
      %v3450 = vsub.s32 %v3446, %v3449
      %vm3451 = vcmp.lt.s32.totalorder %v3450, 0
      %v3452 = vsub.s32 0, %v3450
      %v3453 = vsel %vm3451, %v3452, %v3450
      %v3454 = vclz %v3453
      %v3455 = vsub.s32 %v3454, 2
      %vm3456 = vcmp.gt.s32.totalorder 0, %v3455
      %v3457 = vsel %vm3456, 0, %v3455
      %v3458 = vsub.s32 32, %v3457
      %v3459 = vshll.u32 %v3450, %v3457
      %v3460 = vshrl.u32 %v3442, %v3458
      %v3461 = vor.u32 %v3459, %v3460
      %v3462 = vsub.s32 4294967266, %v3457
      %v3463 = vadd.s32 %v3462, 127
      %v3464 = vshll.u32 %v3463, 23
      %v3465 = vor.u32 4788187, %v3464
      %v3466 = vand.u32 2147483647, %v3465
      %v3468 = vcvt.s32.f32 %v3461
      %v3469 = vmul.f32 %v3468, %v3466
      %v3470 = vxor.u32 %v3469, 2147483648
      %v3471 = vsel %vm3388, %v3470, %v3469
      %v3472 = vsub.s32 4, %v3448
      %v3473 = vsel %vm3388, %v3472, %v3448
      %v3474 = vsel %vm3387, %v1008, %v3471
      %v3475 = vsel %vm3387, 0, %v3473
      %v3476 = vcosq.f32.pop %v3474
      %v3477 = vsinq.f32.pop %v3474
      %vm3478 = vweird.f32 %v1008
      %v3479 = vand.u32 %v3475, 3
      %vm3480 = vcmp.lt.s32.totalorder %v3479, 2
      %vm3481 = vcmp.eq.s32.totalorder %v3479, 0
      %v3482 = vxor.u32 %v3477, 2147483648
      %v3483 = vsel %vm3481, %v3476, %v3482
      %vm3484 = vcmp.eq.s32.totalorder %v3479, 2
      %v3485 = vxor.u32 %v3476, 2147483648
      %v3486 = vsel %vm3484, %v3485, %v3477
      %v3487 = vsel %vm3480, %v3483, %v3486
      %v3488 = vsel %vm3478, nan, %v3487
      %v3489 = vand.u32 2147483647, %v1009
      %vm3490 = vcmp.le.f32.partialorder %v3489, 0.7853982
      %vm3491 = vcmp.lt.s32.totalorder %v1009, 0
      %v3492 = vand.u32 %v1009, 2139095040
      %v3493 = vshrl.u32 %v3492, 23
      %v3494 = vsub.s32 %v3493, 127
      %v3495 = vand.u32 2147483647, %v1009
      %v3496 = vand.u32 %v3495, 8388607
      %v3497 = vor.u32 %v3496, 8388608
      %v3498 = vsub.s32 0, %v3497
      %v3499 = vadd.s32 %v3494, 1
      %vm3500 = vcmp.gt.s32.totalorder %v3499, 0
      %v3501 = vsel %vm3500, %v3499, 0
      %v3502 = vshrl.u32 %v3501, 5
      %v3503 = vand.u32 %v3501, 31
      %v3504 = vsub.s32 32, %v3503
      %v3505 = vshrl.u32 683565275, %v3504
      %v3506 = vshll.u32 683565275, %v3503
      %v3507 = vshrl.u32 2475754826, %v3504
      %v3508 = vor.u32 %v3506, %v3507
      %v3509 = vshll.u32 2475754826, %v3503
      %v3510 = vshrl.u32 2131351028, %v3504
      %v3511 = vor.u32 %v3509, %v3510
      %v3512 = vshll.u32 2131351028, %v3503
      %v3513 = vshrl.u32 2102212464, %v3504
      %v3514 = vor.u32 %v3512, %v3513
      %v3515 = vshll.u32 2102212464, %v3503
      %v3516 = vshrl.u32 920167782, %v3504
      %v3517 = vor.u32 %v3515, %v3516
      %v3518 = vshll.u32 920167782, %v3503
      %v3519 = vshrl.u32 1326507024, %v3504
      %v3520 = vor.u32 %v3518, %v3519
      %vm3521 = vcmp.lt.s32.totalorder %v3502, 1
      %vm3522 = vcmp.lt.s32.totalorder %v3502, 2
      %vm3523 = vcmp.lt.s32.totalorder %v3502, 3
      %vm3524 = vcmp.lt.s32.totalorder %v3502, 4
      %v3525 = vsel %vm3521, %v3505, %v3508
      %v3526 = vsel %vm3524, %v3514, 2102212464
      %v3527 = vsel %vm3523, %v3511, %v3526
      %v3528 = vsel %vm3522, %v3525, %v3527
      %v3529 = vsel %vm3521, %v3508, %v3511
      %v3530 = vsel %vm3524, %v3517, 920167782
      %v3531 = vsel %vm3523, %v3514, %v3530
      %v3532 = vsel %vm3522, %v3529, %v3531
      %v3533 = vsel %vm3521, %v3511, %v3514
      %v3534 = vsel %vm3524, %v3520, 1326507024
      %v3535 = vsel %vm3523, %v3517, %v3534
      %v3536 = vsel %vm3522, %v3533, %v3535
      %v3537 = vshll.u32 %v3497, 8
      %v3538 = vmul.u32.u64.compose %v3537, %v3536
      %v3539 = vextract.low.u32 %v3538
      %v3540 = vextract.high.u32 %v3538
      %v3541 = vmul.u32.u64.compose %v3537, %v3532
      %v3542 = vextract.low.u32 %v3541
      %v3543 = vextract.high.u32 %v3541
      %v3544 = vmul.u32 %v3537, %v3528
      %v3545 = vadd.s32 %v3540, %v3542
      %vm3546 = vc.u32 %v3540, %v3542
      %v3547 = vadd.s32 %v3543, 1
      %v3548 = vsel %vm3546, %v3547, %v3543
      %v3549 = vadd.s32 %v3544, %v3548
      %v3550 = vadd.s32 %v3549, 536870912
      %v3551 = vshrl.u32 %v3550, 30
      %v3552 = vshll.u32 %v3551, 30
      %v3553 = vsub.s32 %v3549, %v3552
      %vm3554 = vcmp.lt.s32.totalorder %v3553, 0
      %v3555 = vsub.s32 0, %v3553
      %v3556 = vsel %vm3554, %v3555, %v3553
      %v3557 = vclz %v3556
      %v3558 = vsub.s32 %v3557, 2
      %vm3559 = vcmp.gt.s32.totalorder 0, %v3558
      %v3560 = vsel %vm3559, 0, %v3558
      %v3561 = vsub.s32 32, %v3560
      %v3562 = vshll.u32 %v3553, %v3560
      %v3563 = vshrl.u32 %v3545, %v3561
      %v3564 = vor.u32 %v3562, %v3563
      %v3565 = vsub.s32 4294967266, %v3560
      %v3566 = vadd.s32 %v3565, 127
      %v3567 = vshll.u32 %v3566, 23
      %v3568 = vor.u32 4788187, %v3567
      %v3569 = vand.u32 2147483647, %v3568
      %v3571 = vcvt.s32.f32 %v3564
      %v3572 = vmul.f32 %v3571, %v3569
      %v3573 = vxor.u32 %v3572, 2147483648
      %v3574 = vsel %vm3491, %v3573, %v3572
      %v3575 = vsub.s32 4, %v3551
      %v3576 = vsel %vm3491, %v3575, %v3551
      %v3577 = vsel %vm3490, %v1009, %v3574
      %v3578 = vsel %vm3490, 0, %v3576
      %v3579 = vcosq.f32.pop %v3577
      %v3580 = vsinq.f32.pop %v3577
      %vm3581 = vweird.f32 %v1009
      %v3582 = vand.u32 %v3578, 3
      %vm3583 = vcmp.lt.s32.totalorder %v3582, 2
      %vm3584 = vcmp.eq.s32.totalorder %v3582, 0
      %v3585 = vxor.u32 %v3580, 2147483648
      %v3586 = vsel %vm3584, %v3579, %v3585
      %vm3587 = vcmp.eq.s32.totalorder %v3582, 2
      %v3588 = vxor.u32 %v3579, 2147483648
      %v3589 = vsel %vm3587, %v3588, %v3580
      %v3590 = vsel %vm3583, %v3586, %v3589
      %v3591 = vsel %vm3581, nan, %v3590
      %v3592 = vand.u32 2147483647, %v1010
      %vm3593 = vcmp.le.f32.partialorder %v3592, 0.7853982
      %vm3594 = vcmp.lt.s32.totalorder %v1010, 0
      %v3595 = vand.u32 %v1010, 2139095040
      %v3596 = vshrl.u32 %v3595, 23
      %v3597 = vsub.s32 %v3596, 127
      %v3598 = vand.u32 2147483647, %v1010
      %v3599 = vand.u32 %v3598, 8388607
      %v3600 = vor.u32 %v3599, 8388608
      %v3601 = vsub.s32 0, %v3600
      %v3602 = vadd.s32 %v3597, 1
      %vm3603 = vcmp.gt.s32.totalorder %v3602, 0
      %v3604 = vsel %vm3603, %v3602, 0
      %v3605 = vshrl.u32 %v3604, 5
      %v3606 = vand.u32 %v3604, 31
      %v3607 = vsub.s32 32, %v3606
      %v3608 = vshrl.u32 683565275, %v3607
      %v3609 = vshll.u32 683565275, %v3606
      %v3610 = vshrl.u32 2475754826, %v3607
      %v3611 = vor.u32 %v3609, %v3610
      %v3612 = vshll.u32 2475754826, %v3606
      %v3613 = vshrl.u32 2131351028, %v3607
      %v3614 = vor.u32 %v3612, %v3613
      %v3615 = vshll.u32 2131351028, %v3606
      %v3616 = vshrl.u32 2102212464, %v3607
      %v3617 = vor.u32 %v3615, %v3616
      %v3618 = vshll.u32 2102212464, %v3606
      %v3619 = vshrl.u32 920167782, %v3607
      %v3620 = vor.u32 %v3618, %v3619
      %v3621 = vshll.u32 920167782, %v3606
      %v3622 = vshrl.u32 1326507024, %v3607
      %v3623 = vor.u32 %v3621, %v3622
      %vm3624 = vcmp.lt.s32.totalorder %v3605, 1
      %vm3625 = vcmp.lt.s32.totalorder %v3605, 2
      %vm3626 = vcmp.lt.s32.totalorder %v3605, 3
      %vm3627 = vcmp.lt.s32.totalorder %v3605, 4
      %v3628 = vsel %vm3624, %v3608, %v3611
      %v3629 = vsel %vm3627, %v3617, 2102212464
      %v3630 = vsel %vm3626, %v3614, %v3629
      %v3631 = vsel %vm3625, %v3628, %v3630
      %v3632 = vsel %vm3624, %v3611, %v3614
      %v3633 = vsel %vm3627, %v3620, 920167782
      %v3634 = vsel %vm3626, %v3617, %v3633
      %v3635 = vsel %vm3625, %v3632, %v3634
      %v3636 = vsel %vm3624, %v3614, %v3617
      %v3637 = vsel %vm3627, %v3623, 1326507024
      %v3638 = vsel %vm3626, %v3620, %v3637
      %v3639 = vsel %vm3625, %v3636, %v3638
      %v3640 = vshll.u32 %v3600, 8
      %v3641 = vmul.u32.u64.compose %v3640, %v3639
      %v3642 = vextract.low.u32 %v3641
      %v3643 = vextract.high.u32 %v3641
      %v3644 = vmul.u32.u64.compose %v3640, %v3635
      %v3645 = vextract.low.u32 %v3644
      %v3646 = vextract.high.u32 %v3644
      %v3647 = vmul.u32 %v3640, %v3631
      %v3648 = vadd.s32 %v3643, %v3645
      %vm3649 = vc.u32 %v3643, %v3645
      %v3650 = vadd.s32 %v3646, 1
      %v3651 = vsel %vm3649, %v3650, %v3646
      %v3652 = vadd.s32 %v3647, %v3651
      %v3653 = vadd.s32 %v3652, 536870912
      %v3654 = vshrl.u32 %v3653, 30
      %v3655 = vshll.u32 %v3654, 30
      %v3656 = vsub.s32 %v3652, %v3655
      %vm3657 = vcmp.lt.s32.totalorder %v3656, 0
      %v3658 = vsub.s32 0, %v3656
      %v3659 = vsel %vm3657, %v3658, %v3656
      %v3660 = vclz %v3659
      %v3661 = vsub.s32 %v3660, 2
      %vm3662 = vcmp.gt.s32.totalorder 0, %v3661
      %v3663 = vsel %vm3662, 0, %v3661
      %v3664 = vsub.s32 32, %v3663
      %v3665 = vshll.u32 %v3656, %v3663
      %v3666 = vshrl.u32 %v3648, %v3664
      %v3667 = vor.u32 %v3665, %v3666
      %v3668 = vsub.s32 4294967266, %v3663
      %v3669 = vadd.s32 %v3668, 127
      %v3670 = vshll.u32 %v3669, 23
      %v3671 = vor.u32 4788187, %v3670
      %v3672 = vand.u32 2147483647, %v3671
      %v3674 = vcvt.s32.f32 %v3667
      %v3675 = vmul.f32 %v3674, %v3672
      %v3676 = vxor.u32 %v3675, 2147483648
      %v3677 = vsel %vm3594, %v3676, %v3675
      %v3678 = vsub.s32 4, %v3654
      %v3679 = vsel %vm3594, %v3678, %v3654
      %v3680 = vsel %vm3593, %v1010, %v3677
      %v3681 = vsel %vm3593, 0, %v3679
      %v3682 = vcosq.f32.pop %v3680
      %v3683 = vsinq.f32.pop %v3680
      %vm3684 = vweird.f32 %v1010
      %v3685 = vand.u32 %v3681, 3
      %vm3686 = vcmp.lt.s32.totalorder %v3685, 2
      %vm3687 = vcmp.eq.s32.totalorder %v3685, 0
      %v3688 = vxor.u32 %v3683, 2147483648
      %v3689 = vsel %vm3687, %v3682, %v3688
      %vm3690 = vcmp.eq.s32.totalorder %v3685, 2
      %v3691 = vxor.u32 %v3682, 2147483648
      %v3692 = vsel %vm3690, %v3691, %v3683
      %v3693 = vsel %vm3686, %v3689, %v3692
      %v3694 = vsel %vm3684, nan, %v3693
      %v3695 = vand.u32 2147483647, %v1011
      %vm3696 = vcmp.le.f32.partialorder %v3695, 0.7853982
      %vm3697 = vcmp.lt.s32.totalorder %v1011, 0
      %v3698 = vand.u32 %v1011, 2139095040
      %v3699 = vshrl.u32 %v3698, 23
      %v3700 = vsub.s32 %v3699, 127
      %v3701 = vand.u32 2147483647, %v1011
      %v3702 = vand.u32 %v3701, 8388607
      %v3703 = vor.u32 %v3702, 8388608
      %v3704 = vsub.s32 0, %v3703
      %v3705 = vadd.s32 %v3700, 1
      %vm3706 = vcmp.gt.s32.totalorder %v3705, 0
      %v3707 = vsel %vm3706, %v3705, 0
      %v3708 = vshrl.u32 %v3707, 5
      %v3709 = vand.u32 %v3707, 31
      %v3710 = vsub.s32 32, %v3709
      %v3711 = vshrl.u32 683565275, %v3710
      %v3712 = vshll.u32 683565275, %v3709
      %v3713 = vshrl.u32 2475754826, %v3710
      %v3714 = vor.u32 %v3712, %v3713
      %v3715 = vshll.u32 2475754826, %v3709
      %v3716 = vshrl.u32 2131351028, %v3710
      %v3717 = vor.u32 %v3715, %v3716
      %v3718 = vshll.u32 2131351028, %v3709
      %v3719 = vshrl.u32 2102212464, %v3710
      %v3720 = vor.u32 %v3718, %v3719
      %v3721 = vshll.u32 2102212464, %v3709
      %v3722 = vshrl.u32 920167782, %v3710
      %v3723 = vor.u32 %v3721, %v3722
      %v3724 = vshll.u32 920167782, %v3709
      %v3725 = vshrl.u32 1326507024, %v3710
      %v3726 = vor.u32 %v3724, %v3725
      %vm3727 = vcmp.lt.s32.totalorder %v3708, 1
      %vm3728 = vcmp.lt.s32.totalorder %v3708, 2
      %vm3729 = vcmp.lt.s32.totalorder %v3708, 3
      %vm3730 = vcmp.lt.s32.totalorder %v3708, 4
      %v3731 = vsel %vm3727, %v3711, %v3714
      %v3732 = vsel %vm3730, %v3720, 2102212464
      %v3733 = vsel %vm3729, %v3717, %v3732
      %v3734 = vsel %vm3728, %v3731, %v3733
      %v3735 = vsel %vm3727, %v3714, %v3717
      %v3736 = vsel %vm3730, %v3723, 920167782
      %v3737 = vsel %vm3729, %v3720, %v3736
      %v3738 = vsel %vm3728, %v3735, %v3737
      %v3739 = vsel %vm3727, %v3717, %v3720
      %v3740 = vsel %vm3730, %v3726, 1326507024
      %v3741 = vsel %vm3729, %v3723, %v3740
      %v3742 = vsel %vm3728, %v3739, %v3741
      %v3743 = vshll.u32 %v3703, 8
      %v3744 = vmul.u32.u64.compose %v3743, %v3742
      %v3745 = vextract.low.u32 %v3744
      %v3746 = vextract.high.u32 %v3744
      %v3747 = vmul.u32.u64.compose %v3743, %v3738
      %v3748 = vextract.low.u32 %v3747
      %v3749 = vextract.high.u32 %v3747
      %v3750 = vmul.u32 %v3743, %v3734
      %v3751 = vadd.s32 %v3746, %v3748
      %vm3752 = vc.u32 %v3746, %v3748
      %v3753 = vadd.s32 %v3749, 1
      %v3754 = vsel %vm3752, %v3753, %v3749
      %v3755 = vadd.s32 %v3750, %v3754
      %v3756 = vadd.s32 %v3755, 536870912
      %v3757 = vshrl.u32 %v3756, 30
      %v3758 = vshll.u32 %v3757, 30
      %v3759 = vsub.s32 %v3755, %v3758
      %vm3760 = vcmp.lt.s32.totalorder %v3759, 0
      %v3761 = vsub.s32 0, %v3759
      %v3762 = vsel %vm3760, %v3761, %v3759
      %v3763 = vclz %v3762
      %v3764 = vsub.s32 %v3763, 2
      %vm3765 = vcmp.gt.s32.totalorder 0, %v3764
      %v3766 = vsel %vm3765, 0, %v3764
      %v3767 = vsub.s32 32, %v3766
      %v3768 = vshll.u32 %v3759, %v3766
      %v3769 = vshrl.u32 %v3751, %v3767
      %v3770 = vor.u32 %v3768, %v3769
      %v3771 = vsub.s32 4294967266, %v3766
      %v3772 = vadd.s32 %v3771, 127
      %v3773 = vshll.u32 %v3772, 23
      %v3774 = vor.u32 4788187, %v3773
      %v3775 = vand.u32 2147483647, %v3774
      %v3777 = vcvt.s32.f32 %v3770
      %v3778 = vmul.f32 %v3777, %v3775
      %v3779 = vxor.u32 %v3778, 2147483648
      %v3780 = vsel %vm3697, %v3779, %v3778
      %v3781 = vsub.s32 4, %v3757
      %v3782 = vsel %vm3697, %v3781, %v3757
      %v3783 = vsel %vm3696, %v1011, %v3780
      %v3784 = vsel %vm3696, 0, %v3782
      %v3785 = vcosq.f32.pop %v3783
      %v3786 = vsinq.f32.pop %v3783
      %vm3787 = vweird.f32 %v1011
      %v3788 = vand.u32 %v3784, 3
      %vm3789 = vcmp.lt.s32.totalorder %v3788, 2
      %vm3790 = vcmp.eq.s32.totalorder %v3788, 0
      %v3791 = vxor.u32 %v3786, 2147483648
      %v3792 = vsel %vm3790, %v3785, %v3791
      %vm3793 = vcmp.eq.s32.totalorder %v3788, 2
      %v3794 = vxor.u32 %v3785, 2147483648
      %v3795 = vsel %vm3793, %v3794, %v3786
      %v3796 = vsel %vm3789, %v3792, %v3795
      %v3797 = vsel %vm3787, nan, %v3796
      %v3798 = vand.u32 2147483647, %v1012
      %vm3799 = vcmp.le.f32.partialorder %v3798, 0.7853982
      %vm3800 = vcmp.lt.s32.totalorder %v1012, 0
      %v3801 = vand.u32 %v1012, 2139095040
      %v3802 = vshrl.u32 %v3801, 23
      %v3803 = vsub.s32 %v3802, 127
      %v3804 = vand.u32 2147483647, %v1012
      %v3805 = vand.u32 %v3804, 8388607
      %v3806 = vor.u32 %v3805, 8388608
      %v3807 = vsub.s32 0, %v3806
      %v3808 = vadd.s32 %v3803, 1
      %vm3809 = vcmp.gt.s32.totalorder %v3808, 0
      %v3810 = vsel %vm3809, %v3808, 0
      %v3811 = vshrl.u32 %v3810, 5
      %v3812 = vand.u32 %v3810, 31
      %v3813 = vsub.s32 32, %v3812
      %v3814 = vshrl.u32 683565275, %v3813
      %v3815 = vshll.u32 683565275, %v3812
      %v3816 = vshrl.u32 2475754826, %v3813
      %v3817 = vor.u32 %v3815, %v3816
      %v3818 = vshll.u32 2475754826, %v3812
      %v3819 = vshrl.u32 2131351028, %v3813
      %v3820 = vor.u32 %v3818, %v3819
      %v3821 = vshll.u32 2131351028, %v3812
      %v3822 = vshrl.u32 2102212464, %v3813
      %v3823 = vor.u32 %v3821, %v3822
      %v3824 = vshll.u32 2102212464, %v3812
      %v3825 = vshrl.u32 920167782, %v3813
      %v3826 = vor.u32 %v3824, %v3825
      %v3827 = vshll.u32 920167782, %v3812
      %v3828 = vshrl.u32 1326507024, %v3813
      %v3829 = vor.u32 %v3827, %v3828
      %vm3830 = vcmp.lt.s32.totalorder %v3811, 1
      %vm3831 = vcmp.lt.s32.totalorder %v3811, 2
      %vm3832 = vcmp.lt.s32.totalorder %v3811, 3
      %vm3833 = vcmp.lt.s32.totalorder %v3811, 4
      %v3834 = vsel %vm3830, %v3814, %v3817
      %v3835 = vsel %vm3833, %v3823, 2102212464
      %v3836 = vsel %vm3832, %v3820, %v3835
      %v3837 = vsel %vm3831, %v3834, %v3836
      %v3838 = vsel %vm3830, %v3817, %v3820
      %v3839 = vsel %vm3833, %v3826, 920167782
      %v3840 = vsel %vm3832, %v3823, %v3839
      %v3841 = vsel %vm3831, %v3838, %v3840
      %v3842 = vsel %vm3830, %v3820, %v3823
      %v3843 = vsel %vm3833, %v3829, 1326507024
      %v3844 = vsel %vm3832, %v3826, %v3843
      %v3845 = vsel %vm3831, %v3842, %v3844
      %v3846 = vshll.u32 %v3806, 8
      %v3847 = vmul.u32.u64.compose %v3846, %v3845
      %v3848 = vextract.low.u32 %v3847
      %v3849 = vextract.high.u32 %v3847
      %v3850 = vmul.u32.u64.compose %v3846, %v3841
      %v3851 = vextract.low.u32 %v3850
      %v3852 = vextract.high.u32 %v3850
      %v3853 = vmul.u32 %v3846, %v3837
      %v3854 = vadd.s32 %v3849, %v3851
      %vm3855 = vc.u32 %v3849, %v3851
      %v3856 = vadd.s32 %v3852, 1
      %v3857 = vsel %vm3855, %v3856, %v3852
      %v3858 = vadd.s32 %v3853, %v3857
      %v3859 = vadd.s32 %v3858, 536870912
      %v3860 = vshrl.u32 %v3859, 30
      %v3861 = vshll.u32 %v3860, 30
      %v3862 = vsub.s32 %v3858, %v3861
      %vm3863 = vcmp.lt.s32.totalorder %v3862, 0
      %v3864 = vsub.s32 0, %v3862
      %v3865 = vsel %vm3863, %v3864, %v3862
      %v3866 = vclz %v3865
      %v3867 = vsub.s32 %v3866, 2
      %vm3868 = vcmp.gt.s32.totalorder 0, %v3867
      %v3869 = vsel %vm3868, 0, %v3867
      %v3870 = vsub.s32 32, %v3869
      %v3871 = vshll.u32 %v3862, %v3869
      %v3872 = vshrl.u32 %v3854, %v3870
      %v3873 = vor.u32 %v3871, %v3872
      %v3874 = vsub.s32 4294967266, %v3869
      %v3875 = vadd.s32 %v3874, 127
      %v3876 = vshll.u32 %v3875, 23
      %v3877 = vor.u32 4788187, %v3876
      %v3878 = vand.u32 2147483647, %v3877
      %v3880 = vcvt.s32.f32 %v3873
      %v3881 = vmul.f32 %v3880, %v3878
      %v3882 = vxor.u32 %v3881, 2147483648
      %v3883 = vsel %vm3800, %v3882, %v3881
      %v3884 = vsub.s32 4, %v3860
      %v3885 = vsel %vm3800, %v3884, %v3860
      %v3886 = vsel %vm3799, %v1012, %v3883
      %v3887 = vsel %vm3799, 0, %v3885
      %v3888 = vcosq.f32.pop %v3886
      %v3889 = vsinq.f32.pop %v3886
      %vm3890 = vweird.f32 %v1012
      %v3891 = vand.u32 %v3887, 3
      %vm3892 = vcmp.lt.s32.totalorder %v3891, 2
      %vm3893 = vcmp.eq.s32.totalorder %v3891, 0
      %v3894 = vxor.u32 %v3889, 2147483648
      %v3895 = vsel %vm3893, %v3888, %v3894
      %vm3896 = vcmp.eq.s32.totalorder %v3891, 2
      %v3897 = vxor.u32 %v3888, 2147483648
      %v3898 = vsel %vm3896, %v3897, %v3889
      %v3899 = vsel %vm3892, %v3895, %v3898
      %v3900 = vsel %vm3890, nan, %v3899
      %v3901 = vand.u32 2147483647, %v1013
      %vm3902 = vcmp.le.f32.partialorder %v3901, 0.7853982
      %vm3903 = vcmp.lt.s32.totalorder %v1013, 0
      %v3904 = vand.u32 %v1013, 2139095040
      %v3905 = vshrl.u32 %v3904, 23
      %v3906 = vsub.s32 %v3905, 127
      %v3907 = vand.u32 2147483647, %v1013
      %v3908 = vand.u32 %v3907, 8388607
      %v3909 = vor.u32 %v3908, 8388608
      %v3910 = vsub.s32 0, %v3909
      %v3911 = vadd.s32 %v3906, 1
      %vm3912 = vcmp.gt.s32.totalorder %v3911, 0
      %v3913 = vsel %vm3912, %v3911, 0
      %v3914 = vshrl.u32 %v3913, 5
      %v3915 = vand.u32 %v3913, 31
      %v3916 = vsub.s32 32, %v3915
      %v3917 = vshrl.u32 683565275, %v3916
      %v3918 = vshll.u32 683565275, %v3915
      %v3919 = vshrl.u32 2475754826, %v3916
      %v3920 = vor.u32 %v3918, %v3919
      %v3921 = vshll.u32 2475754826, %v3915
      %v3922 = vshrl.u32 2131351028, %v3916
      %v3923 = vor.u32 %v3921, %v3922
      %v3924 = vshll.u32 2131351028, %v3915
      %v3925 = vshrl.u32 2102212464, %v3916
      %v3926 = vor.u32 %v3924, %v3925
      %v3927 = vshll.u32 2102212464, %v3915
      %v3928 = vshrl.u32 920167782, %v3916
      %v3929 = vor.u32 %v3927, %v3928
      %v3930 = vshll.u32 920167782, %v3915
      %v3931 = vshrl.u32 1326507024, %v3916
      %v3932 = vor.u32 %v3930, %v3931
      %vm3933 = vcmp.lt.s32.totalorder %v3914, 1
      %vm3934 = vcmp.lt.s32.totalorder %v3914, 2
      %vm3935 = vcmp.lt.s32.totalorder %v3914, 3
      %vm3936 = vcmp.lt.s32.totalorder %v3914, 4
      %v3937 = vsel %vm3933, %v3917, %v3920
      %v3938 = vsel %vm3936, %v3926, 2102212464
      %v3939 = vsel %vm3935, %v3923, %v3938
      %v3940 = vsel %vm3934, %v3937, %v3939
      %v3941 = vsel %vm3933, %v3920, %v3923
      %v3942 = vsel %vm3936, %v3929, 920167782
      %v3943 = vsel %vm3935, %v3926, %v3942
      %v3944 = vsel %vm3934, %v3941, %v3943
      %v3945 = vsel %vm3933, %v3923, %v3926
      %v3946 = vsel %vm3936, %v3932, 1326507024
      %v3947 = vsel %vm3935, %v3929, %v3946
      %v3948 = vsel %vm3934, %v3945, %v3947
      %v3949 = vshll.u32 %v3909, 8
      %v3950 = vmul.u32.u64.compose %v3949, %v3948
      %v3951 = vextract.low.u32 %v3950
      %v3952 = vextract.high.u32 %v3950
      %v3953 = vmul.u32.u64.compose %v3949, %v3944
      %v3954 = vextract.low.u32 %v3953
      %v3955 = vextract.high.u32 %v3953
      %v3956 = vmul.u32 %v3949, %v3940
      %v3957 = vadd.s32 %v3952, %v3954
      %vm3958 = vc.u32 %v3952, %v3954
      %v3959 = vadd.s32 %v3955, 1
      %v3960 = vsel %vm3958, %v3959, %v3955
      %v3961 = vadd.s32 %v3956, %v3960
      %v3962 = vadd.s32 %v3961, 536870912
      %v3963 = vshrl.u32 %v3962, 30
      %v3964 = vshll.u32 %v3963, 30
      %v3965 = vsub.s32 %v3961, %v3964
      %vm3966 = vcmp.lt.s32.totalorder %v3965, 0
      %v3967 = vsub.s32 0, %v3965
      %v3968 = vsel %vm3966, %v3967, %v3965
      %v3969 = vclz %v3968
      %v3970 = vsub.s32 %v3969, 2
      %vm3971 = vcmp.gt.s32.totalorder 0, %v3970
      %v3972 = vsel %vm3971, 0, %v3970
      %v3973 = vsub.s32 32, %v3972
      %v3974 = vshll.u32 %v3965, %v3972
      %v3975 = vshrl.u32 %v3957, %v3973
      %v3976 = vor.u32 %v3974, %v3975
      %v3977 = vsub.s32 4294967266, %v3972
      %v3978 = vadd.s32 %v3977, 127
      %v3979 = vshll.u32 %v3978, 23
      %v3980 = vor.u32 4788187, %v3979
      %v3981 = vand.u32 2147483647, %v3980
      %v3983 = vcvt.s32.f32 %v3976
      %v3984 = vmul.f32 %v3983, %v3981
      %v3985 = vxor.u32 %v3984, 2147483648
      %v3986 = vsel %vm3903, %v3985, %v3984
      %v3987 = vsub.s32 4, %v3963
      %v3988 = vsel %vm3903, %v3987, %v3963
      %v3989 = vsel %vm3902, %v1013, %v3986
      %v3990 = vsel %vm3902, 0, %v3988
      %v3991 = vcosq.f32.pop %v3989
      %v3992 = vsinq.f32.pop %v3989
      %vm3993 = vweird.f32 %v1013
      %v3994 = vand.u32 %v3990, 3
      %vm3995 = vcmp.lt.s32.totalorder %v3994, 2
      %vm3996 = vcmp.eq.s32.totalorder %v3994, 0
      %v3997 = vxor.u32 %v3992, 2147483648
      %v3998 = vsel %vm3996, %v3991, %v3997
      %vm3999 = vcmp.eq.s32.totalorder %v3994, 2
      %v4000 = vxor.u32 %v3991, 2147483648
      %v4001 = vsel %vm3999, %v4000, %v3992
      %v4002 = vsel %vm3995, %v3998, %v4001
      %v4003 = vsel %vm3993, nan, %v4002
      %v4004 = vand.u32 2147483647, %v1014
      %vm4005 = vcmp.le.f32.partialorder %v4004, 0.7853982
      %vm4006 = vcmp.lt.s32.totalorder %v1014, 0
      %v4007 = vand.u32 %v1014, 2139095040
      %v4008 = vshrl.u32 %v4007, 23
      %v4009 = vsub.s32 %v4008, 127
      %v4010 = vand.u32 2147483647, %v1014
      %v4011 = vand.u32 %v4010, 8388607
      %v4012 = vor.u32 %v4011, 8388608
      %v4013 = vsub.s32 0, %v4012
      %v4014 = vadd.s32 %v4009, 1
      %vm4015 = vcmp.gt.s32.totalorder %v4014, 0
      %v4016 = vsel %vm4015, %v4014, 0
      %v4017 = vshrl.u32 %v4016, 5
      %v4018 = vand.u32 %v4016, 31
      %v4019 = vsub.s32 32, %v4018
      %v4020 = vshrl.u32 683565275, %v4019
      %v4021 = vshll.u32 683565275, %v4018
      %v4022 = vshrl.u32 2475754826, %v4019
      %v4023 = vor.u32 %v4021, %v4022
      %v4024 = vshll.u32 2475754826, %v4018
      %v4025 = vshrl.u32 2131351028, %v4019
      %v4026 = vor.u32 %v4024, %v4025
      %v4027 = vshll.u32 2131351028, %v4018
      %v4028 = vshrl.u32 2102212464, %v4019
      %v4029 = vor.u32 %v4027, %v4028
      %v4030 = vshll.u32 2102212464, %v4018
      %v4031 = vshrl.u32 920167782, %v4019
      %v4032 = vor.u32 %v4030, %v4031
      %v4033 = vshll.u32 920167782, %v4018
      %v4034 = vshrl.u32 1326507024, %v4019
      %v4035 = vor.u32 %v4033, %v4034
      %vm4036 = vcmp.lt.s32.totalorder %v4017, 1
      %vm4037 = vcmp.lt.s32.totalorder %v4017, 2
      %vm4038 = vcmp.lt.s32.totalorder %v4017, 3
      %vm4039 = vcmp.lt.s32.totalorder %v4017, 4
      %v4040 = vsel %vm4036, %v4020, %v4023
      %v4041 = vsel %vm4039, %v4029, 2102212464
      %v4042 = vsel %vm4038, %v4026, %v4041
      %v4043 = vsel %vm4037, %v4040, %v4042
      %v4044 = vsel %vm4036, %v4023, %v4026
      %v4045 = vsel %vm4039, %v4032, 920167782
      %v4046 = vsel %vm4038, %v4029, %v4045
      %v4047 = vsel %vm4037, %v4044, %v4046
      %v4048 = vsel %vm4036, %v4026, %v4029
      %v4049 = vsel %vm4039, %v4035, 1326507024
      %v4050 = vsel %vm4038, %v4032, %v4049
      %v4051 = vsel %vm4037, %v4048, %v4050
      %v4052 = vshll.u32 %v4012, 8
      %v4053 = vmul.u32.u64.compose %v4052, %v4051
      %v4054 = vextract.low.u32 %v4053
      %v4055 = vextract.high.u32 %v4053
      %v4056 = vmul.u32.u64.compose %v4052, %v4047
      %v4057 = vextract.low.u32 %v4056
      %v4058 = vextract.high.u32 %v4056
      %v4059 = vmul.u32 %v4052, %v4043
      %v4060 = vadd.s32 %v4055, %v4057
      %vm4061 = vc.u32 %v4055, %v4057
      %v4062 = vadd.s32 %v4058, 1
      %v4063 = vsel %vm4061, %v4062, %v4058
      %v4064 = vadd.s32 %v4059, %v4063
      %v4065 = vadd.s32 %v4064, 536870912
      %v4066 = vshrl.u32 %v4065, 30
      %v4067 = vshll.u32 %v4066, 30
      %v4068 = vsub.s32 %v4064, %v4067
      %vm4069 = vcmp.lt.s32.totalorder %v4068, 0
      %v4070 = vsub.s32 0, %v4068
      %v4071 = vsel %vm4069, %v4070, %v4068
      %v4072 = vclz %v4071
      %v4073 = vsub.s32 %v4072, 2
      %vm4074 = vcmp.gt.s32.totalorder 0, %v4073
      %v4075 = vsel %vm4074, 0, %v4073
      %v4076 = vsub.s32 32, %v4075
      %v4077 = vshll.u32 %v4068, %v4075
      %v4078 = vshrl.u32 %v4060, %v4076
      %v4079 = vor.u32 %v4077, %v4078
      %v4080 = vsub.s32 4294967266, %v4075
      %v4081 = vadd.s32 %v4080, 127
      %v4082 = vshll.u32 %v4081, 23
      %v4083 = vor.u32 4788187, %v4082
      %v4084 = vand.u32 2147483647, %v4083
      %v4086 = vcvt.s32.f32 %v4079
      %v4087 = vmul.f32 %v4086, %v4084
      %v4088 = vxor.u32 %v4087, 2147483648
      %v4089 = vsel %vm4006, %v4088, %v4087
      %v4090 = vsub.s32 4, %v4066
      %v4091 = vsel %vm4006, %v4090, %v4066
      %v4092 = vsel %vm4005, %v1014, %v4089
      %v4093 = vsel %vm4005, 0, %v4091
      %v4094 = vcosq.f32.pop %v4092
      %v4095 = vsinq.f32.pop %v4092
      %vm4096 = vweird.f32 %v1014
      %v4097 = vand.u32 %v4093, 3
      %vm4098 = vcmp.lt.s32.totalorder %v4097, 2
      %vm4099 = vcmp.eq.s32.totalorder %v4097, 0
      %v4100 = vxor.u32 %v4095, 2147483648
      %v4101 = vsel %vm4099, %v4094, %v4100
      %vm4102 = vcmp.eq.s32.totalorder %v4097, 2
      %v4103 = vxor.u32 %v4094, 2147483648
      %v4104 = vsel %vm4102, %v4103, %v4095
      %v4105 = vsel %vm4098, %v4101, %v4104
      %v4106 = vsel %vm4096, nan, %v4105
      %v4107 = vand.u32 2147483647, %v1015
      %vm4108 = vcmp.le.f32.partialorder %v4107, 0.7853982
      %vm4109 = vcmp.lt.s32.totalorder %v1015, 0
      %v4110 = vand.u32 %v1015, 2139095040
      %v4111 = vshrl.u32 %v4110, 23
      %v4112 = vsub.s32 %v4111, 127
      %v4113 = vand.u32 2147483647, %v1015
      %v4114 = vand.u32 %v4113, 8388607
      %v4115 = vor.u32 %v4114, 8388608
      %v4116 = vsub.s32 0, %v4115
      %v4117 = vadd.s32 %v4112, 1
      %vm4118 = vcmp.gt.s32.totalorder %v4117, 0
      %v4119 = vsel %vm4118, %v4117, 0
      %v4120 = vshrl.u32 %v4119, 5
      %v4121 = vand.u32 %v4119, 31
      %v4122 = vsub.s32 32, %v4121
      %v4123 = vshrl.u32 683565275, %v4122
      %v4124 = vshll.u32 683565275, %v4121
      %v4125 = vshrl.u32 2475754826, %v4122
      %v4126 = vor.u32 %v4124, %v4125
      %v4127 = vshll.u32 2475754826, %v4121
      %v4128 = vshrl.u32 2131351028, %v4122
      %v4129 = vor.u32 %v4127, %v4128
      %v4130 = vshll.u32 2131351028, %v4121
      %v4131 = vshrl.u32 2102212464, %v4122
      %v4132 = vor.u32 %v4130, %v4131
      %v4133 = vshll.u32 2102212464, %v4121
      %v4134 = vshrl.u32 920167782, %v4122
      %v4135 = vor.u32 %v4133, %v4134
      %v4136 = vshll.u32 920167782, %v4121
      %v4137 = vshrl.u32 1326507024, %v4122
      %v4138 = vor.u32 %v4136, %v4137
      %vm4139 = vcmp.lt.s32.totalorder %v4120, 1
      %vm4140 = vcmp.lt.s32.totalorder %v4120, 2
      %vm4141 = vcmp.lt.s32.totalorder %v4120, 3
      %vm4142 = vcmp.lt.s32.totalorder %v4120, 4
      %v4143 = vsel %vm4139, %v4123, %v4126
      %v4144 = vsel %vm4142, %v4132, 2102212464
      %v4145 = vsel %vm4141, %v4129, %v4144
      %v4146 = vsel %vm4140, %v4143, %v4145
      %v4147 = vsel %vm4139, %v4126, %v4129
      %v4148 = vsel %vm4142, %v4135, 920167782
      %v4149 = vsel %vm4141, %v4132, %v4148
      %v4150 = vsel %vm4140, %v4147, %v4149
      %v4151 = vsel %vm4139, %v4129, %v4132
      %v4152 = vsel %vm4142, %v4138, 1326507024
      %v4153 = vsel %vm4141, %v4135, %v4152
      %v4154 = vsel %vm4140, %v4151, %v4153
      %v4155 = vshll.u32 %v4115, 8
      %v4156 = vmul.u32.u64.compose %v4155, %v4154
      %v4157 = vextract.low.u32 %v4156
      %v4158 = vextract.high.u32 %v4156
      %v4159 = vmul.u32.u64.compose %v4155, %v4150
      %v4160 = vextract.low.u32 %v4159
      %v4161 = vextract.high.u32 %v4159
      %v4162 = vmul.u32 %v4155, %v4146
      %v4163 = vadd.s32 %v4158, %v4160
      %vm4164 = vc.u32 %v4158, %v4160
      %v4165 = vadd.s32 %v4161, 1
      %v4166 = vsel %vm4164, %v4165, %v4161
      %v4167 = vadd.s32 %v4162, %v4166
      %v4168 = vadd.s32 %v4167, 536870912
      %v4169 = vshrl.u32 %v4168, 30
      %v4170 = vshll.u32 %v4169, 30
      %v4171 = vsub.s32 %v4167, %v4170
      %vm4172 = vcmp.lt.s32.totalorder %v4171, 0
      %v4173 = vsub.s32 0, %v4171
      %v4174 = vsel %vm4172, %v4173, %v4171
      %v4175 = vclz %v4174
      %v4176 = vsub.s32 %v4175, 2
      %vm4177 = vcmp.gt.s32.totalorder 0, %v4176
      %v4178 = vsel %vm4177, 0, %v4176
      %v4179 = vsub.s32 32, %v4178
      %v4180 = vshll.u32 %v4171, %v4178
      %v4181 = vshrl.u32 %v4163, %v4179
      %v4182 = vor.u32 %v4180, %v4181
      %v4183 = vsub.s32 4294967266, %v4178
      %v4184 = vadd.s32 %v4183, 127
      %v4185 = vshll.u32 %v4184, 23
      %v4186 = vor.u32 4788187, %v4185
      %v4187 = vand.u32 2147483647, %v4186
      %v4189 = vcvt.s32.f32 %v4182
      %v4190 = vmul.f32 %v4189, %v4187
      %v4191 = vxor.u32 %v4190, 2147483648
      %v4192 = vsel %vm4109, %v4191, %v4190
      %v4193 = vsub.s32 4, %v4169
      %v4194 = vsel %vm4109, %v4193, %v4169
      %v4195 = vsel %vm4108, %v1015, %v4192
      %v4196 = vsel %vm4108, 0, %v4194
      %v4197 = vcosq.f32.pop %v4195
      %v4198 = vsinq.f32.pop %v4195
      %vm4199 = vweird.f32 %v1015
      %v4200 = vand.u32 %v4196, 3
      %vm4201 = vcmp.lt.s32.totalorder %v4200, 2
      %vm4202 = vcmp.eq.s32.totalorder %v4200, 0
      %v4203 = vxor.u32 %v4198, 2147483648
      %v4204 = vsel %vm4202, %v4197, %v4203
      %vm4205 = vcmp.eq.s32.totalorder %v4200, 2
      %v4206 = vxor.u32 %v4197, 2147483648
      %v4207 = vsel %vm4205, %v4206, %v4198
      %v4208 = vsel %vm4201, %v4204, %v4207
      %v4209 = vsel %vm4199, nan, %v4208
      %v4210 = vand.u32 2147483647, %v1016
      %vm4211 = vcmp.le.f32.partialorder %v4210, 0.7853982
      %vm4212 = vcmp.lt.s32.totalorder %v1016, 0
      %v4213 = vand.u32 %v1016, 2139095040
      %v4214 = vshrl.u32 %v4213, 23
      %v4215 = vsub.s32 %v4214, 127
      %v4216 = vand.u32 2147483647, %v1016
      %v4217 = vand.u32 %v4216, 8388607
      %v4218 = vor.u32 %v4217, 8388608
      %v4219 = vsub.s32 0, %v4218
      %v4220 = vadd.s32 %v4215, 1
      %vm4221 = vcmp.gt.s32.totalorder %v4220, 0
      %v4222 = vsel %vm4221, %v4220, 0
      %v4223 = vshrl.u32 %v4222, 5
      %v4224 = vand.u32 %v4222, 31
      %v4225 = vsub.s32 32, %v4224
      %v4226 = vshrl.u32 683565275, %v4225
      %v4227 = vshll.u32 683565275, %v4224
      %v4228 = vshrl.u32 2475754826, %v4225
      %v4229 = vor.u32 %v4227, %v4228
      %v4230 = vshll.u32 2475754826, %v4224
      %v4231 = vshrl.u32 2131351028, %v4225
      %v4232 = vor.u32 %v4230, %v4231
      %v4233 = vshll.u32 2131351028, %v4224
      %v4234 = vshrl.u32 2102212464, %v4225
      %v4235 = vor.u32 %v4233, %v4234
      %v4236 = vshll.u32 2102212464, %v4224
      %v4237 = vshrl.u32 920167782, %v4225
      %v4238 = vor.u32 %v4236, %v4237
      %v4239 = vshll.u32 920167782, %v4224
      %v4240 = vshrl.u32 1326507024, %v4225
      %v4241 = vor.u32 %v4239, %v4240
      %vm4242 = vcmp.lt.s32.totalorder %v4223, 1
      %vm4243 = vcmp.lt.s32.totalorder %v4223, 2
      %vm4244 = vcmp.lt.s32.totalorder %v4223, 3
      %vm4245 = vcmp.lt.s32.totalorder %v4223, 4
      %v4246 = vsel %vm4242, %v4226, %v4229
      %v4247 = vsel %vm4245, %v4235, 2102212464
      %v4248 = vsel %vm4244, %v4232, %v4247
      %v4249 = vsel %vm4243, %v4246, %v4248
      %v4250 = vsel %vm4242, %v4229, %v4232
      %v4251 = vsel %vm4245, %v4238, 920167782
      %v4252 = vsel %vm4244, %v4235, %v4251
      %v4253 = vsel %vm4243, %v4250, %v4252
      %v4254 = vsel %vm4242, %v4232, %v4235
      %v4255 = vsel %vm4245, %v4241, 1326507024
      %v4256 = vsel %vm4244, %v4238, %v4255
      %v4257 = vsel %vm4243, %v4254, %v4256
      %v4258 = vshll.u32 %v4218, 8
      %v4259 = vmul.u32.u64.compose %v4258, %v4257
      %v4260 = vextract.low.u32 %v4259
      %v4261 = vextract.high.u32 %v4259
      %v4262 = vmul.u32.u64.compose %v4258, %v4253
      %v4263 = vextract.low.u32 %v4262
      %v4264 = vextract.high.u32 %v4262
      %v4265 = vmul.u32 %v4258, %v4249
      %v4266 = vadd.s32 %v4261, %v4263
      %vm4267 = vc.u32 %v4261, %v4263
      %v4268 = vadd.s32 %v4264, 1
      %v4269 = vsel %vm4267, %v4268, %v4264
      %v4270 = vadd.s32 %v4265, %v4269
      %v4271 = vadd.s32 %v4270, 536870912
      %v4272 = vshrl.u32 %v4271, 30
      %v4273 = vshll.u32 %v4272, 30
      %v4274 = vsub.s32 %v4270, %v4273
      %vm4275 = vcmp.lt.s32.totalorder %v4274, 0
      %v4276 = vsub.s32 0, %v4274
      %v4277 = vsel %vm4275, %v4276, %v4274
      %v4278 = vclz %v4277
      %v4279 = vsub.s32 %v4278, 2
      %vm4280 = vcmp.gt.s32.totalorder 0, %v4279
      %v4281 = vsel %vm4280, 0, %v4279
      %v4282 = vsub.s32 32, %v4281
      %v4283 = vshll.u32 %v4274, %v4281
      %v4284 = vshrl.u32 %v4266, %v4282
      %v4285 = vor.u32 %v4283, %v4284
      %v4286 = vsub.s32 4294967266, %v4281
      %v4287 = vadd.s32 %v4286, 127
      %v4288 = vshll.u32 %v4287, 23
      %v4289 = vor.u32 4788187, %v4288
      %v4290 = vand.u32 2147483647, %v4289
      %v4292 = vcvt.s32.f32 %v4285
      %v4293 = vmul.f32 %v4292, %v4290
      %v4294 = vxor.u32 %v4293, 2147483648
      %v4295 = vsel %vm4212, %v4294, %v4293
      %v4296 = vsub.s32 4, %v4272
      %v4297 = vsel %vm4212, %v4296, %v4272
      %v4298 = vsel %vm4211, %v1016, %v4295
      %v4299 = vsel %vm4211, 0, %v4297
      %v4300 = vcosq.f32.pop %v4298
      %v4301 = vsinq.f32.pop %v4298
      %vm4302 = vweird.f32 %v1016
      %v4303 = vand.u32 %v4299, 3
      %vm4304 = vcmp.lt.s32.totalorder %v4303, 2
      %vm4305 = vcmp.eq.s32.totalorder %v4303, 0
      %v4306 = vxor.u32 %v4301, 2147483648
      %v4307 = vsel %vm4305, %v4300, %v4306
      %vm4308 = vcmp.eq.s32.totalorder %v4303, 2
      %v4309 = vxor.u32 %v4300, 2147483648
      %v4310 = vsel %vm4308, %v4309, %v4301
      %v4311 = vsel %vm4304, %v4307, %v4310
      %v4312 = vsel %vm4302, nan, %v4311
      %v4313 = vpack.c.bf16 %v1222, %v1119
      %v4314 = vpack.c.bf16 %v1428, %v1325
      %v4315 = vpack.c.bf16 %v1634, %v1531
      %v4316 = vpack.c.bf16 %v1840, %v1737
      %v4317 = vpack.c.bf16 %v2046, %v1943
      %v4318 = vpack.c.bf16 %v2252, %v2149
      %v4319 = vpack.c.bf16 %v2458, %v2355
      %v4320 = vpack.c.bf16 %v2664, %v2561
      %v4321 = vpack.c.bf16 %v2870, %v2767
      %v4322 = vpack.c.bf16 %v3076, %v2973
      %v4323 = vpack.c.bf16 %v3282, %v3179
      %v4324 = vpack.c.bf16 %v3488, %v3385
      %v4325 = vpack.c.bf16 %v3694, %v3591
      %v4326 = vpack.c.bf16 %v3900, %v3797
      %v4327 = vpack.c.bf16 %v4106, %v4003
      %v4328 = vpack.c.bf16 %v4312, %v4209
      %v4329 = vld [vmem:[%s4] sm:$0xff]
      %v4330 = vld [vmem:[%s4 + $0x8] sm:$0xff]
      %v4331 = vld [vmem:[%s4 + $0x10] sm:$0xff]
      %v4332 = vld [vmem:[%s4 + $0x18] sm:$0xff]
      %v4333 = vld [vmem:[%s4 + $0x20] sm:$0xff]
      %v4334 = vld [vmem:[%s4 + $0x28] sm:$0xff]
      %v4335 = vld [vmem:[%s4 + $0x30] sm:$0xff]
      %v4336 = vld [vmem:[%s4 + $0x38] sm:$0xff]
      %v4337 = vld [vmem:[%s5] sm:$0x3]
      %v4339 = vlaneseq
      %v4340 = vshrl.u32 %v4339, 7
      %v4341 = vsub.s32 0, %v4340
      %v4342 = vrot.slane %v4337, %v4341
      %v4343 = vlaneseq
      %v4344 = vshrl.u32 %v4343, 7
      %v4345 = vsub.s32 1, %v4344
      %v4346 = vrot.slane %v4337, %v4345
      %v4357 = vunpack.c.l.b16 %v4329
      %v4358 = vunpack.c.h.b16 %v4329
      %v4359 = vunpack.c.l.b16 %v4330
      %v4360 = vunpack.c.h.b16 %v4330
      %v4361 = vunpack.c.l.b16 %v4331
      %v4362 = vunpack.c.h.b16 %v4331
      %v4363 = vunpack.c.l.b16 %v4332
      %v4364 = vunpack.c.h.b16 %v4332
      %v4365 = vunpack.c.l.b16 %v4333
      %v4366 = vunpack.c.h.b16 %v4333
      %v4367 = vunpack.c.l.b16 %v4334
      %v4368 = vunpack.c.h.b16 %v4334
      %v4369 = vunpack.c.l.b16 %v4335
      %v4370 = vunpack.c.h.b16 %v4335
      %v4371 = vunpack.c.l.b16 %v4336
      %v4372 = vunpack.c.h.b16 %v4336
      %v4373 = vpack.c.b16 %v4359, %v4357
      %v4374 = vpack.c.b16 %v4360, %v4358
      %v4375 = vpack.c.b16 %v4363, %v4361
      %v4376 = vpack.c.b16 %v4364, %v4362
      %v4377 = vpack.c.b16 %v4367, %v4365
      %v4378 = vpack.c.b16 %v4368, %v4366
      %v4379 = vpack.c.b16 %v4371, %v4369
      %v4380 = vpack.c.b16 %v4372, %v4370
      %vm4389 = vcmask 523264
      %v4391 = vsel %vm4389, %v4313, 0
      %v4394 = vsel %vm4389, %v4314, 0
      %v4397 = vsel %vm4389, %v4315, 0
      %v4400 = vsel %vm4389, %v4316, 0
      %v4403 = vsel %vm4389, %v4317, 0
      %v4406 = vsel %vm4389, %v4318, 0
      %v4409 = vsel %vm4389, %v4319, 0
      %v4412 = vsel %vm4389, %v4320, 0
      %v4415 = vsel %vm4389, %v4321, 0
      %v4418 = vsel %vm4389, %v4322, 0
      %v4421 = vsel %vm4389, %v4323, 0
      %v4424 = vsel %vm4389, %v4324, 0
      %v4427 = vsel %vm4389, %v4325, 0
      %v4430 = vsel %vm4389, %v4326, 0
      %v4433 = vsel %vm4389, %v4327, 0
      %v4436 = vsel %vm4389, %v4328, 0
      %4438 = vmatprep.subr.bf16.mxu0 0
      %4439 = vmatpush1.bf16.msra.mxu0 0
      %4440 = vmatprep.subr.bf16.mxu0 0
      %4441 = vmatpush1.bf16.msra.mxu0 0
      %4442 = vmatprep.subr.bf16.mxu0 0
      %4443 = vmatpush1.bf16.msra.mxu0 0
      %4444 = vmatprep.subr.bf16.mxu0 0
      %4445 = vmatpush1.bf16.msra.mxu0 0
      %4446 = vmatprep.subr.bf16.mxu0 %v4380
      %4447 = vmatpush1.bf16.msra.mxu0 %v4379
      %4448 = vmatprep.subr.bf16.mxu0 %v4378
      %4449 = vmatpush1.bf16.msra.mxu0 %v4377
      %4450 = vmatprep.subr.bf16.mxu0 %v4376
      %4451 = vmatpush1.bf16.msra.mxu0 %v4375
      %4452 = vmatprep.subr.bf16.mxu0 %v4374
      %4453 = vmatpush1.bf16.msra.mxu0 %v4373
      %4454 = vmatprep.subr.bf16.mxu0 0
      %4455 = vmatpush2.bf16.msra.mxu0 0
      %4456 = vmatprep.subr.bf16.mxu0 0
      %4457 = vmatpush2.bf16.msra.mxu0 0
      %4458 = vmatprep.subr.bf16.mxu0 0
      %4459 = vmatpush2.bf16.msra.mxu0 0
      %4460 = vmatprep.subr.bf16.mxu0 0
      %4461 = vmatpush2.bf16.msra.mxu0 0
      %4462 = vmatprep.subr.bf16.mxu0 0
      %4463 = vmatpush2.bf16.msra.mxu0 0
      %4464 = vmatprep.subr.bf16.mxu0 0
      %4465 = vmatpush2.bf16.msra.mxu0 0
      %4466 = vmatprep.subr.bf16.mxu0 0
      %4467 = vmatpush2.bf16.msra.mxu0 0
      %4468 = vmatprep.subr.bf16.mxu0 0
      %4469 = vmatpush2.bf16.msra.mxu0 0
      %4470 = vmatprep.mubr.bf16.mxu0 0
      %4471 = vmatmul.mubr.bf16.gmra.mxu0 %v4391
      %v4472 = vpop.f32.mrf.mxu0
      %v4473 = vadd.f32 %v4342, %v4472
      %v4474 = vpop.f32.mrf.mxu0
      %v4475 = vadd.f32 %v4346, %v4474
      %v4476 = vpop.f32.mrf.mxu0
      %v4477 = vadd.f32 %v4342, %v4476
      %v4478 = vpop.f32.mrf.mxu0
      %v4479 = vadd.f32 %v4346, %v4478
      %4480 = vmatprep.mubr.bf16.mxu0 0
      %4481 = vmatmul.mubr.bf16.gmra.mxu0 %v4394
      %v4482 = vpop.f32.mrf.mxu0
      %v4483 = vadd.f32 %v4342, %v4482
      %v4484 = vpop.f32.mrf.mxu0
      %v4485 = vadd.f32 %v4346, %v4484
      %v4486 = vpop.f32.mrf.mxu0
      %v4487 = vadd.f32 %v4342, %v4486
      %v4488 = vpop.f32.mrf.mxu0
      %v4489 = vadd.f32 %v4346, %v4488
      %4490 = vmatprep.mubr.bf16.mxu0 0
      %4491 = vmatmul.mubr.bf16.gmra.mxu0 %v4397
      %v4492 = vpop.f32.mrf.mxu0
      %v4493 = vadd.f32 %v4342, %v4492
      %v4494 = vpop.f32.mrf.mxu0
      %v4495 = vadd.f32 %v4346, %v4494
      %v4496 = vpop.f32.mrf.mxu0
      %v4497 = vadd.f32 %v4342, %v4496
      %v4498 = vpop.f32.mrf.mxu0
      %v4499 = vadd.f32 %v4346, %v4498
      %4500 = vmatprep.mubr.bf16.mxu0 0
      %4501 = vmatmul.mubr.bf16.gmra.mxu0 %v4400
      %v4502 = vpop.f32.mrf.mxu0
      %v4503 = vadd.f32 %v4342, %v4502
      %v4504 = vpop.f32.mrf.mxu0
      %v4505 = vadd.f32 %v4346, %v4504
      %v4506 = vpop.f32.mrf.mxu0
      %v4507 = vadd.f32 %v4342, %v4506
      %v4508 = vpop.f32.mrf.mxu0
      %v4509 = vadd.f32 %v4346, %v4508
      %4510 = vmatprep.mubr.bf16.mxu0 0
      %4511 = vmatmul.mubr.bf16.gmra.mxu0 %v4403
      %v4512 = vpop.f32.mrf.mxu0
      %v4513 = vadd.f32 %v4342, %v4512
      %v4514 = vpop.f32.mrf.mxu0
      %v4515 = vadd.f32 %v4346, %v4514
      %v4516 = vpop.f32.mrf.mxu0
      %v4517 = vadd.f32 %v4342, %v4516
      %v4518 = vpop.f32.mrf.mxu0
      %v4519 = vadd.f32 %v4346, %v4518
      %4520 = vmatprep.mubr.bf16.mxu0 0
      %4521 = vmatmul.mubr.bf16.gmra.mxu0 %v4406
      %v4522 = vpop.f32.mrf.mxu0
      %v4523 = vadd.f32 %v4342, %v4522
      %v4524 = vpop.f32.mrf.mxu0
      %v4525 = vadd.f32 %v4346, %v4524
      %v4526 = vpop.f32.mrf.mxu0
      %v4527 = vadd.f32 %v4342, %v4526
      %v4528 = vpop.f32.mrf.mxu0
      %v4529 = vadd.f32 %v4346, %v4528
      %4530 = vmatprep.mubr.bf16.mxu0 0
      %4531 = vmatmul.mubr.bf16.gmra.mxu0 %v4409
      %v4532 = vpop.f32.mrf.mxu0
      %v4533 = vadd.f32 %v4342, %v4532
      %v4534 = vpop.f32.mrf.mxu0
      %v4535 = vadd.f32 %v4346, %v4534
      %v4536 = vpop.f32.mrf.mxu0
      %v4537 = vadd.f32 %v4342, %v4536
      %v4538 = vpop.f32.mrf.mxu0
      %v4539 = vadd.f32 %v4346, %v4538
      %4540 = vmatprep.mubr.bf16.mxu0 0
      %4541 = vmatmul.mubr.bf16.gmra.mxu0 %v4412
      %v4542 = vpop.f32.mrf.mxu0
      %v4543 = vadd.f32 %v4342, %v4542
      %v4544 = vpop.f32.mrf.mxu0
      %v4545 = vadd.f32 %v4346, %v4544
      %v4546 = vpop.f32.mrf.mxu0
      %v4547 = vadd.f32 %v4342, %v4546
      %v4548 = vpop.f32.mrf.mxu0
      %v4549 = vadd.f32 %v4346, %v4548
      %4550 = vmatprep.mubr.bf16.mxu0 0
      %4551 = vmatmul.mubr.bf16.gmra.mxu0 %v4415
      %v4552 = vpop.f32.mrf.mxu0
      %v4553 = vadd.f32 %v4342, %v4552
      %v4554 = vpop.f32.mrf.mxu0
      %v4555 = vadd.f32 %v4346, %v4554
      %v4556 = vpop.f32.mrf.mxu0
      %v4557 = vadd.f32 %v4342, %v4556
      %v4558 = vpop.f32.mrf.mxu0
      %v4559 = vadd.f32 %v4346, %v4558
      %4560 = vmatprep.mubr.bf16.mxu0 0
      %4561 = vmatmul.mubr.bf16.gmra.mxu0 %v4418
      %v4562 = vpop.f32.mrf.mxu0
      %v4563 = vadd.f32 %v4342, %v4562
      %v4564 = vpop.f32.mrf.mxu0
      %v4565 = vadd.f32 %v4346, %v4564
      %v4566 = vpop.f32.mrf.mxu0
      %v4567 = vadd.f32 %v4342, %v4566
      %v4568 = vpop.f32.mrf.mxu0
      %v4569 = vadd.f32 %v4346, %v4568
      %4570 = vmatprep.mubr.bf16.mxu0 0
      %4571 = vmatmul.mubr.bf16.gmra.mxu0 %v4421
      %v4572 = vpop.f32.mrf.mxu0
      %v4573 = vadd.f32 %v4342, %v4572
      %v4574 = vpop.f32.mrf.mxu0
      %v4575 = vadd.f32 %v4346, %v4574
      %v4576 = vpop.f32.mrf.mxu0
      %v4577 = vadd.f32 %v4342, %v4576
      %v4578 = vpop.f32.mrf.mxu0
      %v4579 = vadd.f32 %v4346, %v4578
      %4580 = vmatprep.mubr.bf16.mxu0 0
      %4581 = vmatmul.mubr.bf16.gmra.mxu0 %v4424
      %v4582 = vpop.f32.mrf.mxu0
      %v4583 = vadd.f32 %v4342, %v4582
      %v4584 = vpop.f32.mrf.mxu0
      %v4585 = vadd.f32 %v4346, %v4584
      %v4586 = vpop.f32.mrf.mxu0
      %v4587 = vadd.f32 %v4342, %v4586
      %v4588 = vpop.f32.mrf.mxu0
      %v4589 = vadd.f32 %v4346, %v4588
      %4590 = vmatprep.mubr.bf16.mxu0 0
      %4591 = vmatmul.mubr.bf16.gmra.mxu0 %v4427
      %v4592 = vpop.f32.mrf.mxu0
      %v4593 = vadd.f32 %v4342, %v4592
      %v4594 = vpop.f32.mrf.mxu0
      %v4595 = vadd.f32 %v4346, %v4594
      %v4596 = vpop.f32.mrf.mxu0
      %v4597 = vadd.f32 %v4342, %v4596
      %v4598 = vpop.f32.mrf.mxu0
      %v4599 = vadd.f32 %v4346, %v4598
      %4600 = vmatprep.mubr.bf16.mxu0 0
      %4601 = vmatmul.mubr.bf16.gmra.mxu0 %v4430
      %v4602 = vpop.f32.mrf.mxu0
      %v4603 = vadd.f32 %v4342, %v4602
      %v4604 = vpop.f32.mrf.mxu0
      %v4605 = vadd.f32 %v4346, %v4604
      %v4606 = vpop.f32.mrf.mxu0
      %v4607 = vadd.f32 %v4342, %v4606
      %v4608 = vpop.f32.mrf.mxu0
      %v4609 = vadd.f32 %v4346, %v4608
      %4610 = vmatprep.mubr.bf16.mxu0 0
      %4611 = vmatmul.mubr.bf16.gmra.mxu0 %v4433
      %v4612 = vpop.f32.mrf.mxu0
      %v4613 = vadd.f32 %v4342, %v4612
      %v4614 = vpop.f32.mrf.mxu0
      %v4615 = vadd.f32 %v4346, %v4614
      %v4616 = vpop.f32.mrf.mxu0
      %v4617 = vadd.f32 %v4342, %v4616
      %v4618 = vpop.f32.mrf.mxu0
      %v4619 = vadd.f32 %v4346, %v4618
      %4620 = vmatprep.mubr.bf16.mxu0 0
      %4621 = vmatmul.mubr.bf16.gmra.mxu0 %v4436
      %v4622 = vpop.f32.mrf.mxu0
      %v4623 = vadd.f32 %v4342, %v4622
      %v4624 = vpop.f32.mrf.mxu0
      %v4625 = vadd.f32 %v4346, %v4624
      %v4626 = vpop.f32.mrf.mxu0
      %v4627 = vadd.f32 %v4342, %v4626
      %v4628 = vpop.f32.mrf.mxu0
      %v4629 = vadd.f32 %v4346, %v4628
      %4630 = vdwg.mxu0
      %v4631 = vmul.f32 %v4473, 0.5
      %v4632 = vmul.f32 %v4475, 0.5
      %v4633 = vmul.f32 %v4477, 0.5
      %v4634 = vmul.f32 %v4479, 0.5
      %v4635 = vmul.f32 %v4483, 0.5
      %v4636 = vmul.f32 %v4485, 0.5
      %v4637 = vmul.f32 %v4487, 0.5
      %v4638 = vmul.f32 %v4489, 0.5
      %v4639 = vmul.f32 %v4493, 0.5
      %v4640 = vmul.f32 %v4495, 0.5
      %v4641 = vmul.f32 %v4497, 0.5
      %v4642 = vmul.f32 %v4499, 0.5
      %v4643 = vmul.f32 %v4503, 0.5
      %v4644 = vmul.f32 %v4505, 0.5
      %v4645 = vmul.f32 %v4507, 0.5
      %v4646 = vmul.f32 %v4509, 0.5
      %v4647 = vmul.f32 %v4513, 0.5
      %v4648 = vmul.f32 %v4515, 0.5
      %v4649 = vmul.f32 %v4517, 0.5
      %v4650 = vmul.f32 %v4519, 0.5
      %v4651 = vmul.f32 %v4523, 0.5
      %v4652 = vmul.f32 %v4525, 0.5
      %v4653 = vmul.f32 %v4527, 0.5
      %v4654 = vmul.f32 %v4529, 0.5
      %v4655 = vmul.f32 %v4533, 0.5
      %v4656 = vmul.f32 %v4535, 0.5
      %v4657 = vmul.f32 %v4537, 0.5
      %v4658 = vmul.f32 %v4539, 0.5
      %v4659 = vmul.f32 %v4543, 0.5
      %v4660 = vmul.f32 %v4545, 0.5
      %v4661 = vmul.f32 %v4547, 0.5
      %v4662 = vmul.f32 %v4549, 0.5
      %v4663 = vmul.f32 %v4553, 0.5
      %v4664 = vmul.f32 %v4555, 0.5
      %v4665 = vmul.f32 %v4557, 0.5
      %v4666 = vmul.f32 %v4559, 0.5
      %v4667 = vmul.f32 %v4563, 0.5
      %v4668 = vmul.f32 %v4565, 0.5
      %v4669 = vmul.f32 %v4567, 0.5
      %v4670 = vmul.f32 %v4569, 0.5
      %v4671 = vmul.f32 %v4573, 0.5
      %v4672 = vmul.f32 %v4575, 0.5
      %v4673 = vmul.f32 %v4577, 0.5
      %v4674 = vmul.f32 %v4579, 0.5
      %v4675 = vmul.f32 %v4583, 0.5
      %v4676 = vmul.f32 %v4585, 0.5
      %v4677 = vmul.f32 %v4587, 0.5
      %v4678 = vmul.f32 %v4589, 0.5
      %v4679 = vmul.f32 %v4593, 0.5
      %v4680 = vmul.f32 %v4595, 0.5
      %v4681 = vmul.f32 %v4597, 0.5
      %v4682 = vmul.f32 %v4599, 0.5
      %v4683 = vmul.f32 %v4603, 0.5
      %v4684 = vmul.f32 %v4605, 0.5
      %v4685 = vmul.f32 %v4607, 0.5
      %v4686 = vmul.f32 %v4609, 0.5
      %v4687 = vmul.f32 %v4613, 0.5
      %v4688 = vmul.f32 %v4615, 0.5
      %v4689 = vmul.f32 %v4617, 0.5
      %v4690 = vmul.f32 %v4619, 0.5
      %v4691 = vmul.f32 %v4623, 0.5
      %v4692 = vmul.f32 %v4625, 0.5
      %v4693 = vmul.f32 %v4627, 0.5
      %v4694 = vmul.f32 %v4629, 0.5
      %v4695 = vmul.f32 %v4473, 0.044715
      %v4696 = vmul.f32 %v4475, 0.044715
      %v4697 = vmul.f32 %v4477, 0.044715
      %v4698 = vmul.f32 %v4479, 0.044715
      %v4699 = vmul.f32 %v4483, 0.044715
      %v4700 = vmul.f32 %v4485, 0.044715
      %v4701 = vmul.f32 %v4487, 0.044715
      %v4702 = vmul.f32 %v4489, 0.044715
      %v4703 = vmul.f32 %v4493, 0.044715
      %v4704 = vmul.f32 %v4495, 0.044715
      %v4705 = vmul.f32 %v4497, 0.044715
      %v4706 = vmul.f32 %v4499, 0.044715
      %v4707 = vmul.f32 %v4503, 0.044715
      %v4708 = vmul.f32 %v4505, 0.044715
      %v4709 = vmul.f32 %v4507, 0.044715
      %v4710 = vmul.f32 %v4509, 0.044715
      %v4711 = vmul.f32 %v4513, 0.044715
      %v4712 = vmul.f32 %v4515, 0.044715
      %v4713 = vmul.f32 %v4517, 0.044715
      %v4714 = vmul.f32 %v4519, 0.044715
      %v4715 = vmul.f32 %v4523, 0.044715
      %v4716 = vmul.f32 %v4525, 0.044715
      %v4717 = vmul.f32 %v4527, 0.044715
      %v4718 = vmul.f32 %v4529, 0.044715
      %v4719 = vmul.f32 %v4533, 0.044715
      %v4720 = vmul.f32 %v4535, 0.044715
      %v4721 = vmul.f32 %v4537, 0.044715
      %v4722 = vmul.f32 %v4539, 0.044715
      %v4723 = vmul.f32 %v4543, 0.044715
      %v4724 = vmul.f32 %v4545, 0.044715
      %v4725 = vmul.f32 %v4547, 0.044715
      %v4726 = vmul.f32 %v4549, 0.044715
      %v4727 = vmul.f32 %v4553, 0.044715
      %v4728 = vmul.f32 %v4555, 0.044715
      %v4729 = vmul.f32 %v4557, 0.044715
      %v4730 = vmul.f32 %v4559, 0.044715
      %v4731 = vmul.f32 %v4563, 0.044715
      %v4732 = vmul.f32 %v4565, 0.044715
      %v4733 = vmul.f32 %v4567, 0.044715
      %v4734 = vmul.f32 %v4569, 0.044715
      %v4735 = vmul.f32 %v4573, 0.044715
      %v4736 = vmul.f32 %v4575, 0.044715
      %v4737 = vmul.f32 %v4577, 0.044715
      %v4738 = vmul.f32 %v4579, 0.044715
      %v4739 = vmul.f32 %v4583, 0.044715
      %v4740 = vmul.f32 %v4585, 0.044715
      %v4741 = vmul.f32 %v4587, 0.044715
      %v4742 = vmul.f32 %v4589, 0.044715
      %v4743 = vmul.f32 %v4593, 0.044715
      %v4744 = vmul.f32 %v4595, 0.044715
      %v4745 = vmul.f32 %v4597, 0.044715
      %v4746 = vmul.f32 %v4599, 0.044715
      %v4747 = vmul.f32 %v4603, 0.044715
      %v4748 = vmul.f32 %v4605, 0.044715
      %v4749 = vmul.f32 %v4607, 0.044715
      %v4750 = vmul.f32 %v4609, 0.044715
      %v4751 = vmul.f32 %v4613, 0.044715
      %v4752 = vmul.f32 %v4615, 0.044715
      %v4753 = vmul.f32 %v4617, 0.044715
      %v4754 = vmul.f32 %v4619, 0.044715
      %v4755 = vmul.f32 %v4623, 0.044715
      %v4756 = vmul.f32 %v4625, 0.044715
      %v4757 = vmul.f32 %v4627, 0.044715
      %v4758 = vmul.f32 %v4629, 0.044715
      %v4759 = vmul.f32 %v4695, %v4473
      %v4760 = vmul.f32 %v4696, %v4475
      %v4761 = vmul.f32 %v4697, %v4477
      %v4762 = vmul.f32 %v4698, %v4479
      %v4763 = vmul.f32 %v4699, %v4483
      %v4764 = vmul.f32 %v4700, %v4485
      %v4765 = vmul.f32 %v4701, %v4487
      %v4766 = vmul.f32 %v4702, %v4489
      %v4767 = vmul.f32 %v4703, %v4493
      %v4768 = vmul.f32 %v4704, %v4495
      %v4769 = vmul.f32 %v4705, %v4497
      %v4770 = vmul.f32 %v4706, %v4499
      %v4771 = vmul.f32 %v4707, %v4503
      %v4772 = vmul.f32 %v4708, %v4505
      %v4773 = vmul.f32 %v4709, %v4507
      %v4774 = vmul.f32 %v4710, %v4509
      %v4775 = vmul.f32 %v4711, %v4513
      %v4776 = vmul.f32 %v4712, %v4515
      %v4777 = vmul.f32 %v4713, %v4517
      %v4778 = vmul.f32 %v4714, %v4519
      %v4779 = vmul.f32 %v4715, %v4523
      %v4780 = vmul.f32 %v4716, %v4525
      %v4781 = vmul.f32 %v4717, %v4527
      %v4782 = vmul.f32 %v4718, %v4529
      %v4783 = vmul.f32 %v4719, %v4533
      %v4784 = vmul.f32 %v4720, %v4535
      %v4785 = vmul.f32 %v4721, %v4537
      %v4786 = vmul.f32 %v4722, %v4539
      %v4787 = vmul.f32 %v4723, %v4543
      %v4788 = vmul.f32 %v4724, %v4545
      %v4789 = vmul.f32 %v4725, %v4547
      %v4790 = vmul.f32 %v4726, %v4549
      %v4791 = vmul.f32 %v4727, %v4553
      %v4792 = vmul.f32 %v4728, %v4555
      %v4793 = vmul.f32 %v4729, %v4557
      %v4794 = vmul.f32 %v4730, %v4559
      %v4795 = vmul.f32 %v4731, %v4563
      %v4796 = vmul.f32 %v4732, %v4565
      %v4797 = vmul.f32 %v4733, %v4567
      %v4798 = vmul.f32 %v4734, %v4569
      %v4799 = vmul.f32 %v4735, %v4573
      %v4800 = vmul.f32 %v4736, %v4575
      %v4801 = vmul.f32 %v4737, %v4577
      %v4802 = vmul.f32 %v4738, %v4579
      %v4803 = vmul.f32 %v4739, %v4583
      %v4804 = vmul.f32 %v4740, %v4585
      %v4805 = vmul.f32 %v4741, %v4587
      %v4806 = vmul.f32 %v4742, %v4589
      %v4807 = vmul.f32 %v4743, %v4593
      %v4808 = vmul.f32 %v4744, %v4595
      %v4809 = vmul.f32 %v4745, %v4597
      %v4810 = vmul.f32 %v4746, %v4599
      %v4811 = vmul.f32 %v4747, %v4603
      %v4812 = vmul.f32 %v4748, %v4605
      %v4813 = vmul.f32 %v4749, %v4607
      %v4814 = vmul.f32 %v4750, %v4609
      %v4815 = vmul.f32 %v4751, %v4613
      %v4816 = vmul.f32 %v4752, %v4615
      %v4817 = vmul.f32 %v4753, %v4617
      %v4818 = vmul.f32 %v4754, %v4619
      %v4819 = vmul.f32 %v4755, %v4623
      %v4820 = vmul.f32 %v4756, %v4625
      %v4821 = vmul.f32 %v4757, %v4627
      %v4822 = vmul.f32 %v4758, %v4629
      %v4823 = vmul.f32 %v4759, %v4473
      %v4824 = vmul.f32 %v4760, %v4475
      %v4825 = vmul.f32 %v4761, %v4477
      %v4826 = vmul.f32 %v4762, %v4479
      %v4827 = vmul.f32 %v4763, %v4483
      %v4828 = vmul.f32 %v4764, %v4485
      %v4829 = vmul.f32 %v4765, %v4487
      %v4830 = vmul.f32 %v4766, %v4489
      %v4831 = vmul.f32 %v4767, %v4493
      %v4832 = vmul.f32 %v4768, %v4495
      %v4833 = vmul.f32 %v4769, %v4497
      %v4834 = vmul.f32 %v4770, %v4499
      %v4835 = vmul.f32 %v4771, %v4503
      %v4836 = vmul.f32 %v4772, %v4505
      %v4837 = vmul.f32 %v4773, %v4507
      %v4838 = vmul.f32 %v4774, %v4509
      %v4839 = vmul.f32 %v4775, %v4513
      %v4840 = vmul.f32 %v4776, %v4515
      %v4841 = vmul.f32 %v4777, %v4517
      %v4842 = vmul.f32 %v4778, %v4519
      %v4843 = vmul.f32 %v4779, %v4523
      %v4844 = vmul.f32 %v4780, %v4525
      %v4845 = vmul.f32 %v4781, %v4527
      %v4846 = vmul.f32 %v4782, %v4529
      %v4847 = vmul.f32 %v4783, %v4533
      %v4848 = vmul.f32 %v4784, %v4535
      %v4849 = vmul.f32 %v4785, %v4537
      %v4850 = vmul.f32 %v4786, %v4539
      %v4851 = vmul.f32 %v4787, %v4543
      %v4852 = vmul.f32 %v4788, %v4545
      %v4853 = vmul.f32 %v4789, %v4547
      %v4854 = vmul.f32 %v4790, %v4549
      %v4855 = vmul.f32 %v4791, %v4553
      %v4856 = vmul.f32 %v4792, %v4555
      %v4857 = vmul.f32 %v4793, %v4557
      %v4858 = vmul.f32 %v4794, %v4559
      %v4859 = vmul.f32 %v4795, %v4563
      %v4860 = vmul.f32 %v4796, %v4565
      %v4861 = vmul.f32 %v4797, %v4567
      %v4862 = vmul.f32 %v4798, %v4569
      %v4863 = vmul.f32 %v4799, %v4573
      %v4864 = vmul.f32 %v4800, %v4575
      %v4865 = vmul.f32 %v4801, %v4577
      %v4866 = vmul.f32 %v4802, %v4579
      %v4867 = vmul.f32 %v4803, %v4583
      %v4868 = vmul.f32 %v4804, %v4585
      %v4869 = vmul.f32 %v4805, %v4587
      %v4870 = vmul.f32 %v4806, %v4589
      %v4871 = vmul.f32 %v4807, %v4593
      %v4872 = vmul.f32 %v4808, %v4595
      %v4873 = vmul.f32 %v4809, %v4597
      %v4874 = vmul.f32 %v4810, %v4599
      %v4875 = vmul.f32 %v4811, %v4603
      %v4876 = vmul.f32 %v4812, %v4605
      %v4877 = vmul.f32 %v4813, %v4607
      %v4878 = vmul.f32 %v4814, %v4609
      %v4879 = vmul.f32 %v4815, %v4613
      %v4880 = vmul.f32 %v4816, %v4615
      %v4881 = vmul.f32 %v4817, %v4617
      %v4882 = vmul.f32 %v4818, %v4619
      %v4883 = vmul.f32 %v4819, %v4623
      %v4884 = vmul.f32 %v4820, %v4625
      %v4885 = vmul.f32 %v4821, %v4627
      %v4886 = vmul.f32 %v4822, %v4629
      %v4887 = vadd.f32 %v4473, %v4823
      %v4888 = vadd.f32 %v4475, %v4824
      %v4889 = vadd.f32 %v4477, %v4825
      %v4890 = vadd.f32 %v4479, %v4826
      %v4891 = vadd.f32 %v4483, %v4827
      %v4892 = vadd.f32 %v4485, %v4828
      %v4893 = vadd.f32 %v4487, %v4829
      %v4894 = vadd.f32 %v4489, %v4830
      %v4895 = vadd.f32 %v4493, %v4831
      %v4896 = vadd.f32 %v4495, %v4832
      %v4897 = vadd.f32 %v4497, %v4833
      %v4898 = vadd.f32 %v4499, %v4834
      %v4899 = vadd.f32 %v4503, %v4835
      %v4900 = vadd.f32 %v4505, %v4836
      %v4901 = vadd.f32 %v4507, %v4837
      %v4902 = vadd.f32 %v4509, %v4838
      %v4903 = vadd.f32 %v4513, %v4839
      %v4904 = vadd.f32 %v4515, %v4840
      %v4905 = vadd.f32 %v4517, %v4841
      %v4906 = vadd.f32 %v4519, %v4842
      %v4907 = vadd.f32 %v4523, %v4843
      %v4908 = vadd.f32 %v4525, %v4844
      %v4909 = vadd.f32 %v4527, %v4845
      %v4910 = vadd.f32 %v4529, %v4846
      %v4911 = vadd.f32 %v4533, %v4847
      %v4912 = vadd.f32 %v4535, %v4848
      %v4913 = vadd.f32 %v4537, %v4849
      %v4914 = vadd.f32 %v4539, %v4850
      %v4915 = vadd.f32 %v4543, %v4851
      %v4916 = vadd.f32 %v4545, %v4852
      %v4917 = vadd.f32 %v4547, %v4853
      %v4918 = vadd.f32 %v4549, %v4854
      %v4919 = vadd.f32 %v4553, %v4855
      %v4920 = vadd.f32 %v4555, %v4856
      %v4921 = vadd.f32 %v4557, %v4857
      %v4922 = vadd.f32 %v4559, %v4858
      %v4923 = vadd.f32 %v4563, %v4859
      %v4924 = vadd.f32 %v4565, %v4860
      %v4925 = vadd.f32 %v4567, %v4861
      %v4926 = vadd.f32 %v4569, %v4862
      %v4927 = vadd.f32 %v4573, %v4863
      %v4928 = vadd.f32 %v4575, %v4864
      %v4929 = vadd.f32 %v4577, %v4865
      %v4930 = vadd.f32 %v4579, %v4866
      %v4931 = vadd.f32 %v4583, %v4867
      %v4932 = vadd.f32 %v4585, %v4868
      %v4933 = vadd.f32 %v4587, %v4869
      %v4934 = vadd.f32 %v4589, %v4870
      %v4935 = vadd.f32 %v4593, %v4871
      %v4936 = vadd.f32 %v4595, %v4872
      %v4937 = vadd.f32 %v4597, %v4873
      %v4938 = vadd.f32 %v4599, %v4874
      %v4939 = vadd.f32 %v4603, %v4875
      %v4940 = vadd.f32 %v4605, %v4876
      %v4941 = vadd.f32 %v4607, %v4877
      %v4942 = vadd.f32 %v4609, %v4878
      %v4943 = vadd.f32 %v4613, %v4879
      %v4944 = vadd.f32 %v4615, %v4880
      %v4945 = vadd.f32 %v4617, %v4881
      %v4946 = vadd.f32 %v4619, %v4882
      %v4947 = vadd.f32 %v4623, %v4883
      %v4948 = vadd.f32 %v4625, %v4884
      %v4949 = vadd.f32 %v4627, %v4885
      %v4950 = vadd.f32 %v4629, %v4886
      %v4951 = vmul.f32 %v4887, 0.7978846
      %v4952 = vmul.f32 %v4888, 0.7978846
      %v4953 = vmul.f32 %v4889, 0.7978846
      %v4954 = vmul.f32 %v4890, 0.7978846
      %v4955 = vmul.f32 %v4891, 0.7978846
      %v4956 = vmul.f32 %v4892, 0.7978846
      %v4957 = vmul.f32 %v4893, 0.7978846
      %v4958 = vmul.f32 %v4894, 0.7978846
      %v4959 = vmul.f32 %v4895, 0.7978846
      %v4960 = vmul.f32 %v4896, 0.7978846
      %v4961 = vmul.f32 %v4897, 0.7978846
      %v4962 = vmul.f32 %v4898, 0.7978846
      %v4963 = vmul.f32 %v4899, 0.7978846
      %v4964 = vmul.f32 %v4900, 0.7978846
      %v4965 = vmul.f32 %v4901, 0.7978846
      %v4966 = vmul.f32 %v4902, 0.7978846
      %v4967 = vmul.f32 %v4903, 0.7978846
      %v4968 = vmul.f32 %v4904, 0.7978846
      %v4969 = vmul.f32 %v4905, 0.7978846
      %v4970 = vmul.f32 %v4906, 0.7978846
      %v4971 = vmul.f32 %v4907, 0.7978846
      %v4972 = vmul.f32 %v4908, 0.7978846
      %v4973 = vmul.f32 %v4909, 0.7978846
      %v4974 = vmul.f32 %v4910, 0.7978846
      %v4975 = vmul.f32 %v4911, 0.7978846
      %v4976 = vmul.f32 %v4912, 0.7978846
      %v4977 = vmul.f32 %v4913, 0.7978846
      %v4978 = vmul.f32 %v4914, 0.7978846
      %v4979 = vmul.f32 %v4915, 0.7978846
      %v4980 = vmul.f32 %v4916, 0.7978846
      %v4981 = vmul.f32 %v4917, 0.7978846
      %v4982 = vmul.f32 %v4918, 0.7978846
      %v4983 = vmul.f32 %v4919, 0.7978846
      %v4984 = vmul.f32 %v4920, 0.7978846
      %v4985 = vmul.f32 %v4921, 0.7978846
      %v4986 = vmul.f32 %v4922, 0.7978846
      %v4987 = vmul.f32 %v4923, 0.7978846
      %v4988 = vmul.f32 %v4924, 0.7978846
      %v4989 = vmul.f32 %v4925, 0.7978846
      %v4990 = vmul.f32 %v4926, 0.7978846
      %v4991 = vmul.f32 %v4927, 0.7978846
      %v4992 = vmul.f32 %v4928, 0.7978846
      %v4993 = vmul.f32 %v4929, 0.7978846
      %v4994 = vmul.f32 %v4930, 0.7978846
      %v4995 = vmul.f32 %v4931, 0.7978846
      %v4996 = vmul.f32 %v4932, 0.7978846
      %v4997 = vmul.f32 %v4933, 0.7978846
      %v4998 = vmul.f32 %v4934, 0.7978846
      %v4999 = vmul.f32 %v4935, 0.7978846
      %v5000 = vmul.f32 %v4936, 0.7978846
      %v5001 = vmul.f32 %v4937, 0.7978846
      %v5002 = vmul.f32 %v4938, 0.7978846
      %v5003 = vmul.f32 %v4939, 0.7978846
      %v5004 = vmul.f32 %v4940, 0.7978846
      %v5005 = vmul.f32 %v4941, 0.7978846
      %v5006 = vmul.f32 %v4942, 0.7978846
      %v5007 = vmul.f32 %v4943, 0.7978846
      %v5008 = vmul.f32 %v4944, 0.7978846
      %v5009 = vmul.f32 %v4945, 0.7978846
      %v5010 = vmul.f32 %v4946, 0.7978846
      %v5011 = vmul.f32 %v4947, 0.7978846
      %v5012 = vmul.f32 %v4948, 0.7978846
      %v5013 = vmul.f32 %v4949, 0.7978846
      %v5014 = vmul.f32 %v4950, 0.7978846
      %v5015 = vtanh.pop %v4951
      %v5016 = vtanh.pop %v4952
      %v5017 = vtanh.pop %v4953
      %v5018 = vtanh.pop %v4954
      %v5019 = vtanh.pop %v4955
      %v5020 = vtanh.pop %v4956
      %v5021 = vtanh.pop %v4957
      %v5022 = vtanh.pop %v4958
      %v5023 = vtanh.pop %v4959
      %v5024 = vtanh.pop %v4960
      %v5025 = vtanh.pop %v4961
      %v5026 = vtanh.pop %v4962
      %v5027 = vtanh.pop %v4963
      %v5028 = vtanh.pop %v4964
      %v5029 = vtanh.pop %v4965
      %v5030 = vtanh.pop %v4966
      %v5031 = vtanh.pop %v4967
      %v5032 = vtanh.pop %v4968
      %v5033 = vtanh.pop %v4969
      %v5034 = vtanh.pop %v4970
      %v5035 = vtanh.pop %v4971
      %v5036 = vtanh.pop %v4972
      %v5037 = vtanh.pop %v4973
      %v5038 = vtanh.pop %v4974
      %v5039 = vtanh.pop %v4975
      %v5040 = vtanh.pop %v4976
      %v5041 = vtanh.pop %v4977
      %v5042 = vtanh.pop %v4978
      %v5043 = vtanh.pop %v4979
      %v5044 = vtanh.pop %v4980
      %v5045 = vtanh.pop %v4981
      %v5046 = vtanh.pop %v4982
      %v5047 = vtanh.pop %v4983
      %v5048 = vtanh.pop %v4984
      %v5049 = vtanh.pop %v4985
      %v5050 = vtanh.pop %v4986
      %v5051 = vtanh.pop %v4987
      %v5052 = vtanh.pop %v4988
      %v5053 = vtanh.pop %v4989
      %v5054 = vtanh.pop %v4990
      %v5055 = vtanh.pop %v4991
      %v5056 = vtanh.pop %v4992
      %v5057 = vtanh.pop %v4993
      %v5058 = vtanh.pop %v4994
      %v5059 = vtanh.pop %v4995
      %v5060 = vtanh.pop %v4996
      %v5061 = vtanh.pop %v4997
      %v5062 = vtanh.pop %v4998
      %v5063 = vtanh.pop %v4999
      %v5064 = vtanh.pop %v5000
      %v5065 = vtanh.pop %v5001
      %v5066 = vtanh.pop %v5002
      %v5067 = vtanh.pop %v5003
      %v5068 = vtanh.pop %v5004
      %v5069 = vtanh.pop %v5005
      %v5070 = vtanh.pop %v5006
      %v5071 = vtanh.pop %v5007
      %v5072 = vtanh.pop %v5008
      %v5073 = vtanh.pop %v5009
      %v5074 = vtanh.pop %v5010
      %v5075 = vtanh.pop %v5011
      %v5076 = vtanh.pop %v5012
      %v5077 = vtanh.pop %v5013
      %v5078 = vtanh.pop %v5014
      %v5079 = vadd.f32 %v5015, 1.0
      %v5080 = vadd.f32 %v5016, 1.0
      %v5081 = vadd.f32 %v5017, 1.0
      %v5082 = vadd.f32 %v5018, 1.0
      %v5083 = vadd.f32 %v5019, 1.0
      %v5084 = vadd.f32 %v5020, 1.0
      %v5085 = vadd.f32 %v5021, 1.0
      %v5086 = vadd.f32 %v5022, 1.0
      %v5087 = vadd.f32 %v5023, 1.0
      %v5088 = vadd.f32 %v5024, 1.0
      %v5089 = vadd.f32 %v5025, 1.0
      %v5090 = vadd.f32 %v5026, 1.0
      %v5091 = vadd.f32 %v5027, 1.0
      %v5092 = vadd.f32 %v5028, 1.0
      %v5093 = vadd.f32 %v5029, 1.0
      %v5094 = vadd.f32 %v5030, 1.0
      %v5095 = vadd.f32 %v5031, 1.0
      %v5096 = vadd.f32 %v5032, 1.0
      %v5097 = vadd.f32 %v5033, 1.0
      %v5098 = vadd.f32 %v5034, 1.0
      %v5099 = vadd.f32 %v5035, 1.0
      %v5100 = vadd.f32 %v5036, 1.0
      %v5101 = vadd.f32 %v5037, 1.0
      %v5102 = vadd.f32 %v5038, 1.0
      %v5103 = vadd.f32 %v5039, 1.0
      %v5104 = vadd.f32 %v5040, 1.0
      %v5105 = vadd.f32 %v5041, 1.0
      %v5106 = vadd.f32 %v5042, 1.0
      %v5107 = vadd.f32 %v5043, 1.0
      %v5108 = vadd.f32 %v5044, 1.0
      %v5109 = vadd.f32 %v5045, 1.0
      %v5110 = vadd.f32 %v5046, 1.0
      %v5111 = vadd.f32 %v5047, 1.0
      %v5112 = vadd.f32 %v5048, 1.0
      %v5113 = vadd.f32 %v5049, 1.0
      %v5114 = vadd.f32 %v5050, 1.0
      %v5115 = vadd.f32 %v5051, 1.0
      %v5116 = vadd.f32 %v5052, 1.0
      %v5117 = vadd.f32 %v5053, 1.0
      %v5118 = vadd.f32 %v5054, 1.0
      %v5119 = vadd.f32 %v5055, 1.0
      %v5120 = vadd.f32 %v5056, 1.0
      %v5121 = vadd.f32 %v5057, 1.0
      %v5122 = vadd.f32 %v5058, 1.0
      %v5123 = vadd.f32 %v5059, 1.0
      %v5124 = vadd.f32 %v5060, 1.0
      %v5125 = vadd.f32 %v5061, 1.0
      %v5126 = vadd.f32 %v5062, 1.0
      %v5127 = vadd.f32 %v5063, 1.0
      %v5128 = vadd.f32 %v5064, 1.0
      %v5129 = vadd.f32 %v5065, 1.0
      %v5130 = vadd.f32 %v5066, 1.0
      %v5131 = vadd.f32 %v5067, 1.0
      %v5132 = vadd.f32 %v5068, 1.0
      %v5133 = vadd.f32 %v5069, 1.0
      %v5134 = vadd.f32 %v5070, 1.0
      %v5135 = vadd.f32 %v5071, 1.0
      %v5136 = vadd.f32 %v5072, 1.0
      %v5137 = vadd.f32 %v5073, 1.0
      %v5138 = vadd.f32 %v5074, 1.0
      %v5139 = vadd.f32 %v5075, 1.0
      %v5140 = vadd.f32 %v5076, 1.0
      %v5141 = vadd.f32 %v5077, 1.0
      %v5142 = vadd.f32 %v5078, 1.0
      %v5143 = vmul.f32 %v4631, %v5079
      %v5144 = vmul.f32 %v4632, %v5080
      %v5145 = vmul.f32 %v4633, %v5081
      %v5146 = vmul.f32 %v4634, %v5082
      %v5147 = vmul.f32 %v4635, %v5083
      %v5148 = vmul.f32 %v4636, %v5084
      %v5149 = vmul.f32 %v4637, %v5085
      %v5150 = vmul.f32 %v4638, %v5086
      %v5151 = vmul.f32 %v4639, %v5087
      %v5152 = vmul.f32 %v4640, %v5088
      %v5153 = vmul.f32 %v4641, %v5089
      %v5154 = vmul.f32 %v4642, %v5090
      %v5155 = vmul.f32 %v4643, %v5091
      %v5156 = vmul.f32 %v4644, %v5092
      %v5157 = vmul.f32 %v4645, %v5093
      %v5158 = vmul.f32 %v4646, %v5094
      %v5159 = vmul.f32 %v4647, %v5095
      %v5160 = vmul.f32 %v4648, %v5096
      %v5161 = vmul.f32 %v4649, %v5097
      %v5162 = vmul.f32 %v4650, %v5098
      %v5163 = vmul.f32 %v4651, %v5099
      %v5164 = vmul.f32 %v4652, %v5100
      %v5165 = vmul.f32 %v4653, %v5101
      %v5166 = vmul.f32 %v4654, %v5102
      %v5167 = vmul.f32 %v4655, %v5103
      %v5168 = vmul.f32 %v4656, %v5104
      %v5169 = vmul.f32 %v4657, %v5105
      %v5170 = vmul.f32 %v4658, %v5106
      %v5171 = vmul.f32 %v4659, %v5107
      %v5172 = vmul.f32 %v4660, %v5108
      %v5173 = vmul.f32 %v4661, %v5109
      %v5174 = vmul.f32 %v4662, %v5110
      %v5175 = vmul.f32 %v4663, %v5111
      %v5176 = vmul.f32 %v4664, %v5112
      %v5177 = vmul.f32 %v4665, %v5113
      %v5178 = vmul.f32 %v4666, %v5114
      %v5179 = vmul.f32 %v4667, %v5115
      %v5180 = vmul.f32 %v4668, %v5116
      %v5181 = vmul.f32 %v4669, %v5117
      %v5182 = vmul.f32 %v4670, %v5118
      %v5183 = vmul.f32 %v4671, %v5119
      %v5184 = vmul.f32 %v4672, %v5120
      %v5185 = vmul.f32 %v4673, %v5121
      %v5186 = vmul.f32 %v4674, %v5122
      %v5187 = vmul.f32 %v4675, %v5123
      %v5188 = vmul.f32 %v4676, %v5124
      %v5189 = vmul.f32 %v4677, %v5125
      %v5190 = vmul.f32 %v4678, %v5126
      %v5191 = vmul.f32 %v4679, %v5127
      %v5192 = vmul.f32 %v4680, %v5128
      %v5193 = vmul.f32 %v4681, %v5129
      %v5194 = vmul.f32 %v4682, %v5130
      %v5195 = vmul.f32 %v4683, %v5131
      %v5196 = vmul.f32 %v4684, %v5132
      %v5197 = vmul.f32 %v4685, %v5133
      %v5198 = vmul.f32 %v4686, %v5134
      %v5199 = vmul.f32 %v4687, %v5135
      %v5200 = vmul.f32 %v4688, %v5136
      %v5201 = vmul.f32 %v4689, %v5137
      %v5202 = vmul.f32 %v4690, %v5138
      %v5203 = vmul.f32 %v4691, %v5139
      %v5204 = vmul.f32 %v4692, %v5140
      %v5205 = vmul.f32 %v4693, %v5141
      %v5206 = vmul.f32 %v4694, %v5142
      %v5207 = vpack.c.bf16 %v5145, %v5143
      %v5208 = vpack.c.bf16 %v5146, %v5144
      %v5209 = vpack.c.bf16 %v5149, %v5147
      %v5210 = vpack.c.bf16 %v5150, %v5148
      %v5211 = vpack.c.bf16 %v5153, %v5151
      %v5212 = vpack.c.bf16 %v5154, %v5152
      %v5213 = vpack.c.bf16 %v5157, %v5155
      %v5214 = vpack.c.bf16 %v5158, %v5156
      %v5215 = vpack.c.bf16 %v5161, %v5159
      %v5216 = vpack.c.bf16 %v5162, %v5160
      %v5217 = vpack.c.bf16 %v5165, %v5163
      %v5218 = vpack.c.bf16 %v5166, %v5164
      %v5219 = vpack.c.bf16 %v5169, %v5167
      %v5220 = vpack.c.bf16 %v5170, %v5168
      %v5221 = vpack.c.bf16 %v5173, %v5171
      %v5222 = vpack.c.bf16 %v5174, %v5172
      %v5223 = vpack.c.bf16 %v5177, %v5175
      %v5224 = vpack.c.bf16 %v5178, %v5176
      %v5225 = vpack.c.bf16 %v5181, %v5179
      %v5226 = vpack.c.bf16 %v5182, %v5180
      %v5227 = vpack.c.bf16 %v5185, %v5183
      %v5228 = vpack.c.bf16 %v5186, %v5184
      %v5229 = vpack.c.bf16 %v5189, %v5187
      %v5230 = vpack.c.bf16 %v5190, %v5188
      %v5231 = vpack.c.bf16 %v5193, %v5191
      %v5232 = vpack.c.bf16 %v5194, %v5192
      %v5233 = vpack.c.bf16 %v5197, %v5195
      %v5234 = vpack.c.bf16 %v5198, %v5196
      %v5235 = vpack.c.bf16 %v5201, %v5199
      %v5236 = vpack.c.bf16 %v5202, %v5200
      %v5237 = vpack.c.bf16 %v5205, %v5203
      %v5238 = vpack.c.bf16 %v5206, %v5204
      %v5239 = vld [vmem:[%s6] sm:$0xff]
      %v5240 = vld [vmem:[%s6 + $0x8] sm:$0xff]
      %v5241 = vld [vmem:[%s6 + $0x10] sm:$0xff]
      %v5242 = vld [vmem:[%s6 + $0x18] sm:$0xff]
      %v5243 = vld [vmem:[%s6 + $0x20] sm:$0xff]
      %v5244 = vld [vmem:[%s6 + $0x28] sm:$0xff]
      %v5245 = vld [vmem:[%s6 + $0x30] sm:$0xff]
      %v5246 = vld [vmem:[%s6 + $0x38] sm:$0xff]
      %v5247 = vld [vmem:[%s6 + $0x40] sm:$0xff]
      %v5248 = vld [vmem:[%s6 + $0x48] sm:$0xff]
      %v5249 = vld [vmem:[%s6 + $0x50] sm:$0xff]
      %v5250 = vld [vmem:[%s6 + $0x58] sm:$0xff]
      %v5251 = vld [vmem:[%s6 + $0x60] sm:$0xff]
      %v5252 = vld [vmem:[%s6 + $0x68] sm:$0xff]
      %v5253 = vld [vmem:[%s6 + $0x70] sm:$0xff]
      %v5254 = vld [vmem:[%s6 + $0x78] sm:$0xff]
      %v5255 = vld [vmem:[%s6 + $0x80] sm:$0xff]
      %v5256 = vld [vmem:[%s6 + $0x88] sm:$0xff]
      %v5257 = vld [vmem:[%s6 + $0x90] sm:$0xff]
      %v5258 = vld [vmem:[%s6 + $0x98] sm:$0xff]
      %v5259 = vld [vmem:[%s6 + $0xa0] sm:$0xff]
      %v5260 = vld [vmem:[%s6 + $0xa8] sm:$0xff]
      %v5261 = vld [vmem:[%s6 + $0xb0] sm:$0xff]
      %v5262 = vld [vmem:[%s6 + $0xb8] sm:$0xff]
      %v5263 = vld [vmem:[%s6 + $0xc0] sm:$0xff]
      %v5264 = vld [vmem:[%s6 + $0xc8] sm:$0xff]
      %v5265 = vld [vmem:[%s6 + $0xd0] sm:$0xff]
      %v5266 = vld [vmem:[%s6 + $0xd8] sm:$0xff]
      %v5267 = vld [vmem:[%s6 + $0xe0] sm:$0xff]
      %v5268 = vld [vmem:[%s6 + $0xe8] sm:$0xff]
      %v5269 = vld [vmem:[%s6 + $0xf0] sm:$0xff]
      %v5270 = vld [vmem:[%s6 + $0xf8] sm:$0xff]
      %v5271 = vld [vmem:[%s7] sm:$0x3]
      %v5273 = vlaneseq
      %v5274 = vshrl.u32 %v5273, 7
      %v5275 = vsub.s32 0, %v5274
      %v5276 = vrot.slane %v5271, %v5275
      %v5277 = vlaneseq
      %v5278 = vshrl.u32 %v5277, 7
      %v5279 = vsub.s32 1, %v5278
      %v5280 = vrot.slane %v5271, %v5279
      %v5315 = vunpack.c.l.b16 %v5239
      %v5316 = vunpack.c.h.b16 %v5239
      %v5317 = vunpack.c.l.b16 %v5240
      %v5318 = vunpack.c.h.b16 %v5240
      %v5319 = vunpack.c.l.b16 %v5241
      %v5320 = vunpack.c.h.b16 %v5241
      %v5321 = vunpack.c.l.b16 %v5242
      %v5322 = vunpack.c.h.b16 %v5242
      %v5323 = vunpack.c.l.b16 %v5243
      %v5324 = vunpack.c.h.b16 %v5243
      %v5325 = vunpack.c.l.b16 %v5244
      %v5326 = vunpack.c.h.b16 %v5244
      %v5327 = vunpack.c.l.b16 %v5245
      %v5328 = vunpack.c.h.b16 %v5245
      %v5329 = vunpack.c.l.b16 %v5246
      %v5330 = vunpack.c.h.b16 %v5246
      %v5331 = vunpack.c.l.b16 %v5247
      %v5332 = vunpack.c.h.b16 %v5247
      %v5333 = vunpack.c.l.b16 %v5248
      %v5334 = vunpack.c.h.b16 %v5248
      %v5335 = vunpack.c.l.b16 %v5249
      %v5336 = vunpack.c.h.b16 %v5249
      %v5337 = vunpack.c.l.b16 %v5250
      %v5338 = vunpack.c.h.b16 %v5250
      %v5339 = vunpack.c.l.b16 %v5251
      %v5340 = vunpack.c.h.b16 %v5251
      %v5341 = vunpack.c.l.b16 %v5252
      %v5342 = vunpack.c.h.b16 %v5252
      %v5343 = vunpack.c.l.b16 %v5253
      %v5344 = vunpack.c.h.b16 %v5253
      %v5345 = vunpack.c.l.b16 %v5254
      %v5346 = vunpack.c.h.b16 %v5254
      %v5347 = vunpack.c.l.b16 %v5255
      %v5348 = vunpack.c.h.b16 %v5255
      %v5349 = vunpack.c.l.b16 %v5256
      %v5350 = vunpack.c.h.b16 %v5256
      %v5351 = vunpack.c.l.b16 %v5257
      %v5352 = vunpack.c.h.b16 %v5257
      %v5353 = vunpack.c.l.b16 %v5258
      %v5354 = vunpack.c.h.b16 %v5258
      %v5355 = vunpack.c.l.b16 %v5259
      %v5356 = vunpack.c.h.b16 %v5259
      %v5357 = vunpack.c.l.b16 %v5260
      %v5358 = vunpack.c.h.b16 %v5260
      %v5359 = vunpack.c.l.b16 %v5261
      %v5360 = vunpack.c.h.b16 %v5261
      %v5361 = vunpack.c.l.b16 %v5262
      %v5362 = vunpack.c.h.b16 %v5262
      %v5363 = vunpack.c.l.b16 %v5263
      %v5364 = vunpack.c.h.b16 %v5263
      %v5365 = vunpack.c.l.b16 %v5264
      %v5366 = vunpack.c.h.b16 %v5264
      %v5367 = vunpack.c.l.b16 %v5265
      %v5368 = vunpack.c.h.b16 %v5265
      %v5369 = vunpack.c.l.b16 %v5266
      %v5370 = vunpack.c.h.b16 %v5266
      %v5371 = vunpack.c.l.b16 %v5267
      %v5372 = vunpack.c.h.b16 %v5267
      %v5373 = vunpack.c.l.b16 %v5268
      %v5374 = vunpack.c.h.b16 %v5268
      %v5375 = vunpack.c.l.b16 %v5269
      %v5376 = vunpack.c.h.b16 %v5269
      %v5377 = vunpack.c.l.b16 %v5270
      %v5378 = vunpack.c.h.b16 %v5270
      %v5379 = vpack.c.b16 %v5317, %v5315
      %v5380 = vpack.c.b16 %v5318, %v5316
      %v5381 = vpack.c.b16 %v5321, %v5319
      %v5382 = vpack.c.b16 %v5322, %v5320
      %v5383 = vpack.c.b16 %v5325, %v5323
      %v5384 = vpack.c.b16 %v5326, %v5324
      %v5385 = vpack.c.b16 %v5329, %v5327
      %v5386 = vpack.c.b16 %v5330, %v5328
      %v5387 = vpack.c.b16 %v5333, %v5331
      %v5388 = vpack.c.b16 %v5334, %v5332
      %v5389 = vpack.c.b16 %v5337, %v5335
      %v5390 = vpack.c.b16 %v5338, %v5336
      %v5391 = vpack.c.b16 %v5341, %v5339
      %v5392 = vpack.c.b16 %v5342, %v5340
      %v5393 = vpack.c.b16 %v5345, %v5343
      %v5394 = vpack.c.b16 %v5346, %v5344
      %v5395 = vpack.c.b16 %v5349, %v5347
      %v5396 = vpack.c.b16 %v5350, %v5348
      %v5397 = vpack.c.b16 %v5353, %v5351
      %v5398 = vpack.c.b16 %v5354, %v5352
      %v5399 = vpack.c.b16 %v5357, %v5355
      %v5400 = vpack.c.b16 %v5358, %v5356
      %v5401 = vpack.c.b16 %v5361, %v5359
      %v5402 = vpack.c.b16 %v5362, %v5360
      %v5403 = vpack.c.b16 %v5365, %v5363
      %v5404 = vpack.c.b16 %v5366, %v5364
      %v5405 = vpack.c.b16 %v5369, %v5367
      %v5406 = vpack.c.b16 %v5370, %v5368
      %v5407 = vpack.c.b16 %v5373, %v5371
      %v5408 = vpack.c.b16 %v5374, %v5372
      %v5409 = vpack.c.b16 %v5377, %v5375
      %v5410 = vpack.c.b16 %v5378, %v5376
      %5443 = vmatprep.subr.bf16.mxu0 %v5394
      %5444 = vmatpush1.bf16.msra.mxu0 %v5393
      %5445 = vmatprep.subr.bf16.mxu0 %v5392
      %5446 = vmatpush1.bf16.msra.mxu0 %v5391
      %5447 = vmatprep.subr.bf16.mxu0 %v5390
      %5448 = vmatpush1.bf16.msra.mxu0 %v5389
      %5449 = vmatprep.subr.bf16.mxu0 %v5388
      %5450 = vmatpush1.bf16.msra.mxu0 %v5387
      %5451 = vmatprep.subr.bf16.mxu0 %v5386
      %5452 = vmatpush1.bf16.msra.mxu0 %v5385
      %5453 = vmatprep.subr.bf16.mxu0 %v5384
      %5454 = vmatpush1.bf16.msra.mxu0 %v5383
      %5455 = vmatprep.subr.bf16.mxu0 %v5382
      %5456 = vmatpush1.bf16.msra.mxu0 %v5381
      %5457 = vmatprep.subr.bf16.mxu0 %v5380
      %5458 = vmatpush1.bf16.msra.mxu0 %v5379
      %5459 = vmatprep.subr.bf16.mxu0 %v5410
      %5460 = vmatpush2.bf16.msra.mxu0 %v5409
      %5461 = vmatprep.subr.bf16.mxu0 %v5408
      %5462 = vmatpush2.bf16.msra.mxu0 %v5407
      %5463 = vmatprep.subr.bf16.mxu0 %v5406
      %5464 = vmatpush2.bf16.msra.mxu0 %v5405
      %5465 = vmatprep.subr.bf16.mxu0 %v5404
      %5466 = vmatpush2.bf16.msra.mxu0 %v5403
      %5467 = vmatprep.subr.bf16.mxu0 %v5402
      %5468 = vmatpush2.bf16.msra.mxu0 %v5401
      %5469 = vmatprep.subr.bf16.mxu0 %v5400
      %5470 = vmatpush2.bf16.msra.mxu0 %v5399
      %5471 = vmatprep.subr.bf16.mxu0 %v5398
      %5472 = vmatpush2.bf16.msra.mxu0 %v5397
      %5473 = vmatprep.subr.bf16.mxu0 %v5396
      %5474 = vmatpush2.bf16.msra.mxu0 %v5395
      %5475 = vmatprep.mubr.bf16.mxu0 %v5208
      %5476 = vmatmul.mubr.bf16.gmra.mxu0 %v5207
      %v5477 = vpop.f32.mrf.mxu0
      %v5478 = vadd.f32 %v5276, %v5477
      %v5479 = vpop.f32.mrf.mxu0
      %v5480 = vadd.f32 %v5280, %v5479
      %v5481 = vpop.f32.mrf.mxu0
      %v5482 = vadd.f32 %v5276, %v5481
      %v5483 = vpop.f32.mrf.mxu0
      %v5484 = vadd.f32 %v5280, %v5483
      %5485 = vmatprep.mubr.bf16.mxu0 %v5210
      %5486 = vmatmul.mubr.bf16.gmra.mxu0 %v5209
      %v5487 = vpop.f32.mrf.mxu0
      %v5488 = vadd.f32 %v5276, %v5487
      %v5489 = vpop.f32.mrf.mxu0
      %v5490 = vadd.f32 %v5280, %v5489
      %v5491 = vpop.f32.mrf.mxu0
      %v5492 = vadd.f32 %v5276, %v5491
      %v5493 = vpop.f32.mrf.mxu0
      %v5494 = vadd.f32 %v5280, %v5493
      %5495 = vmatprep.mubr.bf16.mxu0 %v5212
      %5496 = vmatmul.mubr.bf16.gmra.mxu0 %v5211
      %v5497 = vpop.f32.mrf.mxu0
      %v5498 = vadd.f32 %v5276, %v5497
      %v5499 = vpop.f32.mrf.mxu0
      %v5500 = vadd.f32 %v5280, %v5499
      %v5501 = vpop.f32.mrf.mxu0
      %v5502 = vadd.f32 %v5276, %v5501
      %v5503 = vpop.f32.mrf.mxu0
      %v5504 = vadd.f32 %v5280, %v5503
      %5505 = vmatprep.mubr.bf16.mxu0 %v5214
      %5506 = vmatmul.mubr.bf16.gmra.mxu0 %v5213
      %v5507 = vpop.f32.mrf.mxu0
      %v5508 = vadd.f32 %v5276, %v5507
      %v5509 = vpop.f32.mrf.mxu0
      %v5510 = vadd.f32 %v5280, %v5509
      %v5511 = vpop.f32.mrf.mxu0
      %v5512 = vadd.f32 %v5276, %v5511
      %v5513 = vpop.f32.mrf.mxu0
      %v5514 = vadd.f32 %v5280, %v5513
      %5515 = vmatprep.mubr.bf16.mxu0 %v5216
      %5516 = vmatmul.mubr.bf16.gmra.mxu0 %v5215
      %v5517 = vpop.f32.mrf.mxu0
      %v5518 = vadd.f32 %v5276, %v5517
      %v5519 = vpop.f32.mrf.mxu0
      %v5520 = vadd.f32 %v5280, %v5519
      %v5521 = vpop.f32.mrf.mxu0
      %v5522 = vadd.f32 %v5276, %v5521
      %v5523 = vpop.f32.mrf.mxu0
      %v5524 = vadd.f32 %v5280, %v5523
      %5525 = vmatprep.mubr.bf16.mxu0 %v5218
      %5526 = vmatmul.mubr.bf16.gmra.mxu0 %v5217
      %v5527 = vpop.f32.mrf.mxu0
      %v5528 = vadd.f32 %v5276, %v5527
      %v5529 = vpop.f32.mrf.mxu0
      %v5530 = vadd.f32 %v5280, %v5529
      %v5531 = vpop.f32.mrf.mxu0
      %v5532 = vadd.f32 %v5276, %v5531
      %v5533 = vpop.f32.mrf.mxu0
      %v5534 = vadd.f32 %v5280, %v5533
      %5535 = vmatprep.mubr.bf16.mxu0 %v5220
      %5536 = vmatmul.mubr.bf16.gmra.mxu0 %v5219
      %v5537 = vpop.f32.mrf.mxu0
      %v5538 = vadd.f32 %v5276, %v5537
      %v5539 = vpop.f32.mrf.mxu0
      %v5540 = vadd.f32 %v5280, %v5539
      %v5541 = vpop.f32.mrf.mxu0
      %v5542 = vadd.f32 %v5276, %v5541
      %v5543 = vpop.f32.mrf.mxu0
      %v5544 = vadd.f32 %v5280, %v5543
      %5545 = vmatprep.mubr.bf16.mxu0 %v5222
      %5546 = vmatmul.mubr.bf16.gmra.mxu0 %v5221
      %v5547 = vpop.f32.mrf.mxu0
      %v5548 = vadd.f32 %v5276, %v5547
      %v5549 = vpop.f32.mrf.mxu0
      %v5550 = vadd.f32 %v5280, %v5549
      %v5551 = vpop.f32.mrf.mxu0
      %v5552 = vadd.f32 %v5276, %v5551
      %v5553 = vpop.f32.mrf.mxu0
      %v5554 = vadd.f32 %v5280, %v5553
      %5555 = vmatprep.mubr.bf16.mxu0 %v5224
      %5556 = vmatmul.mubr.bf16.gmra.mxu0 %v5223
      %v5557 = vpop.f32.mrf.mxu0
      %v5558 = vadd.f32 %v5276, %v5557
      %v5559 = vpop.f32.mrf.mxu0
      %v5560 = vadd.f32 %v5280, %v5559
      %v5561 = vpop.f32.mrf.mxu0
      %v5562 = vadd.f32 %v5276, %v5561
      %v5563 = vpop.f32.mrf.mxu0
      %v5564 = vadd.f32 %v5280, %v5563
      %5565 = vmatprep.mubr.bf16.mxu0 %v5226
      %5566 = vmatmul.mubr.bf16.gmra.mxu0 %v5225
      %v5567 = vpop.f32.mrf.mxu0
      %v5568 = vadd.f32 %v5276, %v5567
      %v5569 = vpop.f32.mrf.mxu0
      %v5570 = vadd.f32 %v5280, %v5569
      %v5571 = vpop.f32.mrf.mxu0
      %v5572 = vadd.f32 %v5276, %v5571
      %v5573 = vpop.f32.mrf.mxu0
      %v5574 = vadd.f32 %v5280, %v5573
      %5575 = vmatprep.mubr.bf16.mxu0 %v5228
      %5576 = vmatmul.mubr.bf16.gmra.mxu0 %v5227
      %v5577 = vpop.f32.mrf.mxu0
      %v5578 = vadd.f32 %v5276, %v5577
      %v5579 = vpop.f32.mrf.mxu0
      %v5580 = vadd.f32 %v5280, %v5579
      %v5581 = vpop.f32.mrf.mxu0
      %v5582 = vadd.f32 %v5276, %v5581
      %v5583 = vpop.f32.mrf.mxu0
      %v5584 = vadd.f32 %v5280, %v5583
      %5585 = vmatprep.mubr.bf16.mxu0 %v5230
      %5586 = vmatmul.mubr.bf16.gmra.mxu0 %v5229
      %v5587 = vpop.f32.mrf.mxu0
      %v5588 = vadd.f32 %v5276, %v5587
      %v5589 = vpop.f32.mrf.mxu0
      %v5590 = vadd.f32 %v5280, %v5589
      %v5591 = vpop.f32.mrf.mxu0
      %v5592 = vadd.f32 %v5276, %v5591
      %v5593 = vpop.f32.mrf.mxu0
      %v5594 = vadd.f32 %v5280, %v5593
      %5595 = vmatprep.mubr.bf16.mxu0 %v5232
      %5596 = vmatmul.mubr.bf16.gmra.mxu0 %v5231
      %v5597 = vpop.f32.mrf.mxu0
      %v5598 = vadd.f32 %v5276, %v5597
      %v5599 = vpop.f32.mrf.mxu0
      %v5600 = vadd.f32 %v5280, %v5599
      %v5601 = vpop.f32.mrf.mxu0
      %v5602 = vadd.f32 %v5276, %v5601
      %v5603 = vpop.f32.mrf.mxu0
      %v5604 = vadd.f32 %v5280, %v5603
      %5605 = vmatprep.mubr.bf16.mxu0 %v5234
      %5606 = vmatmul.mubr.bf16.gmra.mxu0 %v5233
      %v5607 = vpop.f32.mrf.mxu0
      %v5608 = vadd.f32 %v5276, %v5607
      %v5609 = vpop.f32.mrf.mxu0
      %v5610 = vadd.f32 %v5280, %v5609
      %v5611 = vpop.f32.mrf.mxu0
      %v5612 = vadd.f32 %v5276, %v5611
      %v5613 = vpop.f32.mrf.mxu0
      %v5614 = vadd.f32 %v5280, %v5613
      %5615 = vmatprep.mubr.bf16.mxu0 %v5236
      %5616 = vmatmul.mubr.bf16.gmra.mxu0 %v5235
      %v5617 = vpop.f32.mrf.mxu0
      %v5618 = vadd.f32 %v5276, %v5617
      %v5619 = vpop.f32.mrf.mxu0
      %v5620 = vadd.f32 %v5280, %v5619
      %v5621 = vpop.f32.mrf.mxu0
      %v5622 = vadd.f32 %v5276, %v5621
      %v5623 = vpop.f32.mrf.mxu0
      %v5624 = vadd.f32 %v5280, %v5623
      %5625 = vmatprep.mubr.bf16.mxu0 %v5238
      %5626 = vmatmul.mubr.bf16.gmra.mxu0 %v5237
      %v5627 = vpop.f32.mrf.mxu0
      %v5628 = vadd.f32 %v5276, %v5627
      %v5629 = vpop.f32.mrf.mxu0
      %v5630 = vadd.f32 %v5280, %v5629
      %v5631 = vpop.f32.mrf.mxu0
      %v5632 = vadd.f32 %v5276, %v5631
      %v5633 = vpop.f32.mrf.mxu0
      %v5634 = vadd.f32 %v5280, %v5633
      %5635 = vdwg.mxu0
      %v5636 = vmul.f32 %v5478, 0.5
      %v5637 = vmul.f32 %v5480, 0.5
      %v5638 = vmul.f32 %v5482, 0.5
      %v5639 = vmul.f32 %v5484, 0.5
      %v5640 = vmul.f32 %v5488, 0.5
      %v5641 = vmul.f32 %v5490, 0.5
      %v5642 = vmul.f32 %v5492, 0.5
      %v5643 = vmul.f32 %v5494, 0.5
      %v5644 = vmul.f32 %v5498, 0.5
      %v5645 = vmul.f32 %v5500, 0.5
      %v5646 = vmul.f32 %v5502, 0.5
      %v5647 = vmul.f32 %v5504, 0.5
      %v5648 = vmul.f32 %v5508, 0.5
      %v5649 = vmul.f32 %v5510, 0.5
      %v5650 = vmul.f32 %v5512, 0.5
      %v5651 = vmul.f32 %v5514, 0.5
      %v5652 = vmul.f32 %v5518, 0.5
      %v5653 = vmul.f32 %v5520, 0.5
      %v5654 = vmul.f32 %v5522, 0.5
      %v5655 = vmul.f32 %v5524, 0.5
      %v5656 = vmul.f32 %v5528, 0.5
      %v5657 = vmul.f32 %v5530, 0.5
      %v5658 = vmul.f32 %v5532, 0.5
      %v5659 = vmul.f32 %v5534, 0.5
      %v5660 = vmul.f32 %v5538, 0.5
      %v5661 = vmul.f32 %v5540, 0.5
      %v5662 = vmul.f32 %v5542, 0.5
      %v5663 = vmul.f32 %v5544, 0.5
      %v5664 = vmul.f32 %v5548, 0.5
      %v5665 = vmul.f32 %v5550, 0.5
      %v5666 = vmul.f32 %v5552, 0.5
      %v5667 = vmul.f32 %v5554, 0.5
      %v5668 = vmul.f32 %v5558, 0.5
      %v5669 = vmul.f32 %v5560, 0.5
      %v5670 = vmul.f32 %v5562, 0.5
      %v5671 = vmul.f32 %v5564, 0.5
      %v5672 = vmul.f32 %v5568, 0.5
      %v5673 = vmul.f32 %v5570, 0.5
      %v5674 = vmul.f32 %v5572, 0.5
      %v5675 = vmul.f32 %v5574, 0.5
      %v5676 = vmul.f32 %v5578, 0.5
      %v5677 = vmul.f32 %v5580, 0.5
      %v5678 = vmul.f32 %v5582, 0.5
      %v5679 = vmul.f32 %v5584, 0.5
      %v5680 = vmul.f32 %v5588, 0.5
      %v5681 = vmul.f32 %v5590, 0.5
      %v5682 = vmul.f32 %v5592, 0.5
      %v5683 = vmul.f32 %v5594, 0.5
      %v5684 = vmul.f32 %v5598, 0.5
      %v5685 = vmul.f32 %v5600, 0.5
      %v5686 = vmul.f32 %v5602, 0.5
      %v5687 = vmul.f32 %v5604, 0.5
      %v5688 = vmul.f32 %v5608, 0.5
      %v5689 = vmul.f32 %v5610, 0.5
      %v5690 = vmul.f32 %v5612, 0.5
      %v5691 = vmul.f32 %v5614, 0.5
      %v5692 = vmul.f32 %v5618, 0.5
      %v5693 = vmul.f32 %v5620, 0.5
      %v5694 = vmul.f32 %v5622, 0.5
      %v5695 = vmul.f32 %v5624, 0.5
      %v5696 = vmul.f32 %v5628, 0.5
      %v5697 = vmul.f32 %v5630, 0.5
      %v5698 = vmul.f32 %v5632, 0.5
      %v5699 = vmul.f32 %v5634, 0.5
      %v5700 = vmul.f32 %v5478, 0.044715
      %v5701 = vmul.f32 %v5480, 0.044715
      %v5702 = vmul.f32 %v5482, 0.044715
      %v5703 = vmul.f32 %v5484, 0.044715
      %v5704 = vmul.f32 %v5488, 0.044715
      %v5705 = vmul.f32 %v5490, 0.044715
      %v5706 = vmul.f32 %v5492, 0.044715
      %v5707 = vmul.f32 %v5494, 0.044715
      %v5708 = vmul.f32 %v5498, 0.044715
      %v5709 = vmul.f32 %v5500, 0.044715
      %v5710 = vmul.f32 %v5502, 0.044715
      %v5711 = vmul.f32 %v5504, 0.044715
      %v5712 = vmul.f32 %v5508, 0.044715
      %v5713 = vmul.f32 %v5510, 0.044715
      %v5714 = vmul.f32 %v5512, 0.044715
      %v5715 = vmul.f32 %v5514, 0.044715
      %v5716 = vmul.f32 %v5518, 0.044715
      %v5717 = vmul.f32 %v5520, 0.044715
      %v5718 = vmul.f32 %v5522, 0.044715
      %v5719 = vmul.f32 %v5524, 0.044715
      %v5720 = vmul.f32 %v5528, 0.044715
      %v5721 = vmul.f32 %v5530, 0.044715
      %v5722 = vmul.f32 %v5532, 0.044715
      %v5723 = vmul.f32 %v5534, 0.044715
      %v5724 = vmul.f32 %v5538, 0.044715
      %v5725 = vmul.f32 %v5540, 0.044715
      %v5726 = vmul.f32 %v5542, 0.044715
      %v5727 = vmul.f32 %v5544, 0.044715
      %v5728 = vmul.f32 %v5548, 0.044715
      %v5729 = vmul.f32 %v5550, 0.044715
      %v5730 = vmul.f32 %v5552, 0.044715
      %v5731 = vmul.f32 %v5554, 0.044715
      %v5732 = vmul.f32 %v5558, 0.044715
      %v5733 = vmul.f32 %v5560, 0.044715
      %v5734 = vmul.f32 %v5562, 0.044715
      %v5735 = vmul.f32 %v5564, 0.044715
      %v5736 = vmul.f32 %v5568, 0.044715
      %v5737 = vmul.f32 %v5570, 0.044715
      %v5738 = vmul.f32 %v5572, 0.044715
      %v5739 = vmul.f32 %v5574, 0.044715
      %v5740 = vmul.f32 %v5578, 0.044715
      %v5741 = vmul.f32 %v5580, 0.044715
      %v5742 = vmul.f32 %v5582, 0.044715
      %v5743 = vmul.f32 %v5584, 0.044715
      %v5744 = vmul.f32 %v5588, 0.044715
      %v5745 = vmul.f32 %v5590, 0.044715
      %v5746 = vmul.f32 %v5592, 0.044715
      %v5747 = vmul.f32 %v5594, 0.044715
      %v5748 = vmul.f32 %v5598, 0.044715
      %v5749 = vmul.f32 %v5600, 0.044715
      %v5750 = vmul.f32 %v5602, 0.044715
      %v5751 = vmul.f32 %v5604, 0.044715
      %v5752 = vmul.f32 %v5608, 0.044715
      %v5753 = vmul.f32 %v5610, 0.044715
      %v5754 = vmul.f32 %v5612, 0.044715
      %v5755 = vmul.f32 %v5614, 0.044715
      %v5756 = vmul.f32 %v5618, 0.044715
      %v5757 = vmul.f32 %v5620, 0.044715
      %v5758 = vmul.f32 %v5622, 0.044715
      %v5759 = vmul.f32 %v5624, 0.044715
      %v5760 = vmul.f32 %v5628, 0.044715
      %v5761 = vmul.f32 %v5630, 0.044715
      %v5762 = vmul.f32 %v5632, 0.044715
      %v5763 = vmul.f32 %v5634, 0.044715
      %v5764 = vmul.f32 %v5700, %v5478
      %v5765 = vmul.f32 %v5701, %v5480
      %v5766 = vmul.f32 %v5702, %v5482
      %v5767 = vmul.f32 %v5703, %v5484
      %v5768 = vmul.f32 %v5704, %v5488
      %v5769 = vmul.f32 %v5705, %v5490
      %v5770 = vmul.f32 %v5706, %v5492
      %v5771 = vmul.f32 %v5707, %v5494
      %v5772 = vmul.f32 %v5708, %v5498
      %v5773 = vmul.f32 %v5709, %v5500
      %v5774 = vmul.f32 %v5710, %v5502
      %v5775 = vmul.f32 %v5711, %v5504
      %v5776 = vmul.f32 %v5712, %v5508
      %v5777 = vmul.f32 %v5713, %v5510
      %v5778 = vmul.f32 %v5714, %v5512
      %v5779 = vmul.f32 %v5715, %v5514
      %v5780 = vmul.f32 %v5716, %v5518
      %v5781 = vmul.f32 %v5717, %v5520
      %v5782 = vmul.f32 %v5718, %v5522
      %v5783 = vmul.f32 %v5719, %v5524
      %v5784 = vmul.f32 %v5720, %v5528
      %v5785 = vmul.f32 %v5721, %v5530
      %v5786 = vmul.f32 %v5722, %v5532
      %v5787 = vmul.f32 %v5723, %v5534
      %v5788 = vmul.f32 %v5724, %v5538
      %v5789 = vmul.f32 %v5725, %v5540
      %v5790 = vmul.f32 %v5726, %v5542
      %v5791 = vmul.f32 %v5727, %v5544
      %v5792 = vmul.f32 %v5728, %v5548
      %v5793 = vmul.f32 %v5729, %v5550
      %v5794 = vmul.f32 %v5730, %v5552
      %v5795 = vmul.f32 %v5731, %v5554
      %v5796 = vmul.f32 %v5732, %v5558
      %v5797 = vmul.f32 %v5733, %v5560
      %v5798 = vmul.f32 %v5734, %v5562
      %v5799 = vmul.f32 %v5735, %v5564
      %v5800 = vmul.f32 %v5736, %v5568
      %v5801 = vmul.f32 %v5737, %v5570
      %v5802 = vmul.f32 %v5738, %v5572
      %v5803 = vmul.f32 %v5739, %v5574
      %v5804 = vmul.f32 %v5740, %v5578
      %v5805 = vmul.f32 %v5741, %v5580
      %v5806 = vmul.f32 %v5742, %v5582
      %v5807 = vmul.f32 %v5743, %v5584
      %v5808 = vmul.f32 %v5744, %v5588
      %v5809 = vmul.f32 %v5745, %v5590
      %v5810 = vmul.f32 %v5746, %v5592
      %v5811 = vmul.f32 %v5747, %v5594
      %v5812 = vmul.f32 %v5748, %v5598
      %v5813 = vmul.f32 %v5749, %v5600
      %v5814 = vmul.f32 %v5750, %v5602
      %v5815 = vmul.f32 %v5751, %v5604
      %v5816 = vmul.f32 %v5752, %v5608
      %v5817 = vmul.f32 %v5753, %v5610
      %v5818 = vmul.f32 %v5754, %v5612
      %v5819 = vmul.f32 %v5755, %v5614
      %v5820 = vmul.f32 %v5756, %v5618
      %v5821 = vmul.f32 %v5757, %v5620
      %v5822 = vmul.f32 %v5758, %v5622
      %v5823 = vmul.f32 %v5759, %v5624
      %v5824 = vmul.f32 %v5760, %v5628
      %v5825 = vmul.f32 %v5761, %v5630
      %v5826 = vmul.f32 %v5762, %v5632
      %v5827 = vmul.f32 %v5763, %v5634
      %v5828 = vmul.f32 %v5764, %v5478
      %v5829 = vmul.f32 %v5765, %v5480
      %v5830 = vmul.f32 %v5766, %v5482
      %v5831 = vmul.f32 %v5767, %v5484
      %v5832 = vmul.f32 %v5768, %v5488
      %v5833 = vmul.f32 %v5769, %v5490
      %v5834 = vmul.f32 %v5770, %v5492
      %v5835 = vmul.f32 %v5771, %v5494
      %v5836 = vmul.f32 %v5772, %v5498
      %v5837 = vmul.f32 %v5773, %v5500
      %v5838 = vmul.f32 %v5774, %v5502
      %v5839 = vmul.f32 %v5775, %v5504
      %v5840 = vmul.f32 %v5776, %v5508
      %v5841 = vmul.f32 %v5777, %v5510
      %v5842 = vmul.f32 %v5778, %v5512
      %v5843 = vmul.f32 %v5779, %v5514
      %v5844 = vmul.f32 %v5780, %v5518
      %v5845 = vmul.f32 %v5781, %v5520
      %v5846 = vmul.f32 %v5782, %v5522
      %v5847 = vmul.f32 %v5783, %v5524
      %v5848 = vmul.f32 %v5784, %v5528
      %v5849 = vmul.f32 %v5785, %v5530
      %v5850 = vmul.f32 %v5786, %v5532
      %v5851 = vmul.f32 %v5787, %v5534
      %v5852 = vmul.f32 %v5788, %v5538
      %v5853 = vmul.f32 %v5789, %v5540
      %v5854 = vmul.f32 %v5790, %v5542
      %v5855 = vmul.f32 %v5791, %v5544
      %v5856 = vmul.f32 %v5792, %v5548
      %v5857 = vmul.f32 %v5793, %v5550
      %v5858 = vmul.f32 %v5794, %v5552
      %v5859 = vmul.f32 %v5795, %v5554
      %v5860 = vmul.f32 %v5796, %v5558
      %v5861 = vmul.f32 %v5797, %v5560
      %v5862 = vmul.f32 %v5798, %v5562
      %v5863 = vmul.f32 %v5799, %v5564
      %v5864 = vmul.f32 %v5800, %v5568
      %v5865 = vmul.f32 %v5801, %v5570
      %v5866 = vmul.f32 %v5802, %v5572
      %v5867 = vmul.f32 %v5803, %v5574
      %v5868 = vmul.f32 %v5804, %v5578
      %v5869 = vmul.f32 %v5805, %v5580
      %v5870 = vmul.f32 %v5806, %v5582
      %v5871 = vmul.f32 %v5807, %v5584
      %v5872 = vmul.f32 %v5808, %v5588
      %v5873 = vmul.f32 %v5809, %v5590
      %v5874 = vmul.f32 %v5810, %v5592
      %v5875 = vmul.f32 %v5811, %v5594
      %v5876 = vmul.f32 %v5812, %v5598
      %v5877 = vmul.f32 %v5813, %v5600
      %v5878 = vmul.f32 %v5814, %v5602
      %v5879 = vmul.f32 %v5815, %v5604
      %v5880 = vmul.f32 %v5816, %v5608
      %v5881 = vmul.f32 %v5817, %v5610
      %v5882 = vmul.f32 %v5818, %v5612
      %v5883 = vmul.f32 %v5819, %v5614
      %v5884 = vmul.f32 %v5820, %v5618
      %v5885 = vmul.f32 %v5821, %v5620
      %v5886 = vmul.f32 %v5822, %v5622
      %v5887 = vmul.f32 %v5823, %v5624
      %v5888 = vmul.f32 %v5824, %v5628
      %v5889 = vmul.f32 %v5825, %v5630
      %v5890 = vmul.f32 %v5826, %v5632
      %v5891 = vmul.f32 %v5827, %v5634
      %v5892 = vadd.f32 %v5478, %v5828
      %v5893 = vadd.f32 %v5480, %v5829
      %v5894 = vadd.f32 %v5482, %v5830
      %v5895 = vadd.f32 %v5484, %v5831
      %v5896 = vadd.f32 %v5488, %v5832
      %v5897 = vadd.f32 %v5490, %v5833
      %v5898 = vadd.f32 %v5492, %v5834
      %v5899 = vadd.f32 %v5494, %v5835
      %v5900 = vadd.f32 %v5498, %v5836
      %v5901 = vadd.f32 %v5500, %v5837
      %v5902 = vadd.f32 %v5502, %v5838
      %v5903 = vadd.f32 %v5504, %v5839
      %v5904 = vadd.f32 %v5508, %v5840
      %v5905 = vadd.f32 %v5510, %v5841
      %v5906 = vadd.f32 %v5512, %v5842
      %v5907 = vadd.f32 %v5514, %v5843
      %v5908 = vadd.f32 %v5518, %v5844
      %v5909 = vadd.f32 %v5520, %v5845
      %v5910 = vadd.f32 %v5522, %v5846
      %v5911 = vadd.f32 %v5524, %v5847
      %v5912 = vadd.f32 %v5528, %v5848
      %v5913 = vadd.f32 %v5530, %v5849
      %v5914 = vadd.f32 %v5532, %v5850
      %v5915 = vadd.f32 %v5534, %v5851
      %v5916 = vadd.f32 %v5538, %v5852
      %v5917 = vadd.f32 %v5540, %v5853
      %v5918 = vadd.f32 %v5542, %v5854
      %v5919 = vadd.f32 %v5544, %v5855
      %v5920 = vadd.f32 %v5548, %v5856
      %v5921 = vadd.f32 %v5550, %v5857
      %v5922 = vadd.f32 %v5552, %v5858
      %v5923 = vadd.f32 %v5554, %v5859
      %v5924 = vadd.f32 %v5558, %v5860
      %v5925 = vadd.f32 %v5560, %v5861
      %v5926 = vadd.f32 %v5562, %v5862
      %v5927 = vadd.f32 %v5564, %v5863
      %v5928 = vadd.f32 %v5568, %v5864
      %v5929 = vadd.f32 %v5570, %v5865
      %v5930 = vadd.f32 %v5572, %v5866
      %v5931 = vadd.f32 %v5574, %v5867
      %v5932 = vadd.f32 %v5578, %v5868
      %v5933 = vadd.f32 %v5580, %v5869
      %v5934 = vadd.f32 %v5582, %v5870
      %v5935 = vadd.f32 %v5584, %v5871
      %v5936 = vadd.f32 %v5588, %v5872
      %v5937 = vadd.f32 %v5590, %v5873
      %v5938 = vadd.f32 %v5592, %v5874
      %v5939 = vadd.f32 %v5594, %v5875
      %v5940 = vadd.f32 %v5598, %v5876
      %v5941 = vadd.f32 %v5600, %v5877
      %v5942 = vadd.f32 %v5602, %v5878
      %v5943 = vadd.f32 %v5604, %v5879
      %v5944 = vadd.f32 %v5608, %v5880
      %v5945 = vadd.f32 %v5610, %v5881
      %v5946 = vadd.f32 %v5612, %v5882
      %v5947 = vadd.f32 %v5614, %v5883
      %v5948 = vadd.f32 %v5618, %v5884
      %v5949 = vadd.f32 %v5620, %v5885
      %v5950 = vadd.f32 %v5622, %v5886
      %v5951 = vadd.f32 %v5624, %v5887
      %v5952 = vadd.f32 %v5628, %v5888
      %v5953 = vadd.f32 %v5630, %v5889
      %v5954 = vadd.f32 %v5632, %v5890
      %v5955 = vadd.f32 %v5634, %v5891
      %v5956 = vmul.f32 %v5892, 0.7978846
      %v5957 = vmul.f32 %v5893, 0.7978846
      %v5958 = vmul.f32 %v5894, 0.7978846
      %v5959 = vmul.f32 %v5895, 0.7978846
      %v5960 = vmul.f32 %v5896, 0.7978846
      %v5961 = vmul.f32 %v5897, 0.7978846
      %v5962 = vmul.f32 %v5898, 0.7978846
      %v5963 = vmul.f32 %v5899, 0.7978846
      %v5964 = vmul.f32 %v5900, 0.7978846
      %v5965 = vmul.f32 %v5901, 0.7978846
      %v5966 = vmul.f32 %v5902, 0.7978846
      %v5967 = vmul.f32 %v5903, 0.7978846
      %v5968 = vmul.f32 %v5904, 0.7978846
      %v5969 = vmul.f32 %v5905, 0.7978846
      %v5970 = vmul.f32 %v5906, 0.7978846
      %v5971 = vmul.f32 %v5907, 0.7978846
      %v5972 = vmul.f32 %v5908, 0.7978846
      %v5973 = vmul.f32 %v5909, 0.7978846
      %v5974 = vmul.f32 %v5910, 0.7978846
      %v5975 = vmul.f32 %v5911, 0.7978846
      %v5976 = vmul.f32 %v5912, 0.7978846
      %v5977 = vmul.f32 %v5913, 0.7978846
      %v5978 = vmul.f32 %v5914, 0.7978846
      %v5979 = vmul.f32 %v5915, 0.7978846
      %v5980 = vmul.f32 %v5916, 0.7978846
      %v5981 = vmul.f32 %v5917, 0.7978846
      %v5982 = vmul.f32 %v5918, 0.7978846
      %v5983 = vmul.f32 %v5919, 0.7978846
      %v5984 = vmul.f32 %v5920, 0.7978846
      %v5985 = vmul.f32 %v5921, 0.7978846
      %v5986 = vmul.f32 %v5922, 0.7978846
      %v5987 = vmul.f32 %v5923, 0.7978846
      %v5988 = vmul.f32 %v5924, 0.7978846
      %v5989 = vmul.f32 %v5925, 0.7978846
      %v5990 = vmul.f32 %v5926, 0.7978846
      %v5991 = vmul.f32 %v5927, 0.7978846
      %v5992 = vmul.f32 %v5928, 0.7978846
      %v5993 = vmul.f32 %v5929, 0.7978846
      %v5994 = vmul.f32 %v5930, 0.7978846
      %v5995 = vmul.f32 %v5931, 0.7978846
      %v5996 = vmul.f32 %v5932, 0.7978846
      %v5997 = vmul.f32 %v5933, 0.7978846
      %v5998 = vmul.f32 %v5934, 0.7978846
      %v5999 = vmul.f32 %v5935, 0.7978846
      %v6000 = vmul.f32 %v5936, 0.7978846
      %v6001 = vmul.f32 %v5937, 0.7978846
      %v6002 = vmul.f32 %v5938, 0.7978846
      %v6003 = vmul.f32 %v5939, 0.7978846
      %v6004 = vmul.f32 %v5940, 0.7978846
      %v6005 = vmul.f32 %v5941, 0.7978846
      %v6006 = vmul.f32 %v5942, 0.7978846
      %v6007 = vmul.f32 %v5943, 0.7978846
      %v6008 = vmul.f32 %v5944, 0.7978846
      %v6009 = vmul.f32 %v5945, 0.7978846
      %v6010 = vmul.f32 %v5946, 0.7978846
      %v6011 = vmul.f32 %v5947, 0.7978846
      %v6012 = vmul.f32 %v5948, 0.7978846
      %v6013 = vmul.f32 %v5949, 0.7978846
      %v6014 = vmul.f32 %v5950, 0.7978846
      %v6015 = vmul.f32 %v5951, 0.7978846
      %v6016 = vmul.f32 %v5952, 0.7978846
      %v6017 = vmul.f32 %v5953, 0.7978846
      %v6018 = vmul.f32 %v5954, 0.7978846
      %v6019 = vmul.f32 %v5955, 0.7978846
      %v6020 = vtanh.pop %v5956
      %v6021 = vtanh.pop %v5957
      %v6022 = vtanh.pop %v5958
      %v6023 = vtanh.pop %v5959
      %v6024 = vtanh.pop %v5960
      %v6025 = vtanh.pop %v5961
      %v6026 = vtanh.pop %v5962
      %v6027 = vtanh.pop %v5963
      %v6028 = vtanh.pop %v5964
      %v6029 = vtanh.pop %v5965
      %v6030 = vtanh.pop %v5966
      %v6031 = vtanh.pop %v5967
      %v6032 = vtanh.pop %v5968
      %v6033 = vtanh.pop %v5969
      %v6034 = vtanh.pop %v5970
      %v6035 = vtanh.pop %v5971
      %v6036 = vtanh.pop %v5972
      %v6037 = vtanh.pop %v5973
      %v6038 = vtanh.pop %v5974
      %v6039 = vtanh.pop %v5975
      %v6040 = vtanh.pop %v5976
      %v6041 = vtanh.pop %v5977
      %v6042 = vtanh.pop %v5978
      %v6043 = vtanh.pop %v5979
      %v6044 = vtanh.pop %v5980
      %v6045 = vtanh.pop %v5981
      %v6046 = vtanh.pop %v5982
      %v6047 = vtanh.pop %v5983
      %v6048 = vtanh.pop %v5984
      %v6049 = vtanh.pop %v5985
      %v6050 = vtanh.pop %v5986
      %v6051 = vtanh.pop %v5987
      %v6052 = vtanh.pop %v5988
      %v6053 = vtanh.pop %v5989
      %v6054 = vtanh.pop %v5990
      %v6055 = vtanh.pop %v5991
      %v6056 = vtanh.pop %v5992
      %v6057 = vtanh.pop %v5993
      %v6058 = vtanh.pop %v5994
      %v6059 = vtanh.pop %v5995
      %v6060 = vtanh.pop %v5996
      %v6061 = vtanh.pop %v5997
      %v6062 = vtanh.pop %v5998
      %v6063 = vtanh.pop %v5999
      %v6064 = vtanh.pop %v6000
      %v6065 = vtanh.pop %v6001
      %v6066 = vtanh.pop %v6002
      %v6067 = vtanh.pop %v6003
      %v6068 = vtanh.pop %v6004
      %v6069 = vtanh.pop %v6005
      %v6070 = vtanh.pop %v6006
      %v6071 = vtanh.pop %v6007
      %v6072 = vtanh.pop %v6008
      %v6073 = vtanh.pop %v6009
      %v6074 = vtanh.pop %v6010
      %v6075 = vtanh.pop %v6011
      %v6076 = vtanh.pop %v6012
      %v6077 = vtanh.pop %v6013
      %v6078 = vtanh.pop %v6014
      %v6079 = vtanh.pop %v6015
      %v6080 = vtanh.pop %v6016
      %v6081 = vtanh.pop %v6017
      %v6082 = vtanh.pop %v6018
      %v6083 = vtanh.pop %v6019
      %v6084 = vadd.f32 %v6020, 1.0
      %v6085 = vadd.f32 %v6021, 1.0
      %v6086 = vadd.f32 %v6022, 1.0
      %v6087 = vadd.f32 %v6023, 1.0
      %v6088 = vadd.f32 %v6024, 1.0
      %v6089 = vadd.f32 %v6025, 1.0
      %v6090 = vadd.f32 %v6026, 1.0
      %v6091 = vadd.f32 %v6027, 1.0
      %v6092 = vadd.f32 %v6028, 1.0
      %v6093 = vadd.f32 %v6029, 1.0
      %v6094 = vadd.f32 %v6030, 1.0
      %v6095 = vadd.f32 %v6031, 1.0
      %v6096 = vadd.f32 %v6032, 1.0
      %v6097 = vadd.f32 %v6033, 1.0
      %v6098 = vadd.f32 %v6034, 1.0
      %v6099 = vadd.f32 %v6035, 1.0
      %v6100 = vadd.f32 %v6036, 1.0
      %v6101 = vadd.f32 %v6037, 1.0
      %v6102 = vadd.f32 %v6038, 1.0
      %v6103 = vadd.f32 %v6039, 1.0
      %v6104 = vadd.f32 %v6040, 1.0
      %v6105 = vadd.f32 %v6041, 1.0
      %v6106 = vadd.f32 %v6042, 1.0
      %v6107 = vadd.f32 %v6043, 1.0
      %v6108 = vadd.f32 %v6044, 1.0
      %v6109 = vadd.f32 %v6045, 1.0
      %v6110 = vadd.f32 %v6046, 1.0
      %v6111 = vadd.f32 %v6047, 1.0
      %v6112 = vadd.f32 %v6048, 1.0
      %v6113 = vadd.f32 %v6049, 1.0
      %v6114 = vadd.f32 %v6050, 1.0
      %v6115 = vadd.f32 %v6051, 1.0
      %v6116 = vadd.f32 %v6052, 1.0
      %v6117 = vadd.f32 %v6053, 1.0
      %v6118 = vadd.f32 %v6054, 1.0
      %v6119 = vadd.f32 %v6055, 1.0
      %v6120 = vadd.f32 %v6056, 1.0
      %v6121 = vadd.f32 %v6057, 1.0
      %v6122 = vadd.f32 %v6058, 1.0
      %v6123 = vadd.f32 %v6059, 1.0
      %v6124 = vadd.f32 %v6060, 1.0
      %v6125 = vadd.f32 %v6061, 1.0
      %v6126 = vadd.f32 %v6062, 1.0
      %v6127 = vadd.f32 %v6063, 1.0
      %v6128 = vadd.f32 %v6064, 1.0
      %v6129 = vadd.f32 %v6065, 1.0
      %v6130 = vadd.f32 %v6066, 1.0
      %v6131 = vadd.f32 %v6067, 1.0
      %v6132 = vadd.f32 %v6068, 1.0
      %v6133 = vadd.f32 %v6069, 1.0
      %v6134 = vadd.f32 %v6070, 1.0
      %v6135 = vadd.f32 %v6071, 1.0
      %v6136 = vadd.f32 %v6072, 1.0
      %v6137 = vadd.f32 %v6073, 1.0
      %v6138 = vadd.f32 %v6074, 1.0
      %v6139 = vadd.f32 %v6075, 1.0
      %v6140 = vadd.f32 %v6076, 1.0
      %v6141 = vadd.f32 %v6077, 1.0
      %v6142 = vadd.f32 %v6078, 1.0
      %v6143 = vadd.f32 %v6079, 1.0
      %v6144 = vadd.f32 %v6080, 1.0
      %v6145 = vadd.f32 %v6081, 1.0
      %v6146 = vadd.f32 %v6082, 1.0
      %v6147 = vadd.f32 %v6083, 1.0
      %v6148 = vmul.f32 %v5636, %v6084
      %v6149 = vmul.f32 %v5637, %v6085
      %v6150 = vmul.f32 %v5638, %v6086
      %v6151 = vmul.f32 %v5639, %v6087
      %v6152 = vmul.f32 %v5640, %v6088
      %v6153 = vmul.f32 %v5641, %v6089
      %v6154 = vmul.f32 %v5642, %v6090
      %v6155 = vmul.f32 %v5643, %v6091
      %v6156 = vmul.f32 %v5644, %v6092
      %v6157 = vmul.f32 %v5645, %v6093
      %v6158 = vmul.f32 %v5646, %v6094
      %v6159 = vmul.f32 %v5647, %v6095
      %v6160 = vmul.f32 %v5648, %v6096
      %v6161 = vmul.f32 %v5649, %v6097
      %v6162 = vmul.f32 %v5650, %v6098
      %v6163 = vmul.f32 %v5651, %v6099
      %v6164 = vmul.f32 %v5652, %v6100
      %v6165 = vmul.f32 %v5653, %v6101
      %v6166 = vmul.f32 %v5654, %v6102
      %v6167 = vmul.f32 %v5655, %v6103
      %v6168 = vmul.f32 %v5656, %v6104
      %v6169 = vmul.f32 %v5657, %v6105
      %v6170 = vmul.f32 %v5658, %v6106
      %v6171 = vmul.f32 %v5659, %v6107
      %v6172 = vmul.f32 %v5660, %v6108
      %v6173 = vmul.f32 %v5661, %v6109
      %v6174 = vmul.f32 %v5662, %v6110
      %v6175 = vmul.f32 %v5663, %v6111
      %v6176 = vmul.f32 %v5664, %v6112
      %v6177 = vmul.f32 %v5665, %v6113
      %v6178 = vmul.f32 %v5666, %v6114
      %v6179 = vmul.f32 %v5667, %v6115
      %v6180 = vmul.f32 %v5668, %v6116
      %v6181 = vmul.f32 %v5669, %v6117
      %v6182 = vmul.f32 %v5670, %v6118
      %v6183 = vmul.f32 %v5671, %v6119
      %v6184 = vmul.f32 %v5672, %v6120
      %v6185 = vmul.f32 %v5673, %v6121
      %v6186 = vmul.f32 %v5674, %v6122
      %v6187 = vmul.f32 %v5675, %v6123
      %v6188 = vmul.f32 %v5676, %v6124
      %v6189 = vmul.f32 %v5677, %v6125
      %v6190 = vmul.f32 %v5678, %v6126
      %v6191 = vmul.f32 %v5679, %v6127
      %v6192 = vmul.f32 %v5680, %v6128
      %v6193 = vmul.f32 %v5681, %v6129
      %v6194 = vmul.f32 %v5682, %v6130
      %v6195 = vmul.f32 %v5683, %v6131
      %v6196 = vmul.f32 %v5684, %v6132
      %v6197 = vmul.f32 %v5685, %v6133
      %v6198 = vmul.f32 %v5686, %v6134
      %v6199 = vmul.f32 %v5687, %v6135
      %v6200 = vmul.f32 %v5688, %v6136
      %v6201 = vmul.f32 %v5689, %v6137
      %v6202 = vmul.f32 %v5690, %v6138
      %v6203 = vmul.f32 %v5691, %v6139
      %v6204 = vmul.f32 %v5692, %v6140
      %v6205 = vmul.f32 %v5693, %v6141
      %v6206 = vmul.f32 %v5694, %v6142
      %v6207 = vmul.f32 %v5695, %v6143
      %v6208 = vmul.f32 %v5696, %v6144
      %v6209 = vmul.f32 %v5697, %v6145
      %v6210 = vmul.f32 %v5698, %v6146
      %v6211 = vmul.f32 %v5699, %v6147
      %v6212 = vpack.c.bf16 %v6150, %v6148
      %v6213 = vpack.c.bf16 %v6151, %v6149
      %v6214 = vpack.c.bf16 %v6154, %v6152
      %v6215 = vpack.c.bf16 %v6155, %v6153
      %v6216 = vpack.c.bf16 %v6158, %v6156
      %v6217 = vpack.c.bf16 %v6159, %v6157
      %v6218 = vpack.c.bf16 %v6162, %v6160
      %v6219 = vpack.c.bf16 %v6163, %v6161
      %v6220 = vpack.c.bf16 %v6166, %v6164
      %v6221 = vpack.c.bf16 %v6167, %v6165
      %v6222 = vpack.c.bf16 %v6170, %v6168
      %v6223 = vpack.c.bf16 %v6171, %v6169
      %v6224 = vpack.c.bf16 %v6174, %v6172
      %v6225 = vpack.c.bf16 %v6175, %v6173
      %v6226 = vpack.c.bf16 %v6178, %v6176
      %v6227 = vpack.c.bf16 %v6179, %v6177
      %v6228 = vpack.c.bf16 %v6182, %v6180
      %v6229 = vpack.c.bf16 %v6183, %v6181
      %v6230 = vpack.c.bf16 %v6186, %v6184
      %v6231 = vpack.c.bf16 %v6187, %v6185
      %v6232 = vpack.c.bf16 %v6190, %v6188
      %v6233 = vpack.c.bf16 %v6191, %v6189
      %v6234 = vpack.c.bf16 %v6194, %v6192
      %v6235 = vpack.c.bf16 %v6195, %v6193
      %v6236 = vpack.c.bf16 %v6198, %v6196
      %v6237 = vpack.c.bf16 %v6199, %v6197
      %v6238 = vpack.c.bf16 %v6202, %v6200
      %v6239 = vpack.c.bf16 %v6203, %v6201
      %v6240 = vpack.c.bf16 %v6206, %v6204
      %v6241 = vpack.c.bf16 %v6207, %v6205
      %v6242 = vpack.c.bf16 %v6210, %v6208
      %v6243 = vpack.c.bf16 %v6211, %v6209
      %v6244 = vld [vmem:[%s8] sm:$0xff]
      %v6245 = vld [vmem:[%s8 + $0x8] sm:$0xff]
      %v6246 = vld [vmem:[%s8 + $0x10] sm:$0xff]
      %v6247 = vld [vmem:[%s8 + $0x18] sm:$0xff]
      %v6248 = vld [vmem:[%s8 + $0x20] sm:$0xff]
      %v6249 = vld [vmem:[%s8 + $0x28] sm:$0xff]
      %v6250 = vld [vmem:[%s8 + $0x30] sm:$0xff]
      %v6251 = vld [vmem:[%s8 + $0x38] sm:$0xff]
      %v6252 = vld [vmem:[%s8 + $0x40] sm:$0xff]
      %v6253 = vld [vmem:[%s8 + $0x48] sm:$0xff]
      %v6254 = vld [vmem:[%s8 + $0x50] sm:$0xff]
      %v6255 = vld [vmem:[%s8 + $0x58] sm:$0xff]
      %v6256 = vld [vmem:[%s8 + $0x60] sm:$0xff]
      %v6257 = vld [vmem:[%s8 + $0x68] sm:$0xff]
      %v6258 = vld [vmem:[%s8 + $0x70] sm:$0xff]
      %v6259 = vld [vmem:[%s8 + $0x78] sm:$0xff]
      %v6260 = vld [vmem:[%s8 + $0x80] sm:$0xff]
      %v6261 = vld [vmem:[%s8 + $0x88] sm:$0xff]
      %v6262 = vld [vmem:[%s8 + $0x90] sm:$0xff]
      %v6263 = vld [vmem:[%s8 + $0x98] sm:$0xff]
      %v6264 = vld [vmem:[%s8 + $0xa0] sm:$0xff]
      %v6265 = vld [vmem:[%s8 + $0xa8] sm:$0xff]
      %v6266 = vld [vmem:[%s8 + $0xb0] sm:$0xff]
      %v6267 = vld [vmem:[%s8 + $0xb8] sm:$0xff]
      %v6268 = vld [vmem:[%s8 + $0xc0] sm:$0xff]
      %v6269 = vld [vmem:[%s8 + $0xc8] sm:$0xff]
      %v6270 = vld [vmem:[%s8 + $0xd0] sm:$0xff]
      %v6271 = vld [vmem:[%s8 + $0xd8] sm:$0xff]
      %v6272 = vld [vmem:[%s8 + $0xe0] sm:$0xff]
      %v6273 = vld [vmem:[%s8 + $0xe8] sm:$0xff]
      %v6274 = vld [vmem:[%s8 + $0xf0] sm:$0xff]
      %v6275 = vld [vmem:[%s8 + $0xf8] sm:$0xff]
      %v6276 = vld [vmem:[%s9] sm:$0x3]
      %v6278 = vlaneseq
      %v6279 = vshrl.u32 %v6278, 7
      %v6280 = vsub.s32 0, %v6279
      %v6281 = vrot.slane %v6276, %v6280
      %v6282 = vlaneseq
      %v6283 = vshrl.u32 %v6282, 7
      %v6284 = vsub.s32 1, %v6283
      %v6285 = vrot.slane %v6276, %v6284
      %v6320 = vunpack.c.l.b16 %v6244
      %v6321 = vunpack.c.h.b16 %v6244
      %v6322 = vunpack.c.l.b16 %v6245
      %v6323 = vunpack.c.h.b16 %v6245
      %v6324 = vunpack.c.l.b16 %v6246
      %v6325 = vunpack.c.h.b16 %v6246
      %v6326 = vunpack.c.l.b16 %v6247
      %v6327 = vunpack.c.h.b16 %v6247
      %v6328 = vunpack.c.l.b16 %v6248
      %v6329 = vunpack.c.h.b16 %v6248
      %v6330 = vunpack.c.l.b16 %v6249
      %v6331 = vunpack.c.h.b16 %v6249
      %v6332 = vunpack.c.l.b16 %v6250
      %v6333 = vunpack.c.h.b16 %v6250
      %v6334 = vunpack.c.l.b16 %v6251
      %v6335 = vunpack.c.h.b16 %v6251
      %v6336 = vunpack.c.l.b16 %v6252
      %v6337 = vunpack.c.h.b16 %v6252
      %v6338 = vunpack.c.l.b16 %v6253
      %v6339 = vunpack.c.h.b16 %v6253
      %v6340 = vunpack.c.l.b16 %v6254
      %v6341 = vunpack.c.h.b16 %v6254
      %v6342 = vunpack.c.l.b16 %v6255
      %v6343 = vunpack.c.h.b16 %v6255
      %v6344 = vunpack.c.l.b16 %v6256
      %v6345 = vunpack.c.h.b16 %v6256
      %v6346 = vunpack.c.l.b16 %v6257
      %v6347 = vunpack.c.h.b16 %v6257
      %v6348 = vunpack.c.l.b16 %v6258
      %v6349 = vunpack.c.h.b16 %v6258
      %v6350 = vunpack.c.l.b16 %v6259
      %v6351 = vunpack.c.h.b16 %v6259
      %v6352 = vunpack.c.l.b16 %v6260
      %v6353 = vunpack.c.h.b16 %v6260
      %v6354 = vunpack.c.l.b16 %v6261
      %v6355 = vunpack.c.h.b16 %v6261
      %v6356 = vunpack.c.l.b16 %v6262
      %v6357 = vunpack.c.h.b16 %v6262
      %v6358 = vunpack.c.l.b16 %v6263
      %v6359 = vunpack.c.h.b16 %v6263
      %v6360 = vunpack.c.l.b16 %v6264
      %v6361 = vunpack.c.h.b16 %v6264
      %v6362 = vunpack.c.l.b16 %v6265
      %v6363 = vunpack.c.h.b16 %v6265
      %v6364 = vunpack.c.l.b16 %v6266
      %v6365 = vunpack.c.h.b16 %v6266
      %v6366 = vunpack.c.l.b16 %v6267
      %v6367 = vunpack.c.h.b16 %v6267
      %v6368 = vunpack.c.l.b16 %v6268
      %v6369 = vunpack.c.h.b16 %v6268
      %v6370 = vunpack.c.l.b16 %v6269
      %v6371 = vunpack.c.h.b16 %v6269
      %v6372 = vunpack.c.l.b16 %v6270
      %v6373 = vunpack.c.h.b16 %v6270
      %v6374 = vunpack.c.l.b16 %v6271
      %v6375 = vunpack.c.h.b16 %v6271
      %v6376 = vunpack.c.l.b16 %v6272
      %v6377 = vunpack.c.h.b16 %v6272
      %v6378 = vunpack.c.l.b16 %v6273
      %v6379 = vunpack.c.h.b16 %v6273
      %v6380 = vunpack.c.l.b16 %v6274
      %v6381 = vunpack.c.h.b16 %v6274
      %v6382 = vunpack.c.l.b16 %v6275
      %v6383 = vunpack.c.h.b16 %v6275
      %v6384 = vpack.c.b16 %v6322, %v6320
      %v6385 = vpack.c.b16 %v6323, %v6321
      %v6386 = vpack.c.b16 %v6326, %v6324
      %v6387 = vpack.c.b16 %v6327, %v6325
      %v6388 = vpack.c.b16 %v6330, %v6328
      %v6389 = vpack.c.b16 %v6331, %v6329
      %v6390 = vpack.c.b16 %v6334, %v6332
      %v6391 = vpack.c.b16 %v6335, %v6333
      %v6392 = vpack.c.b16 %v6338, %v6336
      %v6393 = vpack.c.b16 %v6339, %v6337
      %v6394 = vpack.c.b16 %v6342, %v6340
      %v6395 = vpack.c.b16 %v6343, %v6341
      %v6396 = vpack.c.b16 %v6346, %v6344
      %v6397 = vpack.c.b16 %v6347, %v6345
      %v6398 = vpack.c.b16 %v6350, %v6348
      %v6399 = vpack.c.b16 %v6351, %v6349
      %v6400 = vpack.c.b16 %v6354, %v6352
      %v6401 = vpack.c.b16 %v6355, %v6353
      %v6402 = vpack.c.b16 %v6358, %v6356
      %v6403 = vpack.c.b16 %v6359, %v6357
      %v6404 = vpack.c.b16 %v6362, %v6360
      %v6405 = vpack.c.b16 %v6363, %v6361
      %v6406 = vpack.c.b16 %v6366, %v6364
      %v6407 = vpack.c.b16 %v6367, %v6365
      %v6408 = vpack.c.b16 %v6370, %v6368
      %v6409 = vpack.c.b16 %v6371, %v6369
      %v6410 = vpack.c.b16 %v6374, %v6372
      %v6411 = vpack.c.b16 %v6375, %v6373
      %v6412 = vpack.c.b16 %v6378, %v6376
      %v6413 = vpack.c.b16 %v6379, %v6377
      %v6414 = vpack.c.b16 %v6382, %v6380
      %v6415 = vpack.c.b16 %v6383, %v6381
      %6448 = vmatprep.subr.bf16.mxu0 %v6399
      %6449 = vmatpush1.bf16.msra.mxu0 %v6398
      %6450 = vmatprep.subr.bf16.mxu0 %v6397
      %6451 = vmatpush1.bf16.msra.mxu0 %v6396
      %6452 = vmatprep.subr.bf16.mxu0 %v6395
      %6453 = vmatpush1.bf16.msra.mxu0 %v6394
      %6454 = vmatprep.subr.bf16.mxu0 %v6393
      %6455 = vmatpush1.bf16.msra.mxu0 %v6392
      %6456 = vmatprep.subr.bf16.mxu0 %v6391
      %6457 = vmatpush1.bf16.msra.mxu0 %v6390
      %6458 = vmatprep.subr.bf16.mxu0 %v6389
      %6459 = vmatpush1.bf16.msra.mxu0 %v6388
      %6460 = vmatprep.subr.bf16.mxu0 %v6387
      %6461 = vmatpush1.bf16.msra.mxu0 %v6386
      %6462 = vmatprep.subr.bf16.mxu0 %v6385
      %6463 = vmatpush1.bf16.msra.mxu0 %v6384
      %6464 = vmatprep.subr.bf16.mxu0 %v6415
      %6465 = vmatpush2.bf16.msra.mxu0 %v6414
      %6466 = vmatprep.subr.bf16.mxu0 %v6413
      %6467 = vmatpush2.bf16.msra.mxu0 %v6412
      %6468 = vmatprep.subr.bf16.mxu0 %v6411
      %6469 = vmatpush2.bf16.msra.mxu0 %v6410
      %6470 = vmatprep.subr.bf16.mxu0 %v6409
      %6471 = vmatpush2.bf16.msra.mxu0 %v6408
      %6472 = vmatprep.subr.bf16.mxu0 %v6407
      %6473 = vmatpush2.bf16.msra.mxu0 %v6406
      %6474 = vmatprep.subr.bf16.mxu0 %v6405
      %6475 = vmatpush2.bf16.msra.mxu0 %v6404
      %6476 = vmatprep.subr.bf16.mxu0 %v6403
      %6477 = vmatpush2.bf16.msra.mxu0 %v6402
      %6478 = vmatprep.subr.bf16.mxu0 %v6401
      %6479 = vmatpush2.bf16.msra.mxu0 %v6400
      %6480 = vmatprep.mubr.bf16.mxu0 %v6213
      %6481 = vmatmul.mubr.bf16.gmra.mxu0 %v6212
      %v6482 = vpop.f32.mrf.mxu0
      %v6483 = vadd.f32 %v6281, %v6482
      %v6484 = vpop.f32.mrf.mxu0
      %v6485 = vadd.f32 %v6285, %v6484
      %v6486 = vpop.f32.mrf.mxu0
      %v6487 = vadd.f32 %v6281, %v6486
      %v6488 = vpop.f32.mrf.mxu0
      %v6489 = vadd.f32 %v6285, %v6488
      %6490 = vmatprep.mubr.bf16.mxu0 %v6215
      %6491 = vmatmul.mubr.bf16.gmra.mxu0 %v6214
      %v6492 = vpop.f32.mrf.mxu0
      %v6493 = vadd.f32 %v6281, %v6492
      %v6494 = vpop.f32.mrf.mxu0
      %v6495 = vadd.f32 %v6285, %v6494
      %v6496 = vpop.f32.mrf.mxu0
      %v6497 = vadd.f32 %v6281, %v6496
      %v6498 = vpop.f32.mrf.mxu0
      %v6499 = vadd.f32 %v6285, %v6498
      %6500 = vmatprep.mubr.bf16.mxu0 %v6217
      %6501 = vmatmul.mubr.bf16.gmra.mxu0 %v6216
      %v6502 = vpop.f32.mrf.mxu0
      %v6503 = vadd.f32 %v6281, %v6502
      %v6504 = vpop.f32.mrf.mxu0
      %v6505 = vadd.f32 %v6285, %v6504
      %v6506 = vpop.f32.mrf.mxu0
      %v6507 = vadd.f32 %v6281, %v6506
      %v6508 = vpop.f32.mrf.mxu0
      %v6509 = vadd.f32 %v6285, %v6508
      %6510 = vmatprep.mubr.bf16.mxu0 %v6219
      %6511 = vmatmul.mubr.bf16.gmra.mxu0 %v6218
      %v6512 = vpop.f32.mrf.mxu0
      %v6513 = vadd.f32 %v6281, %v6512
      %v6514 = vpop.f32.mrf.mxu0
      %v6515 = vadd.f32 %v6285, %v6514
      %v6516 = vpop.f32.mrf.mxu0
      %v6517 = vadd.f32 %v6281, %v6516
      %v6518 = vpop.f32.mrf.mxu0
      %v6519 = vadd.f32 %v6285, %v6518
      %6520 = vmatprep.mubr.bf16.mxu0 %v6221
      %6521 = vmatmul.mubr.bf16.gmra.mxu0 %v6220
      %v6522 = vpop.f32.mrf.mxu0
      %v6523 = vadd.f32 %v6281, %v6522
      %v6524 = vpop.f32.mrf.mxu0
      %v6525 = vadd.f32 %v6285, %v6524
      %v6526 = vpop.f32.mrf.mxu0
      %v6527 = vadd.f32 %v6281, %v6526
      %v6528 = vpop.f32.mrf.mxu0
      %v6529 = vadd.f32 %v6285, %v6528
      %6530 = vmatprep.mubr.bf16.mxu0 %v6223
      %6531 = vmatmul.mubr.bf16.gmra.mxu0 %v6222
      %v6532 = vpop.f32.mrf.mxu0
      %v6533 = vadd.f32 %v6281, %v6532
      %v6534 = vpop.f32.mrf.mxu0
      %v6535 = vadd.f32 %v6285, %v6534
      %v6536 = vpop.f32.mrf.mxu0
      %v6537 = vadd.f32 %v6281, %v6536
      %v6538 = vpop.f32.mrf.mxu0
      %v6539 = vadd.f32 %v6285, %v6538
      %6540 = vmatprep.mubr.bf16.mxu0 %v6225
      %6541 = vmatmul.mubr.bf16.gmra.mxu0 %v6224
      %v6542 = vpop.f32.mrf.mxu0
      %v6543 = vadd.f32 %v6281, %v6542
      %v6544 = vpop.f32.mrf.mxu0
      %v6545 = vadd.f32 %v6285, %v6544
      %v6546 = vpop.f32.mrf.mxu0
      %v6547 = vadd.f32 %v6281, %v6546
      %v6548 = vpop.f32.mrf.mxu0
      %v6549 = vadd.f32 %v6285, %v6548
      %6550 = vmatprep.mubr.bf16.mxu0 %v6227
      %6551 = vmatmul.mubr.bf16.gmra.mxu0 %v6226
      %v6552 = vpop.f32.mrf.mxu0
      %v6553 = vadd.f32 %v6281, %v6552
      %v6554 = vpop.f32.mrf.mxu0
      %v6555 = vadd.f32 %v6285, %v6554
      %v6556 = vpop.f32.mrf.mxu0
      %v6557 = vadd.f32 %v6281, %v6556
      %v6558 = vpop.f32.mrf.mxu0
      %v6559 = vadd.f32 %v6285, %v6558
      %6560 = vmatprep.mubr.bf16.mxu0 %v6229
      %6561 = vmatmul.mubr.bf16.gmra.mxu0 %v6228
      %v6562 = vpop.f32.mrf.mxu0
      %v6563 = vadd.f32 %v6281, %v6562
      %v6564 = vpop.f32.mrf.mxu0
      %v6565 = vadd.f32 %v6285, %v6564
      %v6566 = vpop.f32.mrf.mxu0
      %v6567 = vadd.f32 %v6281, %v6566
      %v6568 = vpop.f32.mrf.mxu0
      %v6569 = vadd.f32 %v6285, %v6568
      %6570 = vmatprep.mubr.bf16.mxu0 %v6231
      %6571 = vmatmul.mubr.bf16.gmra.mxu0 %v6230
      %v6572 = vpop.f32.mrf.mxu0
      %v6573 = vadd.f32 %v6281, %v6572
      %v6574 = vpop.f32.mrf.mxu0
      %v6575 = vadd.f32 %v6285, %v6574
      %v6576 = vpop.f32.mrf.mxu0
      %v6577 = vadd.f32 %v6281, %v6576
      %v6578 = vpop.f32.mrf.mxu0
      %v6579 = vadd.f32 %v6285, %v6578
      %6580 = vmatprep.mubr.bf16.mxu0 %v6233
      %6581 = vmatmul.mubr.bf16.gmra.mxu0 %v6232
      %v6582 = vpop.f32.mrf.mxu0
      %v6583 = vadd.f32 %v6281, %v6582
      %v6584 = vpop.f32.mrf.mxu0
      %v6585 = vadd.f32 %v6285, %v6584
      %v6586 = vpop.f32.mrf.mxu0
      %v6587 = vadd.f32 %v6281, %v6586
      %v6588 = vpop.f32.mrf.mxu0
      %v6589 = vadd.f32 %v6285, %v6588
      %6590 = vmatprep.mubr.bf16.mxu0 %v6235
      %6591 = vmatmul.mubr.bf16.gmra.mxu0 %v6234
      %v6592 = vpop.f32.mrf.mxu0
      %v6593 = vadd.f32 %v6281, %v6592
      %v6594 = vpop.f32.mrf.mxu0
      %v6595 = vadd.f32 %v6285, %v6594
      %v6596 = vpop.f32.mrf.mxu0
      %v6597 = vadd.f32 %v6281, %v6596
      %v6598 = vpop.f32.mrf.mxu0
      %v6599 = vadd.f32 %v6285, %v6598
      %6600 = vmatprep.mubr.bf16.mxu0 %v6237
      %6601 = vmatmul.mubr.bf16.gmra.mxu0 %v6236
      %v6602 = vpop.f32.mrf.mxu0
      %v6603 = vadd.f32 %v6281, %v6602
      %v6604 = vpop.f32.mrf.mxu0
      %v6605 = vadd.f32 %v6285, %v6604
      %v6606 = vpop.f32.mrf.mxu0
      %v6607 = vadd.f32 %v6281, %v6606
      %v6608 = vpop.f32.mrf.mxu0
      %v6609 = vadd.f32 %v6285, %v6608
      %6610 = vmatprep.mubr.bf16.mxu0 %v6239
      %6611 = vmatmul.mubr.bf16.gmra.mxu0 %v6238
      %v6612 = vpop.f32.mrf.mxu0
      %v6613 = vadd.f32 %v6281, %v6612
      %v6614 = vpop.f32.mrf.mxu0
      %v6615 = vadd.f32 %v6285, %v6614
      %v6616 = vpop.f32.mrf.mxu0
      %v6617 = vadd.f32 %v6281, %v6616
      %v6618 = vpop.f32.mrf.mxu0
      %v6619 = vadd.f32 %v6285, %v6618
      %6620 = vmatprep.mubr.bf16.mxu0 %v6241
      %6621 = vmatmul.mubr.bf16.gmra.mxu0 %v6240
      %v6622 = vpop.f32.mrf.mxu0
      %v6623 = vadd.f32 %v6281, %v6622
      %v6624 = vpop.f32.mrf.mxu0
      %v6625 = vadd.f32 %v6285, %v6624
      %v6626 = vpop.f32.mrf.mxu0
      %v6627 = vadd.f32 %v6281, %v6626
      %v6628 = vpop.f32.mrf.mxu0
      %v6629 = vadd.f32 %v6285, %v6628
      %6630 = vmatprep.mubr.bf16.mxu0 %v6243
      %6631 = vmatmul.mubr.bf16.gmra.mxu0 %v6242
      %v6632 = vpop.f32.mrf.mxu0
      %v6633 = vadd.f32 %v6281, %v6632
      %v6634 = vpop.f32.mrf.mxu0
      %v6635 = vadd.f32 %v6285, %v6634
      %v6636 = vpop.f32.mrf.mxu0
      %v6637 = vadd.f32 %v6281, %v6636
      %v6638 = vpop.f32.mrf.mxu0
      %v6639 = vadd.f32 %v6285, %v6638
      %6640 = vdwg.mxu0
      %v6641 = vmul.f32 %v6483, 0.5
      %v6642 = vmul.f32 %v6485, 0.5
      %v6643 = vmul.f32 %v6487, 0.5
      %v6644 = vmul.f32 %v6489, 0.5
      %v6645 = vmul.f32 %v6493, 0.5
      %v6646 = vmul.f32 %v6495, 0.5
      %v6647 = vmul.f32 %v6497, 0.5
      %v6648 = vmul.f32 %v6499, 0.5
      %v6649 = vmul.f32 %v6503, 0.5
      %v6650 = vmul.f32 %v6505, 0.5
      %v6651 = vmul.f32 %v6507, 0.5
      %v6652 = vmul.f32 %v6509, 0.5
      %v6653 = vmul.f32 %v6513, 0.5
      %v6654 = vmul.f32 %v6515, 0.5
      %v6655 = vmul.f32 %v6517, 0.5
      %v6656 = vmul.f32 %v6519, 0.5
      %v6657 = vmul.f32 %v6523, 0.5
      %v6658 = vmul.f32 %v6525, 0.5
      %v6659 = vmul.f32 %v6527, 0.5
      %v6660 = vmul.f32 %v6529, 0.5
      %v6661 = vmul.f32 %v6533, 0.5
      %v6662 = vmul.f32 %v6535, 0.5
      %v6663 = vmul.f32 %v6537, 0.5
      %v6664 = vmul.f32 %v6539, 0.5
      %v6665 = vmul.f32 %v6543, 0.5
      %v6666 = vmul.f32 %v6545, 0.5
      %v6667 = vmul.f32 %v6547, 0.5
      %v6668 = vmul.f32 %v6549, 0.5
      %v6669 = vmul.f32 %v6553, 0.5
      %v6670 = vmul.f32 %v6555, 0.5
      %v6671 = vmul.f32 %v6557, 0.5
      %v6672 = vmul.f32 %v6559, 0.5
      %v6673 = vmul.f32 %v6563, 0.5
      %v6674 = vmul.f32 %v6565, 0.5
      %v6675 = vmul.f32 %v6567, 0.5
      %v6676 = vmul.f32 %v6569, 0.5
      %v6677 = vmul.f32 %v6573, 0.5
      %v6678 = vmul.f32 %v6575, 0.5
      %v6679 = vmul.f32 %v6577, 0.5
      %v6680 = vmul.f32 %v6579, 0.5
      %v6681 = vmul.f32 %v6583, 0.5
      %v6682 = vmul.f32 %v6585, 0.5
      %v6683 = vmul.f32 %v6587, 0.5
      %v6684 = vmul.f32 %v6589, 0.5
      %v6685 = vmul.f32 %v6593, 0.5
      %v6686 = vmul.f32 %v6595, 0.5
      %v6687 = vmul.f32 %v6597, 0.5
      %v6688 = vmul.f32 %v6599, 0.5
      %v6689 = vmul.f32 %v6603, 0.5
      %v6690 = vmul.f32 %v6605, 0.5
      %v6691 = vmul.f32 %v6607, 0.5
      %v6692 = vmul.f32 %v6609, 0.5
      %v6693 = vmul.f32 %v6613, 0.5
      %v6694 = vmul.f32 %v6615, 0.5
      %v6695 = vmul.f32 %v6617, 0.5
      %v6696 = vmul.f32 %v6619, 0.5
      %v6697 = vmul.f32 %v6623, 0.5
      %v6698 = vmul.f32 %v6625, 0.5
      %v6699 = vmul.f32 %v6627, 0.5
      %v6700 = vmul.f32 %v6629, 0.5
      %v6701 = vmul.f32 %v6633, 0.5
      %v6702 = vmul.f32 %v6635, 0.5
      %v6703 = vmul.f32 %v6637, 0.5
      %v6704 = vmul.f32 %v6639, 0.5
      %v6705 = vmul.f32 %v6483, 0.044715
      %v6706 = vmul.f32 %v6485, 0.044715
      %v6707 = vmul.f32 %v6487, 0.044715
      %v6708 = vmul.f32 %v6489, 0.044715
      %v6709 = vmul.f32 %v6493, 0.044715
      %v6710 = vmul.f32 %v6495, 0.044715
      %v6711 = vmul.f32 %v6497, 0.044715
      %v6712 = vmul.f32 %v6499, 0.044715
      %v6713 = vmul.f32 %v6503, 0.044715
      %v6714 = vmul.f32 %v6505, 0.044715
      %v6715 = vmul.f32 %v6507, 0.044715
      %v6716 = vmul.f32 %v6509, 0.044715
      %v6717 = vmul.f32 %v6513, 0.044715
      %v6718 = vmul.f32 %v6515, 0.044715
      %v6719 = vmul.f32 %v6517, 0.044715
      %v6720 = vmul.f32 %v6519, 0.044715
      %v6721 = vmul.f32 %v6523, 0.044715
      %v6722 = vmul.f32 %v6525, 0.044715
      %v6723 = vmul.f32 %v6527, 0.044715
      %v6724 = vmul.f32 %v6529, 0.044715
      %v6725 = vmul.f32 %v6533, 0.044715
      %v6726 = vmul.f32 %v6535, 0.044715
      %v6727 = vmul.f32 %v6537, 0.044715
      %v6728 = vmul.f32 %v6539, 0.044715
      %v6729 = vmul.f32 %v6543, 0.044715
      %v6730 = vmul.f32 %v6545, 0.044715
      %v6731 = vmul.f32 %v6547, 0.044715
      %v6732 = vmul.f32 %v6549, 0.044715
      %v6733 = vmul.f32 %v6553, 0.044715
      %v6734 = vmul.f32 %v6555, 0.044715
      %v6735 = vmul.f32 %v6557, 0.044715
      %v6736 = vmul.f32 %v6559, 0.044715
      %v6737 = vmul.f32 %v6563, 0.044715
      %v6738 = vmul.f32 %v6565, 0.044715
      %v6739 = vmul.f32 %v6567, 0.044715
      %v6740 = vmul.f32 %v6569, 0.044715
      %v6741 = vmul.f32 %v6573, 0.044715
      %v6742 = vmul.f32 %v6575, 0.044715
      %v6743 = vmul.f32 %v6577, 0.044715
      %v6744 = vmul.f32 %v6579, 0.044715
      %v6745 = vmul.f32 %v6583, 0.044715
      %v6746 = vmul.f32 %v6585, 0.044715
      %v6747 = vmul.f32 %v6587, 0.044715
      %v6748 = vmul.f32 %v6589, 0.044715
      %v6749 = vmul.f32 %v6593, 0.044715
      %v6750 = vmul.f32 %v6595, 0.044715
      %v6751 = vmul.f32 %v6597, 0.044715
      %v6752 = vmul.f32 %v6599, 0.044715
      %v6753 = vmul.f32 %v6603, 0.044715
      %v6754 = vmul.f32 %v6605, 0.044715
      %v6755 = vmul.f32 %v6607, 0.044715
      %v6756 = vmul.f32 %v6609, 0.044715
      %v6757 = vmul.f32 %v6613, 0.044715
      %v6758 = vmul.f32 %v6615, 0.044715
      %v6759 = vmul.f32 %v6617, 0.044715
      %v6760 = vmul.f32 %v6619, 0.044715
      %v6761 = vmul.f32 %v6623, 0.044715
      %v6762 = vmul.f32 %v6625, 0.044715
      %v6763 = vmul.f32 %v6627, 0.044715
      %v6764 = vmul.f32 %v6629, 0.044715
      %v6765 = vmul.f32 %v6633, 0.044715
      %v6766 = vmul.f32 %v6635, 0.044715
      %v6767 = vmul.f32 %v6637, 0.044715
      %v6768 = vmul.f32 %v6639, 0.044715
      %v6769 = vmul.f32 %v6705, %v6483
      %v6770 = vmul.f32 %v6706, %v6485
      %v6771 = vmul.f32 %v6707, %v6487
      %v6772 = vmul.f32 %v6708, %v6489
      %v6773 = vmul.f32 %v6709, %v6493
      %v6774 = vmul.f32 %v6710, %v6495
      %v6775 = vmul.f32 %v6711, %v6497
      %v6776 = vmul.f32 %v6712, %v6499
      %v6777 = vmul.f32 %v6713, %v6503
      %v6778 = vmul.f32 %v6714, %v6505
      %v6779 = vmul.f32 %v6715, %v6507
      %v6780 = vmul.f32 %v6716, %v6509
      %v6781 = vmul.f32 %v6717, %v6513
      %v6782 = vmul.f32 %v6718, %v6515
      %v6783 = vmul.f32 %v6719, %v6517
      %v6784 = vmul.f32 %v6720, %v6519
      %v6785 = vmul.f32 %v6721, %v6523
      %v6786 = vmul.f32 %v6722, %v6525
      %v6787 = vmul.f32 %v6723, %v6527
      %v6788 = vmul.f32 %v6724, %v6529
      %v6789 = vmul.f32 %v6725, %v6533
      %v6790 = vmul.f32 %v6726, %v6535
      %v6791 = vmul.f32 %v6727, %v6537
      %v6792 = vmul.f32 %v6728, %v6539
      %v6793 = vmul.f32 %v6729, %v6543
      %v6794 = vmul.f32 %v6730, %v6545
      %v6795 = vmul.f32 %v6731, %v6547
      %v6796 = vmul.f32 %v6732, %v6549
      %v6797 = vmul.f32 %v6733, %v6553
      %v6798 = vmul.f32 %v6734, %v6555
      %v6799 = vmul.f32 %v6735, %v6557
      %v6800 = vmul.f32 %v6736, %v6559
      %v6801 = vmul.f32 %v6737, %v6563
      %v6802 = vmul.f32 %v6738, %v6565
      %v6803 = vmul.f32 %v6739, %v6567
      %v6804 = vmul.f32 %v6740, %v6569
      %v6805 = vmul.f32 %v6741, %v6573
      %v6806 = vmul.f32 %v6742, %v6575
      %v6807 = vmul.f32 %v6743, %v6577
      %v6808 = vmul.f32 %v6744, %v6579
      %v6809 = vmul.f32 %v6745, %v6583
      %v6810 = vmul.f32 %v6746, %v6585
      %v6811 = vmul.f32 %v6747, %v6587
      %v6812 = vmul.f32 %v6748, %v6589
      %v6813 = vmul.f32 %v6749, %v6593
      %v6814 = vmul.f32 %v6750, %v6595
      %v6815 = vmul.f32 %v6751, %v6597
      %v6816 = vmul.f32 %v6752, %v6599
      %v6817 = vmul.f32 %v6753, %v6603
      %v6818 = vmul.f32 %v6754, %v6605
      %v6819 = vmul.f32 %v6755, %v6607
      %v6820 = vmul.f32 %v6756, %v6609
      %v6821 = vmul.f32 %v6757, %v6613
      %v6822 = vmul.f32 %v6758, %v6615
      %v6823 = vmul.f32 %v6759, %v6617
      %v6824 = vmul.f32 %v6760, %v6619
      %v6825 = vmul.f32 %v6761, %v6623
      %v6826 = vmul.f32 %v6762, %v6625
      %v6827 = vmul.f32 %v6763, %v6627
      %v6828 = vmul.f32 %v6764, %v6629
      %v6829 = vmul.f32 %v6765, %v6633
      %v6830 = vmul.f32 %v6766, %v6635
      %v6831 = vmul.f32 %v6767, %v6637
      %v6832 = vmul.f32 %v6768, %v6639
      %v6833 = vmul.f32 %v6769, %v6483
      %v6834 = vmul.f32 %v6770, %v6485
      %v6835 = vmul.f32 %v6771, %v6487
      %v6836 = vmul.f32 %v6772, %v6489
      %v6837 = vmul.f32 %v6773, %v6493
      %v6838 = vmul.f32 %v6774, %v6495
      %v6839 = vmul.f32 %v6775, %v6497
      %v6840 = vmul.f32 %v6776, %v6499
      %v6841 = vmul.f32 %v6777, %v6503
      %v6842 = vmul.f32 %v6778, %v6505
      %v6843 = vmul.f32 %v6779, %v6507
      %v6844 = vmul.f32 %v6780, %v6509
      %v6845 = vmul.f32 %v6781, %v6513
      %v6846 = vmul.f32 %v6782, %v6515
      %v6847 = vmul.f32 %v6783, %v6517
      %v6848 = vmul.f32 %v6784, %v6519
      %v6849 = vmul.f32 %v6785, %v6523
      %v6850 = vmul.f32 %v6786, %v6525
      %v6851 = vmul.f32 %v6787, %v6527
      %v6852 = vmul.f32 %v6788, %v6529
      %v6853 = vmul.f32 %v6789, %v6533
      %v6854 = vmul.f32 %v6790, %v6535
      %v6855 = vmul.f32 %v6791, %v6537
      %v6856 = vmul.f32 %v6792, %v6539
      %v6857 = vmul.f32 %v6793, %v6543
      %v6858 = vmul.f32 %v6794, %v6545
      %v6859 = vmul.f32 %v6795, %v6547
      %v6860 = vmul.f32 %v6796, %v6549
      %v6861 = vmul.f32 %v6797, %v6553
      %v6862 = vmul.f32 %v6798, %v6555
      %v6863 = vmul.f32 %v6799, %v6557
      %v6864 = vmul.f32 %v6800, %v6559
      %v6865 = vmul.f32 %v6801, %v6563
      %v6866 = vmul.f32 %v6802, %v6565
      %v6867 = vmul.f32 %v6803, %v6567
      %v6868 = vmul.f32 %v6804, %v6569
      %v6869 = vmul.f32 %v6805, %v6573
      %v6870 = vmul.f32 %v6806, %v6575
      %v6871 = vmul.f32 %v6807, %v6577
      %v6872 = vmul.f32 %v6808, %v6579
      %v6873 = vmul.f32 %v6809, %v6583
      %v6874 = vmul.f32 %v6810, %v6585
      %v6875 = vmul.f32 %v6811, %v6587
      %v6876 = vmul.f32 %v6812, %v6589
      %v6877 = vmul.f32 %v6813, %v6593
      %v6878 = vmul.f32 %v6814, %v6595
      %v6879 = vmul.f32 %v6815, %v6597
      %v6880 = vmul.f32 %v6816, %v6599
      %v6881 = vmul.f32 %v6817, %v6603
      %v6882 = vmul.f32 %v6818, %v6605
      %v6883 = vmul.f32 %v6819, %v6607
      %v6884 = vmul.f32 %v6820, %v6609
      %v6885 = vmul.f32 %v6821, %v6613
      %v6886 = vmul.f32 %v6822, %v6615
      %v6887 = vmul.f32 %v6823, %v6617
      %v6888 = vmul.f32 %v6824, %v6619
      %v6889 = vmul.f32 %v6825, %v6623
      %v6890 = vmul.f32 %v6826, %v6625
      %v6891 = vmul.f32 %v6827, %v6627
      %v6892 = vmul.f32 %v6828, %v6629
      %v6893 = vmul.f32 %v6829, %v6633
      %v6894 = vmul.f32 %v6830, %v6635
      %v6895 = vmul.f32 %v6831, %v6637
      %v6896 = vmul.f32 %v6832, %v6639
      %v6897 = vadd.f32 %v6483, %v6833
      %v6898 = vadd.f32 %v6485, %v6834
      %v6899 = vadd.f32 %v6487, %v6835
      %v6900 = vadd.f32 %v6489, %v6836
      %v6901 = vadd.f32 %v6493, %v6837
      %v6902 = vadd.f32 %v6495, %v6838
      %v6903 = vadd.f32 %v6497, %v6839
      %v6904 = vadd.f32 %v6499, %v6840
      %v6905 = vadd.f32 %v6503, %v6841
      %v6906 = vadd.f32 %v6505, %v6842
      %v6907 = vadd.f32 %v6507, %v6843
      %v6908 = vadd.f32 %v6509, %v6844
      %v6909 = vadd.f32 %v6513, %v6845
      %v6910 = vadd.f32 %v6515, %v6846
      %v6911 = vadd.f32 %v6517, %v6847
      %v6912 = vadd.f32 %v6519, %v6848
      %v6913 = vadd.f32 %v6523, %v6849
      %v6914 = vadd.f32 %v6525, %v6850
      %v6915 = vadd.f32 %v6527, %v6851
      %v6916 = vadd.f32 %v6529, %v6852
      %v6917 = vadd.f32 %v6533, %v6853
      %v6918 = vadd.f32 %v6535, %v6854
      %v6919 = vadd.f32 %v6537, %v6855
      %v6920 = vadd.f32 %v6539, %v6856
      %v6921 = vadd.f32 %v6543, %v6857
      %v6922 = vadd.f32 %v6545, %v6858
      %v6923 = vadd.f32 %v6547, %v6859
      %v6924 = vadd.f32 %v6549, %v6860
      %v6925 = vadd.f32 %v6553, %v6861
      %v6926 = vadd.f32 %v6555, %v6862
      %v6927 = vadd.f32 %v6557, %v6863
      %v6928 = vadd.f32 %v6559, %v6864
      %v6929 = vadd.f32 %v6563, %v6865
      %v6930 = vadd.f32 %v6565, %v6866
      %v6931 = vadd.f32 %v6567, %v6867
      %v6932 = vadd.f32 %v6569, %v6868
      %v6933 = vadd.f32 %v6573, %v6869
      %v6934 = vadd.f32 %v6575, %v6870
      %v6935 = vadd.f32 %v6577, %v6871
      %v6936 = vadd.f32 %v6579, %v6872
      %v6937 = vadd.f32 %v6583, %v6873
      %v6938 = vadd.f32 %v6585, %v6874
      %v6939 = vadd.f32 %v6587, %v6875
      %v6940 = vadd.f32 %v6589, %v6876
      %v6941 = vadd.f32 %v6593, %v6877
      %v6942 = vadd.f32 %v6595, %v6878
      %v6943 = vadd.f32 %v6597, %v6879
      %v6944 = vadd.f32 %v6599, %v6880
      %v6945 = vadd.f32 %v6603, %v6881
      %v6946 = vadd.f32 %v6605, %v6882
      %v6947 = vadd.f32 %v6607, %v6883
      %v6948 = vadd.f32 %v6609, %v6884
      %v6949 = vadd.f32 %v6613, %v6885
      %v6950 = vadd.f32 %v6615, %v6886
      %v6951 = vadd.f32 %v6617, %v6887
      %v6952 = vadd.f32 %v6619, %v6888
      %v6953 = vadd.f32 %v6623, %v6889
      %v6954 = vadd.f32 %v6625, %v6890
      %v6955 = vadd.f32 %v6627, %v6891
      %v6956 = vadd.f32 %v6629, %v6892
      %v6957 = vadd.f32 %v6633, %v6893
      %v6958 = vadd.f32 %v6635, %v6894
      %v6959 = vadd.f32 %v6637, %v6895
      %v6960 = vadd.f32 %v6639, %v6896
      %v6961 = vmul.f32 %v6897, 0.7978846
      %v6962 = vmul.f32 %v6898, 0.7978846
      %v6963 = vmul.f32 %v6899, 0.7978846
      %v6964 = vmul.f32 %v6900, 0.7978846
      %v6965 = vmul.f32 %v6901, 0.7978846
      %v6966 = vmul.f32 %v6902, 0.7978846
      %v6967 = vmul.f32 %v6903, 0.7978846
      %v6968 = vmul.f32 %v6904, 0.7978846
      %v6969 = vmul.f32 %v6905, 0.7978846
      %v6970 = vmul.f32 %v6906, 0.7978846
      %v6971 = vmul.f32 %v6907, 0.7978846
      %v6972 = vmul.f32 %v6908, 0.7978846
      %v6973 = vmul.f32 %v6909, 0.7978846
      %v6974 = vmul.f32 %v6910, 0.7978846
      %v6975 = vmul.f32 %v6911, 0.7978846
      %v6976 = vmul.f32 %v6912, 0.7978846
      %v6977 = vmul.f32 %v6913, 0.7978846
      %v6978 = vmul.f32 %v6914, 0.7978846
      %v6979 = vmul.f32 %v6915, 0.7978846
      %v6980 = vmul.f32 %v6916, 0.7978846
      %v6981 = vmul.f32 %v6917, 0.7978846
      %v6982 = vmul.f32 %v6918, 0.7978846
      %v6983 = vmul.f32 %v6919, 0.7978846
      %v6984 = vmul.f32 %v6920, 0.7978846
      %v6985 = vmul.f32 %v6921, 0.7978846
      %v6986 = vmul.f32 %v6922, 0.7978846
      %v6987 = vmul.f32 %v6923, 0.7978846
      %v6988 = vmul.f32 %v6924, 0.7978846
      %v6989 = vmul.f32 %v6925, 0.7978846
      %v6990 = vmul.f32 %v6926, 0.7978846
      %v6991 = vmul.f32 %v6927, 0.7978846
      %v6992 = vmul.f32 %v6928, 0.7978846
      %v6993 = vmul.f32 %v6929, 0.7978846
      %v6994 = vmul.f32 %v6930, 0.7978846
      %v6995 = vmul.f32 %v6931, 0.7978846
      %v6996 = vmul.f32 %v6932, 0.7978846
      %v6997 = vmul.f32 %v6933, 0.7978846
      %v6998 = vmul.f32 %v6934, 0.7978846
      %v6999 = vmul.f32 %v6935, 0.7978846
      %v7000 = vmul.f32 %v6936, 0.7978846
      %v7001 = vmul.f32 %v6937, 0.7978846
      %v7002 = vmul.f32 %v6938, 0.7978846
      %v7003 = vmul.f32 %v6939, 0.7978846
      %v7004 = vmul.f32 %v6940, 0.7978846
      %v7005 = vmul.f32 %v6941, 0.7978846
      %v7006 = vmul.f32 %v6942, 0.7978846
      %v7007 = vmul.f32 %v6943, 0.7978846
      %v7008 = vmul.f32 %v6944, 0.7978846
      %v7009 = vmul.f32 %v6945, 0.7978846
      %v7010 = vmul.f32 %v6946, 0.7978846
      %v7011 = vmul.f32 %v6947, 0.7978846
      %v7012 = vmul.f32 %v6948, 0.7978846
      %v7013 = vmul.f32 %v6949, 0.7978846
      %v7014 = vmul.f32 %v6950, 0.7978846
      %v7015 = vmul.f32 %v6951, 0.7978846
      %v7016 = vmul.f32 %v6952, 0.7978846
      %v7017 = vmul.f32 %v6953, 0.7978846
      %v7018 = vmul.f32 %v6954, 0.7978846
      %v7019 = vmul.f32 %v6955, 0.7978846
      %v7020 = vmul.f32 %v6956, 0.7978846
      %v7021 = vmul.f32 %v6957, 0.7978846
      %v7022 = vmul.f32 %v6958, 0.7978846
      %v7023 = vmul.f32 %v6959, 0.7978846
      %v7024 = vmul.f32 %v6960, 0.7978846
      %v7025 = vtanh.pop %v6961
      %v7026 = vtanh.pop %v6962
      %v7027 = vtanh.pop %v6963
      %v7028 = vtanh.pop %v6964
      %v7029 = vtanh.pop %v6965
      %v7030 = vtanh.pop %v6966
      %v7031 = vtanh.pop %v6967
      %v7032 = vtanh.pop %v6968
      %v7033 = vtanh.pop %v6969
      %v7034 = vtanh.pop %v6970
      %v7035 = vtanh.pop %v6971
      %v7036 = vtanh.pop %v6972
      %v7037 = vtanh.pop %v6973
      %v7038 = vtanh.pop %v6974
      %v7039 = vtanh.pop %v6975
      %v7040 = vtanh.pop %v6976
      %v7041 = vtanh.pop %v6977
      %v7042 = vtanh.pop %v6978
      %v7043 = vtanh.pop %v6979
      %v7044 = vtanh.pop %v6980
      %v7045 = vtanh.pop %v6981
      %v7046 = vtanh.pop %v6982
      %v7047 = vtanh.pop %v6983
      %v7048 = vtanh.pop %v6984
      %v7049 = vtanh.pop %v6985
      %v7050 = vtanh.pop %v6986
      %v7051 = vtanh.pop %v6987
      %v7052 = vtanh.pop %v6988
      %v7053 = vtanh.pop %v6989
      %v7054 = vtanh.pop %v6990
      %v7055 = vtanh.pop %v6991
      %v7056 = vtanh.pop %v6992
      %v7057 = vtanh.pop %v6993
      %v7058 = vtanh.pop %v6994
      %v7059 = vtanh.pop %v6995
      %v7060 = vtanh.pop %v6996
      %v7061 = vtanh.pop %v6997
      %v7062 = vtanh.pop %v6998
      %v7063 = vtanh.pop %v6999
      %v7064 = vtanh.pop %v7000
      %v7065 = vtanh.pop %v7001
      %v7066 = vtanh.pop %v7002
      %v7067 = vtanh.pop %v7003
      %v7068 = vtanh.pop %v7004
      %v7069 = vtanh.pop %v7005
      %v7070 = vtanh.pop %v7006
      %v7071 = vtanh.pop %v7007
      %v7072 = vtanh.pop %v7008
      %v7073 = vtanh.pop %v7009
      %v7074 = vtanh.pop %v7010
      %v7075 = vtanh.pop %v7011
      %v7076 = vtanh.pop %v7012
      %v7077 = vtanh.pop %v7013
      %v7078 = vtanh.pop %v7014
      %v7079 = vtanh.pop %v7015
      %v7080 = vtanh.pop %v7016
      %v7081 = vtanh.pop %v7017
      %v7082 = vtanh.pop %v7018
      %v7083 = vtanh.pop %v7019
      %v7084 = vtanh.pop %v7020
      %v7085 = vtanh.pop %v7021
      %v7086 = vtanh.pop %v7022
      %v7087 = vtanh.pop %v7023
      %v7088 = vtanh.pop %v7024
      %v7089 = vadd.f32 %v7025, 1.0
      %v7090 = vadd.f32 %v7026, 1.0
      %v7091 = vadd.f32 %v7027, 1.0
      %v7092 = vadd.f32 %v7028, 1.0
      %v7093 = vadd.f32 %v7029, 1.0
      %v7094 = vadd.f32 %v7030, 1.0
      %v7095 = vadd.f32 %v7031, 1.0
      %v7096 = vadd.f32 %v7032, 1.0
      %v7097 = vadd.f32 %v7033, 1.0
      %v7098 = vadd.f32 %v7034, 1.0
      %v7099 = vadd.f32 %v7035, 1.0
      %v7100 = vadd.f32 %v7036, 1.0
      %v7101 = vadd.f32 %v7037, 1.0
      %v7102 = vadd.f32 %v7038, 1.0
      %v7103 = vadd.f32 %v7039, 1.0
      %v7104 = vadd.f32 %v7040, 1.0
      %v7105 = vadd.f32 %v7041, 1.0
      %v7106 = vadd.f32 %v7042, 1.0
      %v7107 = vadd.f32 %v7043, 1.0
      %v7108 = vadd.f32 %v7044, 1.0
      %v7109 = vadd.f32 %v7045, 1.0
      %v7110 = vadd.f32 %v7046, 1.0
      %v7111 = vadd.f32 %v7047, 1.0
      %v7112 = vadd.f32 %v7048, 1.0
      %v7113 = vadd.f32 %v7049, 1.0
      %v7114 = vadd.f32 %v7050, 1.0
      %v7115 = vadd.f32 %v7051, 1.0
      %v7116 = vadd.f32 %v7052, 1.0
      %v7117 = vadd.f32 %v7053, 1.0
      %v7118 = vadd.f32 %v7054, 1.0
      %v7119 = vadd.f32 %v7055, 1.0
      %v7120 = vadd.f32 %v7056, 1.0
      %v7121 = vadd.f32 %v7057, 1.0
      %v7122 = vadd.f32 %v7058, 1.0
      %v7123 = vadd.f32 %v7059, 1.0
      %v7124 = vadd.f32 %v7060, 1.0
      %v7125 = vadd.f32 %v7061, 1.0
      %v7126 = vadd.f32 %v7062, 1.0
      %v7127 = vadd.f32 %v7063, 1.0
      %v7128 = vadd.f32 %v7064, 1.0
      %v7129 = vadd.f32 %v7065, 1.0
      %v7130 = vadd.f32 %v7066, 1.0
      %v7131 = vadd.f32 %v7067, 1.0
      %v7132 = vadd.f32 %v7068, 1.0
      %v7133 = vadd.f32 %v7069, 1.0
      %v7134 = vadd.f32 %v7070, 1.0
      %v7135 = vadd.f32 %v7071, 1.0
      %v7136 = vadd.f32 %v7072, 1.0
      %v7137 = vadd.f32 %v7073, 1.0
      %v7138 = vadd.f32 %v7074, 1.0
      %v7139 = vadd.f32 %v7075, 1.0
      %v7140 = vadd.f32 %v7076, 1.0
      %v7141 = vadd.f32 %v7077, 1.0
      %v7142 = vadd.f32 %v7078, 1.0
      %v7143 = vadd.f32 %v7079, 1.0
      %v7144 = vadd.f32 %v7080, 1.0
      %v7145 = vadd.f32 %v7081, 1.0
      %v7146 = vadd.f32 %v7082, 1.0
      %v7147 = vadd.f32 %v7083, 1.0
      %v7148 = vadd.f32 %v7084, 1.0
      %v7149 = vadd.f32 %v7085, 1.0
      %v7150 = vadd.f32 %v7086, 1.0
      %v7151 = vadd.f32 %v7087, 1.0
      %v7152 = vadd.f32 %v7088, 1.0
      %v7153 = vmul.f32 %v6641, %v7089
      %v7154 = vmul.f32 %v6642, %v7090
      %v7155 = vmul.f32 %v6643, %v7091
      %v7156 = vmul.f32 %v6644, %v7092
      %v7157 = vmul.f32 %v6645, %v7093
      %v7158 = vmul.f32 %v6646, %v7094
      %v7159 = vmul.f32 %v6647, %v7095
      %v7160 = vmul.f32 %v6648, %v7096
      %v7161 = vmul.f32 %v6649, %v7097
      %v7162 = vmul.f32 %v6650, %v7098
      %v7163 = vmul.f32 %v6651, %v7099
      %v7164 = vmul.f32 %v6652, %v7100
      %v7165 = vmul.f32 %v6653, %v7101
      %v7166 = vmul.f32 %v6654, %v7102
      %v7167 = vmul.f32 %v6655, %v7103
      %v7168 = vmul.f32 %v6656, %v7104
      %v7169 = vmul.f32 %v6657, %v7105
      %v7170 = vmul.f32 %v6658, %v7106
      %v7171 = vmul.f32 %v6659, %v7107
      %v7172 = vmul.f32 %v6660, %v7108
      %v7173 = vmul.f32 %v6661, %v7109
      %v7174 = vmul.f32 %v6662, %v7110
      %v7175 = vmul.f32 %v6663, %v7111
      %v7176 = vmul.f32 %v6664, %v7112
      %v7177 = vmul.f32 %v6665, %v7113
      %v7178 = vmul.f32 %v6666, %v7114
      %v7179 = vmul.f32 %v6667, %v7115
      %v7180 = vmul.f32 %v6668, %v7116
      %v7181 = vmul.f32 %v6669, %v7117
      %v7182 = vmul.f32 %v6670, %v7118
      %v7183 = vmul.f32 %v6671, %v7119
      %v7184 = vmul.f32 %v6672, %v7120
      %v7185 = vmul.f32 %v6673, %v7121
      %v7186 = vmul.f32 %v6674, %v7122
      %v7187 = vmul.f32 %v6675, %v7123
      %v7188 = vmul.f32 %v6676, %v7124
      %v7189 = vmul.f32 %v6677, %v7125
      %v7190 = vmul.f32 %v6678, %v7126
      %v7191 = vmul.f32 %v6679, %v7127
      %v7192 = vmul.f32 %v6680, %v7128
      %v7193 = vmul.f32 %v6681, %v7129
      %v7194 = vmul.f32 %v6682, %v7130
      %v7195 = vmul.f32 %v6683, %v7131
      %v7196 = vmul.f32 %v6684, %v7132
      %v7197 = vmul.f32 %v6685, %v7133
      %v7198 = vmul.f32 %v6686, %v7134
      %v7199 = vmul.f32 %v6687, %v7135
      %v7200 = vmul.f32 %v6688, %v7136
      %v7201 = vmul.f32 %v6689, %v7137
      %v7202 = vmul.f32 %v6690, %v7138
      %v7203 = vmul.f32 %v6691, %v7139
      %v7204 = vmul.f32 %v6692, %v7140
      %v7205 = vmul.f32 %v6693, %v7141
      %v7206 = vmul.f32 %v6694, %v7142
      %v7207 = vmul.f32 %v6695, %v7143
      %v7208 = vmul.f32 %v6696, %v7144
      %v7209 = vmul.f32 %v6697, %v7145
      %v7210 = vmul.f32 %v6698, %v7146
      %v7211 = vmul.f32 %v6699, %v7147
      %v7212 = vmul.f32 %v6700, %v7148
      %v7213 = vmul.f32 %v6701, %v7149
      %v7214 = vmul.f32 %v6702, %v7150
      %v7215 = vmul.f32 %v6703, %v7151
      %v7216 = vmul.f32 %v6704, %v7152
      %v7217 = vpack.c.bf16 %v7155, %v7153
      %v7218 = vpack.c.bf16 %v7156, %v7154
      %v7219 = vpack.c.bf16 %v7159, %v7157
      %v7220 = vpack.c.bf16 %v7160, %v7158
      %v7221 = vpack.c.bf16 %v7163, %v7161
      %v7222 = vpack.c.bf16 %v7164, %v7162
      %v7223 = vpack.c.bf16 %v7167, %v7165
      %v7224 = vpack.c.bf16 %v7168, %v7166
      %v7225 = vpack.c.bf16 %v7171, %v7169
      %v7226 = vpack.c.bf16 %v7172, %v7170
      %v7227 = vpack.c.bf16 %v7175, %v7173
      %v7228 = vpack.c.bf16 %v7176, %v7174
      %v7229 = vpack.c.bf16 %v7179, %v7177
      %v7230 = vpack.c.bf16 %v7180, %v7178
      %v7231 = vpack.c.bf16 %v7183, %v7181
      %v7232 = vpack.c.bf16 %v7184, %v7182
      %v7233 = vpack.c.bf16 %v7187, %v7185
      %v7234 = vpack.c.bf16 %v7188, %v7186
      %v7235 = vpack.c.bf16 %v7191, %v7189
      %v7236 = vpack.c.bf16 %v7192, %v7190
      %v7237 = vpack.c.bf16 %v7195, %v7193
      %v7238 = vpack.c.bf16 %v7196, %v7194
      %v7239 = vpack.c.bf16 %v7199, %v7197
      %v7240 = vpack.c.bf16 %v7200, %v7198
      %v7241 = vpack.c.bf16 %v7203, %v7201
      %v7242 = vpack.c.bf16 %v7204, %v7202
      %v7243 = vpack.c.bf16 %v7207, %v7205
      %v7244 = vpack.c.bf16 %v7208, %v7206
      %v7245 = vpack.c.bf16 %v7211, %v7209
      %v7246 = vpack.c.bf16 %v7212, %v7210
      %v7247 = vpack.c.bf16 %v7215, %v7213
      %v7248 = vpack.c.bf16 %v7216, %v7214
      %v7249 = vld [vmem:[%s10] sm:$0xff]
      %v7250 = vld [vmem:[%s10 + $0x8] sm:$0xff]
      %v7251 = vld [vmem:[%s10 + $0x10] sm:$0xff]
      %v7252 = vld [vmem:[%s10 + $0x18] sm:$0xff]
      %v7253 = vld [vmem:[%s10 + $0x20] sm:$0xff]
      %v7254 = vld [vmem:[%s10 + $0x28] sm:$0xff]
      %v7255 = vld [vmem:[%s10 + $0x30] sm:$0xff]
      %v7256 = vld [vmem:[%s10 + $0x38] sm:$0xff]
      %v7257 = vld [vmem:[%s10 + $0x40] sm:$0xff]
      %v7258 = vld [vmem:[%s10 + $0x48] sm:$0xff]
      %v7259 = vld [vmem:[%s10 + $0x50] sm:$0xff]
      %v7260 = vld [vmem:[%s10 + $0x58] sm:$0xff]
      %v7261 = vld [vmem:[%s10 + $0x60] sm:$0xff]
      %v7262 = vld [vmem:[%s10 + $0x68] sm:$0xff]
      %v7263 = vld [vmem:[%s10 + $0x70] sm:$0xff]
      %v7264 = vld [vmem:[%s10 + $0x78] sm:$0xff]
      %v7265 = vld [vmem:[%s10 + $0x80] sm:$0xff]
      %v7266 = vld [vmem:[%s10 + $0x88] sm:$0xff]
      %v7267 = vld [vmem:[%s10 + $0x90] sm:$0xff]
      %v7268 = vld [vmem:[%s10 + $0x98] sm:$0xff]
      %v7269 = vld [vmem:[%s10 + $0xa0] sm:$0xff]
      %v7270 = vld [vmem:[%s10 + $0xa8] sm:$0xff]
      %v7271 = vld [vmem:[%s10 + $0xb0] sm:$0xff]
      %v7272 = vld [vmem:[%s10 + $0xb8] sm:$0xff]
      %v7273 = vld [vmem:[%s10 + $0xc0] sm:$0xff]
      %v7274 = vld [vmem:[%s10 + $0xc8] sm:$0xff]
      %v7275 = vld [vmem:[%s10 + $0xd0] sm:$0xff]
      %v7276 = vld [vmem:[%s10 + $0xd8] sm:$0xff]
      %v7277 = vld [vmem:[%s10 + $0xe0] sm:$0xff]
      %v7278 = vld [vmem:[%s10 + $0xe8] sm:$0xff]
      %v7279 = vld [vmem:[%s10 + $0xf0] sm:$0xff]
      %v7280 = vld [vmem:[%s10 + $0xf8] sm:$0xff]
      %v7281 = vld [vmem:[%s540] sm:$0x3]
      %v7283 = vlaneseq
      %v7284 = vshrl.u32 %v7283, 7
      %v7285 = vsub.s32 0, %v7284
      %v7286 = vrot.slane %v7281, %v7285
      %v7287 = vlaneseq
      %v7288 = vshrl.u32 %v7287, 7
      %v7289 = vsub.s32 1, %v7288
      %v7290 = vrot.slane %v7281, %v7289
      %v7325 = vunpack.c.l.b16 %v7249
      %v7326 = vunpack.c.h.b16 %v7249
      %v7327 = vunpack.c.l.b16 %v7250
      %v7328 = vunpack.c.h.b16 %v7250
      %v7329 = vunpack.c.l.b16 %v7251
      %v7330 = vunpack.c.h.b16 %v7251
      %v7331 = vunpack.c.l.b16 %v7252
      %v7332 = vunpack.c.h.b16 %v7252
      %v7333 = vunpack.c.l.b16 %v7253
      %v7334 = vunpack.c.h.b16 %v7253
      %v7335 = vunpack.c.l.b16 %v7254
      %v7336 = vunpack.c.h.b16 %v7254
      %v7337 = vunpack.c.l.b16 %v7255
      %v7338 = vunpack.c.h.b16 %v7255
      %v7339 = vunpack.c.l.b16 %v7256
      %v7340 = vunpack.c.h.b16 %v7256
      %v7341 = vunpack.c.l.b16 %v7257
      %v7342 = vunpack.c.h.b16 %v7257
      %v7343 = vunpack.c.l.b16 %v7258
      %v7344 = vunpack.c.h.b16 %v7258
      %v7345 = vunpack.c.l.b16 %v7259
      %v7346 = vunpack.c.h.b16 %v7259
      %v7347 = vunpack.c.l.b16 %v7260
      %v7348 = vunpack.c.h.b16 %v7260
      %v7349 = vunpack.c.l.b16 %v7261
      %v7350 = vunpack.c.h.b16 %v7261
      %v7351 = vunpack.c.l.b16 %v7262
      %v7352 = vunpack.c.h.b16 %v7262
      %v7353 = vunpack.c.l.b16 %v7263
      %v7354 = vunpack.c.h.b16 %v7263
      %v7355 = vunpack.c.l.b16 %v7264
      %v7356 = vunpack.c.h.b16 %v7264
      %v7357 = vunpack.c.l.b16 %v7265
      %v7358 = vunpack.c.h.b16 %v7265
      %v7359 = vunpack.c.l.b16 %v7266
      %v7360 = vunpack.c.h.b16 %v7266
      %v7361 = vunpack.c.l.b16 %v7267
      %v7362 = vunpack.c.h.b16 %v7267
      %v7363 = vunpack.c.l.b16 %v7268
      %v7364 = vunpack.c.h.b16 %v7268
      %v7365 = vunpack.c.l.b16 %v7269
      %v7366 = vunpack.c.h.b16 %v7269
      %v7367 = vunpack.c.l.b16 %v7270
      %v7368 = vunpack.c.h.b16 %v7270
      %v7369 = vunpack.c.l.b16 %v7271
      %v7370 = vunpack.c.h.b16 %v7271
      %v7371 = vunpack.c.l.b16 %v7272
      %v7372 = vunpack.c.h.b16 %v7272
      %v7373 = vunpack.c.l.b16 %v7273
      %v7374 = vunpack.c.h.b16 %v7273
      %v7375 = vunpack.c.l.b16 %v7274
      %v7376 = vunpack.c.h.b16 %v7274
      %v7377 = vunpack.c.l.b16 %v7275
      %v7378 = vunpack.c.h.b16 %v7275
      %v7379 = vunpack.c.l.b16 %v7276
      %v7380 = vunpack.c.h.b16 %v7276
      %v7381 = vunpack.c.l.b16 %v7277
      %v7382 = vunpack.c.h.b16 %v7277
      %v7383 = vunpack.c.l.b16 %v7278
      %v7384 = vunpack.c.h.b16 %v7278
      %v7385 = vunpack.c.l.b16 %v7279
      %v7386 = vunpack.c.h.b16 %v7279
      %v7387 = vunpack.c.l.b16 %v7280
      %v7388 = vunpack.c.h.b16 %v7280
      %v7389 = vpack.c.b16 %v7327, %v7325
      %v7390 = vpack.c.b16 %v7328, %v7326
      %v7391 = vpack.c.b16 %v7331, %v7329
      %v7392 = vpack.c.b16 %v7332, %v7330
      %v7393 = vpack.c.b16 %v7335, %v7333
      %v7394 = vpack.c.b16 %v7336, %v7334
      %v7395 = vpack.c.b16 %v7339, %v7337
      %v7396 = vpack.c.b16 %v7340, %v7338
      %v7397 = vpack.c.b16 %v7343, %v7341
      %v7398 = vpack.c.b16 %v7344, %v7342
      %v7399 = vpack.c.b16 %v7347, %v7345
      %v7400 = vpack.c.b16 %v7348, %v7346
      %v7401 = vpack.c.b16 %v7351, %v7349
      %v7402 = vpack.c.b16 %v7352, %v7350
      %v7403 = vpack.c.b16 %v7355, %v7353
      %v7404 = vpack.c.b16 %v7356, %v7354
      %v7405 = vpack.c.b16 %v7359, %v7357
      %v7406 = vpack.c.b16 %v7360, %v7358
      %v7407 = vpack.c.b16 %v7363, %v7361
      %v7408 = vpack.c.b16 %v7364, %v7362
      %v7409 = vpack.c.b16 %v7367, %v7365
      %v7410 = vpack.c.b16 %v7368, %v7366
      %v7411 = vpack.c.b16 %v7371, %v7369
      %v7412 = vpack.c.b16 %v7372, %v7370
      %v7413 = vpack.c.b16 %v7375, %v7373
      %v7414 = vpack.c.b16 %v7376, %v7374
      %v7415 = vpack.c.b16 %v7379, %v7377
      %v7416 = vpack.c.b16 %v7380, %v7378
      %v7417 = vpack.c.b16 %v7383, %v7381
      %v7418 = vpack.c.b16 %v7384, %v7382
      %v7419 = vpack.c.b16 %v7387, %v7385
      %v7420 = vpack.c.b16 %v7388, %v7386
      %7453 = vmatprep.subr.bf16.mxu0 %v7404
      %7454 = vmatpush1.bf16.msra.mxu0 %v7403
      %7455 = vmatprep.subr.bf16.mxu0 %v7402
      %7456 = vmatpush1.bf16.msra.mxu0 %v7401
      %7457 = vmatprep.subr.bf16.mxu0 %v7400
      %7458 = vmatpush1.bf16.msra.mxu0 %v7399
      %7459 = vmatprep.subr.bf16.mxu0 %v7398
      %7460 = vmatpush1.bf16.msra.mxu0 %v7397
      %7461 = vmatprep.subr.bf16.mxu0 %v7396
      %7462 = vmatpush1.bf16.msra.mxu0 %v7395
      %7463 = vmatprep.subr.bf16.mxu0 %v7394
      %7464 = vmatpush1.bf16.msra.mxu0 %v7393
      %7465 = vmatprep.subr.bf16.mxu0 %v7392
      %7466 = vmatpush1.bf16.msra.mxu0 %v7391
      %7467 = vmatprep.subr.bf16.mxu0 %v7390
      %7468 = vmatpush1.bf16.msra.mxu0 %v7389
      %7469 = vmatprep.subr.bf16.mxu0 %v7420
      %7470 = vmatpush2.bf16.msra.mxu0 %v7419
      %7471 = vmatprep.subr.bf16.mxu0 %v7418
      %7472 = vmatpush2.bf16.msra.mxu0 %v7417
      %7473 = vmatprep.subr.bf16.mxu0 %v7416
      %7474 = vmatpush2.bf16.msra.mxu0 %v7415
      %7475 = vmatprep.subr.bf16.mxu0 %v7414
      %7476 = vmatpush2.bf16.msra.mxu0 %v7413
      %7477 = vmatprep.subr.bf16.mxu0 %v7412
      %7478 = vmatpush2.bf16.msra.mxu0 %v7411
      %7479 = vmatprep.subr.bf16.mxu0 %v7410
      %7480 = vmatpush2.bf16.msra.mxu0 %v7409
      %7481 = vmatprep.subr.bf16.mxu0 %v7408
      %7482 = vmatpush2.bf16.msra.mxu0 %v7407
      %7483 = vmatprep.subr.bf16.mxu0 %v7406
      %7484 = vmatpush2.bf16.msra.mxu0 %v7405
      %7485 = vmatprep.mubr.bf16.mxu0 %v7218
      %7486 = vmatmul.mubr.bf16.gmra.mxu0 %v7217
      %v7487 = vpop.f32.mrf.mxu0
      %v7488 = vadd.f32 %v7286, %v7487
      %v7489 = vpop.f32.mrf.mxu0
      %v7490 = vadd.f32 %v7290, %v7489
      %v7491 = vpop.f32.mrf.mxu0
      %v7492 = vadd.f32 %v7286, %v7491
      %v7493 = vpop.f32.mrf.mxu0
      %v7494 = vadd.f32 %v7290, %v7493
      %7495 = vmatprep.mubr.bf16.mxu0 %v7220
      %7496 = vmatmul.mubr.bf16.gmra.mxu0 %v7219
      %v7497 = vpop.f32.mrf.mxu0
      %v7498 = vadd.f32 %v7286, %v7497
      %v7499 = vpop.f32.mrf.mxu0
      %v7500 = vadd.f32 %v7290, %v7499
      %v7501 = vpop.f32.mrf.mxu0
      %v7502 = vadd.f32 %v7286, %v7501
      %v7503 = vpop.f32.mrf.mxu0
      %v7504 = vadd.f32 %v7290, %v7503
      %7505 = vmatprep.mubr.bf16.mxu0 %v7222
      %7506 = vmatmul.mubr.bf16.gmra.mxu0 %v7221
      %v7507 = vpop.f32.mrf.mxu0
      %v7508 = vadd.f32 %v7286, %v7507
      %v7509 = vpop.f32.mrf.mxu0
      %v7510 = vadd.f32 %v7290, %v7509
      %v7511 = vpop.f32.mrf.mxu0
      %v7512 = vadd.f32 %v7286, %v7511
      %v7513 = vpop.f32.mrf.mxu0
      %v7514 = vadd.f32 %v7290, %v7513
      %7515 = vmatprep.mubr.bf16.mxu0 %v7224
      %7516 = vmatmul.mubr.bf16.gmra.mxu0 %v7223
      %v7517 = vpop.f32.mrf.mxu0
      %v7518 = vadd.f32 %v7286, %v7517
      %v7519 = vpop.f32.mrf.mxu0
      %v7520 = vadd.f32 %v7290, %v7519
      %v7521 = vpop.f32.mrf.mxu0
      %v7522 = vadd.f32 %v7286, %v7521
      %v7523 = vpop.f32.mrf.mxu0
      %v7524 = vadd.f32 %v7290, %v7523
      %7525 = vmatprep.mubr.bf16.mxu0 %v7226
      %7526 = vmatmul.mubr.bf16.gmra.mxu0 %v7225
      %v7527 = vpop.f32.mrf.mxu0
      %v7528 = vadd.f32 %v7286, %v7527
      %v7529 = vpop.f32.mrf.mxu0
      %v7530 = vadd.f32 %v7290, %v7529
      %v7531 = vpop.f32.mrf.mxu0
      %v7532 = vadd.f32 %v7286, %v7531
      %v7533 = vpop.f32.mrf.mxu0
      %v7534 = vadd.f32 %v7290, %v7533
      %7535 = vmatprep.mubr.bf16.mxu0 %v7228
      %7536 = vmatmul.mubr.bf16.gmra.mxu0 %v7227
      %v7537 = vpop.f32.mrf.mxu0
      %v7538 = vadd.f32 %v7286, %v7537
      %v7539 = vpop.f32.mrf.mxu0
      %v7540 = vadd.f32 %v7290, %v7539
      %v7541 = vpop.f32.mrf.mxu0
      %v7542 = vadd.f32 %v7286, %v7541
      %v7543 = vpop.f32.mrf.mxu0
      %v7544 = vadd.f32 %v7290, %v7543
      %7545 = vmatprep.mubr.bf16.mxu0 %v7230
      %7546 = vmatmul.mubr.bf16.gmra.mxu0 %v7229
      %v7547 = vpop.f32.mrf.mxu0
      %v7548 = vadd.f32 %v7286, %v7547
      %v7549 = vpop.f32.mrf.mxu0
      %v7550 = vadd.f32 %v7290, %v7549
      %v7551 = vpop.f32.mrf.mxu0
      %v7552 = vadd.f32 %v7286, %v7551
      %v7553 = vpop.f32.mrf.mxu0
      %v7554 = vadd.f32 %v7290, %v7553
      %7555 = vmatprep.mubr.bf16.mxu0 %v7232
      %7556 = vmatmul.mubr.bf16.gmra.mxu0 %v7231
      %v7557 = vpop.f32.mrf.mxu0
      %v7558 = vadd.f32 %v7286, %v7557
      %v7559 = vpop.f32.mrf.mxu0
      %v7560 = vadd.f32 %v7290, %v7559
      %v7561 = vpop.f32.mrf.mxu0
      %v7562 = vadd.f32 %v7286, %v7561
      %v7563 = vpop.f32.mrf.mxu0
      %v7564 = vadd.f32 %v7290, %v7563
      %7565 = vmatprep.mubr.bf16.mxu0 %v7234
      %7566 = vmatmul.mubr.bf16.gmra.mxu0 %v7233
      %v7567 = vpop.f32.mrf.mxu0
      %v7568 = vadd.f32 %v7286, %v7567
      %v7569 = vpop.f32.mrf.mxu0
      %v7570 = vadd.f32 %v7290, %v7569
      %v7571 = vpop.f32.mrf.mxu0
      %v7572 = vadd.f32 %v7286, %v7571
      %v7573 = vpop.f32.mrf.mxu0
      %v7574 = vadd.f32 %v7290, %v7573
      %7575 = vmatprep.mubr.bf16.mxu0 %v7236
      %7576 = vmatmul.mubr.bf16.gmra.mxu0 %v7235
      %v7577 = vpop.f32.mrf.mxu0
      %v7578 = vadd.f32 %v7286, %v7577
      %v7579 = vpop.f32.mrf.mxu0
      %v7580 = vadd.f32 %v7290, %v7579
      %v7581 = vpop.f32.mrf.mxu0
      %v7582 = vadd.f32 %v7286, %v7581
      %v7583 = vpop.f32.mrf.mxu0
      %v7584 = vadd.f32 %v7290, %v7583
      %7585 = vmatprep.mubr.bf16.mxu0 %v7238
      %7586 = vmatmul.mubr.bf16.gmra.mxu0 %v7237
      %v7587 = vpop.f32.mrf.mxu0
      %v7588 = vadd.f32 %v7286, %v7587
      %v7589 = vpop.f32.mrf.mxu0
      %v7590 = vadd.f32 %v7290, %v7589
      %v7591 = vpop.f32.mrf.mxu0
      %v7592 = vadd.f32 %v7286, %v7591
      %v7593 = vpop.f32.mrf.mxu0
      %v7594 = vadd.f32 %v7290, %v7593
      %7595 = vmatprep.mubr.bf16.mxu0 %v7240
      %7596 = vmatmul.mubr.bf16.gmra.mxu0 %v7239
      %v7597 = vpop.f32.mrf.mxu0
      %v7598 = vadd.f32 %v7286, %v7597
      %v7599 = vpop.f32.mrf.mxu0
      %v7600 = vadd.f32 %v7290, %v7599
      %v7601 = vpop.f32.mrf.mxu0
      %v7602 = vadd.f32 %v7286, %v7601
      %v7603 = vpop.f32.mrf.mxu0
      %v7604 = vadd.f32 %v7290, %v7603
      %7605 = vmatprep.mubr.bf16.mxu0 %v7242
      %7606 = vmatmul.mubr.bf16.gmra.mxu0 %v7241
      %v7607 = vpop.f32.mrf.mxu0
      %v7608 = vadd.f32 %v7286, %v7607
      %v7609 = vpop.f32.mrf.mxu0
      %v7610 = vadd.f32 %v7290, %v7609
      %v7611 = vpop.f32.mrf.mxu0
      %v7612 = vadd.f32 %v7286, %v7611
      %v7613 = vpop.f32.mrf.mxu0
      %v7614 = vadd.f32 %v7290, %v7613
      %7615 = vmatprep.mubr.bf16.mxu0 %v7244
      %7616 = vmatmul.mubr.bf16.gmra.mxu0 %v7243
      %v7617 = vpop.f32.mrf.mxu0
      %v7618 = vadd.f32 %v7286, %v7617
      %v7619 = vpop.f32.mrf.mxu0
      %v7620 = vadd.f32 %v7290, %v7619
      %v7621 = vpop.f32.mrf.mxu0
      %v7622 = vadd.f32 %v7286, %v7621
      %v7623 = vpop.f32.mrf.mxu0
      %v7624 = vadd.f32 %v7290, %v7623
      %7625 = vmatprep.mubr.bf16.mxu0 %v7246
      %7626 = vmatmul.mubr.bf16.gmra.mxu0 %v7245
      %v7627 = vpop.f32.mrf.mxu0
      %v7628 = vadd.f32 %v7286, %v7627
      %v7629 = vpop.f32.mrf.mxu0
      %v7630 = vadd.f32 %v7290, %v7629
      %v7631 = vpop.f32.mrf.mxu0
      %v7632 = vadd.f32 %v7286, %v7631
      %v7633 = vpop.f32.mrf.mxu0
      %v7634 = vadd.f32 %v7290, %v7633
      %7635 = vmatprep.mubr.bf16.mxu0 %v7248
      %7636 = vmatmul.mubr.bf16.gmra.mxu0 %v7247
      %v7637 = vpop.f32.mrf.mxu0
      %v7638 = vadd.f32 %v7286, %v7637
      %v7639 = vpop.f32.mrf.mxu0
      %v7640 = vadd.f32 %v7290, %v7639
      %v7641 = vpop.f32.mrf.mxu0
      %v7642 = vadd.f32 %v7286, %v7641
      %v7643 = vpop.f32.mrf.mxu0
      %v7644 = vadd.f32 %v7290, %v7643
      %7645 = vdwg.mxu0
      %v7646 = vmul.f32 %v7488, 0.5
      %v7647 = vmul.f32 %v7490, 0.5
      %v7648 = vmul.f32 %v7492, 0.5
      %v7649 = vmul.f32 %v7494, 0.5
      %v7650 = vmul.f32 %v7498, 0.5
      %v7651 = vmul.f32 %v7500, 0.5
      %v7652 = vmul.f32 %v7502, 0.5
      %v7653 = vmul.f32 %v7504, 0.5
      %v7654 = vmul.f32 %v7508, 0.5
      %v7655 = vmul.f32 %v7510, 0.5
      %v7656 = vmul.f32 %v7512, 0.5
      %v7657 = vmul.f32 %v7514, 0.5
      %v7658 = vmul.f32 %v7518, 0.5
      %v7659 = vmul.f32 %v7520, 0.5
      %v7660 = vmul.f32 %v7522, 0.5
      %v7661 = vmul.f32 %v7524, 0.5
      %v7662 = vmul.f32 %v7528, 0.5
      %v7663 = vmul.f32 %v7530, 0.5
      %v7664 = vmul.f32 %v7532, 0.5
      %v7665 = vmul.f32 %v7534, 0.5
      %v7666 = vmul.f32 %v7538, 0.5
      %v7667 = vmul.f32 %v7540, 0.5
      %v7668 = vmul.f32 %v7542, 0.5
      %v7669 = vmul.f32 %v7544, 0.5
      %v7670 = vmul.f32 %v7548, 0.5
      %v7671 = vmul.f32 %v7550, 0.5
      %v7672 = vmul.f32 %v7552, 0.5
      %v7673 = vmul.f32 %v7554, 0.5
      %v7674 = vmul.f32 %v7558, 0.5
      %v7675 = vmul.f32 %v7560, 0.5
      %v7676 = vmul.f32 %v7562, 0.5
      %v7677 = vmul.f32 %v7564, 0.5
      %v7678 = vmul.f32 %v7568, 0.5
      %v7679 = vmul.f32 %v7570, 0.5
      %v7680 = vmul.f32 %v7572, 0.5
      %v7681 = vmul.f32 %v7574, 0.5
      %v7682 = vmul.f32 %v7578, 0.5
      %v7683 = vmul.f32 %v7580, 0.5
      %v7684 = vmul.f32 %v7582, 0.5
      %v7685 = vmul.f32 %v7584, 0.5
      %v7686 = vmul.f32 %v7588, 0.5
      %v7687 = vmul.f32 %v7590, 0.5
      %v7688 = vmul.f32 %v7592, 0.5
      %v7689 = vmul.f32 %v7594, 0.5
      %v7690 = vmul.f32 %v7598, 0.5
      %v7691 = vmul.f32 %v7600, 0.5
      %v7692 = vmul.f32 %v7602, 0.5
      %v7693 = vmul.f32 %v7604, 0.5
      %v7694 = vmul.f32 %v7608, 0.5
      %v7695 = vmul.f32 %v7610, 0.5
      %v7696 = vmul.f32 %v7612, 0.5
      %v7697 = vmul.f32 %v7614, 0.5
      %v7698 = vmul.f32 %v7618, 0.5
      %v7699 = vmul.f32 %v7620, 0.5
      %v7700 = vmul.f32 %v7622, 0.5
      %v7701 = vmul.f32 %v7624, 0.5
      %v7702 = vmul.f32 %v7628, 0.5
      %v7703 = vmul.f32 %v7630, 0.5
      %v7704 = vmul.f32 %v7632, 0.5
      %v7705 = vmul.f32 %v7634, 0.5
      %v7706 = vmul.f32 %v7638, 0.5
      %v7707 = vmul.f32 %v7640, 0.5
      %v7708 = vmul.f32 %v7642, 0.5
      %v7709 = vmul.f32 %v7644, 0.5
      %v7710 = vmul.f32 %v7488, 0.044715
      %v7711 = vmul.f32 %v7490, 0.044715
      %v7712 = vmul.f32 %v7492, 0.044715
      %v7713 = vmul.f32 %v7494, 0.044715
      %v7714 = vmul.f32 %v7498, 0.044715
      %v7715 = vmul.f32 %v7500, 0.044715
      %v7716 = vmul.f32 %v7502, 0.044715
      %v7717 = vmul.f32 %v7504, 0.044715
      %v7718 = vmul.f32 %v7508, 0.044715
      %v7719 = vmul.f32 %v7510, 0.044715
      %v7720 = vmul.f32 %v7512, 0.044715
      %v7721 = vmul.f32 %v7514, 0.044715
      %v7722 = vmul.f32 %v7518, 0.044715
      %v7723 = vmul.f32 %v7520, 0.044715
      %v7724 = vmul.f32 %v7522, 0.044715
      %v7725 = vmul.f32 %v7524, 0.044715
      %v7726 = vmul.f32 %v7528, 0.044715
      %v7727 = vmul.f32 %v7530, 0.044715
      %v7728 = vmul.f32 %v7532, 0.044715
      %v7729 = vmul.f32 %v7534, 0.044715
      %v7730 = vmul.f32 %v7538, 0.044715
      %v7731 = vmul.f32 %v7540, 0.044715
      %v7732 = vmul.f32 %v7542, 0.044715
      %v7733 = vmul.f32 %v7544, 0.044715
      %v7734 = vmul.f32 %v7548, 0.044715
      %v7735 = vmul.f32 %v7550, 0.044715
      %v7736 = vmul.f32 %v7552, 0.044715
      %v7737 = vmul.f32 %v7554, 0.044715
      %v7738 = vmul.f32 %v7558, 0.044715
      %v7739 = vmul.f32 %v7560, 0.044715
      %v7740 = vmul.f32 %v7562, 0.044715
      %v7741 = vmul.f32 %v7564, 0.044715
      %v7742 = vmul.f32 %v7568, 0.044715
      %v7743 = vmul.f32 %v7570, 0.044715
      %v7744 = vmul.f32 %v7572, 0.044715
      %v7745 = vmul.f32 %v7574, 0.044715
      %v7746 = vmul.f32 %v7578, 0.044715
      %v7747 = vmul.f32 %v7580, 0.044715
      %v7748 = vmul.f32 %v7582, 0.044715
      %v7749 = vmul.f32 %v7584, 0.044715
      %v7750 = vmul.f32 %v7588, 0.044715
      %v7751 = vmul.f32 %v7590, 0.044715
      %v7752 = vmul.f32 %v7592, 0.044715
      %v7753 = vmul.f32 %v7594, 0.044715
      %v7754 = vmul.f32 %v7598, 0.044715
      %v7755 = vmul.f32 %v7600, 0.044715
      %v7756 = vmul.f32 %v7602, 0.044715
      %v7757 = vmul.f32 %v7604, 0.044715
      %v7758 = vmul.f32 %v7608, 0.044715
      %v7759 = vmul.f32 %v7610, 0.044715
      %v7760 = vmul.f32 %v7612, 0.044715
      %v7761 = vmul.f32 %v7614, 0.044715
      %v7762 = vmul.f32 %v7618, 0.044715
      %v7763 = vmul.f32 %v7620, 0.044715
      %v7764 = vmul.f32 %v7622, 0.044715
      %v7765 = vmul.f32 %v7624, 0.044715
      %v7766 = vmul.f32 %v7628, 0.044715
      %v7767 = vmul.f32 %v7630, 0.044715
      %v7768 = vmul.f32 %v7632, 0.044715
      %v7769 = vmul.f32 %v7634, 0.044715
      %v7770 = vmul.f32 %v7638, 0.044715
      %v7771 = vmul.f32 %v7640, 0.044715
      %v7772 = vmul.f32 %v7642, 0.044715
      %v7773 = vmul.f32 %v7644, 0.044715
      %v7774 = vmul.f32 %v7710, %v7488
      %v7775 = vmul.f32 %v7711, %v7490
      %v7776 = vmul.f32 %v7712, %v7492
      %v7777 = vmul.f32 %v7713, %v7494
      %v7778 = vmul.f32 %v7714, %v7498
      %v7779 = vmul.f32 %v7715, %v7500
      %v7780 = vmul.f32 %v7716, %v7502
      %v7781 = vmul.f32 %v7717, %v7504
      %v7782 = vmul.f32 %v7718, %v7508
      %v7783 = vmul.f32 %v7719, %v7510
      %v7784 = vmul.f32 %v7720, %v7512
      %v7785 = vmul.f32 %v7721, %v7514
      %v7786 = vmul.f32 %v7722, %v7518
      %v7787 = vmul.f32 %v7723, %v7520
      %v7788 = vmul.f32 %v7724, %v7522
      %v7789 = vmul.f32 %v7725, %v7524
      %v7790 = vmul.f32 %v7726, %v7528
      %v7791 = vmul.f32 %v7727, %v7530
      %v7792 = vmul.f32 %v7728, %v7532
      %v7793 = vmul.f32 %v7729, %v7534
      %v7794 = vmul.f32 %v7730, %v7538
      %v7795 = vmul.f32 %v7731, %v7540
      %v7796 = vmul.f32 %v7732, %v7542
      %v7797 = vmul.f32 %v7733, %v7544
      %v7798 = vmul.f32 %v7734, %v7548
      %v7799 = vmul.f32 %v7735, %v7550
      %v7800 = vmul.f32 %v7736, %v7552
      %v7801 = vmul.f32 %v7737, %v7554
      %v7802 = vmul.f32 %v7738, %v7558
      %v7803 = vmul.f32 %v7739, %v7560
      %v7804 = vmul.f32 %v7740, %v7562
      %v7805 = vmul.f32 %v7741, %v7564
      %v7806 = vmul.f32 %v7742, %v7568
      %v7807 = vmul.f32 %v7743, %v7570
      %v7808 = vmul.f32 %v7744, %v7572
      %v7809 = vmul.f32 %v7745, %v7574
      %v7810 = vmul.f32 %v7746, %v7578
      %v7811 = vmul.f32 %v7747, %v7580
      %v7812 = vmul.f32 %v7748, %v7582
      %v7813 = vmul.f32 %v7749, %v7584
      %v7814 = vmul.f32 %v7750, %v7588
      %v7815 = vmul.f32 %v7751, %v7590
      %v7816 = vmul.f32 %v7752, %v7592
      %v7817 = vmul.f32 %v7753, %v7594
      %v7818 = vmul.f32 %v7754, %v7598
      %v7819 = vmul.f32 %v7755, %v7600
      %v7820 = vmul.f32 %v7756, %v7602
      %v7821 = vmul.f32 %v7757, %v7604
      %v7822 = vmul.f32 %v7758, %v7608
      %v7823 = vmul.f32 %v7759, %v7610
      %v7824 = vmul.f32 %v7760, %v7612
      %v7825 = vmul.f32 %v7761, %v7614
      %v7826 = vmul.f32 %v7762, %v7618
      %v7827 = vmul.f32 %v7763, %v7620
      %v7828 = vmul.f32 %v7764, %v7622
      %v7829 = vmul.f32 %v7765, %v7624
      %v7830 = vmul.f32 %v7766, %v7628
      %v7831 = vmul.f32 %v7767, %v7630
      %v7832 = vmul.f32 %v7768, %v7632
      %v7833 = vmul.f32 %v7769, %v7634
      %v7834 = vmul.f32 %v7770, %v7638
      %v7835 = vmul.f32 %v7771, %v7640
      %v7836 = vmul.f32 %v7772, %v7642
      %v7837 = vmul.f32 %v7773, %v7644
      %v7838 = vmul.f32 %v7774, %v7488
      %v7839 = vmul.f32 %v7775, %v7490
      %v7840 = vmul.f32 %v7776, %v7492
      %v7841 = vmul.f32 %v7777, %v7494
      %v7842 = vmul.f32 %v7778, %v7498
      %v7843 = vmul.f32 %v7779, %v7500
      %v7844 = vmul.f32 %v7780, %v7502
      %v7845 = vmul.f32 %v7781, %v7504
      %v7846 = vmul.f32 %v7782, %v7508
      %v7847 = vmul.f32 %v7783, %v7510
      %v7848 = vmul.f32 %v7784, %v7512
      %v7849 = vmul.f32 %v7785, %v7514
      %v7850 = vmul.f32 %v7786, %v7518
      %v7851 = vmul.f32 %v7787, %v7520
      %v7852 = vmul.f32 %v7788, %v7522
      %v7853 = vmul.f32 %v7789, %v7524
      %v7854 = vmul.f32 %v7790, %v7528
      %v7855 = vmul.f32 %v7791, %v7530
      %v7856 = vmul.f32 %v7792, %v7532
      %v7857 = vmul.f32 %v7793, %v7534
      %v7858 = vmul.f32 %v7794, %v7538
      %v7859 = vmul.f32 %v7795, %v7540
      %v7860 = vmul.f32 %v7796, %v7542
      %v7861 = vmul.f32 %v7797, %v7544
      %v7862 = vmul.f32 %v7798, %v7548
      %v7863 = vmul.f32 %v7799, %v7550
      %v7864 = vmul.f32 %v7800, %v7552
      %v7865 = vmul.f32 %v7801, %v7554
      %v7866 = vmul.f32 %v7802, %v7558
      %v7867 = vmul.f32 %v7803, %v7560
      %v7868 = vmul.f32 %v7804, %v7562
      %v7869 = vmul.f32 %v7805, %v7564
      %v7870 = vmul.f32 %v7806, %v7568
      %v7871 = vmul.f32 %v7807, %v7570
      %v7872 = vmul.f32 %v7808, %v7572
      %v7873 = vmul.f32 %v7809, %v7574
      %v7874 = vmul.f32 %v7810, %v7578
      %v7875 = vmul.f32 %v7811, %v7580
      %v7876 = vmul.f32 %v7812, %v7582
      %v7877 = vmul.f32 %v7813, %v7584
      %v7878 = vmul.f32 %v7814, %v7588
      %v7879 = vmul.f32 %v7815, %v7590
      %v7880 = vmul.f32 %v7816, %v7592
      %v7881 = vmul.f32 %v7817, %v7594
      %v7882 = vmul.f32 %v7818, %v7598
      %v7883 = vmul.f32 %v7819, %v7600
      %v7884 = vmul.f32 %v7820, %v7602
      %v7885 = vmul.f32 %v7821, %v7604
      %v7886 = vmul.f32 %v7822, %v7608
      %v7887 = vmul.f32 %v7823, %v7610
      %v7888 = vmul.f32 %v7824, %v7612
      %v7889 = vmul.f32 %v7825, %v7614
      %v7890 = vmul.f32 %v7826, %v7618
      %v7891 = vmul.f32 %v7827, %v7620
      %v7892 = vmul.f32 %v7828, %v7622
      %v7893 = vmul.f32 %v7829, %v7624
      %v7894 = vmul.f32 %v7830, %v7628
      %v7895 = vmul.f32 %v7831, %v7630
      %v7896 = vmul.f32 %v7832, %v7632
      %v7897 = vmul.f32 %v7833, %v7634
      %v7898 = vmul.f32 %v7834, %v7638
      %v7899 = vmul.f32 %v7835, %v7640
      %v7900 = vmul.f32 %v7836, %v7642
      %v7901 = vmul.f32 %v7837, %v7644
      %v7902 = vadd.f32 %v7488, %v7838
      %v7903 = vadd.f32 %v7490, %v7839
      %v7904 = vadd.f32 %v7492, %v7840
      %v7905 = vadd.f32 %v7494, %v7841
      %v7906 = vadd.f32 %v7498, %v7842
      %v7907 = vadd.f32 %v7500, %v7843
      %v7908 = vadd.f32 %v7502, %v7844
      %v7909 = vadd.f32 %v7504, %v7845
      %v7910 = vadd.f32 %v7508, %v7846
      %v7911 = vadd.f32 %v7510, %v7847
      %v7912 = vadd.f32 %v7512, %v7848
      %v7913 = vadd.f32 %v7514, %v7849
      %v7914 = vadd.f32 %v7518, %v7850
      %v7915 = vadd.f32 %v7520, %v7851
      %v7916 = vadd.f32 %v7522, %v7852
      %v7917 = vadd.f32 %v7524, %v7853
      %v7918 = vadd.f32 %v7528, %v7854
      %v7919 = vadd.f32 %v7530, %v7855
      %v7920 = vadd.f32 %v7532, %v7856
      %v7921 = vadd.f32 %v7534, %v7857
      %v7922 = vadd.f32 %v7538, %v7858
      %v7923 = vadd.f32 %v7540, %v7859
      %v7924 = vadd.f32 %v7542, %v7860
      %v7925 = vadd.f32 %v7544, %v7861
      %v7926 = vadd.f32 %v7548, %v7862
      %v7927 = vadd.f32 %v7550, %v7863
      %v7928 = vadd.f32 %v7552, %v7864
      %v7929 = vadd.f32 %v7554, %v7865
      %v7930 = vadd.f32 %v7558, %v7866
      %v7931 = vadd.f32 %v7560, %v7867
      %v7932 = vadd.f32 %v7562, %v7868
      %v7933 = vadd.f32 %v7564, %v7869
      %v7934 = vadd.f32 %v7568, %v7870
      %v7935 = vadd.f32 %v7570, %v7871
      %v7936 = vadd.f32 %v7572, %v7872
      %v7937 = vadd.f32 %v7574, %v7873
      %v7938 = vadd.f32 %v7578, %v7874
      %v7939 = vadd.f32 %v7580, %v7875
      %v7940 = vadd.f32 %v7582, %v7876
      %v7941 = vadd.f32 %v7584, %v7877
      %v7942 = vadd.f32 %v7588, %v7878
      %v7943 = vadd.f32 %v7590, %v7879
      %v7944 = vadd.f32 %v7592, %v7880
      %v7945 = vadd.f32 %v7594, %v7881
      %v7946 = vadd.f32 %v7598, %v7882
      %v7947 = vadd.f32 %v7600, %v7883
      %v7948 = vadd.f32 %v7602, %v7884
      %v7949 = vadd.f32 %v7604, %v7885
      %v7950 = vadd.f32 %v7608, %v7886
      %v7951 = vadd.f32 %v7610, %v7887
      %v7952 = vadd.f32 %v7612, %v7888
      %v7953 = vadd.f32 %v7614, %v7889
      %v7954 = vadd.f32 %v7618, %v7890
      %v7955 = vadd.f32 %v7620, %v7891
      %v7956 = vadd.f32 %v7622, %v7892
      %v7957 = vadd.f32 %v7624, %v7893
      %v7958 = vadd.f32 %v7628, %v7894
      %v7959 = vadd.f32 %v7630, %v7895
      %v7960 = vadd.f32 %v7632, %v7896
      %v7961 = vadd.f32 %v7634, %v7897
      %v7962 = vadd.f32 %v7638, %v7898
      %v7963 = vadd.f32 %v7640, %v7899
      %v7964 = vadd.f32 %v7642, %v7900
      %v7965 = vadd.f32 %v7644, %v7901
      %v7966 = vmul.f32 %v7902, 0.7978846
      %v7967 = vmul.f32 %v7903, 0.7978846
      %v7968 = vmul.f32 %v7904, 0.7978846
      %v7969 = vmul.f32 %v7905, 0.7978846
      %v7970 = vmul.f32 %v7906, 0.7978846
      %v7971 = vmul.f32 %v7907, 0.7978846
      %v7972 = vmul.f32 %v7908, 0.7978846
      %v7973 = vmul.f32 %v7909, 0.7978846
      %v7974 = vmul.f32 %v7910, 0.7978846
      %v7975 = vmul.f32 %v7911, 0.7978846
      %v7976 = vmul.f32 %v7912, 0.7978846
      %v7977 = vmul.f32 %v7913, 0.7978846
      %v7978 = vmul.f32 %v7914, 0.7978846
      %v7979 = vmul.f32 %v7915, 0.7978846
      %v7980 = vmul.f32 %v7916, 0.7978846
      %v7981 = vmul.f32 %v7917, 0.7978846
      %v7982 = vmul.f32 %v7918, 0.7978846
      %v7983 = vmul.f32 %v7919, 0.7978846
      %v7984 = vmul.f32 %v7920, 0.7978846
      %v7985 = vmul.f32 %v7921, 0.7978846
      %v7986 = vmul.f32 %v7922, 0.7978846
      %v7987 = vmul.f32 %v7923, 0.7978846
      %v7988 = vmul.f32 %v7924, 0.7978846
      %v7989 = vmul.f32 %v7925, 0.7978846
      %v7990 = vmul.f32 %v7926, 0.7978846
      %v7991 = vmul.f32 %v7927, 0.7978846
      %v7992 = vmul.f32 %v7928, 0.7978846
      %v7993 = vmul.f32 %v7929, 0.7978846
      %v7994 = vmul.f32 %v7930, 0.7978846
      %v7995 = vmul.f32 %v7931, 0.7978846
      %v7996 = vmul.f32 %v7932, 0.7978846
      %v7997 = vmul.f32 %v7933, 0.7978846
      %v7998 = vmul.f32 %v7934, 0.7978846
      %v7999 = vmul.f32 %v7935, 0.7978846
      %v8000 = vmul.f32 %v7936, 0.7978846
      %v8001 = vmul.f32 %v7937, 0.7978846
      %v8002 = vmul.f32 %v7938, 0.7978846
      %v8003 = vmul.f32 %v7939, 0.7978846
      %v8004 = vmul.f32 %v7940, 0.7978846
      %v8005 = vmul.f32 %v7941, 0.7978846
      %v8006 = vmul.f32 %v7942, 0.7978846
      %v8007 = vmul.f32 %v7943, 0.7978846
      %v8008 = vmul.f32 %v7944, 0.7978846
      %v8009 = vmul.f32 %v7945, 0.7978846
      %v8010 = vmul.f32 %v7946, 0.7978846
      %v8011 = vmul.f32 %v7947, 0.7978846
      %v8012 = vmul.f32 %v7948, 0.7978846
      %v8013 = vmul.f32 %v7949, 0.7978846
      %v8014 = vmul.f32 %v7950, 0.7978846
      %v8015 = vmul.f32 %v7951, 0.7978846
      %v8016 = vmul.f32 %v7952, 0.7978846
      %v8017 = vmul.f32 %v7953, 0.7978846
      %v8018 = vmul.f32 %v7954, 0.7978846
      %v8019 = vmul.f32 %v7955, 0.7978846
      %v8020 = vmul.f32 %v7956, 0.7978846
      %v8021 = vmul.f32 %v7957, 0.7978846
      %v8022 = vmul.f32 %v7958, 0.7978846
      %v8023 = vmul.f32 %v7959, 0.7978846
      %v8024 = vmul.f32 %v7960, 0.7978846
      %v8025 = vmul.f32 %v7961, 0.7978846
      %v8026 = vmul.f32 %v7962, 0.7978846
      %v8027 = vmul.f32 %v7963, 0.7978846
      %v8028 = vmul.f32 %v7964, 0.7978846
      %v8029 = vmul.f32 %v7965, 0.7978846
      %v8030 = vtanh.pop %v7966
      %v8031 = vtanh.pop %v7967
      %v8032 = vtanh.pop %v7968
      %v8033 = vtanh.pop %v7969
      %v8034 = vtanh.pop %v7970
      %v8035 = vtanh.pop %v7971
      %v8036 = vtanh.pop %v7972
      %v8037 = vtanh.pop %v7973
      %v8038 = vtanh.pop %v7974
      %v8039 = vtanh.pop %v7975
      %v8040 = vtanh.pop %v7976
      %v8041 = vtanh.pop %v7977
      %v8042 = vtanh.pop %v7978
      %v8043 = vtanh.pop %v7979
      %v8044 = vtanh.pop %v7980
      %v8045 = vtanh.pop %v7981
      %v8046 = vtanh.pop %v7982
      %v8047 = vtanh.pop %v7983
      %v8048 = vtanh.pop %v7984
      %v8049 = vtanh.pop %v7985
      %v8050 = vtanh.pop %v7986
      %v8051 = vtanh.pop %v7987
      %v8052 = vtanh.pop %v7988
      %v8053 = vtanh.pop %v7989
      %v8054 = vtanh.pop %v7990
      %v8055 = vtanh.pop %v7991
      %v8056 = vtanh.pop %v7992
      %v8057 = vtanh.pop %v7993
      %v8058 = vtanh.pop %v7994
      %v8059 = vtanh.pop %v7995
      %v8060 = vtanh.pop %v7996
      %v8061 = vtanh.pop %v7997
      %v8062 = vtanh.pop %v7998
      %v8063 = vtanh.pop %v7999
      %v8064 = vtanh.pop %v8000
      %v8065 = vtanh.pop %v8001
      %v8066 = vtanh.pop %v8002
      %v8067 = vtanh.pop %v8003
      %v8068 = vtanh.pop %v8004
      %v8069 = vtanh.pop %v8005
      %v8070 = vtanh.pop %v8006
      %v8071 = vtanh.pop %v8007
      %v8072 = vtanh.pop %v8008
      %v8073 = vtanh.pop %v8009
      %v8074 = vtanh.pop %v8010
      %v8075 = vtanh.pop %v8011
      %v8076 = vtanh.pop %v8012
      %v8077 = vtanh.pop %v8013
      %v8078 = vtanh.pop %v8014
      %v8079 = vtanh.pop %v8015
      %v8080 = vtanh.pop %v8016
      %v8081 = vtanh.pop %v8017
      %v8082 = vtanh.pop %v8018
      %v8083 = vtanh.pop %v8019
      %v8084 = vtanh.pop %v8020
      %v8085 = vtanh.pop %v8021
      %v8086 = vtanh.pop %v8022
      %v8087 = vtanh.pop %v8023
      %v8088 = vtanh.pop %v8024
      %v8089 = vtanh.pop %v8025
      %v8090 = vtanh.pop %v8026
      %v8091 = vtanh.pop %v8027
      %v8092 = vtanh.pop %v8028
      %v8093 = vtanh.pop %v8029
      %v8094 = vadd.f32 %v8030, 1.0
      %v8095 = vadd.f32 %v8031, 1.0
      %v8096 = vadd.f32 %v8032, 1.0
      %v8097 = vadd.f32 %v8033, 1.0
      %v8098 = vadd.f32 %v8034, 1.0
      %v8099 = vadd.f32 %v8035, 1.0
      %v8100 = vadd.f32 %v8036, 1.0
      %v8101 = vadd.f32 %v8037, 1.0
      %v8102 = vadd.f32 %v8038, 1.0
      %v8103 = vadd.f32 %v8039, 1.0
      %v8104 = vadd.f32 %v8040, 1.0
      %v8105 = vadd.f32 %v8041, 1.0
      %v8106 = vadd.f32 %v8042, 1.0
      %v8107 = vadd.f32 %v8043, 1.0
      %v8108 = vadd.f32 %v8044, 1.0
      %v8109 = vadd.f32 %v8045, 1.0
      %v8110 = vadd.f32 %v8046, 1.0
      %v8111 = vadd.f32 %v8047, 1.0
      %v8112 = vadd.f32 %v8048, 1.0
      %v8113 = vadd.f32 %v8049, 1.0
      %v8114 = vadd.f32 %v8050, 1.0
      %v8115 = vadd.f32 %v8051, 1.0
      %v8116 = vadd.f32 %v8052, 1.0
      %v8117 = vadd.f32 %v8053, 1.0
      %v8118 = vadd.f32 %v8054, 1.0
      %v8119 = vadd.f32 %v8055, 1.0
      %v8120 = vadd.f32 %v8056, 1.0
      %v8121 = vadd.f32 %v8057, 1.0
      %v8122 = vadd.f32 %v8058, 1.0
      %v8123 = vadd.f32 %v8059, 1.0
      %v8124 = vadd.f32 %v8060, 1.0
      %v8125 = vadd.f32 %v8061, 1.0
      %v8126 = vadd.f32 %v8062, 1.0
      %v8127 = vadd.f32 %v8063, 1.0
      %v8128 = vadd.f32 %v8064, 1.0
      %v8129 = vadd.f32 %v8065, 1.0
      %v8130 = vadd.f32 %v8066, 1.0
      %v8131 = vadd.f32 %v8067, 1.0
      %v8132 = vadd.f32 %v8068, 1.0
      %v8133 = vadd.f32 %v8069, 1.0
      %v8134 = vadd.f32 %v8070, 1.0
      %v8135 = vadd.f32 %v8071, 1.0
      %v8136 = vadd.f32 %v8072, 1.0
      %v8137 = vadd.f32 %v8073, 1.0
      %v8138 = vadd.f32 %v8074, 1.0
      %v8139 = vadd.f32 %v8075, 1.0
      %v8140 = vadd.f32 %v8076, 1.0
      %v8141 = vadd.f32 %v8077, 1.0
      %v8142 = vadd.f32 %v8078, 1.0
      %v8143 = vadd.f32 %v8079, 1.0
      %v8144 = vadd.f32 %v8080, 1.0
      %v8145 = vadd.f32 %v8081, 1.0
      %v8146 = vadd.f32 %v8082, 1.0
      %v8147 = vadd.f32 %v8083, 1.0
      %v8148 = vadd.f32 %v8084, 1.0
      %v8149 = vadd.f32 %v8085, 1.0
      %v8150 = vadd.f32 %v8086, 1.0
      %v8151 = vadd.f32 %v8087, 1.0
      %v8152 = vadd.f32 %v8088, 1.0
      %v8153 = vadd.f32 %v8089, 1.0
      %v8154 = vadd.f32 %v8090, 1.0
      %v8155 = vadd.f32 %v8091, 1.0
      %v8156 = vadd.f32 %v8092, 1.0
      %v8157 = vadd.f32 %v8093, 1.0
      %v8158 = vmul.f32 %v7646, %v8094
      %v8159 = vmul.f32 %v7647, %v8095
      %v8160 = vmul.f32 %v7648, %v8096
      %v8161 = vmul.f32 %v7649, %v8097
      %v8162 = vmul.f32 %v7650, %v8098
      %v8163 = vmul.f32 %v7651, %v8099
      %v8164 = vmul.f32 %v7652, %v8100
      %v8165 = vmul.f32 %v7653, %v8101
      %v8166 = vmul.f32 %v7654, %v8102
      %v8167 = vmul.f32 %v7655, %v8103
      %v8168 = vmul.f32 %v7656, %v8104
      %v8169 = vmul.f32 %v7657, %v8105
      %v8170 = vmul.f32 %v7658, %v8106
      %v8171 = vmul.f32 %v7659, %v8107
      %v8172 = vmul.f32 %v7660, %v8108
      %v8173 = vmul.f32 %v7661, %v8109
      %v8174 = vmul.f32 %v7662, %v8110
      %v8175 = vmul.f32 %v7663, %v8111
      %v8176 = vmul.f32 %v7664, %v8112
      %v8177 = vmul.f32 %v7665, %v8113
      %v8178 = vmul.f32 %v7666, %v8114
      %v8179 = vmul.f32 %v7667, %v8115
      %v8180 = vmul.f32 %v7668, %v8116
      %v8181 = vmul.f32 %v7669, %v8117
      %v8182 = vmul.f32 %v7670, %v8118
      %v8183 = vmul.f32 %v7671, %v8119
      %v8184 = vmul.f32 %v7672, %v8120
      %v8185 = vmul.f32 %v7673, %v8121
      %v8186 = vmul.f32 %v7674, %v8122
      %v8187 = vmul.f32 %v7675, %v8123
      %v8188 = vmul.f32 %v7676, %v8124
      %v8189 = vmul.f32 %v7677, %v8125
      %v8190 = vmul.f32 %v7678, %v8126
      %v8191 = vmul.f32 %v7679, %v8127
      %v8192 = vmul.f32 %v7680, %v8128
      %v8193 = vmul.f32 %v7681, %v8129
      %v8194 = vmul.f32 %v7682, %v8130
      %v8195 = vmul.f32 %v7683, %v8131
      %v8196 = vmul.f32 %v7684, %v8132
      %v8197 = vmul.f32 %v7685, %v8133
      %v8198 = vmul.f32 %v7686, %v8134
      %v8199 = vmul.f32 %v7687, %v8135
      %v8200 = vmul.f32 %v7688, %v8136
      %v8201 = vmul.f32 %v7689, %v8137
      %v8202 = vmul.f32 %v7690, %v8138
      %v8203 = vmul.f32 %v7691, %v8139
      %v8204 = vmul.f32 %v7692, %v8140
      %v8205 = vmul.f32 %v7693, %v8141
      %v8206 = vmul.f32 %v7694, %v8142
      %v8207 = vmul.f32 %v7695, %v8143
      %v8208 = vmul.f32 %v7696, %v8144
      %v8209 = vmul.f32 %v7697, %v8145
      %v8210 = vmul.f32 %v7698, %v8146
      %v8211 = vmul.f32 %v7699, %v8147
      %v8212 = vmul.f32 %v7700, %v8148
      %v8213 = vmul.f32 %v7701, %v8149
      %v8214 = vmul.f32 %v7702, %v8150
      %v8215 = vmul.f32 %v7703, %v8151
      %v8216 = vmul.f32 %v7704, %v8152
      %v8217 = vmul.f32 %v7705, %v8153
      %v8218 = vmul.f32 %v7706, %v8154
      %v8219 = vmul.f32 %v7707, %v8155
      %v8220 = vmul.f32 %v7708, %v8156
      %v8221 = vmul.f32 %v7709, %v8157
      %v8222 = vpack.c.bf16 %v8160, %v8158
      %v8223 = vpack.c.bf16 %v8161, %v8159
      %v8224 = vpack.c.bf16 %v8164, %v8162
      %v8225 = vpack.c.bf16 %v8165, %v8163
      %v8226 = vpack.c.bf16 %v8168, %v8166
      %v8227 = vpack.c.bf16 %v8169, %v8167
      %v8228 = vpack.c.bf16 %v8172, %v8170
      %v8229 = vpack.c.bf16 %v8173, %v8171
      %v8230 = vpack.c.bf16 %v8176, %v8174
      %v8231 = vpack.c.bf16 %v8177, %v8175
      %v8232 = vpack.c.bf16 %v8180, %v8178
      %v8233 = vpack.c.bf16 %v8181, %v8179
      %v8234 = vpack.c.bf16 %v8184, %v8182
      %v8235 = vpack.c.bf16 %v8185, %v8183
      %v8236 = vpack.c.bf16 %v8188, %v8186
      %v8237 = vpack.c.bf16 %v8189, %v8187
      %v8238 = vpack.c.bf16 %v8192, %v8190
      %v8239 = vpack.c.bf16 %v8193, %v8191
      %v8240 = vpack.c.bf16 %v8196, %v8194
      %v8241 = vpack.c.bf16 %v8197, %v8195
      %v8242 = vpack.c.bf16 %v8200, %v8198
      %v8243 = vpack.c.bf16 %v8201, %v8199
      %v8244 = vpack.c.bf16 %v8204, %v8202
      %v8245 = vpack.c.bf16 %v8205, %v8203
      %v8246 = vpack.c.bf16 %v8208, %v8206
      %v8247 = vpack.c.bf16 %v8209, %v8207
      %v8248 = vpack.c.bf16 %v8212, %v8210
      %v8249 = vpack.c.bf16 %v8213, %v8211
      %v8250 = vpack.c.bf16 %v8216, %v8214
      %v8251 = vpack.c.bf16 %v8217, %v8215
      %v8252 = vpack.c.bf16 %v8220, %v8218
      %v8253 = vpack.c.bf16 %v8221, %v8219
      %v8254 = vld [vmem:[%s11] sm:$0xff]
      %v8255 = vld [vmem:[%s11 + $0x8] sm:$0xff]
      %v8256 = vld [vmem:[%s11 + $0x10] sm:$0xff]
      %v8257 = vld [vmem:[%s11 + $0x18] sm:$0xff]
      %v8258 = vld [vmem:[%s11 + $0x20] sm:$0xff]
      %v8259 = vld [vmem:[%s11 + $0x28] sm:$0xff]
      %v8260 = vld [vmem:[%s11 + $0x30] sm:$0xff]
      %v8261 = vld [vmem:[%s11 + $0x38] sm:$0xff]
      %v8262 = vld [vmem:[%s11 + $0x40] sm:$0xff]
      %v8263 = vld [vmem:[%s11 + $0x48] sm:$0xff]
      %v8264 = vld [vmem:[%s11 + $0x50] sm:$0xff]
      %v8265 = vld [vmem:[%s11 + $0x58] sm:$0xff]
      %v8266 = vld [vmem:[%s11 + $0x60] sm:$0xff]
      %v8267 = vld [vmem:[%s11 + $0x68] sm:$0xff]
      %v8268 = vld [vmem:[%s11 + $0x70] sm:$0xff]
      %v8269 = vld [vmem:[%s11 + $0x78] sm:$0xff]
      %v8270 = vld [vmem:[%s11 + $0x80] sm:$0xff]
      %v8271 = vld [vmem:[%s11 + $0x88] sm:$0xff]
      %v8272 = vld [vmem:[%s11 + $0x90] sm:$0xff]
      %v8273 = vld [vmem:[%s11 + $0x98] sm:$0xff]
      %v8274 = vld [vmem:[%s11 + $0xa0] sm:$0xff]
      %v8275 = vld [vmem:[%s11 + $0xa8] sm:$0xff]
      %v8276 = vld [vmem:[%s11 + $0xb0] sm:$0xff]
      %v8277 = vld [vmem:[%s11 + $0xb8] sm:$0xff]
      %v8278 = vld [vmem:[%s11 + $0xc0] sm:$0xff]
      %v8279 = vld [vmem:[%s11 + $0xc8] sm:$0xff]
      %v8280 = vld [vmem:[%s11 + $0xd0] sm:$0xff]
      %v8281 = vld [vmem:[%s11 + $0xd8] sm:$0xff]
      %v8282 = vld [vmem:[%s11 + $0xe0] sm:$0xff]
      %v8283 = vld [vmem:[%s11 + $0xe8] sm:$0xff]
      %v8284 = vld [vmem:[%s11 + $0xf0] sm:$0xff]
      %v8285 = vld [vmem:[%s11 + $0xf8] sm:$0xff]
      %v8286 = vld [vmem:[%s12] sm:$0x3]
      %v8288 = vlaneseq
      %v8289 = vshrl.u32 %v8288, 7
      %v8290 = vsub.s32 0, %v8289
      %v8291 = vrot.slane %v8286, %v8290
      %v8292 = vlaneseq
      %v8293 = vshrl.u32 %v8292, 7
      %v8294 = vsub.s32 1, %v8293
      %v8295 = vrot.slane %v8286, %v8294
      %v8330 = vunpack.c.l.b16 %v8254
      %v8331 = vunpack.c.h.b16 %v8254
      %v8332 = vunpack.c.l.b16 %v8255
      %v8333 = vunpack.c.h.b16 %v8255
      %v8334 = vunpack.c.l.b16 %v8256
      %v8335 = vunpack.c.h.b16 %v8256
      %v8336 = vunpack.c.l.b16 %v8257
      %v8337 = vunpack.c.h.b16 %v8257
      %v8338 = vunpack.c.l.b16 %v8258
      %v8339 = vunpack.c.h.b16 %v8258
      %v8340 = vunpack.c.l.b16 %v8259
      %v8341 = vunpack.c.h.b16 %v8259
      %v8342 = vunpack.c.l.b16 %v8260
      %v8343 = vunpack.c.h.b16 %v8260
      %v8344 = vunpack.c.l.b16 %v8261
      %v8345 = vunpack.c.h.b16 %v8261
      %v8346 = vunpack.c.l.b16 %v8262
      %v8347 = vunpack.c.h.b16 %v8262
      %v8348 = vunpack.c.l.b16 %v8263
      %v8349 = vunpack.c.h.b16 %v8263
      %v8350 = vunpack.c.l.b16 %v8264
      %v8351 = vunpack.c.h.b16 %v8264
      %v8352 = vunpack.c.l.b16 %v8265
      %v8353 = vunpack.c.h.b16 %v8265
      %v8354 = vunpack.c.l.b16 %v8266
      %v8355 = vunpack.c.h.b16 %v8266
      %v8356 = vunpack.c.l.b16 %v8267
      %v8357 = vunpack.c.h.b16 %v8267
      %v8358 = vunpack.c.l.b16 %v8268
      %v8359 = vunpack.c.h.b16 %v8268
      %v8360 = vunpack.c.l.b16 %v8269
      %v8361 = vunpack.c.h.b16 %v8269
      %v8362 = vunpack.c.l.b16 %v8270
      %v8363 = vunpack.c.h.b16 %v8270
      %v8364 = vunpack.c.l.b16 %v8271
      %v8365 = vunpack.c.h.b16 %v8271
      %v8366 = vunpack.c.l.b16 %v8272
      %v8367 = vunpack.c.h.b16 %v8272
      %v8368 = vunpack.c.l.b16 %v8273
      %v8369 = vunpack.c.h.b16 %v8273
      %v8370 = vunpack.c.l.b16 %v8274
      %v8371 = vunpack.c.h.b16 %v8274
      %v8372 = vunpack.c.l.b16 %v8275
      %v8373 = vunpack.c.h.b16 %v8275
      %v8374 = vunpack.c.l.b16 %v8276
      %v8375 = vunpack.c.h.b16 %v8276
      %v8376 = vunpack.c.l.b16 %v8277
      %v8377 = vunpack.c.h.b16 %v8277
      %v8378 = vunpack.c.l.b16 %v8278
      %v8379 = vunpack.c.h.b16 %v8278
      %v8380 = vunpack.c.l.b16 %v8279
      %v8381 = vunpack.c.h.b16 %v8279
      %v8382 = vunpack.c.l.b16 %v8280
      %v8383 = vunpack.c.h.b16 %v8280
      %v8384 = vunpack.c.l.b16 %v8281
      %v8385 = vunpack.c.h.b16 %v8281
      %v8386 = vunpack.c.l.b16 %v8282
      %v8387 = vunpack.c.h.b16 %v8282
      %v8388 = vunpack.c.l.b16 %v8283
      %v8389 = vunpack.c.h.b16 %v8283
      %v8390 = vunpack.c.l.b16 %v8284
      %v8391 = vunpack.c.h.b16 %v8284
      %v8392 = vunpack.c.l.b16 %v8285
      %v8393 = vunpack.c.h.b16 %v8285
      %v8394 = vpack.c.b16 %v8332, %v8330
      %v8395 = vpack.c.b16 %v8333, %v8331
      %v8396 = vpack.c.b16 %v8336, %v8334
      %v8397 = vpack.c.b16 %v8337, %v8335
      %v8398 = vpack.c.b16 %v8340, %v8338
      %v8399 = vpack.c.b16 %v8341, %v8339
      %v8400 = vpack.c.b16 %v8344, %v8342
      %v8401 = vpack.c.b16 %v8345, %v8343
      %v8402 = vpack.c.b16 %v8348, %v8346
      %v8403 = vpack.c.b16 %v8349, %v8347
      %v8404 = vpack.c.b16 %v8352, %v8350
      %v8405 = vpack.c.b16 %v8353, %v8351
      %v8406 = vpack.c.b16 %v8356, %v8354
      %v8407 = vpack.c.b16 %v8357, %v8355
      %v8408 = vpack.c.b16 %v8360, %v8358
      %v8409 = vpack.c.b16 %v8361, %v8359
      %v8410 = vpack.c.b16 %v8364, %v8362
      %v8411 = vpack.c.b16 %v8365, %v8363
      %v8412 = vpack.c.b16 %v8368, %v8366
      %v8413 = vpack.c.b16 %v8369, %v8367
      %v8414 = vpack.c.b16 %v8372, %v8370
      %v8415 = vpack.c.b16 %v8373, %v8371
      %v8416 = vpack.c.b16 %v8376, %v8374
      %v8417 = vpack.c.b16 %v8377, %v8375
      %v8418 = vpack.c.b16 %v8380, %v8378
      %v8419 = vpack.c.b16 %v8381, %v8379
      %v8420 = vpack.c.b16 %v8384, %v8382
      %v8421 = vpack.c.b16 %v8385, %v8383
      %v8422 = vpack.c.b16 %v8388, %v8386
      %v8423 = vpack.c.b16 %v8389, %v8387
      %v8424 = vpack.c.b16 %v8392, %v8390
      %v8425 = vpack.c.b16 %v8393, %v8391
      %8458 = vmatprep.subr.bf16.mxu0 %v8409
      %8459 = vmatpush1.bf16.msra.mxu0 %v8408
      %8460 = vmatprep.subr.bf16.mxu0 %v8407
      %8461 = vmatpush1.bf16.msra.mxu0 %v8406
      %8462 = vmatprep.subr.bf16.mxu0 %v8405
      %8463 = vmatpush1.bf16.msra.mxu0 %v8404
      %8464 = vmatprep.subr.bf16.mxu0 %v8403
      %8465 = vmatpush1.bf16.msra.mxu0 %v8402
      %8466 = vmatprep.subr.bf16.mxu0 %v8401
      %8467 = vmatpush1.bf16.msra.mxu0 %v8400
      %8468 = vmatprep.subr.bf16.mxu0 %v8399
      %8469 = vmatpush1.bf16.msra.mxu0 %v8398
      %8470 = vmatprep.subr.bf16.mxu0 %v8397
      %8471 = vmatpush1.bf16.msra.mxu0 %v8396
      %8472 = vmatprep.subr.bf16.mxu0 %v8395
      %8473 = vmatpush1.bf16.msra.mxu0 %v8394
      %8474 = vmatprep.subr.bf16.mxu0 %v8425
      %8475 = vmatpush2.bf16.msra.mxu0 %v8424
      %8476 = vmatprep.subr.bf16.mxu0 %v8423
      %8477 = vmatpush2.bf16.msra.mxu0 %v8422
      %8478 = vmatprep.subr.bf16.mxu0 %v8421
      %8479 = vmatpush2.bf16.msra.mxu0 %v8420
      %8480 = vmatprep.subr.bf16.mxu0 %v8419
      %8481 = vmatpush2.bf16.msra.mxu0 %v8418
      %8482 = vmatprep.subr.bf16.mxu0 %v8417
      %8483 = vmatpush2.bf16.msra.mxu0 %v8416
      %8484 = vmatprep.subr.bf16.mxu0 %v8415
      %8485 = vmatpush2.bf16.msra.mxu0 %v8414
      %8486 = vmatprep.subr.bf16.mxu0 %v8413
      %8487 = vmatpush2.bf16.msra.mxu0 %v8412
      %8488 = vmatprep.subr.bf16.mxu0 %v8411
      %8489 = vmatpush2.bf16.msra.mxu0 %v8410
      %8490 = vmatprep.mubr.bf16.mxu0 %v8223
      %8491 = vmatmul.mubr.bf16.gmra.mxu0 %v8222
      %v8492 = vpop.f32.mrf.mxu0
      %v8493 = vadd.f32 %v8291, %v8492
      %v8494 = vpop.f32.mrf.mxu0
      %v8495 = vadd.f32 %v8295, %v8494
      %v8496 = vpop.f32.mrf.mxu0
      %v8497 = vadd.f32 %v8291, %v8496
      %v8498 = vpop.f32.mrf.mxu0
      %v8499 = vadd.f32 %v8295, %v8498
      %8500 = vmatprep.mubr.bf16.mxu0 %v8225
      %8501 = vmatmul.mubr.bf16.gmra.mxu0 %v8224
      %v8502 = vpop.f32.mrf.mxu0
      %v8503 = vadd.f32 %v8291, %v8502
      %v8504 = vpop.f32.mrf.mxu0
      %v8505 = vadd.f32 %v8295, %v8504
      %v8506 = vpop.f32.mrf.mxu0
      %v8507 = vadd.f32 %v8291, %v8506
      %v8508 = vpop.f32.mrf.mxu0
      %v8509 = vadd.f32 %v8295, %v8508
      %8510 = vmatprep.mubr.bf16.mxu0 %v8227
      %8511 = vmatmul.mubr.bf16.gmra.mxu0 %v8226
      %v8512 = vpop.f32.mrf.mxu0
      %v8513 = vadd.f32 %v8291, %v8512
      %v8514 = vpop.f32.mrf.mxu0
      %v8515 = vadd.f32 %v8295, %v8514
      %v8516 = vpop.f32.mrf.mxu0
      %v8517 = vadd.f32 %v8291, %v8516
      %v8518 = vpop.f32.mrf.mxu0
      %v8519 = vadd.f32 %v8295, %v8518
      %8520 = vmatprep.mubr.bf16.mxu0 %v8229
      %8521 = vmatmul.mubr.bf16.gmra.mxu0 %v8228
      %v8522 = vpop.f32.mrf.mxu0
      %v8523 = vadd.f32 %v8291, %v8522
      %v8524 = vpop.f32.mrf.mxu0
      %v8525 = vadd.f32 %v8295, %v8524
      %v8526 = vpop.f32.mrf.mxu0
      %v8527 = vadd.f32 %v8291, %v8526
      %v8528 = vpop.f32.mrf.mxu0
      %v8529 = vadd.f32 %v8295, %v8528
      %8530 = vmatprep.mubr.bf16.mxu0 %v8231
      %8531 = vmatmul.mubr.bf16.gmra.mxu0 %v8230
      %v8532 = vpop.f32.mrf.mxu0
      %v8533 = vadd.f32 %v8291, %v8532
      %v8534 = vpop.f32.mrf.mxu0
      %v8535 = vadd.f32 %v8295, %v8534
      %v8536 = vpop.f32.mrf.mxu0
      %v8537 = vadd.f32 %v8291, %v8536
      %v8538 = vpop.f32.mrf.mxu0
      %v8539 = vadd.f32 %v8295, %v8538
      %8540 = vmatprep.mubr.bf16.mxu0 %v8233
      %8541 = vmatmul.mubr.bf16.gmra.mxu0 %v8232
      %v8542 = vpop.f32.mrf.mxu0
      %v8543 = vadd.f32 %v8291, %v8542
      %v8544 = vpop.f32.mrf.mxu0
      %v8545 = vadd.f32 %v8295, %v8544
      %v8546 = vpop.f32.mrf.mxu0
      %v8547 = vadd.f32 %v8291, %v8546
      %v8548 = vpop.f32.mrf.mxu0
      %v8549 = vadd.f32 %v8295, %v8548
      %8550 = vmatprep.mubr.bf16.mxu0 %v8235
      %8551 = vmatmul.mubr.bf16.gmra.mxu0 %v8234
      %v8552 = vpop.f32.mrf.mxu0
      %v8553 = vadd.f32 %v8291, %v8552
      %v8554 = vpop.f32.mrf.mxu0
      %v8555 = vadd.f32 %v8295, %v8554
      %v8556 = vpop.f32.mrf.mxu0
      %v8557 = vadd.f32 %v8291, %v8556
      %v8558 = vpop.f32.mrf.mxu0
      %v8559 = vadd.f32 %v8295, %v8558
      %8560 = vmatprep.mubr.bf16.mxu0 %v8237
      %8561 = vmatmul.mubr.bf16.gmra.mxu0 %v8236
      %v8562 = vpop.f32.mrf.mxu0
      %v8563 = vadd.f32 %v8291, %v8562
      %v8564 = vpop.f32.mrf.mxu0
      %v8565 = vadd.f32 %v8295, %v8564
      %v8566 = vpop.f32.mrf.mxu0
      %v8567 = vadd.f32 %v8291, %v8566
      %v8568 = vpop.f32.mrf.mxu0
      %v8569 = vadd.f32 %v8295, %v8568
      %8570 = vmatprep.mubr.bf16.mxu0 %v8239
      %8571 = vmatmul.mubr.bf16.gmra.mxu0 %v8238
      %v8572 = vpop.f32.mrf.mxu0
      %v8573 = vadd.f32 %v8291, %v8572
      %v8574 = vpop.f32.mrf.mxu0
      %v8575 = vadd.f32 %v8295, %v8574
      %v8576 = vpop.f32.mrf.mxu0
      %v8577 = vadd.f32 %v8291, %v8576
      %v8578 = vpop.f32.mrf.mxu0
      %v8579 = vadd.f32 %v8295, %v8578
      %8580 = vmatprep.mubr.bf16.mxu0 %v8241
      %8581 = vmatmul.mubr.bf16.gmra.mxu0 %v8240
      %v8582 = vpop.f32.mrf.mxu0
      %v8583 = vadd.f32 %v8291, %v8582
      %v8584 = vpop.f32.mrf.mxu0
      %v8585 = vadd.f32 %v8295, %v8584
      %v8586 = vpop.f32.mrf.mxu0
      %v8587 = vadd.f32 %v8291, %v8586
      %v8588 = vpop.f32.mrf.mxu0
      %v8589 = vadd.f32 %v8295, %v8588
      %8590 = vmatprep.mubr.bf16.mxu0 %v8243
      %8591 = vmatmul.mubr.bf16.gmra.mxu0 %v8242
      %v8592 = vpop.f32.mrf.mxu0
      %v8593 = vadd.f32 %v8291, %v8592
      %v8594 = vpop.f32.mrf.mxu0
      %v8595 = vadd.f32 %v8295, %v8594
      %v8596 = vpop.f32.mrf.mxu0
      %v8597 = vadd.f32 %v8291, %v8596
      %v8598 = vpop.f32.mrf.mxu0
      %v8599 = vadd.f32 %v8295, %v8598
      %8600 = vmatprep.mubr.bf16.mxu0 %v8245
      %8601 = vmatmul.mubr.bf16.gmra.mxu0 %v8244
      %v8602 = vpop.f32.mrf.mxu0
      %v8603 = vadd.f32 %v8291, %v8602
      %v8604 = vpop.f32.mrf.mxu0
      %v8605 = vadd.f32 %v8295, %v8604
      %v8606 = vpop.f32.mrf.mxu0
      %v8607 = vadd.f32 %v8291, %v8606
      %v8608 = vpop.f32.mrf.mxu0
      %v8609 = vadd.f32 %v8295, %v8608
      %8610 = vmatprep.mubr.bf16.mxu0 %v8247
      %8611 = vmatmul.mubr.bf16.gmra.mxu0 %v8246
      %v8612 = vpop.f32.mrf.mxu0
      %v8613 = vadd.f32 %v8291, %v8612
      %v8614 = vpop.f32.mrf.mxu0
      %v8615 = vadd.f32 %v8295, %v8614
      %v8616 = vpop.f32.mrf.mxu0
      %v8617 = vadd.f32 %v8291, %v8616
      %v8618 = vpop.f32.mrf.mxu0
      %v8619 = vadd.f32 %v8295, %v8618
      %8620 = vmatprep.mubr.bf16.mxu0 %v8249
      %8621 = vmatmul.mubr.bf16.gmra.mxu0 %v8248
      %v8622 = vpop.f32.mrf.mxu0
      %v8623 = vadd.f32 %v8291, %v8622
      %v8624 = vpop.f32.mrf.mxu0
      %v8625 = vadd.f32 %v8295, %v8624
      %v8626 = vpop.f32.mrf.mxu0
      %v8627 = vadd.f32 %v8291, %v8626
      %v8628 = vpop.f32.mrf.mxu0
      %v8629 = vadd.f32 %v8295, %v8628
      %8630 = vmatprep.mubr.bf16.mxu0 %v8251
      %8631 = vmatmul.mubr.bf16.gmra.mxu0 %v8250
      %v8632 = vpop.f32.mrf.mxu0
      %v8633 = vadd.f32 %v8291, %v8632
      %v8634 = vpop.f32.mrf.mxu0
      %v8635 = vadd.f32 %v8295, %v8634
      %v8636 = vpop.f32.mrf.mxu0
      %v8637 = vadd.f32 %v8291, %v8636
      %v8638 = vpop.f32.mrf.mxu0
      %v8639 = vadd.f32 %v8295, %v8638
      %8640 = vmatprep.mubr.bf16.mxu0 %v8253
      %8641 = vmatmul.mubr.bf16.gmra.mxu0 %v8252
      %v8642 = vpop.f32.mrf.mxu0
      %v8643 = vadd.f32 %v8291, %v8642
      %v8644 = vpop.f32.mrf.mxu0
      %v8645 = vadd.f32 %v8295, %v8644
      %v8646 = vpop.f32.mrf.mxu0
      %v8647 = vadd.f32 %v8291, %v8646
      %v8648 = vpop.f32.mrf.mxu0
      %v8649 = vadd.f32 %v8295, %v8648
      %8650 = vdwg.mxu0
      %v8651 = vmul.f32 %v8493, 0.5
      %v8652 = vmul.f32 %v8495, 0.5
      %v8653 = vmul.f32 %v8497, 0.5
      %v8654 = vmul.f32 %v8499, 0.5
      %v8655 = vmul.f32 %v8503, 0.5
      %v8656 = vmul.f32 %v8505, 0.5
      %v8657 = vmul.f32 %v8507, 0.5
      %v8658 = vmul.f32 %v8509, 0.5
      %v8659 = vmul.f32 %v8513, 0.5
      %v8660 = vmul.f32 %v8515, 0.5
      %v8661 = vmul.f32 %v8517, 0.5
      %v8662 = vmul.f32 %v8519, 0.5
      %v8663 = vmul.f32 %v8523, 0.5
      %v8664 = vmul.f32 %v8525, 0.5
      %v8665 = vmul.f32 %v8527, 0.5
      %v8666 = vmul.f32 %v8529, 0.5
      %v8667 = vmul.f32 %v8533, 0.5
      %v8668 = vmul.f32 %v8535, 0.5
      %v8669 = vmul.f32 %v8537, 0.5
      %v8670 = vmul.f32 %v8539, 0.5
      %v8671 = vmul.f32 %v8543, 0.5
      %v8672 = vmul.f32 %v8545, 0.5
      %v8673 = vmul.f32 %v8547, 0.5
      %v8674 = vmul.f32 %v8549, 0.5
      %v8675 = vmul.f32 %v8553, 0.5
      %v8676 = vmul.f32 %v8555, 0.5
      %v8677 = vmul.f32 %v8557, 0.5
      %v8678 = vmul.f32 %v8559, 0.5
      %v8679 = vmul.f32 %v8563, 0.5
      %v8680 = vmul.f32 %v8565, 0.5
      %v8681 = vmul.f32 %v8567, 0.5
      %v8682 = vmul.f32 %v8569, 0.5
      %v8683 = vmul.f32 %v8573, 0.5
      %v8684 = vmul.f32 %v8575, 0.5
      %v8685 = vmul.f32 %v8577, 0.5
      %v8686 = vmul.f32 %v8579, 0.5
      %v8687 = vmul.f32 %v8583, 0.5
      %v8688 = vmul.f32 %v8585, 0.5
      %v8689 = vmul.f32 %v8587, 0.5
      %v8690 = vmul.f32 %v8589, 0.5
      %v8691 = vmul.f32 %v8593, 0.5
      %v8692 = vmul.f32 %v8595, 0.5
      %v8693 = vmul.f32 %v8597, 0.5
      %v8694 = vmul.f32 %v8599, 0.5
      %v8695 = vmul.f32 %v8603, 0.5
      %v8696 = vmul.f32 %v8605, 0.5
      %v8697 = vmul.f32 %v8607, 0.5
      %v8698 = vmul.f32 %v8609, 0.5
      %v8699 = vmul.f32 %v8613, 0.5
      %v8700 = vmul.f32 %v8615, 0.5
      %v8701 = vmul.f32 %v8617, 0.5
      %v8702 = vmul.f32 %v8619, 0.5
      %v8703 = vmul.f32 %v8623, 0.5
      %v8704 = vmul.f32 %v8625, 0.5
      %v8705 = vmul.f32 %v8627, 0.5
      %v8706 = vmul.f32 %v8629, 0.5
      %v8707 = vmul.f32 %v8633, 0.5
      %v8708 = vmul.f32 %v8635, 0.5
      %v8709 = vmul.f32 %v8637, 0.5
      %v8710 = vmul.f32 %v8639, 0.5
      %v8711 = vmul.f32 %v8643, 0.5
      %v8712 = vmul.f32 %v8645, 0.5
      %v8713 = vmul.f32 %v8647, 0.5
      %v8714 = vmul.f32 %v8649, 0.5
      %v8715 = vmul.f32 %v8493, 0.044715
      %v8716 = vmul.f32 %v8495, 0.044715
      %v8717 = vmul.f32 %v8497, 0.044715
      %v8718 = vmul.f32 %v8499, 0.044715
      %v8719 = vmul.f32 %v8503, 0.044715
      %v8720 = vmul.f32 %v8505, 0.044715
      %v8721 = vmul.f32 %v8507, 0.044715
      %v8722 = vmul.f32 %v8509, 0.044715
      %v8723 = vmul.f32 %v8513, 0.044715
      %v8724 = vmul.f32 %v8515, 0.044715
      %v8725 = vmul.f32 %v8517, 0.044715
      %v8726 = vmul.f32 %v8519, 0.044715
      %v8727 = vmul.f32 %v8523, 0.044715
      %v8728 = vmul.f32 %v8525, 0.044715
      %v8729 = vmul.f32 %v8527, 0.044715
      %v8730 = vmul.f32 %v8529, 0.044715
      %v8731 = vmul.f32 %v8533, 0.044715
      %v8732 = vmul.f32 %v8535, 0.044715
      %v8733 = vmul.f32 %v8537, 0.044715
      %v8734 = vmul.f32 %v8539, 0.044715
      %v8735 = vmul.f32 %v8543, 0.044715
      %v8736 = vmul.f32 %v8545, 0.044715
      %v8737 = vmul.f32 %v8547, 0.044715
      %v8738 = vmul.f32 %v8549, 0.044715
      %v8739 = vmul.f32 %v8553, 0.044715
      %v8740 = vmul.f32 %v8555, 0.044715
      %v8741 = vmul.f32 %v8557, 0.044715
      %v8742 = vmul.f32 %v8559, 0.044715
      %v8743 = vmul.f32 %v8563, 0.044715
      %v8744 = vmul.f32 %v8565, 0.044715
      %v8745 = vmul.f32 %v8567, 0.044715
      %v8746 = vmul.f32 %v8569, 0.044715
      %v8747 = vmul.f32 %v8573, 0.044715
      %v8748 = vmul.f32 %v8575, 0.044715
      %v8749 = vmul.f32 %v8577, 0.044715
      %v8750 = vmul.f32 %v8579, 0.044715
      %v8751 = vmul.f32 %v8583, 0.044715
      %v8752 = vmul.f32 %v8585, 0.044715
      %v8753 = vmul.f32 %v8587, 0.044715
      %v8754 = vmul.f32 %v8589, 0.044715
      %v8755 = vmul.f32 %v8593, 0.044715
      %v8756 = vmul.f32 %v8595, 0.044715
      %v8757 = vmul.f32 %v8597, 0.044715
      %v8758 = vmul.f32 %v8599, 0.044715
      %v8759 = vmul.f32 %v8603, 0.044715
      %v8760 = vmul.f32 %v8605, 0.044715
      %v8761 = vmul.f32 %v8607, 0.044715
      %v8762 = vmul.f32 %v8609, 0.044715
      %v8763 = vmul.f32 %v8613, 0.044715
      %v8764 = vmul.f32 %v8615, 0.044715
      %v8765 = vmul.f32 %v8617, 0.044715
      %v8766 = vmul.f32 %v8619, 0.044715
      %v8767 = vmul.f32 %v8623, 0.044715
      %v8768 = vmul.f32 %v8625, 0.044715
      %v8769 = vmul.f32 %v8627, 0.044715
      %v8770 = vmul.f32 %v8629, 0.044715
      %v8771 = vmul.f32 %v8633, 0.044715
      %v8772 = vmul.f32 %v8635, 0.044715
      %v8773 = vmul.f32 %v8637, 0.044715
      %v8774 = vmul.f32 %v8639, 0.044715
      %v8775 = vmul.f32 %v8643, 0.044715
      %v8776 = vmul.f32 %v8645, 0.044715
      %v8777 = vmul.f32 %v8647, 0.044715
      %v8778 = vmul.f32 %v8649, 0.044715
      %v8779 = vmul.f32 %v8715, %v8493
      %v8780 = vmul.f32 %v8716, %v8495
      %v8781 = vmul.f32 %v8717, %v8497
      %v8782 = vmul.f32 %v8718, %v8499
      %v8783 = vmul.f32 %v8719, %v8503
      %v8784 = vmul.f32 %v8720, %v8505
      %v8785 = vmul.f32 %v8721, %v8507
      %v8786 = vmul.f32 %v8722, %v8509
      %v8787 = vmul.f32 %v8723, %v8513
      %v8788 = vmul.f32 %v8724, %v8515
      %v8789 = vmul.f32 %v8725, %v8517
      %v8790 = vmul.f32 %v8726, %v8519
      %v8791 = vmul.f32 %v8727, %v8523
      %v8792 = vmul.f32 %v8728, %v8525
      %v8793 = vmul.f32 %v8729, %v8527
      %v8794 = vmul.f32 %v8730, %v8529
      %v8795 = vmul.f32 %v8731, %v8533
      %v8796 = vmul.f32 %v8732, %v8535
      %v8797 = vmul.f32 %v8733, %v8537
      %v8798 = vmul.f32 %v8734, %v8539
      %v8799 = vmul.f32 %v8735, %v8543
      %v8800 = vmul.f32 %v8736, %v8545
      %v8801 = vmul.f32 %v8737, %v8547
      %v8802 = vmul.f32 %v8738, %v8549
      %v8803 = vmul.f32 %v8739, %v8553
      %v8804 = vmul.f32 %v8740, %v8555
      %v8805 = vmul.f32 %v8741, %v8557
      %v8806 = vmul.f32 %v8742, %v8559
      %v8807 = vmul.f32 %v8743, %v8563
      %v8808 = vmul.f32 %v8744, %v8565
      %v8809 = vmul.f32 %v8745, %v8567
      %v8810 = vmul.f32 %v8746, %v8569
      %v8811 = vmul.f32 %v8747, %v8573
      %v8812 = vmul.f32 %v8748, %v8575
      %v8813 = vmul.f32 %v8749, %v8577
      %v8814 = vmul.f32 %v8750, %v8579
      %v8815 = vmul.f32 %v8751, %v8583
      %v8816 = vmul.f32 %v8752, %v8585
      %v8817 = vmul.f32 %v8753, %v8587
      %v8818 = vmul.f32 %v8754, %v8589
      %v8819 = vmul.f32 %v8755, %v8593
      %v8820 = vmul.f32 %v8756, %v8595
      %v8821 = vmul.f32 %v8757, %v8597
      %v8822 = vmul.f32 %v8758, %v8599
      %v8823 = vmul.f32 %v8759, %v8603
      %v8824 = vmul.f32 %v8760, %v8605
      %v8825 = vmul.f32 %v8761, %v8607
      %v8826 = vmul.f32 %v8762, %v8609
      %v8827 = vmul.f32 %v8763, %v8613
      %v8828 = vmul.f32 %v8764, %v8615
      %v8829 = vmul.f32 %v8765, %v8617
      %v8830 = vmul.f32 %v8766, %v8619
      %v8831 = vmul.f32 %v8767, %v8623
      %v8832 = vmul.f32 %v8768, %v8625
      %v8833 = vmul.f32 %v8769, %v8627
      %v8834 = vmul.f32 %v8770, %v8629
      %v8835 = vmul.f32 %v8771, %v8633
      %v8836 = vmul.f32 %v8772, %v8635
      %v8837 = vmul.f32 %v8773, %v8637
      %v8838 = vmul.f32 %v8774, %v8639
      %v8839 = vmul.f32 %v8775, %v8643
      %v8840 = vmul.f32 %v8776, %v8645
      %v8841 = vmul.f32 %v8777, %v8647
      %v8842 = vmul.f32 %v8778, %v8649
      %v8843 = vmul.f32 %v8779, %v8493
      %v8844 = vmul.f32 %v8780, %v8495
      %v8845 = vmul.f32 %v8781, %v8497
      %v8846 = vmul.f32 %v8782, %v8499
      %v8847 = vmul.f32 %v8783, %v8503
      %v8848 = vmul.f32 %v8784, %v8505
      %v8849 = vmul.f32 %v8785, %v8507
      %v8850 = vmul.f32 %v8786, %v8509
      %v8851 = vmul.f32 %v8787, %v8513
      %v8852 = vmul.f32 %v8788, %v8515
      %v8853 = vmul.f32 %v8789, %v8517
      %v8854 = vmul.f32 %v8790, %v8519
      %v8855 = vmul.f32 %v8791, %v8523
      %v8856 = vmul.f32 %v8792, %v8525
      %v8857 = vmul.f32 %v8793, %v8527
      %v8858 = vmul.f32 %v8794, %v8529
      %v8859 = vmul.f32 %v8795, %v8533
      %v8860 = vmul.f32 %v8796, %v8535
      %v8861 = vmul.f32 %v8797, %v8537
      %v8862 = vmul.f32 %v8798, %v8539
      %v8863 = vmul.f32 %v8799, %v8543
      %v8864 = vmul.f32 %v8800, %v8545
      %v8865 = vmul.f32 %v8801, %v8547
      %v8866 = vmul.f32 %v8802, %v8549
      %v8867 = vmul.f32 %v8803, %v8553
      %v8868 = vmul.f32 %v8804, %v8555
      %v8869 = vmul.f32 %v8805, %v8557
      %v8870 = vmul.f32 %v8806, %v8559
      %v8871 = vmul.f32 %v8807, %v8563
      %v8872 = vmul.f32 %v8808, %v8565
      %v8873 = vmul.f32 %v8809, %v8567
      %v8874 = vmul.f32 %v8810, %v8569
      %v8875 = vmul.f32 %v8811, %v8573
      %v8876 = vmul.f32 %v8812, %v8575
      %v8877 = vmul.f32 %v8813, %v8577
      %v8878 = vmul.f32 %v8814, %v8579
      %v8879 = vmul.f32 %v8815, %v8583
      %v8880 = vmul.f32 %v8816, %v8585
      %v8881 = vmul.f32 %v8817, %v8587
      %v8882 = vmul.f32 %v8818, %v8589
      %v8883 = vmul.f32 %v8819, %v8593
      %v8884 = vmul.f32 %v8820, %v8595
      %v8885 = vmul.f32 %v8821, %v8597
      %v8886 = vmul.f32 %v8822, %v8599
      %v8887 = vmul.f32 %v8823, %v8603
      %v8888 = vmul.f32 %v8824, %v8605
      %v8889 = vmul.f32 %v8825, %v8607
      %v8890 = vmul.f32 %v8826, %v8609
      %v8891 = vmul.f32 %v8827, %v8613
      %v8892 = vmul.f32 %v8828, %v8615
      %v8893 = vmul.f32 %v8829, %v8617
      %v8894 = vmul.f32 %v8830, %v8619
      %v8895 = vmul.f32 %v8831, %v8623
      %v8896 = vmul.f32 %v8832, %v8625
      %v8897 = vmul.f32 %v8833, %v8627
      %v8898 = vmul.f32 %v8834, %v8629
      %v8899 = vmul.f32 %v8835, %v8633
      %v8900 = vmul.f32 %v8836, %v8635
      %v8901 = vmul.f32 %v8837, %v8637
      %v8902 = vmul.f32 %v8838, %v8639
      %v8903 = vmul.f32 %v8839, %v8643
      %v8904 = vmul.f32 %v8840, %v8645
      %v8905 = vmul.f32 %v8841, %v8647
      %v8906 = vmul.f32 %v8842, %v8649
      %v8907 = vadd.f32 %v8493, %v8843
      %v8908 = vadd.f32 %v8495, %v8844
      %v8909 = vadd.f32 %v8497, %v8845
      %v8910 = vadd.f32 %v8499, %v8846
      %v8911 = vadd.f32 %v8503, %v8847
      %v8912 = vadd.f32 %v8505, %v8848
      %v8913 = vadd.f32 %v8507, %v8849
      %v8914 = vadd.f32 %v8509, %v8850
      %v8915 = vadd.f32 %v8513, %v8851
      %v8916 = vadd.f32 %v8515, %v8852
      %v8917 = vadd.f32 %v8517, %v8853
      %v8918 = vadd.f32 %v8519, %v8854
      %v8919 = vadd.f32 %v8523, %v8855
      %v8920 = vadd.f32 %v8525, %v8856
      %v8921 = vadd.f32 %v8527, %v8857
      %v8922 = vadd.f32 %v8529, %v8858
      %v8923 = vadd.f32 %v8533, %v8859
      %v8924 = vadd.f32 %v8535, %v8860
      %v8925 = vadd.f32 %v8537, %v8861
      %v8926 = vadd.f32 %v8539, %v8862
      %v8927 = vadd.f32 %v8543, %v8863
      %v8928 = vadd.f32 %v8545, %v8864
      %v8929 = vadd.f32 %v8547, %v8865
      %v8930 = vadd.f32 %v8549, %v8866
      %v8931 = vadd.f32 %v8553, %v8867
      %v8932 = vadd.f32 %v8555, %v8868
      %v8933 = vadd.f32 %v8557, %v8869
      %v8934 = vadd.f32 %v8559, %v8870
      %v8935 = vadd.f32 %v8563, %v8871
      %v8936 = vadd.f32 %v8565, %v8872
      %v8937 = vadd.f32 %v8567, %v8873
      %v8938 = vadd.f32 %v8569, %v8874
      %v8939 = vadd.f32 %v8573, %v8875
      %v8940 = vadd.f32 %v8575, %v8876
      %v8941 = vadd.f32 %v8577, %v8877
      %v8942 = vadd.f32 %v8579, %v8878
      %v8943 = vadd.f32 %v8583, %v8879
      %v8944 = vadd.f32 %v8585, %v8880
      %v8945 = vadd.f32 %v8587, %v8881
      %v8946 = vadd.f32 %v8589, %v8882
      %v8947 = vadd.f32 %v8593, %v8883
      %v8948 = vadd.f32 %v8595, %v8884
      %v8949 = vadd.f32 %v8597, %v8885
      %v8950 = vadd.f32 %v8599, %v8886
      %v8951 = vadd.f32 %v8603, %v8887
      %v8952 = vadd.f32 %v8605, %v8888
      %v8953 = vadd.f32 %v8607, %v8889
      %v8954 = vadd.f32 %v8609, %v8890
      %v8955 = vadd.f32 %v8613, %v8891
      %v8956 = vadd.f32 %v8615, %v8892
      %v8957 = vadd.f32 %v8617, %v8893
      %v8958 = vadd.f32 %v8619, %v8894
      %v8959 = vadd.f32 %v8623, %v8895
      %v8960 = vadd.f32 %v8625, %v8896
      %v8961 = vadd.f32 %v8627, %v8897
      %v8962 = vadd.f32 %v8629, %v8898
      %v8963 = vadd.f32 %v8633, %v8899
      %v8964 = vadd.f32 %v8635, %v8900
      %v8965 = vadd.f32 %v8637, %v8901
      %v8966 = vadd.f32 %v8639, %v8902
      %v8967 = vadd.f32 %v8643, %v8903
      %v8968 = vadd.f32 %v8645, %v8904
      %v8969 = vadd.f32 %v8647, %v8905
      %v8970 = vadd.f32 %v8649, %v8906
      %v8971 = vmul.f32 %v8907, 0.7978846
      %v8972 = vmul.f32 %v8908, 0.7978846
      %v8973 = vmul.f32 %v8909, 0.7978846
      %v8974 = vmul.f32 %v8910, 0.7978846
      %v8975 = vmul.f32 %v8911, 0.7978846
      %v8976 = vmul.f32 %v8912, 0.7978846
      %v8977 = vmul.f32 %v8913, 0.7978846
      %v8978 = vmul.f32 %v8914, 0.7978846
      %v8979 = vmul.f32 %v8915, 0.7978846
      %v8980 = vmul.f32 %v8916, 0.7978846
      %v8981 = vmul.f32 %v8917, 0.7978846
      %v8982 = vmul.f32 %v8918, 0.7978846
      %v8983 = vmul.f32 %v8919, 0.7978846
      %v8984 = vmul.f32 %v8920, 0.7978846
      %v8985 = vmul.f32 %v8921, 0.7978846
      %v8986 = vmul.f32 %v8922, 0.7978846
      %v8987 = vmul.f32 %v8923, 0.7978846
      %v8988 = vmul.f32 %v8924, 0.7978846
      %v8989 = vmul.f32 %v8925, 0.7978846
      %v8990 = vmul.f32 %v8926, 0.7978846
      %v8991 = vmul.f32 %v8927, 0.7978846
      %v8992 = vmul.f32 %v8928, 0.7978846
      %v8993 = vmul.f32 %v8929, 0.7978846
      %v8994 = vmul.f32 %v8930, 0.7978846
      %v8995 = vmul.f32 %v8931, 0.7978846
      %v8996 = vmul.f32 %v8932, 0.7978846
      %v8997 = vmul.f32 %v8933, 0.7978846
      %v8998 = vmul.f32 %v8934, 0.7978846
      %v8999 = vmul.f32 %v8935, 0.7978846
      %v9000 = vmul.f32 %v8936, 0.7978846
      %v9001 = vmul.f32 %v8937, 0.7978846
      %v9002 = vmul.f32 %v8938, 0.7978846
      %v9003 = vmul.f32 %v8939, 0.7978846
      %v9004 = vmul.f32 %v8940, 0.7978846
      %v9005 = vmul.f32 %v8941, 0.7978846
      %v9006 = vmul.f32 %v8942, 0.7978846
      %v9007 = vmul.f32 %v8943, 0.7978846
      %v9008 = vmul.f32 %v8944, 0.7978846
      %v9009 = vmul.f32 %v8945, 0.7978846
      %v9010 = vmul.f32 %v8946, 0.7978846
      %v9011 = vmul.f32 %v8947, 0.7978846
      %v9012 = vmul.f32 %v8948, 0.7978846
      %v9013 = vmul.f32 %v8949, 0.7978846
      %v9014 = vmul.f32 %v8950, 0.7978846
      %v9015 = vmul.f32 %v8951, 0.7978846
      %v9016 = vmul.f32 %v8952, 0.7978846
      %v9017 = vmul.f32 %v8953, 0.7978846
      %v9018 = vmul.f32 %v8954, 0.7978846
      %v9019 = vmul.f32 %v8955, 0.7978846
      %v9020 = vmul.f32 %v8956, 0.7978846
      %v9021 = vmul.f32 %v8957, 0.7978846
      %v9022 = vmul.f32 %v8958, 0.7978846
      %v9023 = vmul.f32 %v8959, 0.7978846
      %v9024 = vmul.f32 %v8960, 0.7978846
      %v9025 = vmul.f32 %v8961, 0.7978846
      %v9026 = vmul.f32 %v8962, 0.7978846
      %v9027 = vmul.f32 %v8963, 0.7978846
      %v9028 = vmul.f32 %v8964, 0.7978846
      %v9029 = vmul.f32 %v8965, 0.7978846
      %v9030 = vmul.f32 %v8966, 0.7978846
      %v9031 = vmul.f32 %v8967, 0.7978846
      %v9032 = vmul.f32 %v8968, 0.7978846
      %v9033 = vmul.f32 %v8969, 0.7978846
      %v9034 = vmul.f32 %v8970, 0.7978846
      %v9035 = vtanh.pop %v8971
      %v9036 = vtanh.pop %v8972
      %v9037 = vtanh.pop %v8973
      %v9038 = vtanh.pop %v8974
      %v9039 = vtanh.pop %v8975
      %v9040 = vtanh.pop %v8976
      %v9041 = vtanh.pop %v8977
      %v9042 = vtanh.pop %v8978
      %v9043 = vtanh.pop %v8979
      %v9044 = vtanh.pop %v8980
      %v9045 = vtanh.pop %v8981
      %v9046 = vtanh.pop %v8982
      %v9047 = vtanh.pop %v8983
      %v9048 = vtanh.pop %v8984
      %v9049 = vtanh.pop %v8985
      %v9050 = vtanh.pop %v8986
      %v9051 = vtanh.pop %v8987
      %v9052 = vtanh.pop %v8988
      %v9053 = vtanh.pop %v8989
      %v9054 = vtanh.pop %v8990
      %v9055 = vtanh.pop %v8991
      %v9056 = vtanh.pop %v8992
      %v9057 = vtanh.pop %v8993
      %v9058 = vtanh.pop %v8994
      %v9059 = vtanh.pop %v8995
      %v9060 = vtanh.pop %v8996
      %v9061 = vtanh.pop %v8997
      %v9062 = vtanh.pop %v8998
      %v9063 = vtanh.pop %v8999
      %v9064 = vtanh.pop %v9000
      %v9065 = vtanh.pop %v9001
      %v9066 = vtanh.pop %v9002
      %v9067 = vtanh.pop %v9003
      %v9068 = vtanh.pop %v9004
      %v9069 = vtanh.pop %v9005
      %v9070 = vtanh.pop %v9006
      %v9071 = vtanh.pop %v9007
      %v9072 = vtanh.pop %v9008
      %v9073 = vtanh.pop %v9009
      %v9074 = vtanh.pop %v9010
      %v9075 = vtanh.pop %v9011
      %v9076 = vtanh.pop %v9012
      %v9077 = vtanh.pop %v9013
      %v9078 = vtanh.pop %v9014
      %v9079 = vtanh.pop %v9015
      %v9080 = vtanh.pop %v9016
      %v9081 = vtanh.pop %v9017
      %v9082 = vtanh.pop %v9018
      %v9083 = vtanh.pop %v9019
      %v9084 = vtanh.pop %v9020
      %v9085 = vtanh.pop %v9021
      %v9086 = vtanh.pop %v9022
      %v9087 = vtanh.pop %v9023
      %v9088 = vtanh.pop %v9024
      %v9089 = vtanh.pop %v9025
      %v9090 = vtanh.pop %v9026
      %v9091 = vtanh.pop %v9027
      %v9092 = vtanh.pop %v9028
      %v9093 = vtanh.pop %v9029
      %v9094 = vtanh.pop %v9030
      %v9095 = vtanh.pop %v9031
      %v9096 = vtanh.pop %v9032
      %v9097 = vtanh.pop %v9033
      %v9098 = vtanh.pop %v9034
      %v9099 = vadd.f32 %v9035, 1.0
      %v9100 = vadd.f32 %v9036, 1.0
      %v9101 = vadd.f32 %v9037, 1.0
      %v9102 = vadd.f32 %v9038, 1.0
      %v9103 = vadd.f32 %v9039, 1.0
      %v9104 = vadd.f32 %v9040, 1.0
      %v9105 = vadd.f32 %v9041, 1.0
      %v9106 = vadd.f32 %v9042, 1.0
      %v9107 = vadd.f32 %v9043, 1.0
      %v9108 = vadd.f32 %v9044, 1.0
      %v9109 = vadd.f32 %v9045, 1.0
      %v9110 = vadd.f32 %v9046, 1.0
      %v9111 = vadd.f32 %v9047, 1.0
      %v9112 = vadd.f32 %v9048, 1.0
      %v9113 = vadd.f32 %v9049, 1.0
      %v9114 = vadd.f32 %v9050, 1.0
      %v9115 = vadd.f32 %v9051, 1.0
      %v9116 = vadd.f32 %v9052, 1.0
      %v9117 = vadd.f32 %v9053, 1.0
      %v9118 = vadd.f32 %v9054, 1.0
      %v9119 = vadd.f32 %v9055, 1.0
      %v9120 = vadd.f32 %v9056, 1.0
      %v9121 = vadd.f32 %v9057, 1.0
      %v9122 = vadd.f32 %v9058, 1.0
      %v9123 = vadd.f32 %v9059, 1.0
      %v9124 = vadd.f32 %v9060, 1.0
      %v9125 = vadd.f32 %v9061, 1.0
      %v9126 = vadd.f32 %v9062, 1.0
      %v9127 = vadd.f32 %v9063, 1.0
      %v9128 = vadd.f32 %v9064, 1.0
      %v9129 = vadd.f32 %v9065, 1.0
      %v9130 = vadd.f32 %v9066, 1.0
      %v9131 = vadd.f32 %v9067, 1.0
      %v9132 = vadd.f32 %v9068, 1.0
      %v9133 = vadd.f32 %v9069, 1.0
      %v9134 = vadd.f32 %v9070, 1.0
      %v9135 = vadd.f32 %v9071, 1.0
      %v9136 = vadd.f32 %v9072, 1.0
      %v9137 = vadd.f32 %v9073, 1.0
      %v9138 = vadd.f32 %v9074, 1.0
      %v9139 = vadd.f32 %v9075, 1.0
      %v9140 = vadd.f32 %v9076, 1.0
      %v9141 = vadd.f32 %v9077, 1.0
      %v9142 = vadd.f32 %v9078, 1.0
      %v9143 = vadd.f32 %v9079, 1.0
      %v9144 = vadd.f32 %v9080, 1.0
      %v9145 = vadd.f32 %v9081, 1.0
      %v9146 = vadd.f32 %v9082, 1.0
      %v9147 = vadd.f32 %v9083, 1.0
      %v9148 = vadd.f32 %v9084, 1.0
      %v9149 = vadd.f32 %v9085, 1.0
      %v9150 = vadd.f32 %v9086, 1.0
      %v9151 = vadd.f32 %v9087, 1.0
      %v9152 = vadd.f32 %v9088, 1.0
      %v9153 = vadd.f32 %v9089, 1.0
      %v9154 = vadd.f32 %v9090, 1.0
      %v9155 = vadd.f32 %v9091, 1.0
      %v9156 = vadd.f32 %v9092, 1.0
      %v9157 = vadd.f32 %v9093, 1.0
      %v9158 = vadd.f32 %v9094, 1.0
      %v9159 = vadd.f32 %v9095, 1.0
      %v9160 = vadd.f32 %v9096, 1.0
      %v9161 = vadd.f32 %v9097, 1.0
      %v9162 = vadd.f32 %v9098, 1.0
      %v9163 = vmul.f32 %v8651, %v9099
      %v9164 = vmul.f32 %v8652, %v9100
      %v9165 = vmul.f32 %v8653, %v9101
      %v9166 = vmul.f32 %v8654, %v9102
      %v9167 = vmul.f32 %v8655, %v9103
      %v9168 = vmul.f32 %v8656, %v9104
      %v9169 = vmul.f32 %v8657, %v9105
      %v9170 = vmul.f32 %v8658, %v9106
      %v9171 = vmul.f32 %v8659, %v9107
      %v9172 = vmul.f32 %v8660, %v9108
      %v9173 = vmul.f32 %v8661, %v9109
      %v9174 = vmul.f32 %v8662, %v9110
      %v9175 = vmul.f32 %v8663, %v9111
      %v9176 = vmul.f32 %v8664, %v9112
      %v9177 = vmul.f32 %v8665, %v9113
      %v9178 = vmul.f32 %v8666, %v9114
      %v9179 = vmul.f32 %v8667, %v9115
      %v9180 = vmul.f32 %v8668, %v9116
      %v9181 = vmul.f32 %v8669, %v9117
      %v9182 = vmul.f32 %v8670, %v9118
      %v9183 = vmul.f32 %v8671, %v9119
      %v9184 = vmul.f32 %v8672, %v9120
      %v9185 = vmul.f32 %v8673, %v9121
      %v9186 = vmul.f32 %v8674, %v9122
      %v9187 = vmul.f32 %v8675, %v9123
      %v9188 = vmul.f32 %v8676, %v9124
      %v9189 = vmul.f32 %v8677, %v9125
      %v9190 = vmul.f32 %v8678, %v9126
      %v9191 = vmul.f32 %v8679, %v9127
      %v9192 = vmul.f32 %v8680, %v9128
      %v9193 = vmul.f32 %v8681, %v9129
      %v9194 = vmul.f32 %v8682, %v9130
      %v9195 = vmul.f32 %v8683, %v9131
      %v9196 = vmul.f32 %v8684, %v9132
      %v9197 = vmul.f32 %v8685, %v9133
      %v9198 = vmul.f32 %v8686, %v9134
      %v9199 = vmul.f32 %v8687, %v9135
      %v9200 = vmul.f32 %v8688, %v9136
      %v9201 = vmul.f32 %v8689, %v9137
      %v9202 = vmul.f32 %v8690, %v9138
      %v9203 = vmul.f32 %v8691, %v9139
      %v9204 = vmul.f32 %v8692, %v9140
      %v9205 = vmul.f32 %v8693, %v9141
      %v9206 = vmul.f32 %v8694, %v9142
      %v9207 = vmul.f32 %v8695, %v9143
      %v9208 = vmul.f32 %v8696, %v9144
      %v9209 = vmul.f32 %v8697, %v9145
      %v9210 = vmul.f32 %v8698, %v9146
      %v9211 = vmul.f32 %v8699, %v9147
      %v9212 = vmul.f32 %v8700, %v9148
      %v9213 = vmul.f32 %v8701, %v9149
      %v9214 = vmul.f32 %v8702, %v9150
      %v9215 = vmul.f32 %v8703, %v9151
      %v9216 = vmul.f32 %v8704, %v9152
      %v9217 = vmul.f32 %v8705, %v9153
      %v9218 = vmul.f32 %v8706, %v9154
      %v9219 = vmul.f32 %v8707, %v9155
      %v9220 = vmul.f32 %v8708, %v9156
      %v9221 = vmul.f32 %v8709, %v9157
      %v9222 = vmul.f32 %v8710, %v9158
      %v9223 = vmul.f32 %v8711, %v9159
      %v9224 = vmul.f32 %v8712, %v9160
      %v9225 = vmul.f32 %v8713, %v9161
      %v9226 = vmul.f32 %v8714, %v9162
      %v9227 = vpack.c.bf16 %v9165, %v9163
      %v9228 = vpack.c.bf16 %v9166, %v9164
      %v9229 = vpack.c.bf16 %v9169, %v9167
      %v9230 = vpack.c.bf16 %v9170, %v9168
      %v9231 = vpack.c.bf16 %v9173, %v9171
      %v9232 = vpack.c.bf16 %v9174, %v9172
      %v9233 = vpack.c.bf16 %v9177, %v9175
      %v9234 = vpack.c.bf16 %v9178, %v9176
      %v9235 = vpack.c.bf16 %v9181, %v9179
      %v9236 = vpack.c.bf16 %v9182, %v9180
      %v9237 = vpack.c.bf16 %v9185, %v9183
      %v9238 = vpack.c.bf16 %v9186, %v9184
      %v9239 = vpack.c.bf16 %v9189, %v9187
      %v9240 = vpack.c.bf16 %v9190, %v9188
      %v9241 = vpack.c.bf16 %v9193, %v9191
      %v9242 = vpack.c.bf16 %v9194, %v9192
      %v9243 = vpack.c.bf16 %v9197, %v9195
      %v9244 = vpack.c.bf16 %v9198, %v9196
      %v9245 = vpack.c.bf16 %v9201, %v9199
      %v9246 = vpack.c.bf16 %v9202, %v9200
      %v9247 = vpack.c.bf16 %v9205, %v9203
      %v9248 = vpack.c.bf16 %v9206, %v9204
      %v9249 = vpack.c.bf16 %v9209, %v9207
      %v9250 = vpack.c.bf16 %v9210, %v9208
      %v9251 = vpack.c.bf16 %v9213, %v9211
      %v9252 = vpack.c.bf16 %v9214, %v9212
      %v9253 = vpack.c.bf16 %v9217, %v9215
      %v9254 = vpack.c.bf16 %v9218, %v9216
      %v9255 = vpack.c.bf16 %v9221, %v9219
      %v9256 = vpack.c.bf16 %v9222, %v9220
      %v9257 = vpack.c.bf16 %v9225, %v9223
      %v9258 = vpack.c.bf16 %v9226, %v9224
      %v9259 = vld [vmem:[%s13] sm:$0xf]
      %v9260 = vld [vmem:[%s13 + $0x4] sm:$0xf]
      %v9261 = vld [vmem:[%s13 + $0x8] sm:$0xf]
      %v9262 = vld [vmem:[%s13 + $0xc] sm:$0xf]
      %v9263 = vld [vmem:[%s13 + $0x10] sm:$0xf]
      %v9264 = vld [vmem:[%s13 + $0x14] sm:$0xf]
      %v9265 = vld [vmem:[%s13 + $0x18] sm:$0xf]
      %v9266 = vld [vmem:[%s13 + $0x1c] sm:$0xf]
      %v9267 = vld [vmem:[%s13 + $0x20] sm:$0xf]
      %v9268 = vld [vmem:[%s13 + $0x24] sm:$0xf]
      %v9269 = vld [vmem:[%s13 + $0x28] sm:$0xf]
      %v9270 = vld [vmem:[%s13 + $0x2c] sm:$0xf]
      %v9271 = vld [vmem:[%s13 + $0x30] sm:$0xf]
      %v9272 = vld [vmem:[%s13 + $0x34] sm:$0xf]
      %v9273 = vld [vmem:[%s13 + $0x38] sm:$0xf]
      %v9274 = vld [vmem:[%s13 + $0x3c] sm:$0xf]
      %v9275 = vld [vmem:[%s13 + $0x40] sm:$0xf]
      %v9276 = vld [vmem:[%s13 + $0x44] sm:$0xf]
      %v9277 = vld [vmem:[%s13 + $0x48] sm:$0xf]
      %v9278 = vld [vmem:[%s13 + $0x4c] sm:$0xf]
      %v9279 = vld [vmem:[%s13 + $0x50] sm:$0xf]
      %v9280 = vld [vmem:[%s13 + $0x54] sm:$0xf]
      %v9281 = vld [vmem:[%s13 + $0x58] sm:$0xf]
      %v9282 = vld [vmem:[%s13 + $0x5c] sm:$0xf]
      %v9283 = vld [vmem:[%s13 + $0x60] sm:$0xf]
      %v9284 = vld [vmem:[%s13 + $0x64] sm:$0xf]
      %v9285 = vld [vmem:[%s13 + $0x68] sm:$0xf]
      %v9286 = vld [vmem:[%s13 + $0x6c] sm:$0xf]
      %v9287 = vld [vmem:[%s13 + $0x70] sm:$0xf]
      %v9288 = vld [vmem:[%s13 + $0x74] sm:$0xf]
      %v9289 = vld [vmem:[%s13 + $0x78] sm:$0xf]
      %v9290 = vld [vmem:[%s13 + $0x7c] sm:$0xf]
      %v9291 = vld [vmem:[%s14] sm:$0x1]
      %v9293 = vlaneseq
      %v9294 = vshrl.u32 %v9293, 7
      %v9295 = vsub.s32 0, %v9294
      %v9296 = vrot.slane %v9291, %v9295
      %v9330 = vunpack.c.l.b16 %v9259
      %v9331 = vunpack.c.l.b16 %v9260
      %v9332 = vunpack.c.l.b16 %v9261
      %v9333 = vunpack.c.l.b16 %v9262
      %v9334 = vunpack.c.l.b16 %v9263
      %v9335 = vunpack.c.l.b16 %v9264
      %v9336 = vunpack.c.l.b16 %v9265
      %v9337 = vunpack.c.l.b16 %v9266
      %v9338 = vunpack.c.l.b16 %v9267
      %v9339 = vunpack.c.l.b16 %v9268
      %v9340 = vunpack.c.l.b16 %v9269
      %v9341 = vunpack.c.l.b16 %v9270
      %v9342 = vunpack.c.l.b16 %v9271
      %v9343 = vunpack.c.l.b16 %v9272
      %v9344 = vunpack.c.l.b16 %v9273
      %v9345 = vunpack.c.l.b16 %v9274
      %v9346 = vunpack.c.l.b16 %v9275
      %v9347 = vunpack.c.l.b16 %v9276
      %v9348 = vunpack.c.l.b16 %v9277
      %v9349 = vunpack.c.l.b16 %v9278
      %v9350 = vunpack.c.l.b16 %v9279
      %v9351 = vunpack.c.l.b16 %v9280
      %v9352 = vunpack.c.l.b16 %v9281
      %v9353 = vunpack.c.l.b16 %v9282
      %v9354 = vunpack.c.l.b16 %v9283
      %v9355 = vunpack.c.l.b16 %v9284
      %v9356 = vunpack.c.l.b16 %v9285
      %v9357 = vunpack.c.l.b16 %v9286
      %v9358 = vunpack.c.l.b16 %v9287
      %v9359 = vunpack.c.l.b16 %v9288
      %v9360 = vunpack.c.l.b16 %v9289
      %v9361 = vunpack.c.l.b16 %v9290
      %v9362 = vpack.c.b16 %v9331, %v9330
      %v9363 = vpack.c.b16 %v9333, %v9332
      %v9364 = vpack.c.b16 %v9335, %v9334
      %v9365 = vpack.c.b16 %v9337, %v9336
      %v9366 = vpack.c.b16 %v9339, %v9338
      %v9367 = vpack.c.b16 %v9341, %v9340
      %v9368 = vpack.c.b16 %v9343, %v9342
      %v9369 = vpack.c.b16 %v9345, %v9344
      %v9370 = vpack.c.b16 %v9347, %v9346
      %v9371 = vpack.c.b16 %v9349, %v9348
      %v9372 = vpack.c.b16 %v9351, %v9350
      %v9373 = vpack.c.b16 %v9353, %v9352
      %v9374 = vpack.c.b16 %v9355, %v9354
      %v9375 = vpack.c.b16 %v9357, %v9356
      %v9376 = vpack.c.b16 %v9359, %v9358
      %v9377 = vpack.c.b16 %v9361, %v9360
      %9394 = vmatprep.subr.bf16.mxu0 0
      %9395 = vmatpush1.bf16.msra.mxu0 %v9369
      %9396 = vmatprep.subr.bf16.mxu0 0
      %9397 = vmatpush1.bf16.msra.mxu0 %v9368
      %9398 = vmatprep.subr.bf16.mxu0 0
      %9399 = vmatpush1.bf16.msra.mxu0 %v9367
      %9400 = vmatprep.subr.bf16.mxu0 0
      %9401 = vmatpush1.bf16.msra.mxu0 %v9366
      %9402 = vmatprep.subr.bf16.mxu0 0
      %9403 = vmatpush1.bf16.msra.mxu0 %v9365
      %9404 = vmatprep.subr.bf16.mxu0 0
      %9405 = vmatpush1.bf16.msra.mxu0 %v9364
      %9406 = vmatprep.subr.bf16.mxu0 0
      %9407 = vmatpush1.bf16.msra.mxu0 %v9363
      %9408 = vmatprep.subr.bf16.mxu0 0
      %9409 = vmatpush1.bf16.msra.mxu0 %v9362
      %9410 = vmatprep.subr.bf16.mxu0 0
      %9411 = vmatpush2.bf16.msra.mxu0 %v9377
      %9412 = vmatprep.subr.bf16.mxu0 0
      %9413 = vmatpush2.bf16.msra.mxu0 %v9376
      %9414 = vmatprep.subr.bf16.mxu0 0
      %9415 = vmatpush2.bf16.msra.mxu0 %v9375
      %9416 = vmatprep.subr.bf16.mxu0 0
      %9417 = vmatpush2.bf16.msra.mxu0 %v9374
      %9418 = vmatprep.subr.bf16.mxu0 0
      %9419 = vmatpush2.bf16.msra.mxu0 %v9373
      %9420 = vmatprep.subr.bf16.mxu0 0
      %9421 = vmatpush2.bf16.msra.mxu0 %v9372
      %9422 = vmatprep.subr.bf16.mxu0 0
      %9423 = vmatpush2.bf16.msra.mxu0 %v9371
      %9424 = vmatprep.subr.bf16.mxu0 0
      %9425 = vmatpush2.bf16.msra.mxu0 %v9370
      %9426 = vmatprep.mubr.bf16.mxu0 %v9228
      %9427 = vmatmul.mubr.bf16.gmra.mxu0 %v9227
      %v9428 = vpop.f32.mrf.mxu0
      %v9429 = vadd.f32 %v9296, %v9428
      %v9430 = vpop.f32.mrf.mxu0
      %v9431 = vpop.f32.mrf.mxu0
      %v9432 = vadd.f32 %v9296, %v9431
      %v9433 = vpop.f32.mrf.mxu0
      %9434 = vmatprep.mubr.bf16.mxu0 %v9230
      %9435 = vmatmul.mubr.bf16.gmra.mxu0 %v9229
      %v9436 = vpop.f32.mrf.mxu0
      %v9437 = vadd.f32 %v9296, %v9436
      %v9438 = vpop.f32.mrf.mxu0
      %v9439 = vpop.f32.mrf.mxu0
      %v9440 = vadd.f32 %v9296, %v9439
      %v9441 = vpop.f32.mrf.mxu0
      %9442 = vmatprep.mubr.bf16.mxu0 %v9232
      %9443 = vmatmul.mubr.bf16.gmra.mxu0 %v9231
      %v9444 = vpop.f32.mrf.mxu0
      %v9445 = vadd.f32 %v9296, %v9444
      %v9446 = vpop.f32.mrf.mxu0
      %v9447 = vpop.f32.mrf.mxu0
      %v9448 = vadd.f32 %v9296, %v9447
      %v9449 = vpop.f32.mrf.mxu0
      %9450 = vmatprep.mubr.bf16.mxu0 %v9234
      %9451 = vmatmul.mubr.bf16.gmra.mxu0 %v9233
      %v9452 = vpop.f32.mrf.mxu0
      %v9453 = vadd.f32 %v9296, %v9452
      %v9454 = vpop.f32.mrf.mxu0
      %v9455 = vpop.f32.mrf.mxu0
      %v9456 = vadd.f32 %v9296, %v9455
      %v9457 = vpop.f32.mrf.mxu0
      %9458 = vmatprep.mubr.bf16.mxu0 %v9236
      %9459 = vmatmul.mubr.bf16.gmra.mxu0 %v9235
      %v9460 = vpop.f32.mrf.mxu0
      %v9461 = vadd.f32 %v9296, %v9460
      %v9462 = vpop.f32.mrf.mxu0
      %v9463 = vpop.f32.mrf.mxu0
      %v9464 = vadd.f32 %v9296, %v9463
      %v9465 = vpop.f32.mrf.mxu0
      %9466 = vmatprep.mubr.bf16.mxu0 %v9238
      %9467 = vmatmul.mubr.bf16.gmra.mxu0 %v9237
      %v9468 = vpop.f32.mrf.mxu0
      %v9469 = vadd.f32 %v9296, %v9468
      %v9470 = vpop.f32.mrf.mxu0
      %v9471 = vpop.f32.mrf.mxu0
      %v9472 = vadd.f32 %v9296, %v9471
      %v9473 = vpop.f32.mrf.mxu0
      %9474 = vmatprep.mubr.bf16.mxu0 %v9240
      %9475 = vmatmul.mubr.bf16.gmra.mxu0 %v9239
      %v9476 = vpop.f32.mrf.mxu0
      %v9477 = vadd.f32 %v9296, %v9476
      %v9478 = vpop.f32.mrf.mxu0
      %v9479 = vpop.f32.mrf.mxu0
      %v9480 = vadd.f32 %v9296, %v9479
      %v9481 = vpop.f32.mrf.mxu0
      %9482 = vmatprep.mubr.bf16.mxu0 %v9242
      %9483 = vmatmul.mubr.bf16.gmra.mxu0 %v9241
      %v9484 = vpop.f32.mrf.mxu0
      %v9485 = vadd.f32 %v9296, %v9484
      %v9486 = vpop.f32.mrf.mxu0
      %v9487 = vpop.f32.mrf.mxu0
      %v9488 = vadd.f32 %v9296, %v9487
      %v9489 = vpop.f32.mrf.mxu0
      %9490 = vmatprep.mubr.bf16.mxu0 %v9244
      %9491 = vmatmul.mubr.bf16.gmra.mxu0 %v9243
      %v9492 = vpop.f32.mrf.mxu0
      %v9493 = vadd.f32 %v9296, %v9492
      %v9494 = vpop.f32.mrf.mxu0
      %v9495 = vpop.f32.mrf.mxu0
      %v9496 = vadd.f32 %v9296, %v9495
      %v9497 = vpop.f32.mrf.mxu0
      %9498 = vmatprep.mubr.bf16.mxu0 %v9246
      %9499 = vmatmul.mubr.bf16.gmra.mxu0 %v9245
      %v9500 = vpop.f32.mrf.mxu0
      %v9501 = vadd.f32 %v9296, %v9500
      %v9502 = vpop.f32.mrf.mxu0
      %v9503 = vpop.f32.mrf.mxu0
      %v9504 = vadd.f32 %v9296, %v9503
      %v9505 = vpop.f32.mrf.mxu0
      %9506 = vmatprep.mubr.bf16.mxu0 %v9248
      %9507 = vmatmul.mubr.bf16.gmra.mxu0 %v9247
      %v9508 = vpop.f32.mrf.mxu0
      %v9509 = vadd.f32 %v9296, %v9508
      %v9510 = vpop.f32.mrf.mxu0
      %v9511 = vpop.f32.mrf.mxu0
      %v9512 = vadd.f32 %v9296, %v9511
      %v9513 = vpop.f32.mrf.mxu0
      %9514 = vmatprep.mubr.bf16.mxu0 %v9250
      %9515 = vmatmul.mubr.bf16.gmra.mxu0 %v9249
      %v9516 = vpop.f32.mrf.mxu0
      %v9517 = vadd.f32 %v9296, %v9516
      %v9518 = vpop.f32.mrf.mxu0
      %v9519 = vpop.f32.mrf.mxu0
      %v9520 = vadd.f32 %v9296, %v9519
      %v9521 = vpop.f32.mrf.mxu0
      %9522 = vmatprep.mubr.bf16.mxu0 %v9252
      %9523 = vmatmul.mubr.bf16.gmra.mxu0 %v9251
      %v9524 = vpop.f32.mrf.mxu0
      %v9525 = vadd.f32 %v9296, %v9524
      %v9526 = vpop.f32.mrf.mxu0
      %v9527 = vpop.f32.mrf.mxu0
      %v9528 = vadd.f32 %v9296, %v9527
      %v9529 = vpop.f32.mrf.mxu0
      %9530 = vmatprep.mubr.bf16.mxu0 %v9254
      %9531 = vmatmul.mubr.bf16.gmra.mxu0 %v9253
      %v9532 = vpop.f32.mrf.mxu0
      %v9533 = vadd.f32 %v9296, %v9532
      %v9534 = vpop.f32.mrf.mxu0
      %v9535 = vpop.f32.mrf.mxu0
      %v9536 = vadd.f32 %v9296, %v9535
      %v9537 = vpop.f32.mrf.mxu0
      %9538 = vmatprep.mubr.bf16.mxu0 %v9256
      %9539 = vmatmul.mubr.bf16.gmra.mxu0 %v9255
      %v9540 = vpop.f32.mrf.mxu0
      %v9541 = vadd.f32 %v9296, %v9540
      %v9542 = vpop.f32.mrf.mxu0
      %v9543 = vpop.f32.mrf.mxu0
      %v9544 = vadd.f32 %v9296, %v9543
      %v9545 = vpop.f32.mrf.mxu0
      %9546 = vmatprep.mubr.bf16.mxu0 %v9258
      %9547 = vmatmul.mubr.bf16.gmra.mxu0 %v9257
      %v9548 = vpop.f32.mrf.mxu0
      %v9549 = vadd.f32 %v9296, %v9548
      %v9550 = vpop.f32.mrf.mxu0
      %v9551 = vpop.f32.mrf.mxu0
      %v9552 = vadd.f32 %v9296, %v9551
      %v9553 = vpop.f32.mrf.mxu0
      %9554 = vdwg.mxu0
      %v9555 = vsub.f32 0.0, %v9429
      %v9556 = vsub.f32 0.0, %v9432
      %v9557 = vsub.f32 0.0, %v9437
      %v9558 = vsub.f32 0.0, %v9440
      %v9559 = vsub.f32 0.0, %v9445
      %v9560 = vsub.f32 0.0, %v9448
      %v9561 = vsub.f32 0.0, %v9453
      %v9562 = vsub.f32 0.0, %v9456
      %v9563 = vsub.f32 0.0, %v9461
      %v9564 = vsub.f32 0.0, %v9464
      %v9565 = vsub.f32 0.0, %v9469
      %v9566 = vsub.f32 0.0, %v9472
      %v9567 = vsub.f32 0.0, %v9477
      %v9568 = vsub.f32 0.0, %v9480
      %v9569 = vsub.f32 0.0, %v9485
      %v9570 = vsub.f32 0.0, %v9488
      %v9571 = vsub.f32 0.0, %v9493
      %v9572 = vsub.f32 0.0, %v9496
      %v9573 = vsub.f32 0.0, %v9501
      %v9574 = vsub.f32 0.0, %v9504
      %v9575 = vsub.f32 0.0, %v9509
      %v9576 = vsub.f32 0.0, %v9512
      %v9577 = vsub.f32 0.0, %v9517
      %v9578 = vsub.f32 0.0, %v9520
      %v9579 = vsub.f32 0.0, %v9525
      %v9580 = vsub.f32 0.0, %v9528
      %v9581 = vsub.f32 0.0, %v9533
      %v9582 = vsub.f32 0.0, %v9536
      %v9583 = vsub.f32 0.0, %v9541
      %v9584 = vsub.f32 0.0, %v9544
      %v9585 = vsub.f32 0.0, %v9549
      %v9586 = vsub.f32 0.0, %v9552
      %v9587 = vmul.f32 %v9555, 1.442695
      %v9588 = vpow.pop %v9587
      %v9589 = vmul.f32 %v9556, 1.442695
      %v9590 = vpow.pop %v9589
      %v9591 = vmul.f32 %v9557, 1.442695
      %v9592 = vpow.pop %v9591
      %v9593 = vmul.f32 %v9558, 1.442695
      %v9594 = vpow.pop %v9593
      %v9595 = vmul.f32 %v9559, 1.442695
      %v9596 = vpow.pop %v9595
      %v9597 = vmul.f32 %v9560, 1.442695
      %v9598 = vpow.pop %v9597
      %v9599 = vmul.f32 %v9561, 1.442695
      %v9600 = vpow.pop %v9599
      %v9601 = vmul.f32 %v9562, 1.442695
      %v9602 = vpow.pop %v9601
      %v9603 = vmul.f32 %v9563, 1.442695
      %v9604 = vpow.pop %v9603
      %v9605 = vmul.f32 %v9564, 1.442695
      %v9606 = vpow.pop %v9605
      %v9607 = vmul.f32 %v9565, 1.442695
      %v9608 = vpow.pop %v9607
      %v9609 = vmul.f32 %v9566, 1.442695
      %v9610 = vpow.pop %v9609
      %v9611 = vmul.f32 %v9567, 1.442695
      %v9612 = vpow.pop %v9611
      %v9613 = vmul.f32 %v9568, 1.442695
      %v9614 = vpow.pop %v9613
      %v9615 = vmul.f32 %v9569, 1.442695
      %v9616 = vpow.pop %v9615
      %v9617 = vmul.f32 %v9570, 1.442695
      %v9618 = vpow.pop %v9617
      %v9619 = vmul.f32 %v9571, 1.442695
      %v9620 = vpow.pop %v9619
      %v9621 = vmul.f32 %v9572, 1.442695
      %v9622 = vpow.pop %v9621
      %v9623 = vmul.f32 %v9573, 1.442695
      %v9624 = vpow.pop %v9623
      %v9625 = vmul.f32 %v9574, 1.442695
      %v9626 = vpow.pop %v9625
      %v9627 = vmul.f32 %v9575, 1.442695
      %v9628 = vpow.pop %v9627
      %v9629 = vmul.f32 %v9576, 1.442695
      %v9630 = vpow.pop %v9629
      %v9631 = vmul.f32 %v9577, 1.442695
      %v9632 = vpow.pop %v9631
      %v9633 = vmul.f32 %v9578, 1.442695
      %v9634 = vpow.pop %v9633
      %v9635 = vmul.f32 %v9579, 1.442695
      %v9636 = vpow.pop %v9635
      %v9637 = vmul.f32 %v9580, 1.442695
      %v9638 = vpow.pop %v9637
      %v9639 = vmul.f32 %v9581, 1.442695
      %v9640 = vpow.pop %v9639
      %v9641 = vmul.f32 %v9582, 1.442695
      %v9642 = vpow.pop %v9641
      %v9643 = vmul.f32 %v9583, 1.442695
      %v9644 = vpow.pop %v9643
      %v9645 = vmul.f32 %v9584, 1.442695
      %v9646 = vpow.pop %v9645
      %v9647 = vmul.f32 %v9585, 1.442695
      %v9648 = vpow.pop %v9647
      %v9649 = vmul.f32 %v9586, 1.442695
      %v9650 = vpow.pop %v9649
      %v9651 = vadd.f32 %v9588, 1.0
      %v9652 = vadd.f32 %v9590, 1.0
      %v9653 = vadd.f32 %v9592, 1.0
      %v9654 = vadd.f32 %v9594, 1.0
      %v9655 = vadd.f32 %v9596, 1.0
      %v9656 = vadd.f32 %v9598, 1.0
      %v9657 = vadd.f32 %v9600, 1.0
      %v9658 = vadd.f32 %v9602, 1.0
      %v9659 = vadd.f32 %v9604, 1.0
      %v9660 = vadd.f32 %v9606, 1.0
      %v9661 = vadd.f32 %v9608, 1.0
      %v9662 = vadd.f32 %v9610, 1.0
      %v9663 = vadd.f32 %v9612, 1.0
      %v9664 = vadd.f32 %v9614, 1.0
      %v9665 = vadd.f32 %v9616, 1.0
      %v9666 = vadd.f32 %v9618, 1.0
      %v9667 = vadd.f32 %v9620, 1.0
      %v9668 = vadd.f32 %v9622, 1.0
      %v9669 = vadd.f32 %v9624, 1.0
      %v9670 = vadd.f32 %v9626, 1.0
      %v9671 = vadd.f32 %v9628, 1.0
      %v9672 = vadd.f32 %v9630, 1.0
      %v9673 = vadd.f32 %v9632, 1.0
      %v9674 = vadd.f32 %v9634, 1.0
      %v9675 = vadd.f32 %v9636, 1.0
      %v9676 = vadd.f32 %v9638, 1.0
      %v9677 = vadd.f32 %v9640, 1.0
      %v9678 = vadd.f32 %v9642, 1.0
      %v9679 = vadd.f32 %v9644, 1.0
      %v9680 = vadd.f32 %v9646, 1.0
      %v9681 = vadd.f32 %v9648, 1.0
      %v9682 = vadd.f32 %v9650, 1.0
      %v9683 = vrcp.pop %v9651
      %v9684 = vrcp.pop %v9652
      %v9685 = vrcp.pop %v9653
      %v9686 = vrcp.pop %v9654
      %v9687 = vrcp.pop %v9655
      %v9688 = vrcp.pop %v9656
      %v9689 = vrcp.pop %v9657
      %v9690 = vrcp.pop %v9658
      %v9691 = vrcp.pop %v9659
      %v9692 = vrcp.pop %v9660
      %v9693 = vrcp.pop %v9661
      %v9694 = vrcp.pop %v9662
      %v9695 = vrcp.pop %v9663
      %v9696 = vrcp.pop %v9664
      %v9697 = vrcp.pop %v9665
      %v9698 = vrcp.pop %v9666
      %v9699 = vrcp.pop %v9667
      %v9700 = vrcp.pop %v9668
      %v9701 = vrcp.pop %v9669
      %v9702 = vrcp.pop %v9670
      %v9703 = vrcp.pop %v9671
      %v9704 = vrcp.pop %v9672
      %v9705 = vrcp.pop %v9673
      %v9706 = vrcp.pop %v9674
      %v9707 = vrcp.pop %v9675
      %v9708 = vrcp.pop %v9676
      %v9709 = vrcp.pop %v9677
      %v9710 = vrcp.pop %v9678
      %v9711 = vrcp.pop %v9679
      %v9712 = vrcp.pop %v9680
      %v9713 = vrcp.pop %v9681
      %v9714 = vrcp.pop %v9682
      %v9715 = vpack.c.bf16 %v9684, %v9683
      %v9716 = vpack.c.bf16 %v9686, %v9685
      %v9717 = vpack.c.bf16 %v9688, %v9687
      %v9718 = vpack.c.bf16 %v9690, %v9689
      %v9719 = vpack.c.bf16 %v9692, %v9691
      %v9720 = vpack.c.bf16 %v9694, %v9693
      %v9721 = vpack.c.bf16 %v9696, %v9695
      %v9722 = vpack.c.bf16 %v9698, %v9697
      %v9723 = vpack.c.bf16 %v9700, %v9699
      %v9724 = vpack.c.bf16 %v9702, %v9701
      %v9725 = vpack.c.bf16 %v9704, %v9703
      %v9726 = vpack.c.bf16 %v9706, %v9705
      %v9727 = vpack.c.bf16 %v9708, %v9707
      %v9728 = vpack.c.bf16 %v9710, %v9709
      %v9729 = vpack.c.bf16 %v9712, %v9711
      %v9730 = vpack.c.bf16 %v9714, %v9713
      %v9747 = vunpack.c.l.b16 %v9715
      %v9748 = vunpack.c.h.b16 %v9715
      %v9749 = vunpack.c.l.b16 %v9716
      %v9750 = vunpack.c.h.b16 %v9716
      %v9751 = vunpack.c.l.b16 %v9717
      %v9752 = vunpack.c.h.b16 %v9717
      %v9753 = vunpack.c.l.b16 %v9718
      %v9754 = vunpack.c.h.b16 %v9718
      %v9755 = vunpack.c.l.b16 %v9719
      %v9756 = vunpack.c.h.b16 %v9719
      %v9757 = vunpack.c.l.b16 %v9720
      %v9758 = vunpack.c.h.b16 %v9720
      %v9759 = vunpack.c.l.b16 %v9721
      %v9760 = vunpack.c.h.b16 %v9721
      %v9761 = vunpack.c.l.b16 %v9722
      %v9762 = vunpack.c.h.b16 %v9722
      %v9763 = vunpack.c.l.b16 %v9723
      %v9764 = vunpack.c.h.b16 %v9723
      %v9765 = vunpack.c.l.b16 %v9724
      %v9766 = vunpack.c.h.b16 %v9724
      %v9767 = vunpack.c.l.b16 %v9725
      %v9768 = vunpack.c.h.b16 %v9725
      %v9769 = vunpack.c.l.b16 %v9726
      %v9770 = vunpack.c.h.b16 %v9726
      %v9771 = vunpack.c.l.b16 %v9727
      %v9772 = vunpack.c.h.b16 %v9727
      %v9773 = vunpack.c.l.b16 %v9728
      %v9774 = vunpack.c.h.b16 %v9728
      %v9775 = vunpack.c.l.b16 %v9729
      %v9776 = vunpack.c.h.b16 %v9729
      %v9777 = vunpack.c.l.b16 %v9730
      %v9778 = vunpack.c.h.b16 %v9730
      %v9779 = vpack.c.b16 %v9747, %v9747
      %v9780 = vpack.c.b16 %v9748, %v9748
      %v9781 = vpack.c.b16 %v9749, %v9749
      %v9782 = vpack.c.b16 %v9750, %v9750
      %v9783 = vpack.c.b16 %v9751, %v9751
      %v9784 = vpack.c.b16 %v9752, %v9752
      %v9785 = vpack.c.b16 %v9753, %v9753
      %v9786 = vpack.c.b16 %v9754, %v9754
      %v9787 = vpack.c.b16 %v9755, %v9755
      %v9788 = vpack.c.b16 %v9756, %v9756
      %v9789 = vpack.c.b16 %v9757, %v9757
      %v9790 = vpack.c.b16 %v9758, %v9758
      %v9791 = vpack.c.b16 %v9759, %v9759
      %v9792 = vpack.c.b16 %v9760, %v9760
      %v9793 = vpack.c.b16 %v9761, %v9761
      %v9794 = vpack.c.b16 %v9762, %v9762
      %v9795 = vpack.c.b16 %v9763, %v9763
      %v9796 = vpack.c.b16 %v9764, %v9764
      %v9797 = vpack.c.b16 %v9765, %v9765
      %v9798 = vpack.c.b16 %v9766, %v9766
      %v9799 = vpack.c.b16 %v9767, %v9767
      %v9800 = vpack.c.b16 %v9768, %v9768
      %v9801 = vpack.c.b16 %v9769, %v9769
      %v9802 = vpack.c.b16 %v9770, %v9770
      %v9803 = vpack.c.b16 %v9771, %v9771
      %v9804 = vpack.c.b16 %v9772, %v9772
      %v9805 = vpack.c.b16 %v9773, %v9773
      %v9806 = vpack.c.b16 %v9774, %v9774
      %v9807 = vpack.c.b16 %v9775, %v9775
      %v9808 = vpack.c.b16 %v9776, %v9776
      %v9809 = vpack.c.b16 %v9777, %v9777
      %v9810 = vpack.c.b16 %v9778, %v9778
      %9843 = vst [vmem:[%s549] sm:$0xf] %v9779
      %9844 = vst [vmem:[%s549 + $0x4] sm:$0xf] %v9780
      %9845 = vst [vmem:[%s549 + $0x8] sm:$0xf] %v9781
      %9846 = vst [vmem:[%s549 + $0xc] sm:$0xf] %v9782
      %9847 = vst [vmem:[%s549 + $0x10] sm:$0xf] %v9783
      %9848 = vst [vmem:[%s549 + $0x14] sm:$0xf] %v9784
      %9849 = vst [vmem:[%s549 + $0x18] sm:$0xf] %v9785
      %9850 = vst [vmem:[%s549 + $0x1c] sm:$0xf] %v9786
      %9851 = vst [vmem:[%s549 + $0x20] sm:$0xf] %v9787
      %9852 = vst [vmem:[%s549 + $0x24] sm:$0xf] %v9788
      %9853 = vst [vmem:[%s549 + $0x28] sm:$0xf] %v9789
      %9854 = vst [vmem:[%s549 + $0x2c] sm:$0xf] %v9790
      %9855 = vst [vmem:[%s549 + $0x30] sm:$0xf] %v9791
      %9856 = vst [vmem:[%s549 + $0x34] sm:$0xf] %v9792
      %9857 = vst [vmem:[%s549 + $0x38] sm:$0xf] %v9793
      %9858 = vst [vmem:[%s549 + $0x3c] sm:$0xf] %v9794
      %9859 = vst [vmem:[%s549 + $0x40] sm:$0xf] %v9795
      %9860 = vst [vmem:[%s549 + $0x44] sm:$0xf] %v9796
      %9861 = vst [vmem:[%s549 + $0x48] sm:$0xf] %v9797
      %9862 = vst [vmem:[%s549 + $0x4c] sm:$0xf] %v9798
      %9863 = vst [vmem:[%s549 + $0x50] sm:$0xf] %v9799
      %9864 = vst [vmem:[%s549 + $0x54] sm:$0xf] %v9800
      %9865 = vst [vmem:[%s549 + $0x58] sm:$0xf] %v9801
      %9866 = vst [vmem:[%s549 + $0x5c] sm:$0xf] %v9802
      %9867 = vst [vmem:[%s549 + $0x60] sm:$0xf] %v9803
      %9868 = vst [vmem:[%s549 + $0x64] sm:$0xf] %v9804
      %9869 = vst [vmem:[%s549 + $0x68] sm:$0xf] %v9805
      %9870 = vst [vmem:[%s549 + $0x6c] sm:$0xf] %v9806
      %9871 = vst [vmem:[%s549 + $0x70] sm:$0xf] %v9807
      %9872 = vst [vmem:[%s549 + $0x74] sm:$0xf] %v9808
      %9873 = vst [vmem:[%s549 + $0x78] sm:$0xf] %v9809
      %9874 = vst [vmem:[%s549 + $0x7c] sm:$0xf] %v9810
      %s9875 = smul.u32 32, %s31
      %p9876 = scmp.lt.s32.totalorder %s30, 1
      %s9877 = scalar_select %p9876, %s30, 1
      %p9878 = scmp.lt.s32.totalorder %s9875, 31
      %s9879 = scalar_select %p9878, %s9875, 31
      %s9880 = smul.addr %s9877, 32
      %s9881 = sadd.s32 %s9879, %s9880
      %s9882 = smul.addr %s9881, 4
      %s9883 = scalar_lea.vmem %s15, %s9882
      // Predicated region
      $region81: #{nerf_decoder_forward.1} parent=79 // pred_check
        %p9884 = pneg %p385
      $region82: #{nerf_decoder_forward.1} parent=79 // pred_check_branch
        %9886 = sbr.rel (%p9884) target = $region84
      $region83: #{nerf_decoder_forward.1} parent=79 // pred_region
        %s9887 = smul.u32 32, %s31
      $region84: #{nerf_decoder_forward.1} parent=79 // pred_fallthru
        _
    $region80: #{nerf_decoder_forward.1} parent=5 // pred_fallthru
      _
    %p9888 = scmp.le.s32.totalorder 2, %s21
    // Predicated region
    $region85: #{nerf_decoder_forward.1} parent=5 // pred_check
      %p9889 = pneg %p9888
    $region86: #{nerf_decoder_forward.1} parent=5 // pred_check_branch
      %9891 = sbr.rel (%p9889) target = $region88
    $region87: #{nerf_decoder_forward.1} parent=5 // pred_region
      %s9892 = ssub.s32 %s21, 2
      // Predicated region
      $region89: #{nerf_decoder_forward.1} parent=87 // pred_check
        %p9893 = pneg %p391
      $region90: #{nerf_decoder_forward.1} parent=87 // pred_check_branch
        %9895 = sbr.rel (%p9893) target = $region92
      $region91: #{nerf_decoder_forward.1} parent=87 // pred_region
        %s9896 = smul.u32 32, %s33
        %p9897 = scmp.lt.s32.totalorder %s32, 1
        %s9898 = scalar_select %p9897, %s32, 1
        %p9899 = scmp.lt.s32.totalorder %s9896, 31
        %s9900 = scalar_select %p9899, %s9896, 31
        %s9901 = smul.addr %s9898, 32
        %s9902 = sadd.s32 %s9900, %s9901
        %s9903 = smul.addr %s9902, 4
        %s9904 = scalar_lea.vmem %s15, %s9903
      $region92: #{nerf_decoder_forward.1} parent=87 // pred_fallthru
        _
    $region88: #{nerf_decoder_forward.1} parent=5 // pred_fallthru
      _
  $region6: #{nerf_decoder_forward.1} parent=0 // loop_footer
    %s25 = sadd.s32 1, %s21
  $region7: #{nerf_decoder_forward.1} parent=0 // loop_footer_branch
    %20 = sbr.rel target = $region3
  $region8: #{nerf_decoder_forward.1} parent=0 // loop_exit
    _

</llo_original>
